<compile_context>
chip_gen: v7x
topology: tpu7x:2x2x1
jax: 0.10.0
libtpu: 0.0.40
codegen_flags: <defaults>
</compile_context>

<pallas_src>
import functools

import jax
import jax.numpy as jnp
from jax.experimental import pallas as pl
from jax.experimental.pallas import tpu as pltpu

IN_FEATURES = 3 * 32 * 32     # 3072
HIDDEN = 2048
NUM_CLASSES = 10
N_PAD = 128                   # lane-dense padded class dimension
BN_EPS = 1e-5


# --------------------------------------------------------------------------
# Kernels
# --------------------------------------------------------------------------
def _mlp_kernel_fullk(x_ref, w1_ref, scale_ref, shift_ref, w2_ref, o_ref):
    """Full-K variant (n_k == 1): no accumulator scratch, no pl.when.

    Grid: (j,) effectively -- one step per hidden half (sharded across TCs on
    v7x via the 'parallel' axis).  Everything fused in one pass:
    x @ W1_half -> scale/shift (folded bias+BN) -> ReLU -> @ W2_half (padded).
    """
    h = jnp.dot(x_ref[...], w1_ref[...], preferred_element_type=jnp.float32)
    h = h * scale_ref[...] + shift_ref[...]
    h = jnp.maximum(h, 0.0)                       # ReLU (Dropout = identity, eval)
    out = jnp.dot(h.astype(w2_ref.dtype), w2_ref[...],
                  preferred_element_type=jnp.float32)
    o_ref[...] = out.astype(o_ref.dtype)


def _mlp_kernel_acc(x_ref, w1_ref, scale_ref, shift_ref, w2_ref, o_ref, h_acc):
    """K-tiled variant (n_k > 1) with an f32 VMEM accumulator.

    Grid: (j, k) = (hidden-split [parallel], K-reduction [arbitrary]).
    NOTE: correctness relies on k (axis 1) being the innermost/reduction axis;
    h_acc is re-zeroed at k == 0 each time j advances.
    """
    k = pl.program_id(1)

    @pl.when(k == 0)
    def _():
        h_acc[...] = jnp.zeros_like(h_acc)

    h_acc[...] += jnp.dot(x_ref[...], w1_ref[...],
                          preferred_element_type=jnp.float32)

    @pl.when(k == pl.num_programs(1) - 1)
    def _():
        h = h_acc[...] * scale_ref[...] + shift_ref[...]
        h = jnp.maximum(h, 0.0)                   # ReLU (Dropout = identity, eval)
        out = jnp.dot(h.astype(w2_ref.dtype), w2_ref[...],
                      preferred_element_type=jnp.float32)
        o_ref[...] = out.astype(o_ref.dtype)


# --------------------------------------------------------------------------
# Config / parameter preprocessing (run ONCE, outside the jitted hot path)
# --------------------------------------------------------------------------
def default_config():
    """Generation-dependent tiling: split HIDDEN across TCs only on v7x."""
    try:
        kind = jax.devices()[0].device_kind.lower()
    except Exception:
        kind = ""
    if "v7" in kind or "tpu7" in kind or "7x" in kind:
        # 2 TensorCores/chip: one full-K (3072, 1024) bf16 W1 tile per TC.
        return {"n_hidden_splits": 2, "tk": 3072}
    # Single-TC v5e / v6e: no hidden split, 2 K-steps of contiguous rows.
    return {"n_hidden_splits": 1, "tk": 1536}


def prepare_params(params, *, n_hidden_splits):
    """Fold BN, cast weights to bf16, pad/reshape -- done once at prep time."""
    assert HIDDEN % n_hidden_splits == 0
    h_half = HIDDEN // n_hidden_splits

    # Fold Linear bias + BatchNorm (eval) into per-feature scale/shift:
    #   bn(x@W1 + b1) = scale * (x@W1) + shift
    inv_std = jax.lax.rsqrt(params["bn_var"] + BN_EPS)
    scale = params["bn_gamma"] * inv_std                       # (2048,)
    shift = (params["b1"] - params["bn_mean"]) * scale + params["bn_beta"]

    # W1: bf16, hidden-half-major layout (splits, 3072, h_half) so each half's
    # DMA stream is fully contiguous (matters on v7x's per-TC halves).
    w1 = params["w1"].astype(jnp.bfloat16)                     # (3072, 2048)
    w1 = w1.reshape(IN_FEATURES, n_hidden_splits, h_half).transpose(1, 0, 2)

    # W2: pad 10 -> 128 lanes (unmasked stores / lane-dense DMA), bf16, and
    # split along hidden into (splits, h_half, 128).
    w2_pad = jnp.zeros((HIDDEN, N_PAD), jnp.float32).at[:, :NUM_CLASSES].set(
        params["w2"])
    w2_pad = w2_pad.astype(jnp.bfloat16).reshape(n_hidden_splits, h_half, N_PAD)

    prep = {
        "w1": w1,                                              # bf16 (S, 3072, h_half)
        "scale": scale.reshape(1, HIDDEN).astype(jnp.float32),  # (1, 2048)
        "shift": shift.reshape(1, HIDDEN).astype(jnp.float32),  # (1, 2048)
        "w2": w2_pad,                                          # bf16 (S, h_half, 128)
        "b2": params["b2"].astype(jnp.float32),                # (10,)
    }
    return jax.tree_util.tree_map(jax.block_until_ready, prep)


# --------------------------------------------------------------------------
# Forward pass
# --------------------------------------------------------------------------
@functools.partial(jax.jit, static_argnames=("tk", "n_hidden_splits"))
def mlp_forward(x_nchw, prep, *, tk=1536, n_hidden_splits=1):
    """Run the MLP forward pass. x_nchw: (B, 3, 32, 32) float32.

    `prep` must come from prepare_params(..., n_hidden_splits=n_hidden_splits).
    """
    B = x_nchw.shape[0]
    assert IN_FEATURES % tk == 0, f"tk={tk} must divide {IN_FEATURES}"
    assert HIDDEN % n_hidden_splits == 0
    h_half = HIDDEN // n_hidden_splits
    n_k = IN_FEATURES // tk
    assert prep["w1"].shape == (n_hidden_splits, IN_FEATURES, h_half)

    # Flatten exactly like torch.nn.Flatten (row-major over C, H, W); cast the
    # (tiny) activation to bf16 for the bandwidth-bound first matmul.
    x = x_nchw.reshape(B, IN_FEATURES).astype(jnp.bfloat16)
    w1, scale2d, shift2d, w2 = prep["w1"], prep["scale"], prep["shift"], prep["w2"]

    if n_k == 1:
        kernel = _mlp_kernel_fullk
        scratch = []
    else:
        kernel = _mlp_kernel_acc
        scratch = [pltpu.VMEM((B, h_half), jnp.float32)]

    bytes_accessed = int(
        n_hidden_splits * x.size * 2        # x re-streamed per hidden half (tiny)
        + w1.size * 2                       # bf16 W1, streamed exactly once
        + (scale2d.size + shift2d.size) * 4
        + w2.size * 2                       # bf16 padded W2
        + n_hidden_splits * B * N_PAD * 4   # partial-logit output slabs
    )
    cost = pl.CostEstimate(
        flops=2 * B * IN_FEATURES * HIDDEN + 2 * B * HIDDEN * N_PAD,
        transcendentals=0,
        bytes_accessed=bytes_accessed,
    )

    partial_logits = pl.pallas_call(
        kernel,
        out_shape=jax.ShapeDtypeStruct((n_hidden_splits, B, N_PAD), jnp.float32),
        grid_spec=pltpu.PrefetchScalarGridSpec(
            num_scalar_prefetch=0,
            grid=(n_hidden_splits, n_k),
            in_specs=[
                pl.BlockSpec((B, tk), lambda j, k: (0, k)),              # x tile
                pl.BlockSpec((None, tk, h_half), lambda j, k: (j, k, 0)),  # W1 half
                pl.BlockSpec((1, h_half), lambda j, k: (0, j)),          # scale
                pl.BlockSpec((1, h_half), lambda j, k: (0, j)),          # shift
                pl.BlockSpec((None, h_half, N_PAD), lambda j, k: (j, 0, 0)),  # W2 half
            ],
            out_specs=pl.BlockSpec((None, B, N_PAD), lambda j, k: (j, 0, 0)),
            scratch_shapes=scratch,
        ),
        compiler_params=pltpu.CompilerParams(
            # Hidden-split axis is independent (shards across TCs on v7x);
            # K-reduction axis carries the accumulator -> arbitrary, innermost.
            dimension_semantics=("parallel", "arbitrary"),
            vmem_limit_bytes=32 << 20,
        ),
        cost_estimate=cost,
    )(x, w1, scale2d, shift2d, w2)

    # Sum partial logits over hidden halves, slice off lane padding, add bias.
    logits = partial_logits.sum(axis=0)[:, :NUM_CLASSES] + prep["b2"][None, :]
    return logits


# --------------------------------------------------------------------------
# Parameter init + pure-JAX references
# --------------------------------------------------------------------------
def init_params(key):
    """Deterministic parameter init (PyTorch-like uniform fan-in bounds)."""
    k1, k2, k3, k4 = jax.random.split(key, 4)
    bound1 = 1.0 / jnp.sqrt(jnp.float32(IN_FEATURES))
    bound2 = 1.0 / jnp.sqrt(jnp.float32(HIDDEN))
    return {
        # Stored as (in, out) — transpose of torch's (out, in) layout.
        "w1": jax.random.uniform(k1, (IN_FEATURES, HIDDEN), jnp.float32,
                                 -bound1, bound1),
        "b1": jax.random.uniform(k2, (HIDDEN,), jnp.float32, -bound1, bound1),
        "bn_gamma": jnp.ones((HIDDEN,), jnp.float32),
        "bn_beta": jnp.zeros((HIDDEN,), jnp.float32),
        "bn_mean": jnp.zeros((HIDDEN,), jnp.float32),
        "bn_var": jnp.ones((HIDDEN,), jnp.float32),
        "w2": jax.random.uniform(k3, (HIDDEN, NUM_CLASSES), jnp.float32,
                                 -bound2, bound2),
        "b2": jax.random.uniform(k4, (NUM_CLASSES,), jnp.float32,
                                 -bound2, bound2),
    }


def _bn_relu_fc2(h, params, w2):
    inv_std = jax.lax.rsqrt(params["bn_var"] + BN_EPS)
    h = h + params["b1"]
    h = (h - params["bn_mean"]) * inv_std * params["bn_gamma"] + params["bn_beta"]
    h = jnp.maximum(h, 0.0)
    return h @ w2 + params["b2"]


def _reference_f32(x_nchw, params):
    """Pure-JAX full-f32 reference (loose tolerance vs bf16 kernel)."""
    x = x_nchw.reshape(x_nchw.shape[0], IN_FEATURES)
    return _bn_relu_fc2(x @ params["w1"], params, params["w2"])


def _reference_bf16(x_nchw, params):
    """Pure-JAX reference with the kernel's bf16 matmul precisions."""
    x = x_nchw.reshape(x_nchw.shape[0], IN_FEATURES).astype(jnp.bfloat16)
    w1 = params["w1"].astype(jnp.bfloat16)
    h = jnp.dot(x, w1, preferred_element_type=jnp.float32)
    w2 = params["w2"].astype(jnp.bfloat16).astype(jnp.float32)
    return _bn_relu_fc2(h, params, w2)


# --------------------------------------------------------------------------
# Main
# --------------------------------------------------------------------------
if __name__ == "__main__":
    key = jax.random.PRNGKey(0)
    kx, kp = jax.random.split(key)

    # Small batch; CIFAR-10 NCHW input shape is fixed by the module (3, 32, 32).
    B = 8
    x = jax.random.normal(kx, (B, 3, 32, 32), jnp.float32)
    params = init_params(kp)

    cfg = default_config()                     # v7x: splits=2/tk=3072; else 1/1536
    prep = prepare_params(params, n_hidden_splits=cfg["n_hidden_splits"])

    out = mlp_forward(x, prep, tk=cfg["tk"],
                      n_hidden_splits=cfg["n_hidden_splits"])
    out = jax.block_until_ready(out)
    assert out.shape == (B, NUM_CLASSES), out.shape

    ref_bf16 = _reference_bf16(x, params)
    ref_f32 = _reference_f32(x, params)
    assert jnp.allclose(out, ref_bf16, atol=3e-3, rtol=3e-3), \
        "mismatch vs bf16-matched reference"
    assert jnp.allclose(out, ref_f32, atol=5e-2, rtol=1e-2), \
        "mismatch vs f32 reference"

    print("KERNEL_OK")
</pallas_src>

<mosaic_0001>
module attributes {stable_mosaic.version = 11 : i64} {
  func.func @_mlp_kernel_acc(%arg0: i32, %arg1: i32, %arg2: memref<8x1536xbf16, #tpu.memory_space<vmem>>, %arg3: memref<1x1536x2048xbf16, #tpu.memory_space<vmem>>, %arg4: memref<1x2048xf32, #tpu.memory_space<vmem>>, %arg5: memref<1x2048xf32, #tpu.memory_space<vmem>>, %arg6: memref<1x2048x128xbf16, #tpu.memory_space<vmem>>, %arg7: memref<1x8x128xf32, #tpu.memory_space<vmem>>, %arg8: memref<8x2048xf32, #tpu.memory_space<vmem>>) attributes {dimension_semantics = [#tpu.dimension_semantics<parallel>, #tpu.dimension_semantics<arbitrary>], iteration_bounds = array<i64: 1, 2>, scalar_prefetch = 0 : i64, scratch_operands = 1 : i64, tpu.core_type = #tpu.core_type<tc>, window_params = [{transform_indices = @transform_0, window_bounds = array<i64: 8, 1536>}, {transform_indices = @transform_1, window_bounds = array<i64: 1, 1536, 2048>}, {transform_indices = @transform_2, window_bounds = array<i64: 1, 2048>}, {transform_indices = @transform_3, window_bounds = array<i64: 1, 2048>}, {transform_indices = @transform_4, window_bounds = array<i64: 1, 2048, 128>}, {transform_indices = @transform_5, window_bounds = array<i64: 1, 8, 128>}]} {
    %c0_i32 = arith.constant 0 : i32
    %0 = arith.cmpi eq, %arg1, %c0_i32 : i32
    %1 = arith.extui %0 : i1 to i32
    %c0_i32_0 = arith.constant 0 : i32
    %2 = arith.cmpi ne, %1, %c0_i32_0 : i32
    scf.if %2 {
      %cst_10 = arith.constant 0.000000e+00 : f32
      %13 = vector.broadcast %cst_10 : f32 to vector<8x2048xf32>
      %c0_11 = arith.constant 0 : index
      %c0_12 = arith.constant 0 : index
      %14 = vector.load %arg8[%c0_11, %c0_12] : memref<8x2048xf32, #tpu.memory_space<vmem>>, vector<8x2048xf32>
      tpu.vector_store %arg8[%c0_11, %c0_12], %13 {strides = array<i32>} : memref<8x2048xf32, #tpu.memory_space<vmem>>, vector<8x2048xf32>,
    } else {
    }
    %c0 = arith.constant 0 : index
    %c0_1 = arith.constant 0 : index
    %3 = vector.load %arg8[%c0, %c0_1] : memref<8x2048xf32, #tpu.memory_space<vmem>>, vector<8x2048xf32>
    %c0_2 = arith.constant 0 : index
    %c0_3 = arith.constant 0 : index
    %4 = vector.load %arg2[%c0_2, %c0_3] : memref<8x1536xbf16, #tpu.memory_space<vmem>>, vector<8x1536xbf16>
    %c0_4 = arith.constant 0 : index
    %c0_5 = arith.constant 0 : index
    %c0_6 = arith.constant 0 : index
    %5 = vector.load %arg3[%c0_4, %c0_5, %c0_6] : memref<1x1536x2048xbf16, #tpu.memory_space<vmem>>, vector<1x1536x2048xbf16>
    %6 = vector.shape_cast %5 : vector<1x1536x2048xbf16> to vector<1536x2048xbf16>
    %cst = arith.constant dense<0.000000e+00> : vector<8x2048xf32>
    %7 = tpu.matmul %4, %6, %cst {dimension_numbers = #tpu.dot_dimension_numbers<[1], [0], [0], [1], [0, 0, 1, 1], [], []>} : vector<8x1536xbf16>, vector<1536x2048xbf16>, vector<8x2048xf32> -> vector<8x2048xf32>
    %8 = arith.addf %3, %7 : vector<8x2048xf32>
    %c0_7 = arith.constant 0 : index
    %c0_8 = arith.constant 0 : index
    %9 = vector.load %arg8[%c0_7, %c0_8] : memref<8x2048xf32, #tpu.memory_space<vmem>>, vector<8x2048xf32>
    tpu.vector_store %arg8[%c0_7, %c0_8], %8 {strides = array<i32>} : memref<8x2048xf32, #tpu.memory_space<vmem>>, vector<8x2048xf32>,
    %c1_i32 = arith.constant 1 : i32
    %10 = arith.cmpi eq, %arg1, %c1_i32 : i32
    %11 = arith.extui %10 : i1 to i32
    %c0_i32_9 = arith.constant 0 : i32
    %12 = arith.cmpi ne, %11, %c0_i32_9 : i32
    scf.if %12 {
      %c0_10 = arith.constant 0 : index
      %c0_11 = arith.constant 0 : index
      %13 = vector.load %arg8[%c0_10, %c0_11] : memref<8x2048xf32, #tpu.memory_space<vmem>>, vector<8x2048xf32>
      %c0_12 = arith.constant 0 : index
      %c0_13 = arith.constant 0 : index
      %14 = vector.load %arg4[%c0_12, %c0_13] : memref<1x2048xf32, #tpu.memory_space<vmem>>, vector<1x2048xf32>
      %15 = vector.broadcast %14 : vector<1x2048xf32> to vector<8x2048xf32>
      %16 = arith.mulf %13, %15 : vector<8x2048xf32>
      %c0_14 = arith.constant 0 : index
      %c0_15 = arith.constant 0 : index
      %17 = vector.load %arg5[%c0_14, %c0_15] : memref<1x2048xf32, #tpu.memory_space<vmem>>, vector<1x2048xf32>
      %18 = vector.broadcast %17 : vector<1x2048xf32> to vector<8x2048xf32>
      %19 = arith.addf %16, %18 : vector<8x2048xf32>
      %cst_16 = arith.constant 0.000000e+00 : f32
      %20 = vector.broadcast %cst_16 : f32 to vector<8x2048xf32>
      %21 = arith.maximumf %19, %20 : vector<8x2048xf32>
      %22 = arith.truncf %21 : vector<8x2048xf32> to vector<8x2048xbf16>
      %c0_17 = arith.constant 0 : index
      %c0_18 = arith.constant 0 : index
      %c0_19 = arith.constant 0 : index
      %23 = vector.load %arg6[%c0_17, %c0_18, %c0_19] : memref<1x2048x128xbf16, #tpu.memory_space<vmem>>, vector<1x2048x128xbf16>
      %24 = vector.shape_cast %23 : vector<1x2048x128xbf16> to vector<2048x128xbf16>
      %cst_20 = arith.constant dense<0.000000e+00> : vector<8x128xf32>
      %25 = tpu.matmul %22, %24, %cst_20 {dimension_numbers = #tpu.dot_dimension_numbers<[1], [0], [0], [1], [0, 0, 1, 1], [], []>} : vector<8x2048xbf16>, vector<2048x128xbf16>, vector<8x128xf32> -> vector<8x128xf32>
      %c0_21 = arith.constant 0 : index
      %c0_22 = arith.constant 0 : index
      %c0_23 = arith.constant 0 : index
      %26 = vector.load %arg7[%c0_21, %c0_22, %c0_23] : memref<1x8x128xf32, #tpu.memory_space<vmem>>, vector<1x8x128xf32>
      %27 = vector.shape_cast %26 : vector<1x8x128xf32> to vector<8x128xf32>
      %28 = vector.shape_cast %25 : vector<8x128xf32> to vector<1x8x128xf32>
      tpu.vector_store %arg7[%c0_21, %c0_22, %c0_23], %28 {strides = array<i32>} : memref<1x8x128xf32, #tpu.memory_space<vmem>>, vector<1x8x128xf32>,
    } else {
    }
    return
  }
  func.func @transform_0(%arg0: i32, %arg1: i32) -> (i32, i32) {
    %c0_i32 = arith.constant 0 : i32
    %c0_i32_0 = arith.constant 0 : i32
    return %c0_i32, %arg1 : i32, i32
  }
  func.func @transform_1(%arg0: i32, %arg1: i32) -> (i32, i32, i32) {
    %c0_i32 = arith.constant 0 : i32
    %c0_i32_0 = arith.constant 0 : i32
    return %arg0, %arg1, %c0_i32 : i32, i32, i32
  }
  func.func @transform_2(%arg0: i32, %arg1: i32) -> (i32, i32) {
    %c0_i32 = arith.constant 0 : i32
    %c0_i32_0 = arith.constant 0 : i32
    return %c0_i32, %arg0 : i32, i32
  }
  func.func @transform_3(%arg0: i32, %arg1: i32) -> (i32, i32) {
    %c0_i32 = arith.constant 0 : i32
    %c0_i32_0 = arith.constant 0 : i32
    return %c0_i32, %arg0 : i32, i32
  }
  func.func @transform_4(%arg0: i32, %arg1: i32) -> (i32, i32, i32) {
    %c0_i32 = arith.constant 0 : i32
    %c0_i32_0 = arith.constant 0 : i32
    %c0_i32_1 = arith.constant 0 : i32
    return %arg0, %c0_i32, %c0_i32_0 : i32, i32, i32
  }
  func.func @transform_5(%arg0: i32, %arg1: i32) -> (i32, i32, i32) {
    %c0_i32 = arith.constant 0 : i32
    %c0_i32_0 = arith.constant 0 : i32
    %c0_i32_1 = arith.constant 0 : i32
    return %arg0, %c0_i32, %c0_i32_0 : i32, i32, i32
  }
}

</mosaic_0001>

<llo_original>
// kernel: mlp_forward.1
$region0: #{mlp_forward.1}
  #allocation0 [shape = 'u32[]', space=smem, size = 0x4, offset = 0x4, fixed_abs, tag = 'smem constant byte address 0x4 - core index']
  #allocation1 [shape = 'u32[144,128]{1,0:T(1,128)}', space=vmem, size = 0x12000, scoped, tag = 'internal scratch']
  #allocation2 [shape = 'f32[8,2048]{1,0:T(8,128)}', space=vmem, size = 0x10000, scoped, tag = 'scratch operand']
  %s0 = inlined_call_operand.vmem [shape: bf16[8,3072], index: 0, kind: input, shape index: {}]
  %s1 = inlined_call_operand.hbm [shape: bf16[1,3072,2048], index: 1, kind: input, shape index: {}]
  %s2 = inlined_call_operand.hbm [shape: f32[1,2048], index: 2, kind: input, shape index: {}]
  %s3 = inlined_call_operand.hbm [shape: f32[1,2048], index: 3, kind: input, shape index: {}]
  %s4 = inlined_call_operand.hbm [shape: bf16[1,2048,128], index: 4, kind: input, shape index: {}]
  %s5 = inlined_call_operand.vmem [shape: f32[1,8,128], index: 5, kind: output, shape index: {}]
  %s6 = sld [smem:[#allocation0]]
  $region77: #{mlp_forward.1} parent=0
    _
  %s8 = ssub.s32 1, %s6
  %s9 = scalar_select 0, %s8, %s6
  $region1: #{mlp_forward.1} parent=0
    #allocation3 [shape = 'u8[12582912]{0}', space=vmem, size = 0xc00000, scoped, tag = 'input window, operand 1']
    #allocation4 [shape = 's32[2]{0}', space=sflag, size = 0x8, scoped, tag = 'scoped memory for mlp_forward.1']
    #allocation5 [shape = 'u8[8192]{0}', space=vmem, size = 0x2000, scoped, tag = 'input window, operand 2, single buffered']
    #allocation6 [shape = 's32[1]{0}', space=sflag, size = 0x4, scoped, tag = 'scoped memory for mlp_forward.1']
    #allocation7 [shape = 'u8[8192]{0}', space=vmem, size = 0x2000, scoped, tag = 'input window, operand 3, single buffered']
    #allocation8 [shape = 'u8[524288]{0}', space=vmem, size = 0x80000, scoped, tag = 'input window, operand 4, single buffered']
    #allocation9 [shape = 's32[1]{0}', space=sflag, size = 0x4, scoped, tag = 'scoped memory for mlp_forward.1']
    %10 = vsyncpa [#allocation4], 0
    %s11 = scalar_lea.sflag [#allocation4], 1
    %12 = vsyncpa %s11, 0
    %13 = vsyncpa [#allocation6], 0
    %14 = vsyncpa [#allocation9], 0
    loop: start=0, step=1, limit=4
    $region2: #{mlp_forward.1} parent=1 // loop_pre_header
      _
    $region3: #{mlp_forward.1} parent=1 // loop_header
      %s16 = sphi 0, %s20
      %p17 = scmp.ge.s32.totalorder %s16, 4
      %s23 = sphi 0, %s35
      %s24 = sphi 0, %s31
      %s25 = sphi 0, %s23
      %s26 = sphi 0, %s24
      %s27 = sphi 0, %s25
      %s28 = sphi 0, %s26
      %s38 = sphi 0, %s40
      %s41 = sphi 0, %s38
      %s42 = sphi 0, %s41
      %s58 = sphi 0, %s42
      %s66 = sphi 0, %s68
      %s69 = sphi 0, %s66
      %s70 = sphi 0, %s69
      %s86 = sphi 0, %s70
      %s92 = sphi 0, %s94
      %s95 = sphi 0, %s92
      %s96 = sphi 0, %s95
      %s112 = sphi 0, %s96
      %s118 = sphi 0, %s120
      %s121 = sphi 0, %s118
      %s122 = sphi 0, %s121
      %s138 = sphi 0, %s122
      %s144 = sphi 0, %s146
      %s147 = sphi 0, %s144
      %s148 = sphi 0, %s147
      %s164 = sphi 0, %s148
      %s170 = sphi 0, %s172
      %s173 = sphi 0, %s170
      %s174 = sphi 0, %s173
      %s190 = sphi 0, %s174
    $region4: #{mlp_forward.1} parent=1 // loop_header_branch
      %19 = sbr.rel (%p17) target = $region8
    $region5: #{mlp_forward.1} parent=1 // loop_body
      %s21 = ssub.s32 %s16, 1
      %s22 = ssub.s32 %s16, 2
      %s29 = sadd.s32 1, %s24
      %p30 = scmp.ge.s32.totalorder %s29, 2
      %s31 = scalar_select %p30, 0, %s29
      %s32 = sadd.s32 1, %s23
      %s33 = scalar_select %p30, %s32, %s23
      %p34 = scmp.ge.s32.totalorder %s33, 1
      %s35 = scalar_select %p34, 0, %s33
      %s36 = ssub.s32 %s24, %s31
      %p37 = scmp.eq.s32.totalorder %s36, 0
      %s39 = sadd.s32 %s38, 1
      %s40 = scalar_select %p37, %s38, %s39
      %p43 = pneg %p37
      %p44 = scmp.eq.s32.totalorder %s16, 1
      %p45 = por %p43, %p44
      %p46 = scmp.ne.s32.totalorder %s38, %s41
      %p47 = scmp.eq.s32.totalorder %s16, 0
      %p48 = por %p46, %p47
      %p49 = scmp.ne.s32.totalorder %s38, %s41
      %p50 = scmp.eq.s32.totalorder %s21, 1
      %p51 = por %p49, %p50
      %p52 = scmp.ne.s32.totalorder %s41, %s42
      %p53 = scmp.eq.s32.totalorder %s21, 0
      %p54 = por %p52, %p53
      %p55 = scmp.ne.s32.totalorder %s41, %s42
      %p56 = scmp.eq.s32.totalorder %s22, 1
      %p57 = por %p55, %p56
      %p59 = scmp.ne.s32.totalorder %s42, %s58
      %p60 = scmp.eq.s32.totalorder %s22, 0
      %p61 = por %p59, %p60
      %s62 = ssub.s32 %s23, %s35
      %s63 = ssub.s32 %s24, %s31
      %s64 = sor.u32 %s62, %s63
      %p65 = scmp.eq.s32.totalorder %s64, 0
      %s67 = sadd.s32 %s66, 1
      %s68 = scalar_select %p65, %s66, %s67
      %p71 = pneg %p65
      %p72 = scmp.eq.s32.totalorder %s16, 1
      %p73 = por %p71, %p72
      %p74 = scmp.ne.s32.totalorder %s66, %s69
      %p75 = scmp.eq.s32.totalorder %s16, 0
      %p76 = por %p74, %p75
      %p77 = scmp.ne.s32.totalorder %s66, %s69
      %p78 = scmp.eq.s32.totalorder %s21, 1
      %p79 = por %p77, %p78
      %p80 = scmp.ne.s32.totalorder %s69, %s70
      %p81 = scmp.eq.s32.totalorder %s21, 0
      %p82 = por %p80, %p81
      %p83 = scmp.ne.s32.totalorder %s69, %s70
      %p84 = scmp.eq.s32.totalorder %s22, 1
      %p85 = por %p83, %p84
      %p87 = scmp.ne.s32.totalorder %s70, %s86
      %p88 = scmp.eq.s32.totalorder %s22, 0
      %p89 = por %p87, %p88
      %s90 = ssub.s32 %s23, %s35
      %p91 = scmp.eq.s32.totalorder %s90, 0
      %s93 = sadd.s32 %s92, 1
      %s94 = scalar_select %p91, %s92, %s93
      %p97 = pneg %p91
      %p98 = scmp.eq.s32.totalorder %s16, 1
      %p99 = por %p97, %p98
      %p100 = scmp.ne.s32.totalorder %s92, %s95
      %p101 = scmp.eq.s32.totalorder %s16, 0
      %p102 = por %p100, %p101
      %p103 = scmp.ne.s32.totalorder %s92, %s95
      %p104 = scmp.eq.s32.totalorder %s21, 1
      %p105 = por %p103, %p104
      %p106 = scmp.ne.s32.totalorder %s95, %s96
      %p107 = scmp.eq.s32.totalorder %s21, 0
      %p108 = por %p106, %p107
      %p109 = scmp.ne.s32.totalorder %s95, %s96
      %p110 = scmp.eq.s32.totalorder %s22, 1
      %p111 = por %p109, %p110
      %p113 = scmp.ne.s32.totalorder %s96, %s112
      %p114 = scmp.eq.s32.totalorder %s22, 0
      %p115 = por %p113, %p114
      %s116 = ssub.s32 %s23, %s35
      %p117 = scmp.eq.s32.totalorder %s116, 0
      %s119 = sadd.s32 %s118, 1
      %s120 = scalar_select %p117, %s118, %s119
      %p123 = pneg %p117
      %p124 = scmp.eq.s32.totalorder %s16, 1
      %p125 = por %p123, %p124
      %p126 = scmp.ne.s32.totalorder %s118, %s121
      %p127 = scmp.eq.s32.totalorder %s16, 0
      %p128 = por %p126, %p127
      %p129 = scmp.ne.s32.totalorder %s118, %s121
      %p130 = scmp.eq.s32.totalorder %s21, 1
      %p131 = por %p129, %p130
      %p132 = scmp.ne.s32.totalorder %s121, %s122
      %p133 = scmp.eq.s32.totalorder %s21, 0
      %p134 = por %p132, %p133
      %p135 = scmp.ne.s32.totalorder %s121, %s122
      %p136 = scmp.eq.s32.totalorder %s22, 1
      %p137 = por %p135, %p136
      %p139 = scmp.ne.s32.totalorder %s122, %s138
      %p140 = scmp.eq.s32.totalorder %s22, 0
      %p141 = por %p139, %p140
      %s142 = ssub.s32 %s23, %s35
      %p143 = scmp.eq.s32.totalorder %s142, 0
      %s145 = sadd.s32 %s144, 1
      %s146 = scalar_select %p143, %s144, %s145
      %p149 = pneg %p143
      %p150 = scmp.eq.s32.totalorder %s16, 1
      %p151 = por %p149, %p150
      %p152 = scmp.ne.s32.totalorder %s144, %s147
      %p153 = scmp.eq.s32.totalorder %s16, 0
      %p154 = por %p152, %p153
      %p155 = scmp.ne.s32.totalorder %s144, %s147
      %p156 = scmp.eq.s32.totalorder %s21, 1
      %p157 = por %p155, %p156
      %p158 = scmp.ne.s32.totalorder %s147, %s148
      %p159 = scmp.eq.s32.totalorder %s21, 0
      %p160 = por %p158, %p159
      %p161 = scmp.ne.s32.totalorder %s147, %s148
      %p162 = scmp.eq.s32.totalorder %s22, 1
      %p163 = por %p161, %p162
      %p165 = scmp.ne.s32.totalorder %s148, %s164
      %p166 = scmp.eq.s32.totalorder %s22, 0
      %p167 = por %p165, %p166
      %s168 = ssub.s32 %s23, %s35
      %p169 = scmp.eq.s32.totalorder %s168, 0
      %s171 = sadd.s32 %s170, 1
      %s172 = scalar_select %p169, %s170, %s171
      %p175 = pneg %p169
      %p176 = scmp.eq.s32.totalorder %s16, 1
      %p177 = por %p175, %p176
      %p178 = scmp.ne.s32.totalorder %s170, %s173
      %p179 = scmp.eq.s32.totalorder %s16, 0
      %p180 = por %p178, %p179
      %p181 = scmp.ne.s32.totalorder %s170, %s173
      %p182 = scmp.eq.s32.totalorder %s21, 1
      %p183 = por %p181, %p182
      %p184 = scmp.ne.s32.totalorder %s173, %s174
      %p185 = scmp.eq.s32.totalorder %s21, 0
      %p186 = por %p184, %p185
      %p187 = scmp.ne.s32.totalorder %s173, %s174
      %p188 = scmp.eq.s32.totalorder %s22, 1
      %p189 = por %p187, %p188
      %p191 = scmp.ne.s32.totalorder %s174, %s190
      %p192 = scmp.eq.s32.totalorder %s22, 0
      %p193 = por %p191, %p192
      %p194 = scmp.le.s32.totalorder 1, %s16
      %p195 = scmp.lt.s32.totalorder %s16, 3
      %p196 = pnand %p194, %p195
      %p197 = pneg %p196
      // Predicated region
      $region9: #{mlp_forward.1} parent=5 // pred_check
        _
      $region10: #{mlp_forward.1} parent=5 // pred_check_branch
        %199 = sbr.rel (%p196) target = $region12
      $region11: #{mlp_forward.1} parent=5 // pred_region
        %s200 = ssub.s32 %s16, 1
        // Predicated region
        $region13: #{mlp_forward.1} parent=11 // pred_check
          %p201 = pneg %p108
        $region14: #{mlp_forward.1} parent=11 // pred_check_branch
          %203 = sbr.rel (%p201) target = $region16
        $region15: #{mlp_forward.1} parent=11 // pred_region
          %s204 = smul.u32 16, %s25
          %s206 = ssub.s32 256, 256
          %207 = vsyncadd [#allocation6], %s206
          %s208 = smul.addr %s204, 16
          %s209 = scalar_lea.hbm %s2, %s208
          %s211 = sshll.u32 [#allocation5], 4
          %s212 = int_to_ptr.vmem [resolvable:$true] %s211
          %214 = dma.hbm_to_vmem [thread:$0]  %s209, 256, %s212, [#allocation6]
        $region16: #{mlp_forward.1} parent=11 // pred_fallthru
          _
        // Predicated region
        $region17: #{mlp_forward.1} parent=11 // pred_check
          %p215 = pneg %p134
        $region18: #{mlp_forward.1} parent=11 // pred_check_branch
          %217 = sbr.rel (%p215) target = $region20
        $region19: #{mlp_forward.1} parent=11 // pred_region
          %s218 = smul.u32 16, %s25
          %s220 = ssub.s32 256, 256
          %221 = vsyncadd [#allocation6], %s220
          %s222 = smul.addr %s218, 16
          %s223 = scalar_lea.hbm %s3, %s222
          %s225 = sshll.u32 [#allocation7], 4
          %s226 = int_to_ptr.vmem [resolvable:$true] %s225
          %228 = dma.hbm_to_vmem [thread:$0]  %s223, 256, %s226, [#allocation6]
        $region20: #{mlp_forward.1} parent=11 // pred_fallthru
          _
        // Predicated region
        $region21: #{mlp_forward.1} parent=11 // pred_check
          %p229 = pneg %p160
        $region22: #{mlp_forward.1} parent=11 // pred_check_branch
          %231 = sbr.rel (%p229) target = $region24
        $region23: #{mlp_forward.1} parent=11 // pred_region
          %s233 = ssub.s32 16384, 16384
          %234 = vsyncadd [#allocation9], %s233
          %s235 = smul.addr %s25, 256
          %s236 = smul.addr %s235, 64
          %s237 = scalar_lea.hbm %s4, %s236
          %s238 = sshll.u32 [#allocation8], 4
          %s239 = int_to_ptr.vmem [resolvable:$true] %s238
          %244 = dma.hbm_to_vmem [thread:$0]  %s237, 16384, %s239, [#allocation9], 64, 64, 4
        $region24: #{mlp_forward.1} parent=11 // pred_fallthru
          _
      $region12: #{mlp_forward.1} parent=5 // pred_fallthru
        _
      %p245 = scmp.lt.s32.totalorder %s16, 2
      // Predicated region
      $region25: #{mlp_forward.1} parent=5 // pred_check
        %p246 = pneg %p245
      $region26: #{mlp_forward.1} parent=5 // pred_check_branch
        %248 = sbr.rel (%p246) target = $region28
      $region27: #{mlp_forward.1} parent=5 // pred_region
        // Predicated region
        $region29: #{mlp_forward.1} parent=27 // pred_check
          %p249 = pneg %p48
        $region30: #{mlp_forward.1} parent=27 // pred_check_branch
          %251 = sbr.rel (%p249) target = $region32
        $region31: #{mlp_forward.1} parent=27 // pred_region
          %s252 = smul.u32 12, %s24
          %p253 = scmp.lt.s32.totalorder %s252, 23
          %s254 = scalar_select %p253, %s252, 23
          %s255 = smul.addr %s254, 4
          %s256 = scalar_lea.vmem %s0, %s255
          %s257 = smul.u32 12, %s24
        $region32: #{mlp_forward.1} parent=27 // pred_fallthru
          _
        // Predicated region
        $region33: #{mlp_forward.1} parent=27 // pred_check
          %p258 = pneg %p76
        $region34: #{mlp_forward.1} parent=27 // pred_check_branch
          %260 = sbr.rel (%p258) target = $region36
        $region35: #{mlp_forward.1} parent=27 // pred_region
          %s261 = sand.u32 %s66, 1
          %s262 = scalar_lea.sflag [#allocation4], %s261
          %s263 = sand.u32 %s66, 1
          %s264 = smul.addr %s263, 12288
          %s265 = scalar_lea.vmem [#allocation3], %s264
          %s266 = smul.u32 192, %s24
          %s268 = ssub.s32 196608, 196608
          %269 = vsyncadd %s262, %s268
          %s270 = smul.addr %s266, 16
          %s271 = smul.addr %s23, 6144
          %s272 = sadd.s32 %s270, %s271
          %s273 = smul.addr %s272, 64
          %s274 = scalar_lea.hbm %s1, %s273
          %s275 = sshll.u32 %s265, 4
          %s276 = int_to_ptr.vmem [resolvable:$true] %s275
          %281 = dma.hbm_to_vmem [thread:$0]  %s274, 196608, %s276, %s262, 1024, 1024, 64
        $region36: #{mlp_forward.1} parent=27 // pred_fallthru
          _
      $region28: #{mlp_forward.1} parent=5 // pred_fallthru
        _
      %p282 = scmp.le.s32.totalorder 1, %s16
      %p283 = scmp.lt.s32.totalorder %s16, 3
      %p284 = pnand %p282, %p283
      %p285 = pneg %p284
      // Predicated region
      $region37: #{mlp_forward.1} parent=5 // pred_check
        _
      $region38: #{mlp_forward.1} parent=5 // pred_check_branch
        %287 = sbr.rel (%p284) target = $region40
      $region39: #{mlp_forward.1} parent=5 // pred_region
        %s288 = ssub.s32 %s16, 1
        %s289 = sand.u32 %s69, 1
        %s290 = scalar_lea.sflag [#allocation4], %s289
        %s291 = sand.u32 %s69, 1
        %s292 = smul.addr %s291, 12288
        %s293 = scalar_lea.vmem [#allocation3], %s292
        // Predicated region
        $region41: #{mlp_forward.1} parent=39 // pred_check
          %p294 = pneg %p82
        $region42: #{mlp_forward.1} parent=39 // pred_check_branch
          %296 = sbr.rel (%p294) target = $region44
        $region43: #{mlp_forward.1} parent=39 // pred_region
          %297 = dma.done %s290, 196608
        $region44: #{mlp_forward.1} parent=39 // pred_fallthru
          _
        // Predicated region
        $region45: #{mlp_forward.1} parent=39 // pred_check
          %p298 = pneg %p108
        $region46: #{mlp_forward.1} parent=39 // pred_check_branch
          %300 = sbr.rel (%p298) target = $region48
        $region47: #{mlp_forward.1} parent=39 // pred_region
          %301 = dma.done [#allocation6], 256
        $region48: #{mlp_forward.1} parent=39 // pred_fallthru
          _
        // Predicated region
        $region49: #{mlp_forward.1} parent=39 // pred_check
          %p302 = pneg %p134
        $region50: #{mlp_forward.1} parent=39 // pred_check_branch
          %304 = sbr.rel (%p302) target = $region52
        $region51: #{mlp_forward.1} parent=39 // pred_region
          %305 = dma.done [#allocation6], 256
        $region52: #{mlp_forward.1} parent=39 // pred_fallthru
          _
        // Predicated region
        $region53: #{mlp_forward.1} parent=39 // pred_check
          %p306 = pneg %p160
        $region54: #{mlp_forward.1} parent=39 // pred_check_branch
          %308 = sbr.rel (%p306) target = $region56
        $region55: #{mlp_forward.1} parent=39 // pred_region
          %309 = dma.done [#allocation9], 16384
        $region56: #{mlp_forward.1} parent=39 // pred_fallthru
          _
        %s310 = smul.u32 12, %s26
        %p311 = scmp.lt.s32.totalorder %s310, 23
        %s312 = scalar_select %p311, %s310, 23
        %s313 = smul.addr %s312, 4
        %s314 = scalar_lea.vmem %s0, %s313
        %p315 = pneg %p54
        %p316 = pneg %p51
        %s317 = sand.u32 %s69, 1
        %s318 = scalar_lea.sflag [#allocation4], %s317
        %s319 = sand.u32 %s69, 1
        %s320 = smul.addr %s319, 12288
        %s321 = scalar_lea.vmem [#allocation3], %s320
        %p322 = pneg %p82
        %p323 = pneg %p79
        %p324 = pneg %p108
        %p325 = pneg %p105
        %p326 = pneg %p134
        %p327 = pneg %p131
        %p328 = pneg %p160
        %p329 = pneg %p157
        %p330 = pneg %p186
        %p331 = pneg %p183
        %p332 = scmp.lt.s32.totalorder %s25, 0
        %s333 = scalar_select %p332, %s25, 0
        %s334 = smul.addr %s333, 8
        %s335 = scalar_lea.vmem %s5, %s334
        %s336 = smul.u32 12, %s26
        %p337 = scmp.lt.s32.totalorder %s336, 23
        %s338 = scalar_select %p337, %s336, 23
        %s339 = smul.addr %s338, 4
        %s340 = scalar_lea.vmem %s0, %s339
        %s341 = smul.u32 12, %s26
        %s342 = smul.u32 192, %s26
        %s343 = smul.u32 16, %s25
        %s344 = smul.u32 16, %s25
        %p345 = scmp.lt.s32.totalorder %s25, 0
        %s346 = scalar_select %p345, %s25, 0
        %s347 = smul.addr %s346, 8
        %s348 = scalar_lea.vmem %s5, %s347
        %p350 = scmp.eq.s32.totalorder %s26, 0
        // Predicated region
        $region57: #{mlp_forward.1} parent=39 // pred_check
          %p351 = pneg %p350
        $region58: #{mlp_forward.1} parent=39 // pred_check_branch
          %353 = sbr.rel (%p351) target = $region60
        $region59: #{mlp_forward.1} parent=39 // pred_region
          %354 = vst [vmem:[#allocation2] sm:$0xff] 0.0
          %355 = vst [vmem:[#allocation2 + $0x8] sm:$0xff] 0.0
          %356 = vst [vmem:[#allocation2 + $0x10] sm:$0xff] 0.0
          %357 = vst [vmem:[#allocation2 + $0x18] sm:$0xff] 0.0
          %358 = vst [vmem:[#allocation2 + $0x20] sm:$0xff] 0.0
          %359 = vst [vmem:[#allocation2 + $0x28] sm:$0xff] 0.0
          %360 = vst [vmem:[#allocation2 + $0x30] sm:$0xff] 0.0
          %361 = vst [vmem:[#allocation2 + $0x38] sm:$0xff] 0.0
          %362 = vst [vmem:[#allocation2 + $0x40] sm:$0xff] 0.0
          %363 = vst [vmem:[#allocation2 + $0x48] sm:$0xff] 0.0
          %364 = vst [vmem:[#allocation2 + $0x50] sm:$0xff] 0.0
          %365 = vst [vmem:[#allocation2 + $0x58] sm:$0xff] 0.0
          %366 = vst [vmem:[#allocation2 + $0x60] sm:$0xff] 0.0
          %367 = vst [vmem:[#allocation2 + $0x68] sm:$0xff] 0.0
          %368 = vst [vmem:[#allocation2 + $0x70] sm:$0xff] 0.0
          %369 = vst [vmem:[#allocation2 + $0x78] sm:$0xff] 0.0
        $region60: #{mlp_forward.1} parent=39 // pred_fallthru
          _
        %v370 = vld [vmem:[#allocation2] sm:$0xff]
        %v371 = vld [vmem:[#allocation2 + $0x8] sm:$0xff]
        %v372 = vld [vmem:[#allocation2 + $0x10] sm:$0xff]
        %v373 = vld [vmem:[#allocation2 + $0x18] sm:$0xff]
        %v374 = vld [vmem:[#allocation2 + $0x20] sm:$0xff]
        %v375 = vld [vmem:[#allocation2 + $0x28] sm:$0xff]
        %v376 = vld [vmem:[#allocation2 + $0x30] sm:$0xff]
        %v377 = vld [vmem:[#allocation2 + $0x38] sm:$0xff]
        %v378 = vld [vmem:[#allocation2 + $0x40] sm:$0xff]
        %v379 = vld [vmem:[#allocation2 + $0x48] sm:$0xff]
        %v380 = vld [vmem:[#allocation2 + $0x50] sm:$0xff]
        %v381 = vld [vmem:[#allocation2 + $0x58] sm:$0xff]
        %v382 = vld [vmem:[#allocation2 + $0x60] sm:$0xff]
        %v383 = vld [vmem:[#allocation2 + $0x68] sm:$0xff]
        %v384 = vld [vmem:[#allocation2 + $0x70] sm:$0xff]
        %v385 = vld [vmem:[#allocation2 + $0x78] sm:$0xff]
        %v386 = vld [vmem:[%s340] sm:$0xff]
        %v387 = vld [vmem:[%s340 + $0x8] sm:$0xff]
        %v388 = vld [vmem:[%s340 + $0x10] sm:$0xff]
        %v389 = vld [vmem:[%s340 + $0x18] sm:$0xff]
        %v390 = vld [vmem:[%s340 + $0x20] sm:$0xff]
        %v391 = vld [vmem:[%s340 + $0x28] sm:$0xff]
        %v392 = vld [vmem:[%s293] sm:$0xff]
        %v393 = vld [vmem:[%s293 + $0x8] sm:$0xff]
        %v394 = vld [vmem:[%s293 + $0x10] sm:$0xff]
        %v395 = vld [vmem:[%s293 + $0x18] sm:$0xff]
        %v396 = vld [vmem:[%s293 + $0x20] sm:$0xff]
        %v397 = vld [vmem:[%s293 + $0x28] sm:$0xff]
        %v398 = vld [vmem:[%s293 + $0x30] sm:$0xff]
        %v399 = vld [vmem:[%s293 + $0x38] sm:$0xff]
        %v400 = vld [vmem:[%s293 + $0x40] sm:$0xff]
        %v401 = vld [vmem:[%s293 + $0x48] sm:$0xff]
        %v402 = vld [vmem:[%s293 + $0x50] sm:$0xff]
        %v403 = vld [vmem:[%s293 + $0x58] sm:$0xff]
        %v404 = vld [vmem:[%s293 + $0x60] sm:$0xff]
        %v405 = vld [vmem:[%s293 + $0x68] sm:$0xff]
        %v406 = vld [vmem:[%s293 + $0x70] sm:$0xff]
        %v407 = vld [vmem:[%s293 + $0x78] sm:$0xff]
        %v408 = vld [vmem:[%s293 + $0x80] sm:$0xff]
        %v409 = vld [vmem:[%s293 + $0x88] sm:$0xff]
        %v410 = vld [vmem:[%s293 + $0x90] sm:$0xff]
        %v411 = vld [vmem:[%s293 + $0x98] sm:$0xff]
        %v412 = vld [vmem:[%s293 + $0xa0] sm:$0xff]
        %v413 = vld [vmem:[%s293 + $0xa8] sm:$0xff]
        %v414 = vld [vmem:[%s293 + $0xb0] sm:$0xff]
        %v415 = vld [vmem:[%s293 + $0xb8] sm:$0xff]
        %v416 = vld [vmem:[%s293 + $0xc0] sm:$0xff]
        %v417 = vld [vmem:[%s293 + $0xc8] sm:$0xff]
        %v418 = vld [vmem:[%s293 + $0xd0] sm:$0xff]
        %v419 = vld [vmem:[%s293 + $0xd8] sm:$0xff]
        %v420 = vld [vmem:[%s293 + $0xe0] sm:$0xff]
        %v421 = vld [vmem:[%s293 + $0xe8] sm:$0xff]
        %v422 = vld [vmem:[%s293 + $0xf0] sm:$0xff]
        %v423 = vld [vmem:[%s293 + $0xf8] sm:$0xff]
        %v424 = vld [vmem:[%s293 + $0x100] sm:$0xff]
        %v425 = vld [vmem:[%s293 + $0x108] sm:$0xff]
        %v426 = vld [vmem:[%s293 + $0x110] sm:$0xff]
        %v427 = vld [vmem:[%s293 + $0x118] sm:$0xff]
        %v428 = vld [vmem:[%s293 + $0x120] sm:$0xff]
        %v429 = vld [vmem:[%s293 + $0x128] sm:$0xff]
        %v430 = vld [vmem:[%s293 + $0x130] sm:$0xff]
        %v431 = vld [vmem:[%s293 + $0x138] sm:$0xff]
        %v432 = vld [vmem:[%s293 + $0x140] sm:$0xff]
        %v433 = vld [vmem:[%s293 + $0x148] sm:$0xff]
        %v434 = vld [vmem:[%s293 + $0x150] sm:$0xff]
        %v435 = vld [vmem:[%s293 + $0x158] sm:$0xff]
        %v436 = vld [vmem:[%s293 + $0x160] sm:$0xff]
        %v437 = vld [vmem:[%s293 + $0x168] sm:$0xff]
        %v438 = vld [vmem:[%s293 + $0x170] sm:$0xff]
        %v439 = vld [vmem:[%s293 + $0x178] sm:$0xff]
        %v440 = vld [vmem:[%s293 + $0x180] sm:$0xff]
        %v441 = vld [vmem:[%s293 + $0x188] sm:$0xff]
        %v442 = vld [vmem:[%s293 + $0x190] sm:$0xff]
        %v443 = vld [vmem:[%s293 + $0x198] sm:$0xff]
        %v444 = vld [vmem:[%s293 + $0x1a0] sm:$0xff]
        %v445 = vld [vmem:[%s293 + $0x1a8] sm:$0xff]
        %v446 = vld [vmem:[%s293 + $0x1b0] sm:$0xff]
        %v447 = vld [vmem:[%s293 + $0x1b8] sm:$0xff]
        %v448 = vld [vmem:[%s293 + $0x1c0] sm:$0xff]
        %v449 = vld [vmem:[%s293 + $0x1c8] sm:$0xff]
        %v450 = vld [vmem:[%s293 + $0x1d0] sm:$0xff]
        %v451 = vld [vmem:[%s293 + $0x1d8] sm:$0xff]
        %v452 = vld [vmem:[%s293 + $0x1e0] sm:$0xff]
        %v453 = vld [vmem:[%s293 + $0x1e8] sm:$0xff]
        %v454 = vld [vmem:[%s293 + $0x1f0] sm:$0xff]
        %v455 = vld [vmem:[%s293 + $0x1f8] sm:$0xff]
        %v456 = vld [vmem:[%s293 + $0x200] sm:$0xff]
        %v457 = vld [vmem:[%s293 + $0x208] sm:$0xff]
        %v458 = vld [vmem:[%s293 + $0x210] sm:$0xff]
        %v459 = vld [vmem:[%s293 + $0x218] sm:$0xff]
        %v460 = vld [vmem:[%s293 + $0x220] sm:$0xff]
        %v461 = vld [vmem:[%s293 + $0x228] sm:$0xff]
        %v462 = vld [vmem:[%s293 + $0x230] sm:$0xff]
        %v463 = vld [vmem:[%s293 + $0x238] sm:$0xff]
        %v464 = vld [vmem:[%s293 + $0x240] sm:$0xff]
        %v465 = vld [vmem:[%s293 + $0x248] sm:$0xff]
        %v466 = vld [vmem:[%s293 + $0x250] sm:$0xff]
        %v467 = vld [vmem:[%s293 + $0x258] sm:$0xff]
        %v468 = vld [vmem:[%s293 + $0x260] sm:$0xff]
        %v469 = vld [vmem:[%s293 + $0x268] sm:$0xff]
        %v470 = vld [vmem:[%s293 + $0x270] sm:$0xff]
        %v471 = vld [vmem:[%s293 + $0x278] sm:$0xff]
        %v472 = vld [vmem:[%s293 + $0x280] sm:$0xff]
        %v473 = vld [vmem:[%s293 + $0x288] sm:$0xff]
        %v474 = vld [vmem:[%s293 + $0x290] sm:$0xff]
        %v475 = vld [vmem:[%s293 + $0x298] sm:$0xff]
        %v476 = vld [vmem:[%s293 + $0x2a0] sm:$0xff]
        %v477 = vld [vmem:[%s293 + $0x2a8] sm:$0xff]
        %v478 = vld [vmem:[%s293 + $0x2b0] sm:$0xff]
        %v479 = vld [vmem:[%s293 + $0x2b8] sm:$0xff]
        %v480 = vld [vmem:[%s293 + $0x2c0] sm:$0xff]
        %v481 = vld [vmem:[%s293 + $0x2c8] sm:$0xff]
        %v482 = vld [vmem:[%s293 + $0x2d0] sm:$0xff]
        %v483 = vld [vmem:[%s293 + $0x2d8] sm:$0xff]
        %v484 = vld [vmem:[%s293 + $0x2e0] sm:$0xff]
        %v485 = vld [vmem:[%s293 + $0x2e8] sm:$0xff]
        %v486 = vld [vmem:[%s293 + $0x2f0] sm:$0xff]
        %v487 = vld [vmem:[%s293 + $0x2f8] sm:$0xff]
        %v488 = vld [vmem:[%s293 + $0x300] sm:$0xff]
        %v489 = vld [vmem:[%s293 + $0x308] sm:$0xff]
        %v490 = vld [vmem:[%s293 + $0x310] sm:$0xff]
        %v491 = vld [vmem:[%s293 + $0x318] sm:$0xff]
        %v492 = vld [vmem:[%s293 + $0x320] sm:$0xff]
        %v493 = vld [vmem:[%s293 + $0x328] sm:$0xff]
        %v494 = vld [vmem:[%s293 + $0x330] sm:$0xff]
        %v495 = vld [vmem:[%s293 + $0x338] sm:$0xff]
        %v496 = vld [vmem:[%s293 + $0x340] sm:$0xff]
        %v497 = vld [vmem:[%s293 + $0x348] sm:$0xff]
        %v498 = vld [vmem:[%s293 + $0x350] sm:$0xff]
        %v499 = vld [vmem:[%s293 + $0x358] sm:$0xff]
        %v500 = vld [vmem:[%s293 + $0x360] sm:$0xff]
        %v501 = vld [vmem:[%s293 + $0x368] sm:$0xff]
        %v502 = vld [vmem:[%s293 + $0x370] sm:$0xff]
        %v503 = vld [vmem:[%s293 + $0x378] sm:$0xff]
        %v504 = vld [vmem:[%s293 + $0x380] sm:$0xff]
        %v505 = vld [vmem:[%s293 + $0x388] sm:$0xff]
        %v506 = vld [vmem:[%s293 + $0x390] sm:$0xff]
        %v507 = vld [vmem:[%s293 + $0x398] sm:$0xff]
        %v508 = vld [vmem:[%s293 + $0x3a0] sm:$0xff]
        %v509 = vld [vmem:[%s293 + $0x3a8] sm:$0xff]
        %v510 = vld [vmem:[%s293 + $0x3b0] sm:$0xff]
        %v511 = vld [vmem:[%s293 + $0x3b8] sm:$0xff]
        %v512 = vld [vmem:[%s293 + $0x3c0] sm:$0xff]
        %v513 = vld [vmem:[%s293 + $0x3c8] sm:$0xff]
        %v514 = vld [vmem:[%s293 + $0x3d0] sm:$0xff]
        %v515 = vld [vmem:[%s293 + $0x3d8] sm:$0xff]
        %v516 = vld [vmem:[%s293 + $0x3e0] sm:$0xff]
        %v517 = vld [vmem:[%s293 + $0x3e8] sm:$0xff]
        %v518 = vld [vmem:[%s293 + $0x3f0] sm:$0xff]
        %v519 = vld [vmem:[%s293 + $0x3f8] sm:$0xff]
        %v520 = vld [vmem:[%s293 + $0x400] sm:$0xff]
        %v521 = vld [vmem:[%s293 + $0x408] sm:$0xff]
        %v522 = vld [vmem:[%s293 + $0x410] sm:$0xff]
        %v523 = vld [vmem:[%s293 + $0x418] sm:$0xff]
        %v524 = vld [vmem:[%s293 + $0x420] sm:$0xff]
        %v525 = vld [vmem:[%s293 + $0x428] sm:$0xff]
        %v526 = vld [vmem:[%s293 + $0x430] sm:$0xff]
        %v527 = vld [vmem:[%s293 + $0x438] sm:$0xff]
        %v528 = vld [vmem:[%s293 + $0x440] sm:$0xff]
        %v529 = vld [vmem:[%s293 + $0x448] sm:$0xff]
        %v530 = vld [vmem:[%s293 + $0x450] sm:$0xff]
        %v531 = vld [vmem:[%s293 + $0x458] sm:$0xff]
        %v532 = vld [vmem:[%s293 + $0x460] sm:$0xff]
        %v533 = vld [vmem:[%s293 + $0x468] sm:$0xff]
        %v534 = vld [vmem:[%s293 + $0x470] sm:$0xff]
        %v535 = vld [vmem:[%s293 + $0x478] sm:$0xff]
        %v536 = vld [vmem:[%s293 + $0x480] sm:$0xff]
        %v537 = vld [vmem:[%s293 + $0x488] sm:$0xff]
        %v538 = vld [vmem:[%s293 + $0x490] sm:$0xff]
        %v539 = vld [vmem:[%s293 + $0x498] sm:$0xff]
        %v540 = vld [vmem:[%s293 + $0x4a0] sm:$0xff]
        %v541 = vld [vmem:[%s293 + $0x4a8] sm:$0xff]
        %v542 = vld [vmem:[%s293 + $0x4b0] sm:$0xff]
        %v543 = vld [vmem:[%s293 + $0x4b8] sm:$0xff]
        %v544 = vld [vmem:[%s293 + $0x4c0] sm:$0xff]
        %v545 = vld [vmem:[%s293 + $0x4c8] sm:$0xff]
        %v546 = vld [vmem:[%s293 + $0x4d0] sm:$0xff]
        %v547 = vld [vmem:[%s293 + $0x4d8] sm:$0xff]
        %v548 = vld [vmem:[%s293 + $0x4e0] sm:$0xff]
        %v549 = vld [vmem:[%s293 + $0x4e8] sm:$0xff]
        %v550 = vld [vmem:[%s293 + $0x4f0] sm:$0xff]
        %v551 = vld [vmem:[%s293 + $0x4f8] sm:$0xff]
        %v552 = vld [vmem:[%s293 + $0x500] sm:$0xff]
        %v553 = vld [vmem:[%s293 + $0x508] sm:$0xff]
        %v554 = vld [vmem:[%s293 + $0x510] sm:$0xff]
        %v555 = vld [vmem:[%s293 + $0x518] sm:$0xff]
        %v556 = vld [vmem:[%s293 + $0x520] sm:$0xff]
        %v557 = vld [vmem:[%s293 + $0x528] sm:$0xff]
        %v558 = vld [vmem:[%s293 + $0x530] sm:$0xff]
        %v559 = vld [vmem:[%s293 + $0x538] sm:$0xff]
        %v560 = vld [vmem:[%s293 + $0x540] sm:$0xff]
        %v561 = vld [vmem:[%s293 + $0x548] sm:$0xff]
        %v562 = vld [vmem:[%s293 + $0x550] sm:$0xff]
        %v563 = vld [vmem:[%s293 + $0x558] sm:$0xff]
        %v564 = vld [vmem:[%s293 + $0x560] sm:$0xff]
        %v565 = vld [vmem:[%s293 + $0x568] sm:$0xff]
        %v566 = vld [vmem:[%s293 + $0x570] sm:$0xff]
        %v567 = vld [vmem:[%s293 + $0x578] sm:$0xff]
        %v568 = vld [vmem:[%s293 + $0x580] sm:$0xff]
        %v569 = vld [vmem:[%s293 + $0x588] sm:$0xff]
        %v570 = vld [vmem:[%s293 + $0x590] sm:$0xff]
        %v571 = vld [vmem:[%s293 + $0x598] sm:$0xff]
        %v572 = vld [vmem:[%s293 + $0x5a0] sm:$0xff]
        %v573 = vld [vmem:[%s293 + $0x5a8] sm:$0xff]
        %v574 = vld [vmem:[%s293 + $0x5b0] sm:$0xff]
        %v575 = vld [vmem:[%s293 + $0x5b8] sm:$0xff]
        %v576 = vld [vmem:[%s293 + $0x5c0] sm:$0xff]
        %v577 = vld [vmem:[%s293 + $0x5c8] sm:$0xff]
        %v578 = vld [vmem:[%s293 + $0x5d0] sm:$0xff]
        %v579 = vld [vmem:[%s293 + $0x5d8] sm:$0xff]
        %v580 = vld [vmem:[%s293 + $0x5e0] sm:$0xff]
        %v581 = vld [vmem:[%s293 + $0x5e8] sm:$0xff]
        %v582 = vld [vmem:[%s293 + $0x5f0] sm:$0xff]
        %v583 = vld [vmem:[%s293 + $0x5f8] sm:$0xff]
        %v584 = vld [vmem:[%s293 + $0x600] sm:$0xff]
        %v585 = vld [vmem:[%s293 + $0x608] sm:$0xff]
        %v586 = vld [vmem:[%s293 + $0x610] sm:$0xff]
        %v587 = vld [vmem:[%s293 + $0x618] sm:$0xff]
        %v588 = vld [vmem:[%s293 + $0x620] sm:$0xff]
        %v589 = vld [vmem:[%s293 + $0x628] sm:$0xff]
        %v590 = vld [vmem:[%s293 + $0x630] sm:$0xff]
        %v591 = vld [vmem:[%s293 + $0x638] sm:$0xff]
        %v592 = vld [vmem:[%s293 + $0x640] sm:$0xff]
        %v593 = vld [vmem:[%s293 + $0x648] sm:$0xff]
        %v594 = vld [vmem:[%s293 + $0x650] sm:$0xff]
        %v595 = vld [vmem:[%s293 + $0x658] sm:$0xff]
        %v596 = vld [vmem:[%s293 + $0x660] sm:$0xff]
        %v597 = vld [vmem:[%s293 + $0x668] sm:$0xff]
        %v598 = vld [vmem:[%s293 + $0x670] sm:$0xff]
        %v599 = vld [vmem:[%s293 + $0x678] sm:$0xff]
        %v600 = vld [vmem:[%s293 + $0x680] sm:$0xff]
        %v601 = vld [vmem:[%s293 + $0x688] sm:$0xff]
        %v602 = vld [vmem:[%s293 + $0x690] sm:$0xff]
        %v603 = vld [vmem:[%s293 + $0x698] sm:$0xff]
        %v604 = vld [vmem:[%s293 + $0x6a0] sm:$0xff]
        %v605 = vld [vmem:[%s293 + $0x6a8] sm:$0xff]
        %v606 = vld [vmem:[%s293 + $0x6b0] sm:$0xff]
        %v607 = vld [vmem:[%s293 + $0x6b8] sm:$0xff]
        %v608 = vld [vmem:[%s293 + $0x6c0] sm:$0xff]
        %v609 = vld [vmem:[%s293 + $0x6c8] sm:$0xff]
        %v610 = vld [vmem:[%s293 + $0x6d0] sm:$0xff]
        %v611 = vld [vmem:[%s293 + $0x6d8] sm:$0xff]
        %v612 = vld [vmem:[%s293 + $0x6e0] sm:$0xff]
        %v613 = vld [vmem:[%s293 + $0x6e8] sm:$0xff]
        %v614 = vld [vmem:[%s293 + $0x6f0] sm:$0xff]
        %v615 = vld [vmem:[%s293 + $0x6f8] sm:$0xff]
        %v616 = vld [vmem:[%s293 + $0x700] sm:$0xff]
        %v617 = vld [vmem:[%s293 + $0x708] sm:$0xff]
        %v618 = vld [vmem:[%s293 + $0x710] sm:$0xff]
        %v619 = vld [vmem:[%s293 + $0x718] sm:$0xff]
        %v620 = vld [vmem:[%s293 + $0x720] sm:$0xff]
        %v621 = vld [vmem:[%s293 + $0x728] sm:$0xff]
        %v622 = vld [vmem:[%s293 + $0x730] sm:$0xff]
        %v623 = vld [vmem:[%s293 + $0x738] sm:$0xff]
        %v624 = vld [vmem:[%s293 + $0x740] sm:$0xff]
        %v625 = vld [vmem:[%s293 + $0x748] sm:$0xff]
        %v626 = vld [vmem:[%s293 + $0x750] sm:$0xff]
        %v627 = vld [vmem:[%s293 + $0x758] sm:$0xff]
        %v628 = vld [vmem:[%s293 + $0x760] sm:$0xff]
        %v629 = vld [vmem:[%s293 + $0x768] sm:$0xff]
        %v630 = vld [vmem:[%s293 + $0x770] sm:$0xff]
        %v631 = vld [vmem:[%s293 + $0x778] sm:$0xff]
        %v632 = vld [vmem:[%s293 + $0x780] sm:$0xff]
        %v633 = vld [vmem:[%s293 + $0x788] sm:$0xff]
        %v634 = vld [vmem:[%s293 + $0x790] sm:$0xff]
        %v635 = vld [vmem:[%s293 + $0x798] sm:$0xff]
        %v636 = vld [vmem:[%s293 + $0x7a0] sm:$0xff]
        %v637 = vld [vmem:[%s293 + $0x7a8] sm:$0xff]
        %v638 = vld [vmem:[%s293 + $0x7b0] sm:$0xff]
        %v639 = vld [vmem:[%s293 + $0x7b8] sm:$0xff]
        %v640 = vld [vmem:[%s293 + $0x7c0] sm:$0xff]
        %v641 = vld [vmem:[%s293 + $0x7c8] sm:$0xff]
        %v642 = vld [vmem:[%s293 + $0x7d0] sm:$0xff]
        %v643 = vld [vmem:[%s293 + $0x7d8] sm:$0xff]
        %v644 = vld [vmem:[%s293 + $0x7e0] sm:$0xff]
        %v645 = vld [vmem:[%s293 + $0x7e8] sm:$0xff]
        %v646 = vld [vmem:[%s293 + $0x7f0] sm:$0xff]
        %v647 = vld [vmem:[%s293 + $0x7f8] sm:$0xff]
        %v648 = vld [vmem:[%s293 + $0x800] sm:$0xff]
        %v649 = vld [vmem:[%s293 + $0x808] sm:$0xff]
        %v650 = vld [vmem:[%s293 + $0x810] sm:$0xff]
        %v651 = vld [vmem:[%s293 + $0x818] sm:$0xff]
        %v652 = vld [vmem:[%s293 + $0x820] sm:$0xff]
        %v653 = vld [vmem:[%s293 + $0x828] sm:$0xff]
        %v654 = vld [vmem:[%s293 + $0x830] sm:$0xff]
        %v655 = vld [vmem:[%s293 + $0x838] sm:$0xff]
        %v656 = vld [vmem:[%s293 + $0x840] sm:$0xff]
        %v657 = vld [vmem:[%s293 + $0x848] sm:$0xff]
        %v658 = vld [vmem:[%s293 + $0x850] sm:$0xff]
        %v659 = vld [vmem:[%s293 + $0x858] sm:$0xff]
        %v660 = vld [vmem:[%s293 + $0x860] sm:$0xff]
        %v661 = vld [vmem:[%s293 + $0x868] sm:$0xff]
        %v662 = vld [vmem:[%s293 + $0x870] sm:$0xff]
        %v663 = vld [vmem:[%s293 + $0x878] sm:$0xff]
        %v664 = vld [vmem:[%s293 + $0x880] sm:$0xff]
        %v665 = vld [vmem:[%s293 + $0x888] sm:$0xff]
        %v666 = vld [vmem:[%s293 + $0x890] sm:$0xff]
        %v667 = vld [vmem:[%s293 + $0x898] sm:$0xff]
        %v668 = vld [vmem:[%s293 + $0x8a0] sm:$0xff]
        %v669 = vld [vmem:[%s293 + $0x8a8] sm:$0xff]
        %v670 = vld [vmem:[%s293 + $0x8b0] sm:$0xff]
        %v671 = vld [vmem:[%s293 + $0x8b8] sm:$0xff]
        %v672 = vld [vmem:[%s293 + $0x8c0] sm:$0xff]
        %v673 = vld [vmem:[%s293 + $0x8c8] sm:$0xff]
        %v674 = vld [vmem:[%s293 + $0x8d0] sm:$0xff]
        %v675 = vld [vmem:[%s293 + $0x8d8] sm:$0xff]
        %v676 = vld [vmem:[%s293 + $0x8e0] sm:$0xff]
        %v677 = vld [vmem:[%s293 + $0x8e8] sm:$0xff]
        %v678 = vld [vmem:[%s293 + $0x8f0] sm:$0xff]
        %v679 = vld [vmem:[%s293 + $0x8f8] sm:$0xff]
        %v680 = vld [vmem:[%s293 + $0x900] sm:$0xff]
        %v681 = vld [vmem:[%s293 + $0x908] sm:$0xff]
        %v682 = vld [vmem:[%s293 + $0x910] sm:$0xff]
        %v683 = vld [vmem:[%s293 + $0x918] sm:$0xff]
        %v684 = vld [vmem:[%s293 + $0x920] sm:$0xff]
        %v685 = vld [vmem:[%s293 + $0x928] sm:$0xff]
        %v686 = vld [vmem:[%s293 + $0x930] sm:$0xff]
        %v687 = vld [vmem:[%s293 + $0x938] sm:$0xff]
        %v688 = vld [vmem:[%s293 + $0x940] sm:$0xff]
        %v689 = vld [vmem:[%s293 + $0x948] sm:$0xff]
        %v690 = vld [vmem:[%s293 + $0x950] sm:$0xff]
        %v691 = vld [vmem:[%s293 + $0x958] sm:$0xff]
        %v692 = vld [vmem:[%s293 + $0x960] sm:$0xff]
        %v693 = vld [vmem:[%s293 + $0x968] sm:$0xff]
        %v694 = vld [vmem:[%s293 + $0x970] sm:$0xff]
        %v695 = vld [vmem:[%s293 + $0x978] sm:$0xff]
        %v696 = vld [vmem:[%s293 + $0x980] sm:$0xff]
        %v697 = vld [vmem:[%s293 + $0x988] sm:$0xff]
        %v698 = vld [vmem:[%s293 + $0x990] sm:$0xff]
        %v699 = vld [vmem:[%s293 + $0x998] sm:$0xff]
        %v700 = vld [vmem:[%s293 + $0x9a0] sm:$0xff]
        %v701 = vld [vmem:[%s293 + $0x9a8] sm:$0xff]
        %v702 = vld [vmem:[%s293 + $0x9b0] sm:$0xff]
        %v703 = vld [vmem:[%s293 + $0x9b8] sm:$0xff]
        %v704 = vld [vmem:[%s293 + $0x9c0] sm:$0xff]
        %v705 = vld [vmem:[%s293 + $0x9c8] sm:$0xff]
        %v706 = vld [vmem:[%s293 + $0x9d0] sm:$0xff]
        %v707 = vld [vmem:[%s293 + $0x9d8] sm:$0xff]
        %v708 = vld [vmem:[%s293 + $0x9e0] sm:$0xff]
        %v709 = vld [vmem:[%s293 + $0x9e8] sm:$0xff]
        %v710 = vld [vmem:[%s293 + $0x9f0] sm:$0xff]
        %v711 = vld [vmem:[%s293 + $0x9f8] sm:$0xff]
        %v712 = vld [vmem:[%s293 + $0xa00] sm:$0xff]
        %v713 = vld [vmem:[%s293 + $0xa08] sm:$0xff]
        %v714 = vld [vmem:[%s293 + $0xa10] sm:$0xff]
        %v715 = vld [vmem:[%s293 + $0xa18] sm:$0xff]
        %v716 = vld [vmem:[%s293 + $0xa20] sm:$0xff]
        %v717 = vld [vmem:[%s293 + $0xa28] sm:$0xff]
        %v718 = vld [vmem:[%s293 + $0xa30] sm:$0xff]
        %v719 = vld [vmem:[%s293 + $0xa38] sm:$0xff]
        %v720 = vld [vmem:[%s293 + $0xa40] sm:$0xff]
        %v721 = vld [vmem:[%s293 + $0xa48] sm:$0xff]
        %v722 = vld [vmem:[%s293 + $0xa50] sm:$0xff]
        %v723 = vld [vmem:[%s293 + $0xa58] sm:$0xff]
        %v724 = vld [vmem:[%s293 + $0xa60] sm:$0xff]
        %v725 = vld [vmem:[%s293 + $0xa68] sm:$0xff]
        %v726 = vld [vmem:[%s293 + $0xa70] sm:$0xff]
        %v727 = vld [vmem:[%s293 + $0xa78] sm:$0xff]
        %v728 = vld [vmem:[%s293 + $0xa80] sm:$0xff]
        %v729 = vld [vmem:[%s293 + $0xa88] sm:$0xff]
        %v730 = vld [vmem:[%s293 + $0xa90] sm:$0xff]
        %v731 = vld [vmem:[%s293 + $0xa98] sm:$0xff]
        %v732 = vld [vmem:[%s293 + $0xaa0] sm:$0xff]
        %v733 = vld [vmem:[%s293 + $0xaa8] sm:$0xff]
        %v734 = vld [vmem:[%s293 + $0xab0] sm:$0xff]
        %v735 = vld [vmem:[%s293 + $0xab8] sm:$0xff]
        %v736 = vld [vmem:[%s293 + $0xac0] sm:$0xff]
        %v737 = vld [vmem:[%s293 + $0xac8] sm:$0xff]
        %v738 = vld [vmem:[%s293 + $0xad0] sm:$0xff]
        %v739 = vld [vmem:[%s293 + $0xad8] sm:$0xff]
        %v740 = vld [vmem:[%s293 + $0xae0] sm:$0xff]
        %v741 = vld [vmem:[%s293 + $0xae8] sm:$0xff]
        %v742 = vld [vmem:[%s293 + $0xaf0] sm:$0xff]
        %v743 = vld [vmem:[%s293 + $0xaf8] sm:$0xff]
        %v744 = vld [vmem:[%s293 + $0xb00] sm:$0xff]
        %v745 = vld [vmem:[%s293 + $0xb08] sm:$0xff]
        %v746 = vld [vmem:[%s293 + $0xb10] sm:$0xff]
        %v747 = vld [vmem:[%s293 + $0xb18] sm:$0xff]
        %v748 = vld [vmem:[%s293 + $0xb20] sm:$0xff]
        %v749 = vld [vmem:[%s293 + $0xb28] sm:$0xff]
        %v750 = vld [vmem:[%s293 + $0xb30] sm:$0xff]
        %v751 = vld [vmem:[%s293 + $0xb38] sm:$0xff]
        %v752 = vld [vmem:[%s293 + $0xb40] sm:$0xff]
        %v753 = vld [vmem:[%s293 + $0xb48] sm:$0xff]
        %v754 = vld [vmem:[%s293 + $0xb50] sm:$0xff]
        %v755 = vld [vmem:[%s293 + $0xb58] sm:$0xff]
        %v756 = vld [vmem:[%s293 + $0xb60] sm:$0xff]
        %v757 = vld [vmem:[%s293 + $0xb68] sm:$0xff]
        %v758 = vld [vmem:[%s293 + $0xb70] sm:$0xff]
        %v759 = vld [vmem:[%s293 + $0xb78] sm:$0xff]
        %v760 = vld [vmem:[%s293 + $0xb80] sm:$0xff]
        %v761 = vld [vmem:[%s293 + $0xb88] sm:$0xff]
        %v762 = vld [vmem:[%s293 + $0xb90] sm:$0xff]
        %v763 = vld [vmem:[%s293 + $0xb98] sm:$0xff]
        %v764 = vld [vmem:[%s293 + $0xba0] sm:$0xff]
        %v765 = vld [vmem:[%s293 + $0xba8] sm:$0xff]
        %v766 = vld [vmem:[%s293 + $0xbb0] sm:$0xff]
        %v767 = vld [vmem:[%s293 + $0xbb8] sm:$0xff]
        %v768 = vld [vmem:[%s293 + $0xbc0] sm:$0xff]
        %v769 = vld [vmem:[%s293 + $0xbc8] sm:$0xff]
        %v770 = vld [vmem:[%s293 + $0xbd0] sm:$0xff]
        %v771 = vld [vmem:[%s293 + $0xbd8] sm:$0xff]
        %v772 = vld [vmem:[%s293 + $0xbe0] sm:$0xff]
        %v773 = vld [vmem:[%s293 + $0xbe8] sm:$0xff]
        %v774 = vld [vmem:[%s293 + $0xbf0] sm:$0xff]
        %v775 = vld [vmem:[%s293 + $0xbf8] sm:$0xff]
        %v776 = vld [vmem:[%s293 + $0xc00] sm:$0xff]
        %v777 = vld [vmem:[%s293 + $0xc08] sm:$0xff]
        %v778 = vld [vmem:[%s293 + $0xc10] sm:$0xff]
        %v779 = vld [vmem:[%s293 + $0xc18] sm:$0xff]
        %v780 = vld [vmem:[%s293 + $0xc20] sm:$0xff]
        %v781 = vld [vmem:[%s293 + $0xc28] sm:$0xff]
        %v782 = vld [vmem:[%s293 + $0xc30] sm:$0xff]
        %v783 = vld [vmem:[%s293 + $0xc38] sm:$0xff]
        %v784 = vld [vmem:[%s293 + $0xc40] sm:$0xff]
        %v785 = vld [vmem:[%s293 + $0xc48] sm:$0xff]
        %v786 = vld [vmem:[%s293 + $0xc50] sm:$0xff]
        %v787 = vld [vmem:[%s293 + $0xc58] sm:$0xff]
        %v788 = vld [vmem:[%s293 + $0xc60] sm:$0xff]
        %v789 = vld [vmem:[%s293 + $0xc68] sm:$0xff]
        %v790 = vld [vmem:[%s293 + $0xc70] sm:$0xff]
        %v791 = vld [vmem:[%s293 + $0xc78] sm:$0xff]
        %v792 = vld [vmem:[%s293 + $0xc80] sm:$0xff]
        %v793 = vld [vmem:[%s293 + $0xc88] sm:$0xff]
        %v794 = vld [vmem:[%s293 + $0xc90] sm:$0xff]
        %v795 = vld [vmem:[%s293 + $0xc98] sm:$0xff]
        %v796 = vld [vmem:[%s293 + $0xca0] sm:$0xff]
        %v797 = vld [vmem:[%s293 + $0xca8] sm:$0xff]
        %v798 = vld [vmem:[%s293 + $0xcb0] sm:$0xff]
        %v799 = vld [vmem:[%s293 + $0xcb8] sm:$0xff]
        %v800 = vld [vmem:[%s293 + $0xcc0] sm:$0xff]
        %v801 = vld [vmem:[%s293 + $0xcc8] sm:$0xff]
        %v802 = vld [vmem:[%s293 + $0xcd0] sm:$0xff]
        %v803 = vld [vmem:[%s293 + $0xcd8] sm:$0xff]
        %v804 = vld [vmem:[%s293 + $0xce0] sm:$0xff]
        %v805 = vld [vmem:[%s293 + $0xce8] sm:$0xff]
        %v806 = vld [vmem:[%s293 + $0xcf0] sm:$0xff]
        %v807 = vld [vmem:[%s293 + $0xcf8] sm:$0xff]
        %v808 = vld [vmem:[%s293 + $0xd00] sm:$0xff]
        %v809 = vld [vmem:[%s293 + $0xd08] sm:$0xff]
        %v810 = vld [vmem:[%s293 + $0xd10] sm:$0xff]
        %v811 = vld [vmem:[%s293 + $0xd18] sm:$0xff]
        %v812 = vld [vmem:[%s293 + $0xd20] sm:$0xff]
        %v813 = vld [vmem:[%s293 + $0xd28] sm:$0xff]
        %v814 = vld [vmem:[%s293 + $0xd30] sm:$0xff]
        %v815 = vld [vmem:[%s293 + $0xd38] sm:$0xff]
        %v816 = vld [vmem:[%s293 + $0xd40] sm:$0xff]
        %v817 = vld [vmem:[%s293 + $0xd48] sm:$0xff]
        %v818 = vld [vmem:[%s293 + $0xd50] sm:$0xff]
        %v819 = vld [vmem:[%s293 + $0xd58] sm:$0xff]
        %v820 = vld [vmem:[%s293 + $0xd60] sm:$0xff]
        %v821 = vld [vmem:[%s293 + $0xd68] sm:$0xff]
        %v822 = vld [vmem:[%s293 + $0xd70] sm:$0xff]
        %v823 = vld [vmem:[%s293 + $0xd78] sm:$0xff]
        %v824 = vld [vmem:[%s293 + $0xd80] sm:$0xff]
        %v825 = vld [vmem:[%s293 + $0xd88] sm:$0xff]
        %v826 = vld [vmem:[%s293 + $0xd90] sm:$0xff]
        %v827 = vld [vmem:[%s293 + $0xd98] sm:$0xff]
        %v828 = vld [vmem:[%s293 + $0xda0] sm:$0xff]
        %v829 = vld [vmem:[%s293 + $0xda8] sm:$0xff]
        %v830 = vld [vmem:[%s293 + $0xdb0] sm:$0xff]
        %v831 = vld [vmem:[%s293 + $0xdb8] sm:$0xff]
        %v832 = vld [vmem:[%s293 + $0xdc0] sm:$0xff]
        %v833 = vld [vmem:[%s293 + $0xdc8] sm:$0xff]
        %v834 = vld [vmem:[%s293 + $0xdd0] sm:$0xff]
        %v835 = vld [vmem:[%s293 + $0xdd8] sm:$0xff]
        %v836 = vld [vmem:[%s293 + $0xde0] sm:$0xff]
        %v837 = vld [vmem:[%s293 + $0xde8] sm:$0xff]
        %v838 = vld [vmem:[%s293 + $0xdf0] sm:$0xff]
        %v839 = vld [vmem:[%s293 + $0xdf8] sm:$0xff]
        %v840 = vld [vmem:[%s293 + $0xe00] sm:$0xff]
        %v841 = vld [vmem:[%s293 + $0xe08] sm:$0xff]
        %v842 = vld [vmem:[%s293 + $0xe10] sm:$0xff]
        %v843 = vld [vmem:[%s293 + $0xe18] sm:$0xff]
        %v844 = vld [vmem:[%s293 + $0xe20] sm:$0xff]
        %v845 = vld [vmem:[%s293 + $0xe28] sm:$0xff]
        %v846 = vld [vmem:[%s293 + $0xe30] sm:$0xff]
        %v847 = vld [vmem:[%s293 + $0xe38] sm:$0xff]
        %v848 = vld [vmem:[%s293 + $0xe40] sm:$0xff]
        %v849 = vld [vmem:[%s293 + $0xe48] sm:$0xff]
        %v850 = vld [vmem:[%s293 + $0xe50] sm:$0xff]
        %v851 = vld [vmem:[%s293 + $0xe58] sm:$0xff]
        %v852 = vld [vmem:[%s293 + $0xe60] sm:$0xff]
        %v853 = vld [vmem:[%s293 + $0xe68] sm:$0xff]
        %v854 = vld [vmem:[%s293 + $0xe70] sm:$0xff]
        %v855 = vld [vmem:[%s293 + $0xe78] sm:$0xff]
        %v856 = vld [vmem:[%s293 + $0xe80] sm:$0xff]
        %v857 = vld [vmem:[%s293 + $0xe88] sm:$0xff]
        %v858 = vld [vmem:[%s293 + $0xe90] sm:$0xff]
        %v859 = vld [vmem:[%s293 + $0xe98] sm:$0xff]
        %v860 = vld [vmem:[%s293 + $0xea0] sm:$0xff]
        %v861 = vld [vmem:[%s293 + $0xea8] sm:$0xff]
        %v862 = vld [vmem:[%s293 + $0xeb0] sm:$0xff]
        %v863 = vld [vmem:[%s293 + $0xeb8] sm:$0xff]
        %v864 = vld [vmem:[%s293 + $0xec0] sm:$0xff]
        %v865 = vld [vmem:[%s293 + $0xec8] sm:$0xff]
        %v866 = vld [vmem:[%s293 + $0xed0] sm:$0xff]
        %v867 = vld [vmem:[%s293 + $0xed8] sm:$0xff]
        %v868 = vld [vmem:[%s293 + $0xee0] sm:$0xff]
        %v869 = vld [vmem:[%s293 + $0xee8] sm:$0xff]
        %v870 = vld [vmem:[%s293 + $0xef0] sm:$0xff]
        %v871 = vld [vmem:[%s293 + $0xef8] sm:$0xff]
        %v872 = vld [vmem:[%s293 + $0xf00] sm:$0xff]
        %v873 = vld [vmem:[%s293 + $0xf08] sm:$0xff]
        %v874 = vld [vmem:[%s293 + $0xf10] sm:$0xff]
        %v875 = vld [vmem:[%s293 + $0xf18] sm:$0xff]
        %v876 = vld [vmem:[%s293 + $0xf20] sm:$0xff]
        %v877 = vld [vmem:[%s293 + $0xf28] sm:$0xff]
        %v878 = vld [vmem:[%s293 + $0xf30] sm:$0xff]
        %v879 = vld [vmem:[%s293 + $0xf38] sm:$0xff]
        %v880 = vld [vmem:[%s293 + $0xf40] sm:$0xff]
        %v881 = vld [vmem:[%s293 + $0xf48] sm:$0xff]
        %v882 = vld [vmem:[%s293 + $0xf50] sm:$0xff]
        %v883 = vld [vmem:[%s293 + $0xf58] sm:$0xff]
        %v884 = vld [vmem:[%s293 + $0xf60] sm:$0xff]
        %v885 = vld [vmem:[%s293 + $0xf68] sm:$0xff]
        %v886 = vld [vmem:[%s293 + $0xf70] sm:$0xff]
        %v887 = vld [vmem:[%s293 + $0xf78] sm:$0xff]
        %v888 = vld [vmem:[%s293 + $0xf80] sm:$0xff]
        %v889 = vld [vmem:[%s293 + $0xf88] sm:$0xff]
        %v890 = vld [vmem:[%s293 + $0xf90] sm:$0xff]
        %v891 = vld [vmem:[%s293 + $0xf98] sm:$0xff]
        %v892 = vld [vmem:[%s293 + $0xfa0] sm:$0xff]
        %v893 = vld [vmem:[%s293 + $0xfa8] sm:$0xff]
        %v894 = vld [vmem:[%s293 + $0xfb0] sm:$0xff]
        %v895 = vld [vmem:[%s293 + $0xfb8] sm:$0xff]
        %v896 = vld [vmem:[%s293 + $0xfc0] sm:$0xff]
        %v897 = vld [vmem:[%s293 + $0xfc8] sm:$0xff]
        %v898 = vld [vmem:[%s293 + $0xfd0] sm:$0xff]
        %v899 = vld [vmem:[%s293 + $0xfd8] sm:$0xff]
        %v900 = vld [vmem:[%s293 + $0xfe0] sm:$0xff]
        %v901 = vld [vmem:[%s293 + $0xfe8] sm:$0xff]
        %v902 = vld [vmem:[%s293 + $0xff0] sm:$0xff]
        %v903 = vld [vmem:[%s293 + $0xff8] sm:$0xff]
        %v904 = vld [vmem:[%s293 + $0x1000] sm:$0xff]
        %v905 = vld [vmem:[%s293 + $0x1008] sm:$0xff]
        %v906 = vld [vmem:[%s293 + $0x1010] sm:$0xff]
        %v907 = vld [vmem:[%s293 + $0x1018] sm:$0xff]
        %v908 = vld [vmem:[%s293 + $0x1020] sm:$0xff]
        %v909 = vld [vmem:[%s293 + $0x1028] sm:$0xff]
        %v910 = vld [vmem:[%s293 + $0x1030] sm:$0xff]
        %v911 = vld [vmem:[%s293 + $0x1038] sm:$0xff]
        %v912 = vld [vmem:[%s293 + $0x1040] sm:$0xff]
        %v913 = vld [vmem:[%s293 + $0x1048] sm:$0xff]
        %v914 = vld [vmem:[%s293 + $0x1050] sm:$0xff]
        %v915 = vld [vmem:[%s293 + $0x1058] sm:$0xff]
        %v916 = vld [vmem:[%s293 + $0x1060] sm:$0xff]
        %v917 = vld [vmem:[%s293 + $0x1068] sm:$0xff]
        %v918 = vld [vmem:[%s293 + $0x1070] sm:$0xff]
        %v919 = vld [vmem:[%s293 + $0x1078] sm:$0xff]
        %v920 = vld [vmem:[%s293 + $0x1080] sm:$0xff]
        %v921 = vld [vmem:[%s293 + $0x1088] sm:$0xff]
        %v922 = vld [vmem:[%s293 + $0x1090] sm:$0xff]
        %v923 = vld [vmem:[%s293 + $0x1098] sm:$0xff]
        %v924 = vld [vmem:[%s293 + $0x10a0] sm:$0xff]
        %v925 = vld [vmem:[%s293 + $0x10a8] sm:$0xff]
        %v926 = vld [vmem:[%s293 + $0x10b0] sm:$0xff]
        %v927 = vld [vmem:[%s293 + $0x10b8] sm:$0xff]
        %v928 = vld [vmem:[%s293 + $0x10c0] sm:$0xff]
        %v929 = vld [vmem:[%s293 + $0x10c8] sm:$0xff]
        %v930 = vld [vmem:[%s293 + $0x10d0] sm:$0xff]
        %v931 = vld [vmem:[%s293 + $0x10d8] sm:$0xff]
        %v932 = vld [vmem:[%s293 + $0x10e0] sm:$0xff]
        %v933 = vld [vmem:[%s293 + $0x10e8] sm:$0xff]
        %v934 = vld [vmem:[%s293 + $0x10f0] sm:$0xff]
        %v935 = vld [vmem:[%s293 + $0x10f8] sm:$0xff]
        %v936 = vld [vmem:[%s293 + $0x1100] sm:$0xff]
        %v937 = vld [vmem:[%s293 + $0x1108] sm:$0xff]
        %v938 = vld [vmem:[%s293 + $0x1110] sm:$0xff]
        %v939 = vld [vmem:[%s293 + $0x1118] sm:$0xff]
        %v940 = vld [vmem:[%s293 + $0x1120] sm:$0xff]
        %v941 = vld [vmem:[%s293 + $0x1128] sm:$0xff]
        %v942 = vld [vmem:[%s293 + $0x1130] sm:$0xff]
        %v943 = vld [vmem:[%s293 + $0x1138] sm:$0xff]
        %v944 = vld [vmem:[%s293 + $0x1140] sm:$0xff]
        %v945 = vld [vmem:[%s293 + $0x1148] sm:$0xff]
        %v946 = vld [vmem:[%s293 + $0x1150] sm:$0xff]
        %v947 = vld [vmem:[%s293 + $0x1158] sm:$0xff]
        %v948 = vld [vmem:[%s293 + $0x1160] sm:$0xff]
        %v949 = vld [vmem:[%s293 + $0x1168] sm:$0xff]
        %v950 = vld [vmem:[%s293 + $0x1170] sm:$0xff]
        %v951 = vld [vmem:[%s293 + $0x1178] sm:$0xff]
        %v952 = vld [vmem:[%s293 + $0x1180] sm:$0xff]
        %v953 = vld [vmem:[%s293 + $0x1188] sm:$0xff]
        %v954 = vld [vmem:[%s293 + $0x1190] sm:$0xff]
        %v955 = vld [vmem:[%s293 + $0x1198] sm:$0xff]
        %v956 = vld [vmem:[%s293 + $0x11a0] sm:$0xff]
        %v957 = vld [vmem:[%s293 + $0x11a8] sm:$0xff]
        %v958 = vld [vmem:[%s293 + $0x11b0] sm:$0xff]
        %v959 = vld [vmem:[%s293 + $0x11b8] sm:$0xff]
        %v960 = vld [vmem:[%s293 + $0x11c0] sm:$0xff]
        %v961 = vld [vmem:[%s293 + $0x11c8] sm:$0xff]
        %v962 = vld [vmem:[%s293 + $0x11d0] sm:$0xff]
        %v963 = vld [vmem:[%s293 + $0x11d8] sm:$0xff]
        %v964 = vld [vmem:[%s293 + $0x11e0] sm:$0xff]
        %v965 = vld [vmem:[%s293 + $0x11e8] sm:$0xff]
        %v966 = vld [vmem:[%s293 + $0x11f0] sm:$0xff]
        %v967 = vld [vmem:[%s293 + $0x11f8] sm:$0xff]
        %v968 = vld [vmem:[%s293 + $0x1200] sm:$0xff]
        %v969 = vld [vmem:[%s293 + $0x1208] sm:$0xff]
        %v970 = vld [vmem:[%s293 + $0x1210] sm:$0xff]
        %v971 = vld [vmem:[%s293 + $0x1218] sm:$0xff]
        %v972 = vld [vmem:[%s293 + $0x1220] sm:$0xff]
        %v973 = vld [vmem:[%s293 + $0x1228] sm:$0xff]
        %v974 = vld [vmem:[%s293 + $0x1230] sm:$0xff]
        %v975 = vld [vmem:[%s293 + $0x1238] sm:$0xff]
        %v976 = vld [vmem:[%s293 + $0x1240] sm:$0xff]
        %v977 = vld [vmem:[%s293 + $0x1248] sm:$0xff]
        %v978 = vld [vmem:[%s293 + $0x1250] sm:$0xff]
        %v979 = vld [vmem:[%s293 + $0x1258] sm:$0xff]
        %v980 = vld [vmem:[%s293 + $0x1260] sm:$0xff]
        %v981 = vld [vmem:[%s293 + $0x1268] sm:$0xff]
        %v982 = vld [vmem:[%s293 + $0x1270] sm:$0xff]
        %v983 = vld [vmem:[%s293 + $0x1278] sm:$0xff]
        %v984 = vld [vmem:[%s293 + $0x1280] sm:$0xff]
        %v985 = vld [vmem:[%s293 + $0x1288] sm:$0xff]
        %v986 = vld [vmem:[%s293 + $0x1290] sm:$0xff]
        %v987 = vld [vmem:[%s293 + $0x1298] sm:$0xff]
        %v988 = vld [vmem:[%s293 + $0x12a0] sm:$0xff]
        %v989 = vld [vmem:[%s293 + $0x12a8] sm:$0xff]
        %v990 = vld [vmem:[%s293 + $0x12b0] sm:$0xff]
        %v991 = vld [vmem:[%s293 + $0x12b8] sm:$0xff]
        %v992 = vld [vmem:[%s293 + $0x12c0] sm:$0xff]
        %v993 = vld [vmem:[%s293 + $0x12c8] sm:$0xff]
        %v994 = vld [vmem:[%s293 + $0x12d0] sm:$0xff]
        %v995 = vld [vmem:[%s293 + $0x12d8] sm:$0xff]
        %v996 = vld [vmem:[%s293 + $0x12e0] sm:$0xff]
        %v997 = vld [vmem:[%s293 + $0x12e8] sm:$0xff]
        %v998 = vld [vmem:[%s293 + $0x12f0] sm:$0xff]
        %v999 = vld [vmem:[%s293 + $0x12f8] sm:$0xff]
        %v1000 = vld [vmem:[%s293 + $0x1300] sm:$0xff]
        %v1001 = vld [vmem:[%s293 + $0x1308] sm:$0xff]
        %v1002 = vld [vmem:[%s293 + $0x1310] sm:$0xff]
        %v1003 = vld [vmem:[%s293 + $0x1318] sm:$0xff]
        %v1004 = vld [vmem:[%s293 + $0x1320] sm:$0xff]
        %v1005 = vld [vmem:[%s293 + $0x1328] sm:$0xff]
        %v1006 = vld [vmem:[%s293 + $0x1330] sm:$0xff]
        %v1007 = vld [vmem:[%s293 + $0x1338] sm:$0xff]
        %v1008 = vld [vmem:[%s293 + $0x1340] sm:$0xff]
        %v1009 = vld [vmem:[%s293 + $0x1348] sm:$0xff]
        %v1010 = vld [vmem:[%s293 + $0x1350] sm:$0xff]
        %v1011 = vld [vmem:[%s293 + $0x1358] sm:$0xff]
        %v1012 = vld [vmem:[%s293 + $0x1360] sm:$0xff]
        %v1013 = vld [vmem:[%s293 + $0x1368] sm:$0xff]
        %v1014 = vld [vmem:[%s293 + $0x1370] sm:$0xff]
        %v1015 = vld [vmem:[%s293 + $0x1378] sm:$0xff]
        %v1016 = vld [vmem:[%s293 + $0x1380] sm:$0xff]
        %v1017 = vld [vmem:[%s293 + $0x1388] sm:$0xff]
        %v1018 = vld [vmem:[%s293 + $0x1390] sm:$0xff]
        %v1019 = vld [vmem:[%s293 + $0x1398] sm:$0xff]
        %v1020 = vld [vmem:[%s293 + $0x13a0] sm:$0xff]
        %v1021 = vld [vmem:[%s293 + $0x13a8] sm:$0xff]
        %v1022 = vld [vmem:[%s293 + $0x13b0] sm:$0xff]
        %v1023 = vld [vmem:[%s293 + $0x13b8] sm:$0xff]
        %v1024 = vld [vmem:[%s293 + $0x13c0] sm:$0xff]
        %v1025 = vld [vmem:[%s293 + $0x13c8] sm:$0xff]
        %v1026 = vld [vmem:[%s293 + $0x13d0] sm:$0xff]
        %v1027 = vld [vmem:[%s293 + $0x13d8] sm:$0xff]
        %v1028 = vld [vmem:[%s293 + $0x13e0] sm:$0xff]
        %v1029 = vld [vmem:[%s293 + $0x13e8] sm:$0xff]
        %v1030 = vld [vmem:[%s293 + $0x13f0] sm:$0xff]
        %v1031 = vld [vmem:[%s293 + $0x13f8] sm:$0xff]
        %v1032 = vld [vmem:[%s293 + $0x1400] sm:$0xff]
        %v1033 = vld [vmem:[%s293 + $0x1408] sm:$0xff]
        %v1034 = vld [vmem:[%s293 + $0x1410] sm:$0xff]
        %v1035 = vld [vmem:[%s293 + $0x1418] sm:$0xff]
        %v1036 = vld [vmem:[%s293 + $0x1420] sm:$0xff]
        %v1037 = vld [vmem:[%s293 + $0x1428] sm:$0xff]
        %v1038 = vld [vmem:[%s293 + $0x1430] sm:$0xff]
        %v1039 = vld [vmem:[%s293 + $0x1438] sm:$0xff]
        %v1040 = vld [vmem:[%s293 + $0x1440] sm:$0xff]
        %v1041 = vld [vmem:[%s293 + $0x1448] sm:$0xff]
        %v1042 = vld [vmem:[%s293 + $0x1450] sm:$0xff]
        %v1043 = vld [vmem:[%s293 + $0x1458] sm:$0xff]
        %v1044 = vld [vmem:[%s293 + $0x1460] sm:$0xff]
        %v1045 = vld [vmem:[%s293 + $0x1468] sm:$0xff]
        %v1046 = vld [vmem:[%s293 + $0x1470] sm:$0xff]
        %v1047 = vld [vmem:[%s293 + $0x1478] sm:$0xff]
        %v1048 = vld [vmem:[%s293 + $0x1480] sm:$0xff]
        %v1049 = vld [vmem:[%s293 + $0x1488] sm:$0xff]
        %v1050 = vld [vmem:[%s293 + $0x1490] sm:$0xff]
        %v1051 = vld [vmem:[%s293 + $0x1498] sm:$0xff]
        %v1052 = vld [vmem:[%s293 + $0x14a0] sm:$0xff]
        %v1053 = vld [vmem:[%s293 + $0x14a8] sm:$0xff]
        %v1054 = vld [vmem:[%s293 + $0x14b0] sm:$0xff]
        %v1055 = vld [vmem:[%s293 + $0x14b8] sm:$0xff]
        %v1056 = vld [vmem:[%s293 + $0x14c0] sm:$0xff]
        %v1057 = vld [vmem:[%s293 + $0x14c8] sm:$0xff]
        %v1058 = vld [vmem:[%s293 + $0x14d0] sm:$0xff]
        %v1059 = vld [vmem:[%s293 + $0x14d8] sm:$0xff]
        %v1060 = vld [vmem:[%s293 + $0x14e0] sm:$0xff]
        %v1061 = vld [vmem:[%s293 + $0x14e8] sm:$0xff]
        %v1062 = vld [vmem:[%s293 + $0x14f0] sm:$0xff]
        %v1063 = vld [vmem:[%s293 + $0x14f8] sm:$0xff]
        %v1064 = vld [vmem:[%s293 + $0x1500] sm:$0xff]
        %v1065 = vld [vmem:[%s293 + $0x1508] sm:$0xff]
        %v1066 = vld [vmem:[%s293 + $0x1510] sm:$0xff]
        %v1067 = vld [vmem:[%s293 + $0x1518] sm:$0xff]
        %v1068 = vld [vmem:[%s293 + $0x1520] sm:$0xff]
        %v1069 = vld [vmem:[%s293 + $0x1528] sm:$0xff]
        %v1070 = vld [vmem:[%s293 + $0x1530] sm:$0xff]
        %v1071 = vld [vmem:[%s293 + $0x1538] sm:$0xff]
        %v1072 = vld [vmem:[%s293 + $0x1540] sm:$0xff]
        %v1073 = vld [vmem:[%s293 + $0x1548] sm:$0xff]
        %v1074 = vld [vmem:[%s293 + $0x1550] sm:$0xff]
        %v1075 = vld [vmem:[%s293 + $0x1558] sm:$0xff]
        %v1076 = vld [vmem:[%s293 + $0x1560] sm:$0xff]
        %v1077 = vld [vmem:[%s293 + $0x1568] sm:$0xff]
        %v1078 = vld [vmem:[%s293 + $0x1570] sm:$0xff]
        %v1079 = vld [vmem:[%s293 + $0x1578] sm:$0xff]
        %v1080 = vld [vmem:[%s293 + $0x1580] sm:$0xff]
        %v1081 = vld [vmem:[%s293 + $0x1588] sm:$0xff]
        %v1082 = vld [vmem:[%s293 + $0x1590] sm:$0xff]
        %v1083 = vld [vmem:[%s293 + $0x1598] sm:$0xff]
        %v1084 = vld [vmem:[%s293 + $0x15a0] sm:$0xff]
        %v1085 = vld [vmem:[%s293 + $0x15a8] sm:$0xff]
        %v1086 = vld [vmem:[%s293 + $0x15b0] sm:$0xff]
        %v1087 = vld [vmem:[%s293 + $0x15b8] sm:$0xff]
        %v1088 = vld [vmem:[%s293 + $0x15c0] sm:$0xff]
        %v1089 = vld [vmem:[%s293 + $0x15c8] sm:$0xff]
        %v1090 = vld [vmem:[%s293 + $0x15d0] sm:$0xff]
        %v1091 = vld [vmem:[%s293 + $0x15d8] sm:$0xff]
        %v1092 = vld [vmem:[%s293 + $0x15e0] sm:$0xff]
        %v1093 = vld [vmem:[%s293 + $0x15e8] sm:$0xff]
        %v1094 = vld [vmem:[%s293 + $0x15f0] sm:$0xff]
        %v1095 = vld [vmem:[%s293 + $0x15f8] sm:$0xff]
        %v1096 = vld [vmem:[%s293 + $0x1600] sm:$0xff]
        %v1097 = vld [vmem:[%s293 + $0x1608] sm:$0xff]
        %v1098 = vld [vmem:[%s293 + $0x1610] sm:$0xff]
        %v1099 = vld [vmem:[%s293 + $0x1618] sm:$0xff]
        %v1100 = vld [vmem:[%s293 + $0x1620] sm:$0xff]
        %v1101 = vld [vmem:[%s293 + $0x1628] sm:$0xff]
        %v1102 = vld [vmem:[%s293 + $0x1630] sm:$0xff]
        %v1103 = vld [vmem:[%s293 + $0x1638] sm:$0xff]
        %v1104 = vld [vmem:[%s293 + $0x1640] sm:$0xff]
        %v1105 = vld [vmem:[%s293 + $0x1648] sm:$0xff]
        %v1106 = vld [vmem:[%s293 + $0x1650] sm:$0xff]
        %v1107 = vld [vmem:[%s293 + $0x1658] sm:$0xff]
        %v1108 = vld [vmem:[%s293 + $0x1660] sm:$0xff]
        %v1109 = vld [vmem:[%s293 + $0x1668] sm:$0xff]
        %v1110 = vld [vmem:[%s293 + $0x1670] sm:$0xff]
        %v1111 = vld [vmem:[%s293 + $0x1678] sm:$0xff]
        %v1112 = vld [vmem:[%s293 + $0x1680] sm:$0xff]
        %v1113 = vld [vmem:[%s293 + $0x1688] sm:$0xff]
        %v1114 = vld [vmem:[%s293 + $0x1690] sm:$0xff]
        %v1115 = vld [vmem:[%s293 + $0x1698] sm:$0xff]
        %v1116 = vld [vmem:[%s293 + $0x16a0] sm:$0xff]
        %v1117 = vld [vmem:[%s293 + $0x16a8] sm:$0xff]
        %v1118 = vld [vmem:[%s293 + $0x16b0] sm:$0xff]
        %v1119 = vld [vmem:[%s293 + $0x16b8] sm:$0xff]
        %v1120 = vld [vmem:[%s293 + $0x16c0] sm:$0xff]
        %v1121 = vld [vmem:[%s293 + $0x16c8] sm:$0xff]
        %v1122 = vld [vmem:[%s293 + $0x16d0] sm:$0xff]
        %v1123 = vld [vmem:[%s293 + $0x16d8] sm:$0xff]
        %v1124 = vld [vmem:[%s293 + $0x16e0] sm:$0xff]
        %v1125 = vld [vmem:[%s293 + $0x16e8] sm:$0xff]
        %v1126 = vld [vmem:[%s293 + $0x16f0] sm:$0xff]
        %v1127 = vld [vmem:[%s293 + $0x16f8] sm:$0xff]
        %v1128 = vld [vmem:[%s293 + $0x1700] sm:$0xff]
        %v1129 = vld [vmem:[%s293 + $0x1708] sm:$0xff]
        %v1130 = vld [vmem:[%s293 + $0x1710] sm:$0xff]
        %v1131 = vld [vmem:[%s293 + $0x1718] sm:$0xff]
        %v1132 = vld [vmem:[%s293 + $0x1720] sm:$0xff]
        %v1133 = vld [vmem:[%s293 + $0x1728] sm:$0xff]
        %v1134 = vld [vmem:[%s293 + $0x1730] sm:$0xff]
        %v1135 = vld [vmem:[%s293 + $0x1738] sm:$0xff]
        %v1136 = vld [vmem:[%s293 + $0x1740] sm:$0xff]
        %v1137 = vld [vmem:[%s293 + $0x1748] sm:$0xff]
        %v1138 = vld [vmem:[%s293 + $0x1750] sm:$0xff]
        %v1139 = vld [vmem:[%s293 + $0x1758] sm:$0xff]
        %v1140 = vld [vmem:[%s293 + $0x1760] sm:$0xff]
        %v1141 = vld [vmem:[%s293 + $0x1768] sm:$0xff]
        %v1142 = vld [vmem:[%s293 + $0x1770] sm:$0xff]
        %v1143 = vld [vmem:[%s293 + $0x1778] sm:$0xff]
        %v1144 = vld [vmem:[%s293 + $0x1780] sm:$0xff]
        %v1145 = vld [vmem:[%s293 + $0x1788] sm:$0xff]
        %v1146 = vld [vmem:[%s293 + $0x1790] sm:$0xff]
        %v1147 = vld [vmem:[%s293 + $0x1798] sm:$0xff]
        %v1148 = vld [vmem:[%s293 + $0x17a0] sm:$0xff]
        %v1149 = vld [vmem:[%s293 + $0x17a8] sm:$0xff]
        %v1150 = vld [vmem:[%s293 + $0x17b0] sm:$0xff]
        %v1151 = vld [vmem:[%s293 + $0x17b8] sm:$0xff]
        %v1152 = vld [vmem:[%s293 + $0x17c0] sm:$0xff]
        %v1153 = vld [vmem:[%s293 + $0x17c8] sm:$0xff]
        %v1154 = vld [vmem:[%s293 + $0x17d0] sm:$0xff]
        %v1155 = vld [vmem:[%s293 + $0x17d8] sm:$0xff]
        %v1156 = vld [vmem:[%s293 + $0x17e0] sm:$0xff]
        %v1157 = vld [vmem:[%s293 + $0x17e8] sm:$0xff]
        %v1158 = vld [vmem:[%s293 + $0x17f0] sm:$0xff]
        %v1159 = vld [vmem:[%s293 + $0x17f8] sm:$0xff]
        %v1160 = vld [vmem:[%s293 + $0x1800] sm:$0xff]
        %v1161 = vld [vmem:[%s293 + $0x1808] sm:$0xff]
        %v1162 = vld [vmem:[%s293 + $0x1810] sm:$0xff]
        %v1163 = vld [vmem:[%s293 + $0x1818] sm:$0xff]
        %v1164 = vld [vmem:[%s293 + $0x1820] sm:$0xff]
        %v1165 = vld [vmem:[%s293 + $0x1828] sm:$0xff]
        %v1166 = vld [vmem:[%s293 + $0x1830] sm:$0xff]
        %v1167 = vld [vmem:[%s293 + $0x1838] sm:$0xff]
        %v1168 = vld [vmem:[%s293 + $0x1840] sm:$0xff]
        %v1169 = vld [vmem:[%s293 + $0x1848] sm:$0xff]
        %v1170 = vld [vmem:[%s293 + $0x1850] sm:$0xff]
        %v1171 = vld [vmem:[%s293 + $0x1858] sm:$0xff]
        %v1172 = vld [vmem:[%s293 + $0x1860] sm:$0xff]
        %v1173 = vld [vmem:[%s293 + $0x1868] sm:$0xff]
        %v1174 = vld [vmem:[%s293 + $0x1870] sm:$0xff]
        %v1175 = vld [vmem:[%s293 + $0x1878] sm:$0xff]
        %v1176 = vld [vmem:[%s293 + $0x1880] sm:$0xff]
        %v1177 = vld [vmem:[%s293 + $0x1888] sm:$0xff]
        %v1178 = vld [vmem:[%s293 + $0x1890] sm:$0xff]
        %v1179 = vld [vmem:[%s293 + $0x1898] sm:$0xff]
        %v1180 = vld [vmem:[%s293 + $0x18a0] sm:$0xff]
        %v1181 = vld [vmem:[%s293 + $0x18a8] sm:$0xff]
        %v1182 = vld [vmem:[%s293 + $0x18b0] sm:$0xff]
        %v1183 = vld [vmem:[%s293 + $0x18b8] sm:$0xff]
        %v1184 = vld [vmem:[%s293 + $0x18c0] sm:$0xff]
        %v1185 = vld [vmem:[%s293 + $0x18c8] sm:$0xff]
        %v1186 = vld [vmem:[%s293 + $0x18d0] sm:$0xff]
        %v1187 = vld [vmem:[%s293 + $0x18d8] sm:$0xff]
        %v1188 = vld [vmem:[%s293 + $0x18e0] sm:$0xff]
        %v1189 = vld [vmem:[%s293 + $0x18e8] sm:$0xff]
        %v1190 = vld [vmem:[%s293 + $0x18f0] sm:$0xff]
        %v1191 = vld [vmem:[%s293 + $0x18f8] sm:$0xff]
        %v1192 = vld [vmem:[%s293 + $0x1900] sm:$0xff]
        %v1193 = vld [vmem:[%s293 + $0x1908] sm:$0xff]
        %v1194 = vld [vmem:[%s293 + $0x1910] sm:$0xff]
        %v1195 = vld [vmem:[%s293 + $0x1918] sm:$0xff]
        %v1196 = vld [vmem:[%s293 + $0x1920] sm:$0xff]
        %v1197 = vld [vmem:[%s293 + $0x1928] sm:$0xff]
        %v1198 = vld [vmem:[%s293 + $0x1930] sm:$0xff]
        %v1199 = vld [vmem:[%s293 + $0x1938] sm:$0xff]
        %v1200 = vld [vmem:[%s293 + $0x1940] sm:$0xff]
        %v1201 = vld [vmem:[%s293 + $0x1948] sm:$0xff]
        %v1202 = vld [vmem:[%s293 + $0x1950] sm:$0xff]
        %v1203 = vld [vmem:[%s293 + $0x1958] sm:$0xff]
        %v1204 = vld [vmem:[%s293 + $0x1960] sm:$0xff]
        %v1205 = vld [vmem:[%s293 + $0x1968] sm:$0xff]
        %v1206 = vld [vmem:[%s293 + $0x1970] sm:$0xff]
        %v1207 = vld [vmem:[%s293 + $0x1978] sm:$0xff]
        %v1208 = vld [vmem:[%s293 + $0x1980] sm:$0xff]
        %v1209 = vld [vmem:[%s293 + $0x1988] sm:$0xff]
        %v1210 = vld [vmem:[%s293 + $0x1990] sm:$0xff]
        %v1211 = vld [vmem:[%s293 + $0x1998] sm:$0xff]
        %v1212 = vld [vmem:[%s293 + $0x19a0] sm:$0xff]
        %v1213 = vld [vmem:[%s293 + $0x19a8] sm:$0xff]
        %v1214 = vld [vmem:[%s293 + $0x19b0] sm:$0xff]
        %v1215 = vld [vmem:[%s293 + $0x19b8] sm:$0xff]
        %v1216 = vld [vmem:[%s293 + $0x19c0] sm:$0xff]
        %v1217 = vld [vmem:[%s293 + $0x19c8] sm:$0xff]
        %v1218 = vld [vmem:[%s293 + $0x19d0] sm:$0xff]
        %v1219 = vld [vmem:[%s293 + $0x19d8] sm:$0xff]
        %v1220 = vld [vmem:[%s293 + $0x19e0] sm:$0xff]
        %v1221 = vld [vmem:[%s293 + $0x19e8] sm:$0xff]
        %v1222 = vld [vmem:[%s293 + $0x19f0] sm:$0xff]
        %v1223 = vld [vmem:[%s293 + $0x19f8] sm:$0xff]
        %v1224 = vld [vmem:[%s293 + $0x1a00] sm:$0xff]
        %v1225 = vld [vmem:[%s293 + $0x1a08] sm:$0xff]
        %v1226 = vld [vmem:[%s293 + $0x1a10] sm:$0xff]
        %v1227 = vld [vmem:[%s293 + $0x1a18] sm:$0xff]
        %v1228 = vld [vmem:[%s293 + $0x1a20] sm:$0xff]
        %v1229 = vld [vmem:[%s293 + $0x1a28] sm:$0xff]
        %v1230 = vld [vmem:[%s293 + $0x1a30] sm:$0xff]
        %v1231 = vld [vmem:[%s293 + $0x1a38] sm:$0xff]
        %v1232 = vld [vmem:[%s293 + $0x1a40] sm:$0xff]
        %v1233 = vld [vmem:[%s293 + $0x1a48] sm:$0xff]
        %v1234 = vld [vmem:[%s293 + $0x1a50] sm:$0xff]
        %v1235 = vld [vmem:[%s293 + $0x1a58] sm:$0xff]
        %v1236 = vld [vmem:[%s293 + $0x1a60] sm:$0xff]
        %v1237 = vld [vmem:[%s293 + $0x1a68] sm:$0xff]
        %v1238 = vld [vmem:[%s293 + $0x1a70] sm:$0xff]
        %v1239 = vld [vmem:[%s293 + $0x1a78] sm:$0xff]
        %v1240 = vld [vmem:[%s293 + $0x1a80] sm:$0xff]
        %v1241 = vld [vmem:[%s293 + $0x1a88] sm:$0xff]
        %v1242 = vld [vmem:[%s293 + $0x1a90] sm:$0xff]
        %v1243 = vld [vmem:[%s293 + $0x1a98] sm:$0xff]
        %v1244 = vld [vmem:[%s293 + $0x1aa0] sm:$0xff]
        %v1245 = vld [vmem:[%s293 + $0x1aa8] sm:$0xff]
        %v1246 = vld [vmem:[%s293 + $0x1ab0] sm:$0xff]
        %v1247 = vld [vmem:[%s293 + $0x1ab8] sm:$0xff]
        %v1248 = vld [vmem:[%s293 + $0x1ac0] sm:$0xff]
        %v1249 = vld [vmem:[%s293 + $0x1ac8] sm:$0xff]
        %v1250 = vld [vmem:[%s293 + $0x1ad0] sm:$0xff]
        %v1251 = vld [vmem:[%s293 + $0x1ad8] sm:$0xff]
        %v1252 = vld [vmem:[%s293 + $0x1ae0] sm:$0xff]
        %v1253 = vld [vmem:[%s293 + $0x1ae8] sm:$0xff]
        %v1254 = vld [vmem:[%s293 + $0x1af0] sm:$0xff]
        %v1255 = vld [vmem:[%s293 + $0x1af8] sm:$0xff]
        %v1256 = vld [vmem:[%s293 + $0x1b00] sm:$0xff]
        %v1257 = vld [vmem:[%s293 + $0x1b08] sm:$0xff]
        %v1258 = vld [vmem:[%s293 + $0x1b10] sm:$0xff]
        %v1259 = vld [vmem:[%s293 + $0x1b18] sm:$0xff]
        %v1260 = vld [vmem:[%s293 + $0x1b20] sm:$0xff]
        %v1261 = vld [vmem:[%s293 + $0x1b28] sm:$0xff]
        %v1262 = vld [vmem:[%s293 + $0x1b30] sm:$0xff]
        %v1263 = vld [vmem:[%s293 + $0x1b38] sm:$0xff]
        %v1264 = vld [vmem:[%s293 + $0x1b40] sm:$0xff]
        %v1265 = vld [vmem:[%s293 + $0x1b48] sm:$0xff]
        %v1266 = vld [vmem:[%s293 + $0x1b50] sm:$0xff]
        %v1267 = vld [vmem:[%s293 + $0x1b58] sm:$0xff]
        %v1268 = vld [vmem:[%s293 + $0x1b60] sm:$0xff]
        %v1269 = vld [vmem:[%s293 + $0x1b68] sm:$0xff]
        %v1270 = vld [vmem:[%s293 + $0x1b70] sm:$0xff]
        %v1271 = vld [vmem:[%s293 + $0x1b78] sm:$0xff]
        %v1272 = vld [vmem:[%s293 + $0x1b80] sm:$0xff]
        %v1273 = vld [vmem:[%s293 + $0x1b88] sm:$0xff]
        %v1274 = vld [vmem:[%s293 + $0x1b90] sm:$0xff]
        %v1275 = vld [vmem:[%s293 + $0x1b98] sm:$0xff]
        %v1276 = vld [vmem:[%s293 + $0x1ba0] sm:$0xff]
        %v1277 = vld [vmem:[%s293 + $0x1ba8] sm:$0xff]
        %v1278 = vld [vmem:[%s293 + $0x1bb0] sm:$0xff]
        %v1279 = vld [vmem:[%s293 + $0x1bb8] sm:$0xff]
        %v1280 = vld [vmem:[%s293 + $0x1bc0] sm:$0xff]
        %v1281 = vld [vmem:[%s293 + $0x1bc8] sm:$0xff]
        %v1282 = vld [vmem:[%s293 + $0x1bd0] sm:$0xff]
        %v1283 = vld [vmem:[%s293 + $0x1bd8] sm:$0xff]
        %v1284 = vld [vmem:[%s293 + $0x1be0] sm:$0xff]
        %v1285 = vld [vmem:[%s293 + $0x1be8] sm:$0xff]
        %v1286 = vld [vmem:[%s293 + $0x1bf0] sm:$0xff]
        %v1287 = vld [vmem:[%s293 + $0x1bf8] sm:$0xff]
        %v1288 = vld [vmem:[%s293 + $0x1c00] sm:$0xff]
        %v1289 = vld [vmem:[%s293 + $0x1c08] sm:$0xff]
        %v1290 = vld [vmem:[%s293 + $0x1c10] sm:$0xff]
        %v1291 = vld [vmem:[%s293 + $0x1c18] sm:$0xff]
        %v1292 = vld [vmem:[%s293 + $0x1c20] sm:$0xff]
        %v1293 = vld [vmem:[%s293 + $0x1c28] sm:$0xff]
        %v1294 = vld [vmem:[%s293 + $0x1c30] sm:$0xff]
        %v1295 = vld [vmem:[%s293 + $0x1c38] sm:$0xff]
        %v1296 = vld [vmem:[%s293 + $0x1c40] sm:$0xff]
        %v1297 = vld [vmem:[%s293 + $0x1c48] sm:$0xff]
        %v1298 = vld [vmem:[%s293 + $0x1c50] sm:$0xff]
        %v1299 = vld [vmem:[%s293 + $0x1c58] sm:$0xff]
        %v1300 = vld [vmem:[%s293 + $0x1c60] sm:$0xff]
        %v1301 = vld [vmem:[%s293 + $0x1c68] sm:$0xff]
        %v1302 = vld [vmem:[%s293 + $0x1c70] sm:$0xff]
        %v1303 = vld [vmem:[%s293 + $0x1c78] sm:$0xff]
        %v1304 = vld [vmem:[%s293 + $0x1c80] sm:$0xff]
        %v1305 = vld [vmem:[%s293 + $0x1c88] sm:$0xff]
        %v1306 = vld [vmem:[%s293 + $0x1c90] sm:$0xff]
        %v1307 = vld [vmem:[%s293 + $0x1c98] sm:$0xff]
        %v1308 = vld [vmem:[%s293 + $0x1ca0] sm:$0xff]
        %v1309 = vld [vmem:[%s293 + $0x1ca8] sm:$0xff]
        %v1310 = vld [vmem:[%s293 + $0x1cb0] sm:$0xff]
        %v1311 = vld [vmem:[%s293 + $0x1cb8] sm:$0xff]
        %v1312 = vld [vmem:[%s293 + $0x1cc0] sm:$0xff]
        %v1313 = vld [vmem:[%s293 + $0x1cc8] sm:$0xff]
        %v1314 = vld [vmem:[%s293 + $0x1cd0] sm:$0xff]
        %v1315 = vld [vmem:[%s293 + $0x1cd8] sm:$0xff]
        %v1316 = vld [vmem:[%s293 + $0x1ce0] sm:$0xff]
        %v1317 = vld [vmem:[%s293 + $0x1ce8] sm:$0xff]
        %v1318 = vld [vmem:[%s293 + $0x1cf0] sm:$0xff]
        %v1319 = vld [vmem:[%s293 + $0x1cf8] sm:$0xff]
        %v1320 = vld [vmem:[%s293 + $0x1d00] sm:$0xff]
        %v1321 = vld [vmem:[%s293 + $0x1d08] sm:$0xff]
        %v1322 = vld [vmem:[%s293 + $0x1d10] sm:$0xff]
        %v1323 = vld [vmem:[%s293 + $0x1d18] sm:$0xff]
        %v1324 = vld [vmem:[%s293 + $0x1d20] sm:$0xff]
        %v1325 = vld [vmem:[%s293 + $0x1d28] sm:$0xff]
        %v1326 = vld [vmem:[%s293 + $0x1d30] sm:$0xff]
        %v1327 = vld [vmem:[%s293 + $0x1d38] sm:$0xff]
        %v1328 = vld [vmem:[%s293 + $0x1d40] sm:$0xff]
        %v1329 = vld [vmem:[%s293 + $0x1d48] sm:$0xff]
        %v1330 = vld [vmem:[%s293 + $0x1d50] sm:$0xff]
        %v1331 = vld [vmem:[%s293 + $0x1d58] sm:$0xff]
        %v1332 = vld [vmem:[%s293 + $0x1d60] sm:$0xff]
        %v1333 = vld [vmem:[%s293 + $0x1d68] sm:$0xff]
        %v1334 = vld [vmem:[%s293 + $0x1d70] sm:$0xff]
        %v1335 = vld [vmem:[%s293 + $0x1d78] sm:$0xff]
        %v1336 = vld [vmem:[%s293 + $0x1d80] sm:$0xff]
        %v1337 = vld [vmem:[%s293 + $0x1d88] sm:$0xff]
        %v1338 = vld [vmem:[%s293 + $0x1d90] sm:$0xff]
        %v1339 = vld [vmem:[%s293 + $0x1d98] sm:$0xff]
        %v1340 = vld [vmem:[%s293 + $0x1da0] sm:$0xff]
        %v1341 = vld [vmem:[%s293 + $0x1da8] sm:$0xff]
        %v1342 = vld [vmem:[%s293 + $0x1db0] sm:$0xff]
        %v1343 = vld [vmem:[%s293 + $0x1db8] sm:$0xff]
        %v1344 = vld [vmem:[%s293 + $0x1dc0] sm:$0xff]
        %v1345 = vld [vmem:[%s293 + $0x1dc8] sm:$0xff]
        %v1346 = vld [vmem:[%s293 + $0x1dd0] sm:$0xff]
        %v1347 = vld [vmem:[%s293 + $0x1dd8] sm:$0xff]
        %v1348 = vld [vmem:[%s293 + $0x1de0] sm:$0xff]
        %v1349 = vld [vmem:[%s293 + $0x1de8] sm:$0xff]
        %v1350 = vld [vmem:[%s293 + $0x1df0] sm:$0xff]
        %v1351 = vld [vmem:[%s293 + $0x1df8] sm:$0xff]
        %v1352 = vld [vmem:[%s293 + $0x1e00] sm:$0xff]
        %v1353 = vld [vmem:[%s293 + $0x1e08] sm:$0xff]
        %v1354 = vld [vmem:[%s293 + $0x1e10] sm:$0xff]
        %v1355 = vld [vmem:[%s293 + $0x1e18] sm:$0xff]
        %v1356 = vld [vmem:[%s293 + $0x1e20] sm:$0xff]
        %v1357 = vld [vmem:[%s293 + $0x1e28] sm:$0xff]
        %v1358 = vld [vmem:[%s293 + $0x1e30] sm:$0xff]
        %v1359 = vld [vmem:[%s293 + $0x1e38] sm:$0xff]
        %v1360 = vld [vmem:[%s293 + $0x1e40] sm:$0xff]
        %v1361 = vld [vmem:[%s293 + $0x1e48] sm:$0xff]
        %v1362 = vld [vmem:[%s293 + $0x1e50] sm:$0xff]
        %v1363 = vld [vmem:[%s293 + $0x1e58] sm:$0xff]
        %v1364 = vld [vmem:[%s293 + $0x1e60] sm:$0xff]
        %v1365 = vld [vmem:[%s293 + $0x1e68] sm:$0xff]
        %v1366 = vld [vmem:[%s293 + $0x1e70] sm:$0xff]
        %v1367 = vld [vmem:[%s293 + $0x1e78] sm:$0xff]
        %v1368 = vld [vmem:[%s293 + $0x1e80] sm:$0xff]
        %v1369 = vld [vmem:[%s293 + $0x1e88] sm:$0xff]
        %v1370 = vld [vmem:[%s293 + $0x1e90] sm:$0xff]
        %v1371 = vld [vmem:[%s293 + $0x1e98] sm:$0xff]
        %v1372 = vld [vmem:[%s293 + $0x1ea0] sm:$0xff]
        %v1373 = vld [vmem:[%s293 + $0x1ea8] sm:$0xff]
        %v1374 = vld [vmem:[%s293 + $0x1eb0] sm:$0xff]
        %v1375 = vld [vmem:[%s293 + $0x1eb8] sm:$0xff]
        %v1376 = vld [vmem:[%s293 + $0x1ec0] sm:$0xff]
        %v1377 = vld [vmem:[%s293 + $0x1ec8] sm:$0xff]
        %v1378 = vld [vmem:[%s293 + $0x1ed0] sm:$0xff]
        %v1379 = vld [vmem:[%s293 + $0x1ed8] sm:$0xff]
        %v1380 = vld [vmem:[%s293 + $0x1ee0] sm:$0xff]
        %v1381 = vld [vmem:[%s293 + $0x1ee8] sm:$0xff]
        %v1382 = vld [vmem:[%s293 + $0x1ef0] sm:$0xff]
        %v1383 = vld [vmem:[%s293 + $0x1ef8] sm:$0xff]
        %v1384 = vld [vmem:[%s293 + $0x1f00] sm:$0xff]
        %v1385 = vld [vmem:[%s293 + $0x1f08] sm:$0xff]
        %v1386 = vld [vmem:[%s293 + $0x1f10] sm:$0xff]
        %v1387 = vld [vmem:[%s293 + $0x1f18] sm:$0xff]
        %v1388 = vld [vmem:[%s293 + $0x1f20] sm:$0xff]
        %v1389 = vld [vmem:[%s293 + $0x1f28] sm:$0xff]
        %v1390 = vld [vmem:[%s293 + $0x1f30] sm:$0xff]
        %v1391 = vld [vmem:[%s293 + $0x1f38] sm:$0xff]
        %v1392 = vld [vmem:[%s293 + $0x1f40] sm:$0xff]
        %v1393 = vld [vmem:[%s293 + $0x1f48] sm:$0xff]
        %v1394 = vld [vmem:[%s293 + $0x1f50] sm:$0xff]
        %v1395 = vld [vmem:[%s293 + $0x1f58] sm:$0xff]
        %v1396 = vld [vmem:[%s293 + $0x1f60] sm:$0xff]
        %v1397 = vld [vmem:[%s293 + $0x1f68] sm:$0xff]
        %v1398 = vld [vmem:[%s293 + $0x1f70] sm:$0xff]
        %v1399 = vld [vmem:[%s293 + $0x1f78] sm:$0xff]
        %v1400 = vld [vmem:[%s293 + $0x1f80] sm:$0xff]
        %v1401 = vld [vmem:[%s293 + $0x1f88] sm:$0xff]
        %v1402 = vld [vmem:[%s293 + $0x1f90] sm:$0xff]
        %v1403 = vld [vmem:[%s293 + $0x1f98] sm:$0xff]
        %v1404 = vld [vmem:[%s293 + $0x1fa0] sm:$0xff]
        %v1405 = vld [vmem:[%s293 + $0x1fa8] sm:$0xff]
        %v1406 = vld [vmem:[%s293 + $0x1fb0] sm:$0xff]
        %v1407 = vld [vmem:[%s293 + $0x1fb8] sm:$0xff]
        %v1408 = vld [vmem:[%s293 + $0x1fc0] sm:$0xff]
        %v1409 = vld [vmem:[%s293 + $0x1fc8] sm:$0xff]
        %v1410 = vld [vmem:[%s293 + $0x1fd0] sm:$0xff]
        %v1411 = vld [vmem:[%s293 + $0x1fd8] sm:$0xff]
        %v1412 = vld [vmem:[%s293 + $0x1fe0] sm:$0xff]
        %v1413 = vld [vmem:[%s293 + $0x1fe8] sm:$0xff]
        %v1414 = vld [vmem:[%s293 + $0x1ff0] sm:$0xff]
        %v1415 = vld [vmem:[%s293 + $0x1ff8] sm:$0xff]
        %v1416 = vld [vmem:[%s293 + $0x2000] sm:$0xff]
        %v1417 = vld [vmem:[%s293 + $0x2008] sm:$0xff]
        %v1418 = vld [vmem:[%s293 + $0x2010] sm:$0xff]
        %v1419 = vld [vmem:[%s293 + $0x2018] sm:$0xff]
        %v1420 = vld [vmem:[%s293 + $0x2020] sm:$0xff]
        %v1421 = vld [vmem:[%s293 + $0x2028] sm:$0xff]
        %v1422 = vld [vmem:[%s293 + $0x2030] sm:$0xff]
        %v1423 = vld [vmem:[%s293 + $0x2038] sm:$0xff]
        %v1424 = vld [vmem:[%s293 + $0x2040] sm:$0xff]
        %v1425 = vld [vmem:[%s293 + $0x2048] sm:$0xff]
        %v1426 = vld [vmem:[%s293 + $0x2050] sm:$0xff]
        %v1427 = vld [vmem:[%s293 + $0x2058] sm:$0xff]
        %v1428 = vld [vmem:[%s293 + $0x2060] sm:$0xff]
        %v1429 = vld [vmem:[%s293 + $0x2068] sm:$0xff]
        %v1430 = vld [vmem:[%s293 + $0x2070] sm:$0xff]
        %v1431 = vld [vmem:[%s293 + $0x2078] sm:$0xff]
        %v1432 = vld [vmem:[%s293 + $0x2080] sm:$0xff]
        %v1433 = vld [vmem:[%s293 + $0x2088] sm:$0xff]
        %v1434 = vld [vmem:[%s293 + $0x2090] sm:$0xff]
        %v1435 = vld [vmem:[%s293 + $0x2098] sm:$0xff]
        %v1436 = vld [vmem:[%s293 + $0x20a0] sm:$0xff]
        %v1437 = vld [vmem:[%s293 + $0x20a8] sm:$0xff]
        %v1438 = vld [vmem:[%s293 + $0x20b0] sm:$0xff]
        %v1439 = vld [vmem:[%s293 + $0x20b8] sm:$0xff]
        %v1440 = vld [vmem:[%s293 + $0x20c0] sm:$0xff]
        %v1441 = vld [vmem:[%s293 + $0x20c8] sm:$0xff]
        %v1442 = vld [vmem:[%s293 + $0x20d0] sm:$0xff]
        %v1443 = vld [vmem:[%s293 + $0x20d8] sm:$0xff]
        %v1444 = vld [vmem:[%s293 + $0x20e0] sm:$0xff]
        %v1445 = vld [vmem:[%s293 + $0x20e8] sm:$0xff]
        %v1446 = vld [vmem:[%s293 + $0x20f0] sm:$0xff]
        %v1447 = vld [vmem:[%s293 + $0x20f8] sm:$0xff]
        %v1448 = vld [vmem:[%s293 + $0x2100] sm:$0xff]
        %v1449 = vld [vmem:[%s293 + $0x2108] sm:$0xff]
        %v1450 = vld [vmem:[%s293 + $0x2110] sm:$0xff]
        %v1451 = vld [vmem:[%s293 + $0x2118] sm:$0xff]
        %v1452 = vld [vmem:[%s293 + $0x2120] sm:$0xff]
        %v1453 = vld [vmem:[%s293 + $0x2128] sm:$0xff]
        %v1454 = vld [vmem:[%s293 + $0x2130] sm:$0xff]
        %v1455 = vld [vmem:[%s293 + $0x2138] sm:$0xff]
        %v1456 = vld [vmem:[%s293 + $0x2140] sm:$0xff]
        %v1457 = vld [vmem:[%s293 + $0x2148] sm:$0xff]
        %v1458 = vld [vmem:[%s293 + $0x2150] sm:$0xff]
        %v1459 = vld [vmem:[%s293 + $0x2158] sm:$0xff]
        %v1460 = vld [vmem:[%s293 + $0x2160] sm:$0xff]
        %v1461 = vld [vmem:[%s293 + $0x2168] sm:$0xff]
        %v1462 = vld [vmem:[%s293 + $0x2170] sm:$0xff]
        %v1463 = vld [vmem:[%s293 + $0x2178] sm:$0xff]
        %v1464 = vld [vmem:[%s293 + $0x2180] sm:$0xff]
        %v1465 = vld [vmem:[%s293 + $0x2188] sm:$0xff]
        %v1466 = vld [vmem:[%s293 + $0x2190] sm:$0xff]
        %v1467 = vld [vmem:[%s293 + $0x2198] sm:$0xff]
        %v1468 = vld [vmem:[%s293 + $0x21a0] sm:$0xff]
        %v1469 = vld [vmem:[%s293 + $0x21a8] sm:$0xff]
        %v1470 = vld [vmem:[%s293 + $0x21b0] sm:$0xff]
        %v1471 = vld [vmem:[%s293 + $0x21b8] sm:$0xff]
        %v1472 = vld [vmem:[%s293 + $0x21c0] sm:$0xff]
        %v1473 = vld [vmem:[%s293 + $0x21c8] sm:$0xff]
        %v1474 = vld [vmem:[%s293 + $0x21d0] sm:$0xff]
        %v1475 = vld [vmem:[%s293 + $0x21d8] sm:$0xff]
        %v1476 = vld [vmem:[%s293 + $0x21e0] sm:$0xff]
        %v1477 = vld [vmem:[%s293 + $0x21e8] sm:$0xff]
        %v1478 = vld [vmem:[%s293 + $0x21f0] sm:$0xff]
        %v1479 = vld [vmem:[%s293 + $0x21f8] sm:$0xff]
        %v1480 = vld [vmem:[%s293 + $0x2200] sm:$0xff]
        %v1481 = vld [vmem:[%s293 + $0x2208] sm:$0xff]
        %v1482 = vld [vmem:[%s293 + $0x2210] sm:$0xff]
        %v1483 = vld [vmem:[%s293 + $0x2218] sm:$0xff]
        %v1484 = vld [vmem:[%s293 + $0x2220] sm:$0xff]
        %v1485 = vld [vmem:[%s293 + $0x2228] sm:$0xff]
        %v1486 = vld [vmem:[%s293 + $0x2230] sm:$0xff]
        %v1487 = vld [vmem:[%s293 + $0x2238] sm:$0xff]
        %v1488 = vld [vmem:[%s293 + $0x2240] sm:$0xff]
        %v1489 = vld [vmem:[%s293 + $0x2248] sm:$0xff]
        %v1490 = vld [vmem:[%s293 + $0x2250] sm:$0xff]
        %v1491 = vld [vmem:[%s293 + $0x2258] sm:$0xff]
        %v1492 = vld [vmem:[%s293 + $0x2260] sm:$0xff]
        %v1493 = vld [vmem:[%s293 + $0x2268] sm:$0xff]
        %v1494 = vld [vmem:[%s293 + $0x2270] sm:$0xff]
        %v1495 = vld [vmem:[%s293 + $0x2278] sm:$0xff]
        %v1496 = vld [vmem:[%s293 + $0x2280] sm:$0xff]
        %v1497 = vld [vmem:[%s293 + $0x2288] sm:$0xff]
        %v1498 = vld [vmem:[%s293 + $0x2290] sm:$0xff]
        %v1499 = vld [vmem:[%s293 + $0x2298] sm:$0xff]
        %v1500 = vld [vmem:[%s293 + $0x22a0] sm:$0xff]
        %v1501 = vld [vmem:[%s293 + $0x22a8] sm:$0xff]
        %v1502 = vld [vmem:[%s293 + $0x22b0] sm:$0xff]
        %v1503 = vld [vmem:[%s293 + $0x22b8] sm:$0xff]
        %v1504 = vld [vmem:[%s293 + $0x22c0] sm:$0xff]
        %v1505 = vld [vmem:[%s293 + $0x22c8] sm:$0xff]
        %v1506 = vld [vmem:[%s293 + $0x22d0] sm:$0xff]
        %v1507 = vld [vmem:[%s293 + $0x22d8] sm:$0xff]
        %v1508 = vld [vmem:[%s293 + $0x22e0] sm:$0xff]
        %v1509 = vld [vmem:[%s293 + $0x22e8] sm:$0xff]
        %v1510 = vld [vmem:[%s293 + $0x22f0] sm:$0xff]
        %v1511 = vld [vmem:[%s293 + $0x22f8] sm:$0xff]
        %v1512 = vld [vmem:[%s293 + $0x2300] sm:$0xff]
        %v1513 = vld [vmem:[%s293 + $0x2308] sm:$0xff]
        %v1514 = vld [vmem:[%s293 + $0x2310] sm:$0xff]
        %v1515 = vld [vmem:[%s293 + $0x2318] sm:$0xff]
        %v1516 = vld [vmem:[%s293 + $0x2320] sm:$0xff]
        %v1517 = vld [vmem:[%s293 + $0x2328] sm:$0xff]
        %v1518 = vld [vmem:[%s293 + $0x2330] sm:$0xff]
        %v1519 = vld [vmem:[%s293 + $0x2338] sm:$0xff]
        %v1520 = vld [vmem:[%s293 + $0x2340] sm:$0xff]
        %v1521 = vld [vmem:[%s293 + $0x2348] sm:$0xff]
        %v1522 = vld [vmem:[%s293 + $0x2350] sm:$0xff]
        %v1523 = vld [vmem:[%s293 + $0x2358] sm:$0xff]
        %v1524 = vld [vmem:[%s293 + $0x2360] sm:$0xff]
        %v1525 = vld [vmem:[%s293 + $0x2368] sm:$0xff]
        %v1526 = vld [vmem:[%s293 + $0x2370] sm:$0xff]
        %v1527 = vld [vmem:[%s293 + $0x2378] sm:$0xff]
        %v1528 = vld [vmem:[%s293 + $0x2380] sm:$0xff]
        %v1529 = vld [vmem:[%s293 + $0x2388] sm:$0xff]
        %v1530 = vld [vmem:[%s293 + $0x2390] sm:$0xff]
        %v1531 = vld [vmem:[%s293 + $0x2398] sm:$0xff]
        %v1532 = vld [vmem:[%s293 + $0x23a0] sm:$0xff]
        %v1533 = vld [vmem:[%s293 + $0x23a8] sm:$0xff]
        %v1534 = vld [vmem:[%s293 + $0x23b0] sm:$0xff]
        %v1535 = vld [vmem:[%s293 + $0x23b8] sm:$0xff]
        %v1536 = vld [vmem:[%s293 + $0x23c0] sm:$0xff]
        %v1537 = vld [vmem:[%s293 + $0x23c8] sm:$0xff]
        %v1538 = vld [vmem:[%s293 + $0x23d0] sm:$0xff]
        %v1539 = vld [vmem:[%s293 + $0x23d8] sm:$0xff]
        %v1540 = vld [vmem:[%s293 + $0x23e0] sm:$0xff]
        %v1541 = vld [vmem:[%s293 + $0x23e8] sm:$0xff]
        %v1542 = vld [vmem:[%s293 + $0x23f0] sm:$0xff]
        %v1543 = vld [vmem:[%s293 + $0x23f8] sm:$0xff]
        %v1544 = vld [vmem:[%s293 + $0x2400] sm:$0xff]
        %v1545 = vld [vmem:[%s293 + $0x2408] sm:$0xff]
        %v1546 = vld [vmem:[%s293 + $0x2410] sm:$0xff]
        %v1547 = vld [vmem:[%s293 + $0x2418] sm:$0xff]
        %v1548 = vld [vmem:[%s293 + $0x2420] sm:$0xff]
        %v1549 = vld [vmem:[%s293 + $0x2428] sm:$0xff]
        %v1550 = vld [vmem:[%s293 + $0x2430] sm:$0xff]
        %v1551 = vld [vmem:[%s293 + $0x2438] sm:$0xff]
        %v1552 = vld [vmem:[%s293 + $0x2440] sm:$0xff]
        %v1553 = vld [vmem:[%s293 + $0x2448] sm:$0xff]
        %v1554 = vld [vmem:[%s293 + $0x2450] sm:$0xff]
        %v1555 = vld [vmem:[%s293 + $0x2458] sm:$0xff]
        %v1556 = vld [vmem:[%s293 + $0x2460] sm:$0xff]
        %v1557 = vld [vmem:[%s293 + $0x2468] sm:$0xff]
        %v1558 = vld [vmem:[%s293 + $0x2470] sm:$0xff]
        %v1559 = vld [vmem:[%s293 + $0x2478] sm:$0xff]
        %v1560 = vld [vmem:[%s293 + $0x2480] sm:$0xff]
        %v1561 = vld [vmem:[%s293 + $0x2488] sm:$0xff]
        %v1562 = vld [vmem:[%s293 + $0x2490] sm:$0xff]
        %v1563 = vld [vmem:[%s293 + $0x2498] sm:$0xff]
        %v1564 = vld [vmem:[%s293 + $0x24a0] sm:$0xff]
        %v1565 = vld [vmem:[%s293 + $0x24a8] sm:$0xff]
        %v1566 = vld [vmem:[%s293 + $0x24b0] sm:$0xff]
        %v1567 = vld [vmem:[%s293 + $0x24b8] sm:$0xff]
        %v1568 = vld [vmem:[%s293 + $0x24c0] sm:$0xff]
        %v1569 = vld [vmem:[%s293 + $0x24c8] sm:$0xff]
        %v1570 = vld [vmem:[%s293 + $0x24d0] sm:$0xff]
        %v1571 = vld [vmem:[%s293 + $0x24d8] sm:$0xff]
        %v1572 = vld [vmem:[%s293 + $0x24e0] sm:$0xff]
        %v1573 = vld [vmem:[%s293 + $0x24e8] sm:$0xff]
        %v1574 = vld [vmem:[%s293 + $0x24f0] sm:$0xff]
        %v1575 = vld [vmem:[%s293 + $0x24f8] sm:$0xff]
        %v1576 = vld [vmem:[%s293 + $0x2500] sm:$0xff]
        %v1577 = vld [vmem:[%s293 + $0x2508] sm:$0xff]
        %v1578 = vld [vmem:[%s293 + $0x2510] sm:$0xff]
        %v1579 = vld [vmem:[%s293 + $0x2518] sm:$0xff]
        %v1580 = vld [vmem:[%s293 + $0x2520] sm:$0xff]
        %v1581 = vld [vmem:[%s293 + $0x2528] sm:$0xff]
        %v1582 = vld [vmem:[%s293 + $0x2530] sm:$0xff]
        %v1583 = vld [vmem:[%s293 + $0x2538] sm:$0xff]
        %v1584 = vld [vmem:[%s293 + $0x2540] sm:$0xff]
        %v1585 = vld [vmem:[%s293 + $0x2548] sm:$0xff]
        %v1586 = vld [vmem:[%s293 + $0x2550] sm:$0xff]
        %v1587 = vld [vmem:[%s293 + $0x2558] sm:$0xff]
        %v1588 = vld [vmem:[%s293 + $0x2560] sm:$0xff]
        %v1589 = vld [vmem:[%s293 + $0x2568] sm:$0xff]
        %v1590 = vld [vmem:[%s293 + $0x2570] sm:$0xff]
        %v1591 = vld [vmem:[%s293 + $0x2578] sm:$0xff]
        %v1592 = vld [vmem:[%s293 + $0x2580] sm:$0xff]
        %v1593 = vld [vmem:[%s293 + $0x2588] sm:$0xff]
        %v1594 = vld [vmem:[%s293 + $0x2590] sm:$0xff]
        %v1595 = vld [vmem:[%s293 + $0x2598] sm:$0xff]
        %v1596 = vld [vmem:[%s293 + $0x25a0] sm:$0xff]
        %v1597 = vld [vmem:[%s293 + $0x25a8] sm:$0xff]
        %v1598 = vld [vmem:[%s293 + $0x25b0] sm:$0xff]
        %v1599 = vld [vmem:[%s293 + $0x25b8] sm:$0xff]
        %v1600 = vld [vmem:[%s293 + $0x25c0] sm:$0xff]
        %v1601 = vld [vmem:[%s293 + $0x25c8] sm:$0xff]
        %v1602 = vld [vmem:[%s293 + $0x25d0] sm:$0xff]
        %v1603 = vld [vmem:[%s293 + $0x25d8] sm:$0xff]
        %v1604 = vld [vmem:[%s293 + $0x25e0] sm:$0xff]
        %v1605 = vld [vmem:[%s293 + $0x25e8] sm:$0xff]
        %v1606 = vld [vmem:[%s293 + $0x25f0] sm:$0xff]
        %v1607 = vld [vmem:[%s293 + $0x25f8] sm:$0xff]
        %v1608 = vld [vmem:[%s293 + $0x2600] sm:$0xff]
        %v1609 = vld [vmem:[%s293 + $0x2608] sm:$0xff]
        %v1610 = vld [vmem:[%s293 + $0x2610] sm:$0xff]
        %v1611 = vld [vmem:[%s293 + $0x2618] sm:$0xff]
        %v1612 = vld [vmem:[%s293 + $0x2620] sm:$0xff]
        %v1613 = vld [vmem:[%s293 + $0x2628] sm:$0xff]
        %v1614 = vld [vmem:[%s293 + $0x2630] sm:$0xff]
        %v1615 = vld [vmem:[%s293 + $0x2638] sm:$0xff]
        %v1616 = vld [vmem:[%s293 + $0x2640] sm:$0xff]
        %v1617 = vld [vmem:[%s293 + $0x2648] sm:$0xff]
        %v1618 = vld [vmem:[%s293 + $0x2650] sm:$0xff]
        %v1619 = vld [vmem:[%s293 + $0x2658] sm:$0xff]
        %v1620 = vld [vmem:[%s293 + $0x2660] sm:$0xff]
        %v1621 = vld [vmem:[%s293 + $0x2668] sm:$0xff]
        %v1622 = vld [vmem:[%s293 + $0x2670] sm:$0xff]
        %v1623 = vld [vmem:[%s293 + $0x2678] sm:$0xff]
        %v1624 = vld [vmem:[%s293 + $0x2680] sm:$0xff]
        %v1625 = vld [vmem:[%s293 + $0x2688] sm:$0xff]
        %v1626 = vld [vmem:[%s293 + $0x2690] sm:$0xff]
        %v1627 = vld [vmem:[%s293 + $0x2698] sm:$0xff]
        %v1628 = vld [vmem:[%s293 + $0x26a0] sm:$0xff]
        %v1629 = vld [vmem:[%s293 + $0x26a8] sm:$0xff]
        %v1630 = vld [vmem:[%s293 + $0x26b0] sm:$0xff]
        %v1631 = vld [vmem:[%s293 + $0x26b8] sm:$0xff]
        %v1632 = vld [vmem:[%s293 + $0x26c0] sm:$0xff]
        %v1633 = vld [vmem:[%s293 + $0x26c8] sm:$0xff]
        %v1634 = vld [vmem:[%s293 + $0x26d0] sm:$0xff]
        %v1635 = vld [vmem:[%s293 + $0x26d8] sm:$0xff]
        %v1636 = vld [vmem:[%s293 + $0x26e0] sm:$0xff]
        %v1637 = vld [vmem:[%s293 + $0x26e8] sm:$0xff]
        %v1638 = vld [vmem:[%s293 + $0x26f0] sm:$0xff]
        %v1639 = vld [vmem:[%s293 + $0x26f8] sm:$0xff]
        %v1640 = vld [vmem:[%s293 + $0x2700] sm:$0xff]
        %v1641 = vld [vmem:[%s293 + $0x2708] sm:$0xff]
        %v1642 = vld [vmem:[%s293 + $0x2710] sm:$0xff]
        %v1643 = vld [vmem:[%s293 + $0x2718] sm:$0xff]
        %v1644 = vld [vmem:[%s293 + $0x2720] sm:$0xff]
        %v1645 = vld [vmem:[%s293 + $0x2728] sm:$0xff]
        %v1646 = vld [vmem:[%s293 + $0x2730] sm:$0xff]
        %v1647 = vld [vmem:[%s293 + $0x2738] sm:$0xff]
        %v1648 = vld [vmem:[%s293 + $0x2740] sm:$0xff]
        %v1649 = vld [vmem:[%s293 + $0x2748] sm:$0xff]
        %v1650 = vld [vmem:[%s293 + $0x2750] sm:$0xff]
        %v1651 = vld [vmem:[%s293 + $0x2758] sm:$0xff]
        %v1652 = vld [vmem:[%s293 + $0x2760] sm:$0xff]
        %v1653 = vld [vmem:[%s293 + $0x2768] sm:$0xff]
        %v1654 = vld [vmem:[%s293 + $0x2770] sm:$0xff]
        %v1655 = vld [vmem:[%s293 + $0x2778] sm:$0xff]
        %v1656 = vld [vmem:[%s293 + $0x2780] sm:$0xff]
        %v1657 = vld [vmem:[%s293 + $0x2788] sm:$0xff]
        %v1658 = vld [vmem:[%s293 + $0x2790] sm:$0xff]
        %v1659 = vld [vmem:[%s293 + $0x2798] sm:$0xff]
        %v1660 = vld [vmem:[%s293 + $0x27a0] sm:$0xff]
        %v1661 = vld [vmem:[%s293 + $0x27a8] sm:$0xff]
        %v1662 = vld [vmem:[%s293 + $0x27b0] sm:$0xff]
        %v1663 = vld [vmem:[%s293 + $0x27b8] sm:$0xff]
        %v1664 = vld [vmem:[%s293 + $0x27c0] sm:$0xff]
        %v1665 = vld [vmem:[%s293 + $0x27c8] sm:$0xff]
        %v1666 = vld [vmem:[%s293 + $0x27d0] sm:$0xff]
        %v1667 = vld [vmem:[%s293 + $0x27d8] sm:$0xff]
        %v1668 = vld [vmem:[%s293 + $0x27e0] sm:$0xff]
        %v1669 = vld [vmem:[%s293 + $0x27e8] sm:$0xff]
        %v1670 = vld [vmem:[%s293 + $0x27f0] sm:$0xff]
        %v1671 = vld [vmem:[%s293 + $0x27f8] sm:$0xff]
        %v1672 = vld [vmem:[%s293 + $0x2800] sm:$0xff]
        %v1673 = vld [vmem:[%s293 + $0x2808] sm:$0xff]
        %v1674 = vld [vmem:[%s293 + $0x2810] sm:$0xff]
        %v1675 = vld [vmem:[%s293 + $0x2818] sm:$0xff]
        %v1676 = vld [vmem:[%s293 + $0x2820] sm:$0xff]
        %v1677 = vld [vmem:[%s293 + $0x2828] sm:$0xff]
        %v1678 = vld [vmem:[%s293 + $0x2830] sm:$0xff]
        %v1679 = vld [vmem:[%s293 + $0x2838] sm:$0xff]
        %v1680 = vld [vmem:[%s293 + $0x2840] sm:$0xff]
        %v1681 = vld [vmem:[%s293 + $0x2848] sm:$0xff]
        %v1682 = vld [vmem:[%s293 + $0x2850] sm:$0xff]
        %v1683 = vld [vmem:[%s293 + $0x2858] sm:$0xff]
        %v1684 = vld [vmem:[%s293 + $0x2860] sm:$0xff]
        %v1685 = vld [vmem:[%s293 + $0x2868] sm:$0xff]
        %v1686 = vld [vmem:[%s293 + $0x2870] sm:$0xff]
        %v1687 = vld [vmem:[%s293 + $0x2878] sm:$0xff]
        %v1688 = vld [vmem:[%s293 + $0x2880] sm:$0xff]
        %v1689 = vld [vmem:[%s293 + $0x2888] sm:$0xff]
        %v1690 = vld [vmem:[%s293 + $0x2890] sm:$0xff]
        %v1691 = vld [vmem:[%s293 + $0x2898] sm:$0xff]
        %v1692 = vld [vmem:[%s293 + $0x28a0] sm:$0xff]
        %v1693 = vld [vmem:[%s293 + $0x28a8] sm:$0xff]
        %v1694 = vld [vmem:[%s293 + $0x28b0] sm:$0xff]
        %v1695 = vld [vmem:[%s293 + $0x28b8] sm:$0xff]
        %v1696 = vld [vmem:[%s293 + $0x28c0] sm:$0xff]
        %v1697 = vld [vmem:[%s293 + $0x28c8] sm:$0xff]
        %v1698 = vld [vmem:[%s293 + $0x28d0] sm:$0xff]
        %v1699 = vld [vmem:[%s293 + $0x28d8] sm:$0xff]
        %v1700 = vld [vmem:[%s293 + $0x28e0] sm:$0xff]
        %v1701 = vld [vmem:[%s293 + $0x28e8] sm:$0xff]
        %v1702 = vld [vmem:[%s293 + $0x28f0] sm:$0xff]
        %v1703 = vld [vmem:[%s293 + $0x28f8] sm:$0xff]
        %v1704 = vld [vmem:[%s293 + $0x2900] sm:$0xff]
        %v1705 = vld [vmem:[%s293 + $0x2908] sm:$0xff]
        %v1706 = vld [vmem:[%s293 + $0x2910] sm:$0xff]
        %v1707 = vld [vmem:[%s293 + $0x2918] sm:$0xff]
        %v1708 = vld [vmem:[%s293 + $0x2920] sm:$0xff]
        %v1709 = vld [vmem:[%s293 + $0x2928] sm:$0xff]
        %v1710 = vld [vmem:[%s293 + $0x2930] sm:$0xff]
        %v1711 = vld [vmem:[%s293 + $0x2938] sm:$0xff]
        %v1712 = vld [vmem:[%s293 + $0x2940] sm:$0xff]
        %v1713 = vld [vmem:[%s293 + $0x2948] sm:$0xff]
        %v1714 = vld [vmem:[%s293 + $0x2950] sm:$0xff]
        %v1715 = vld [vmem:[%s293 + $0x2958] sm:$0xff]
        %v1716 = vld [vmem:[%s293 + $0x2960] sm:$0xff]
        %v1717 = vld [vmem:[%s293 + $0x2968] sm:$0xff]
        %v1718 = vld [vmem:[%s293 + $0x2970] sm:$0xff]
        %v1719 = vld [vmem:[%s293 + $0x2978] sm:$0xff]
        %v1720 = vld [vmem:[%s293 + $0x2980] sm:$0xff]
        %v1721 = vld [vmem:[%s293 + $0x2988] sm:$0xff]
        %v1722 = vld [vmem:[%s293 + $0x2990] sm:$0xff]
        %v1723 = vld [vmem:[%s293 + $0x2998] sm:$0xff]
        %v1724 = vld [vmem:[%s293 + $0x29a0] sm:$0xff]
        %v1725 = vld [vmem:[%s293 + $0x29a8] sm:$0xff]
        %v1726 = vld [vmem:[%s293 + $0x29b0] sm:$0xff]
        %v1727 = vld [vmem:[%s293 + $0x29b8] sm:$0xff]
        %v1728 = vld [vmem:[%s293 + $0x29c0] sm:$0xff]
        %v1729 = vld [vmem:[%s293 + $0x29c8] sm:$0xff]
        %v1730 = vld [vmem:[%s293 + $0x29d0] sm:$0xff]
        %v1731 = vld [vmem:[%s293 + $0x29d8] sm:$0xff]
        %v1732 = vld [vmem:[%s293 + $0x29e0] sm:$0xff]
        %v1733 = vld [vmem:[%s293 + $0x29e8] sm:$0xff]
        %v1734 = vld [vmem:[%s293 + $0x29f0] sm:$0xff]
        %v1735 = vld [vmem:[%s293 + $0x29f8] sm:$0xff]
        %v1736 = vld [vmem:[%s293 + $0x2a00] sm:$0xff]
        %v1737 = vld [vmem:[%s293 + $0x2a08] sm:$0xff]
        %v1738 = vld [vmem:[%s293 + $0x2a10] sm:$0xff]
        %v1739 = vld [vmem:[%s293 + $0x2a18] sm:$0xff]
        %v1740 = vld [vmem:[%s293 + $0x2a20] sm:$0xff]
        %v1741 = vld [vmem:[%s293 + $0x2a28] sm:$0xff]
        %v1742 = vld [vmem:[%s293 + $0x2a30] sm:$0xff]
        %v1743 = vld [vmem:[%s293 + $0x2a38] sm:$0xff]
        %v1744 = vld [vmem:[%s293 + $0x2a40] sm:$0xff]
        %v1745 = vld [vmem:[%s293 + $0x2a48] sm:$0xff]
        %v1746 = vld [vmem:[%s293 + $0x2a50] sm:$0xff]
        %v1747 = vld [vmem:[%s293 + $0x2a58] sm:$0xff]
        %v1748 = vld [vmem:[%s293 + $0x2a60] sm:$0xff]
        %v1749 = vld [vmem:[%s293 + $0x2a68] sm:$0xff]
        %v1750 = vld [vmem:[%s293 + $0x2a70] sm:$0xff]
        %v1751 = vld [vmem:[%s293 + $0x2a78] sm:$0xff]
        %v1752 = vld [vmem:[%s293 + $0x2a80] sm:$0xff]
        %v1753 = vld [vmem:[%s293 + $0x2a88] sm:$0xff]
        %v1754 = vld [vmem:[%s293 + $0x2a90] sm:$0xff]
        %v1755 = vld [vmem:[%s293 + $0x2a98] sm:$0xff]
        %v1756 = vld [vmem:[%s293 + $0x2aa0] sm:$0xff]
        %v1757 = vld [vmem:[%s293 + $0x2aa8] sm:$0xff]
        %v1758 = vld [vmem:[%s293 + $0x2ab0] sm:$0xff]
        %v1759 = vld [vmem:[%s293 + $0x2ab8] sm:$0xff]
        %v1760 = vld [vmem:[%s293 + $0x2ac0] sm:$0xff]
        %v1761 = vld [vmem:[%s293 + $0x2ac8] sm:$0xff]
        %v1762 = vld [vmem:[%s293 + $0x2ad0] sm:$0xff]
        %v1763 = vld [vmem:[%s293 + $0x2ad8] sm:$0xff]
        %v1764 = vld [vmem:[%s293 + $0x2ae0] sm:$0xff]
        %v1765 = vld [vmem:[%s293 + $0x2ae8] sm:$0xff]
        %v1766 = vld [vmem:[%s293 + $0x2af0] sm:$0xff]
        %v1767 = vld [vmem:[%s293 + $0x2af8] sm:$0xff]
        %v1768 = vld [vmem:[%s293 + $0x2b00] sm:$0xff]
        %v1769 = vld [vmem:[%s293 + $0x2b08] sm:$0xff]
        %v1770 = vld [vmem:[%s293 + $0x2b10] sm:$0xff]
        %v1771 = vld [vmem:[%s293 + $0x2b18] sm:$0xff]
        %v1772 = vld [vmem:[%s293 + $0x2b20] sm:$0xff]
        %v1773 = vld [vmem:[%s293 + $0x2b28] sm:$0xff]
        %v1774 = vld [vmem:[%s293 + $0x2b30] sm:$0xff]
        %v1775 = vld [vmem:[%s293 + $0x2b38] sm:$0xff]
        %v1776 = vld [vmem:[%s293 + $0x2b40] sm:$0xff]
        %v1777 = vld [vmem:[%s293 + $0x2b48] sm:$0xff]
        %v1778 = vld [vmem:[%s293 + $0x2b50] sm:$0xff]
        %v1779 = vld [vmem:[%s293 + $0x2b58] sm:$0xff]
        %v1780 = vld [vmem:[%s293 + $0x2b60] sm:$0xff]
        %v1781 = vld [vmem:[%s293 + $0x2b68] sm:$0xff]
        %v1782 = vld [vmem:[%s293 + $0x2b70] sm:$0xff]
        %v1783 = vld [vmem:[%s293 + $0x2b78] sm:$0xff]
        %v1784 = vld [vmem:[%s293 + $0x2b80] sm:$0xff]
        %v1785 = vld [vmem:[%s293 + $0x2b88] sm:$0xff]
        %v1786 = vld [vmem:[%s293 + $0x2b90] sm:$0xff]
        %v1787 = vld [vmem:[%s293 + $0x2b98] sm:$0xff]
        %v1788 = vld [vmem:[%s293 + $0x2ba0] sm:$0xff]
        %v1789 = vld [vmem:[%s293 + $0x2ba8] sm:$0xff]
        %v1790 = vld [vmem:[%s293 + $0x2bb0] sm:$0xff]
        %v1791 = vld [vmem:[%s293 + $0x2bb8] sm:$0xff]
        %v1792 = vld [vmem:[%s293 + $0x2bc0] sm:$0xff]
        %v1793 = vld [vmem:[%s293 + $0x2bc8] sm:$0xff]
        %v1794 = vld [vmem:[%s293 + $0x2bd0] sm:$0xff]
        %v1795 = vld [vmem:[%s293 + $0x2bd8] sm:$0xff]
        %v1796 = vld [vmem:[%s293 + $0x2be0] sm:$0xff]
        %v1797 = vld [vmem:[%s293 + $0x2be8] sm:$0xff]
        %v1798 = vld [vmem:[%s293 + $0x2bf0] sm:$0xff]
        %v1799 = vld [vmem:[%s293 + $0x2bf8] sm:$0xff]
        %v1800 = vld [vmem:[%s293 + $0x2c00] sm:$0xff]
        %v1801 = vld [vmem:[%s293 + $0x2c08] sm:$0xff]
        %v1802 = vld [vmem:[%s293 + $0x2c10] sm:$0xff]
        %v1803 = vld [vmem:[%s293 + $0x2c18] sm:$0xff]
        %v1804 = vld [vmem:[%s293 + $0x2c20] sm:$0xff]
        %v1805 = vld [vmem:[%s293 + $0x2c28] sm:$0xff]
        %v1806 = vld [vmem:[%s293 + $0x2c30] sm:$0xff]
        %v1807 = vld [vmem:[%s293 + $0x2c38] sm:$0xff]
        %v1808 = vld [vmem:[%s293 + $0x2c40] sm:$0xff]
        %v1809 = vld [vmem:[%s293 + $0x2c48] sm:$0xff]
        %v1810 = vld [vmem:[%s293 + $0x2c50] sm:$0xff]
        %v1811 = vld [vmem:[%s293 + $0x2c58] sm:$0xff]
        %v1812 = vld [vmem:[%s293 + $0x2c60] sm:$0xff]
        %v1813 = vld [vmem:[%s293 + $0x2c68] sm:$0xff]
        %v1814 = vld [vmem:[%s293 + $0x2c70] sm:$0xff]
        %v1815 = vld [vmem:[%s293 + $0x2c78] sm:$0xff]
        %v1816 = vld [vmem:[%s293 + $0x2c80] sm:$0xff]
        %v1817 = vld [vmem:[%s293 + $0x2c88] sm:$0xff]
        %v1818 = vld [vmem:[%s293 + $0x2c90] sm:$0xff]
        %v1819 = vld [vmem:[%s293 + $0x2c98] sm:$0xff]
        %v1820 = vld [vmem:[%s293 + $0x2ca0] sm:$0xff]
        %v1821 = vld [vmem:[%s293 + $0x2ca8] sm:$0xff]
        %v1822 = vld [vmem:[%s293 + $0x2cb0] sm:$0xff]
        %v1823 = vld [vmem:[%s293 + $0x2cb8] sm:$0xff]
        %v1824 = vld [vmem:[%s293 + $0x2cc0] sm:$0xff]
        %v1825 = vld [vmem:[%s293 + $0x2cc8] sm:$0xff]
        %v1826 = vld [vmem:[%s293 + $0x2cd0] sm:$0xff]
        %v1827 = vld [vmem:[%s293 + $0x2cd8] sm:$0xff]
        %v1828 = vld [vmem:[%s293 + $0x2ce0] sm:$0xff]
        %v1829 = vld [vmem:[%s293 + $0x2ce8] sm:$0xff]
        %v1830 = vld [vmem:[%s293 + $0x2cf0] sm:$0xff]
        %v1831 = vld [vmem:[%s293 + $0x2cf8] sm:$0xff]
        %v1832 = vld [vmem:[%s293 + $0x2d00] sm:$0xff]
        %v1833 = vld [vmem:[%s293 + $0x2d08] sm:$0xff]
        %v1834 = vld [vmem:[%s293 + $0x2d10] sm:$0xff]
        %v1835 = vld [vmem:[%s293 + $0x2d18] sm:$0xff]
        %v1836 = vld [vmem:[%s293 + $0x2d20] sm:$0xff]
        %v1837 = vld [vmem:[%s293 + $0x2d28] sm:$0xff]
        %v1838 = vld [vmem:[%s293 + $0x2d30] sm:$0xff]
        %v1839 = vld [vmem:[%s293 + $0x2d38] sm:$0xff]
        %v1840 = vld [vmem:[%s293 + $0x2d40] sm:$0xff]
        %v1841 = vld [vmem:[%s293 + $0x2d48] sm:$0xff]
        %v1842 = vld [vmem:[%s293 + $0x2d50] sm:$0xff]
        %v1843 = vld [vmem:[%s293 + $0x2d58] sm:$0xff]
        %v1844 = vld [vmem:[%s293 + $0x2d60] sm:$0xff]
        %v1845 = vld [vmem:[%s293 + $0x2d68] sm:$0xff]
        %v1846 = vld [vmem:[%s293 + $0x2d70] sm:$0xff]
        %v1847 = vld [vmem:[%s293 + $0x2d78] sm:$0xff]
        %v1848 = vld [vmem:[%s293 + $0x2d80] sm:$0xff]
        %v1849 = vld [vmem:[%s293 + $0x2d88] sm:$0xff]
        %v1850 = vld [vmem:[%s293 + $0x2d90] sm:$0xff]
        %v1851 = vld [vmem:[%s293 + $0x2d98] sm:$0xff]
        %v1852 = vld [vmem:[%s293 + $0x2da0] sm:$0xff]
        %v1853 = vld [vmem:[%s293 + $0x2da8] sm:$0xff]
        %v1854 = vld [vmem:[%s293 + $0x2db0] sm:$0xff]
        %v1855 = vld [vmem:[%s293 + $0x2db8] sm:$0xff]
        %v1856 = vld [vmem:[%s293 + $0x2dc0] sm:$0xff]
        %v1857 = vld [vmem:[%s293 + $0x2dc8] sm:$0xff]
        %v1858 = vld [vmem:[%s293 + $0x2dd0] sm:$0xff]
        %v1859 = vld [vmem:[%s293 + $0x2dd8] sm:$0xff]
        %v1860 = vld [vmem:[%s293 + $0x2de0] sm:$0xff]
        %v1861 = vld [vmem:[%s293 + $0x2de8] sm:$0xff]
        %v1862 = vld [vmem:[%s293 + $0x2df0] sm:$0xff]
        %v1863 = vld [vmem:[%s293 + $0x2df8] sm:$0xff]
        %v1864 = vld [vmem:[%s293 + $0x2e00] sm:$0xff]
        %v1865 = vld [vmem:[%s293 + $0x2e08] sm:$0xff]
        %v1866 = vld [vmem:[%s293 + $0x2e10] sm:$0xff]
        %v1867 = vld [vmem:[%s293 + $0x2e18] sm:$0xff]
        %v1868 = vld [vmem:[%s293 + $0x2e20] sm:$0xff]
        %v1869 = vld [vmem:[%s293 + $0x2e28] sm:$0xff]
        %v1870 = vld [vmem:[%s293 + $0x2e30] sm:$0xff]
        %v1871 = vld [vmem:[%s293 + $0x2e38] sm:$0xff]
        %v1872 = vld [vmem:[%s293 + $0x2e40] sm:$0xff]
        %v1873 = vld [vmem:[%s293 + $0x2e48] sm:$0xff]
        %v1874 = vld [vmem:[%s293 + $0x2e50] sm:$0xff]
        %v1875 = vld [vmem:[%s293 + $0x2e58] sm:$0xff]
        %v1876 = vld [vmem:[%s293 + $0x2e60] sm:$0xff]
        %v1877 = vld [vmem:[%s293 + $0x2e68] sm:$0xff]
        %v1878 = vld [vmem:[%s293 + $0x2e70] sm:$0xff]
        %v1879 = vld [vmem:[%s293 + $0x2e78] sm:$0xff]
        %v1880 = vld [vmem:[%s293 + $0x2e80] sm:$0xff]
        %v1881 = vld [vmem:[%s293 + $0x2e88] sm:$0xff]
        %v1882 = vld [vmem:[%s293 + $0x2e90] sm:$0xff]
        %v1883 = vld [vmem:[%s293 + $0x2e98] sm:$0xff]
        %v1884 = vld [vmem:[%s293 + $0x2ea0] sm:$0xff]
        %v1885 = vld [vmem:[%s293 + $0x2ea8] sm:$0xff]
        %v1886 = vld [vmem:[%s293 + $0x2eb0] sm:$0xff]
        %v1887 = vld [vmem:[%s293 + $0x2eb8] sm:$0xff]
        %v1888 = vld [vmem:[%s293 + $0x2ec0] sm:$0xff]
        %v1889 = vld [vmem:[%s293 + $0x2ec8] sm:$0xff]
        %v1890 = vld [vmem:[%s293 + $0x2ed0] sm:$0xff]
        %v1891 = vld [vmem:[%s293 + $0x2ed8] sm:$0xff]
        %v1892 = vld [vmem:[%s293 + $0x2ee0] sm:$0xff]
        %v1893 = vld [vmem:[%s293 + $0x2ee8] sm:$0xff]
        %v1894 = vld [vmem:[%s293 + $0x2ef0] sm:$0xff]
        %v1895 = vld [vmem:[%s293 + $0x2ef8] sm:$0xff]
        %v1896 = vld [vmem:[%s293 + $0x2f00] sm:$0xff]
        %v1897 = vld [vmem:[%s293 + $0x2f08] sm:$0xff]
        %v1898 = vld [vmem:[%s293 + $0x2f10] sm:$0xff]
        %v1899 = vld [vmem:[%s293 + $0x2f18] sm:$0xff]
        %v1900 = vld [vmem:[%s293 + $0x2f20] sm:$0xff]
        %v1901 = vld [vmem:[%s293 + $0x2f28] sm:$0xff]
        %v1902 = vld [vmem:[%s293 + $0x2f30] sm:$0xff]
        %v1903 = vld [vmem:[%s293 + $0x2f38] sm:$0xff]
        %v1904 = vld [vmem:[%s293 + $0x2f40] sm:$0xff]
        %v1905 = vld [vmem:[%s293 + $0x2f48] sm:$0xff]
        %v1906 = vld [vmem:[%s293 + $0x2f50] sm:$0xff]
        %v1907 = vld [vmem:[%s293 + $0x2f58] sm:$0xff]
        %v1908 = vld [vmem:[%s293 + $0x2f60] sm:$0xff]
        %v1909 = vld [vmem:[%s293 + $0x2f68] sm:$0xff]
        %v1910 = vld [vmem:[%s293 + $0x2f70] sm:$0xff]
        %v1911 = vld [vmem:[%s293 + $0x2f78] sm:$0xff]
        %v1912 = vld [vmem:[%s293 + $0x2f80] sm:$0xff]
        %v1913 = vld [vmem:[%s293 + $0x2f88] sm:$0xff]
        %v1914 = vld [vmem:[%s293 + $0x2f90] sm:$0xff]
        %v1915 = vld [vmem:[%s293 + $0x2f98] sm:$0xff]
        %v1916 = vld [vmem:[%s293 + $0x2fa0] sm:$0xff]
        %v1917 = vld [vmem:[%s293 + $0x2fa8] sm:$0xff]
        %v1918 = vld [vmem:[%s293 + $0x2fb0] sm:$0xff]
        %v1919 = vld [vmem:[%s293 + $0x2fb8] sm:$0xff]
        %v1920 = vld [vmem:[%s293 + $0x2fc0] sm:$0xff]
        %v1921 = vld [vmem:[%s293 + $0x2fc8] sm:$0xff]
        %v1922 = vld [vmem:[%s293 + $0x2fd0] sm:$0xff]
        %v1923 = vld [vmem:[%s293 + $0x2fd8] sm:$0xff]
        %v1924 = vld [vmem:[%s293 + $0x2fe0] sm:$0xff]
        %v1925 = vld [vmem:[%s293 + $0x2fe8] sm:$0xff]
        %v1926 = vld [vmem:[%s293 + $0x2ff0] sm:$0xff]
        %v1927 = vld [vmem:[%s293 + $0x2ff8] sm:$0xff]
        %v1934 = vunpack.c.l.b16 %v386
        %v1935 = vunpack.c.h.b16 %v386
        %v1936 = vunpack.c.l.b16 %v387
        %v1937 = vunpack.c.h.b16 %v387
        %v1938 = vunpack.c.l.b16 %v388
        %v1939 = vunpack.c.h.b16 %v388
        %v1940 = vunpack.c.l.b16 %v389
        %v1941 = vunpack.c.h.b16 %v389
        %v1942 = vunpack.c.l.b16 %v390
        %v1943 = vunpack.c.h.b16 %v390
        %v1944 = vunpack.c.l.b16 %v391
        %v1945 = vunpack.c.h.b16 %v391
        %v1946 = vpack.c.b16 %v1934, %v1934
        %v1947 = vpack.c.b16 %v1935, %v1935
        %v1948 = vpack.c.b16 %v1936, %v1936
        %v1949 = vpack.c.b16 %v1937, %v1937
        %v1950 = vpack.c.b16 %v1938, %v1938
        %v1951 = vpack.c.b16 %v1939, %v1939
        %v1952 = vpack.c.b16 %v1940, %v1940
        %v1953 = vpack.c.b16 %v1941, %v1941
        %v1954 = vpack.c.b16 %v1942, %v1942
        %v1955 = vpack.c.b16 %v1943, %v1943
        %v1956 = vpack.c.b16 %v1944, %v1944
        %v1957 = vpack.c.b16 %v1945, %v1945
        %v3506 = vunpack.c.l.b16 %v392
        %v3507 = vunpack.c.h.b16 %v392
        %v3508 = vunpack.c.l.b16 %v393
        %v3509 = vunpack.c.h.b16 %v393
        %v3510 = vunpack.c.l.b16 %v394
        %v3511 = vunpack.c.h.b16 %v394
        %v3512 = vunpack.c.l.b16 %v395
        %v3513 = vunpack.c.h.b16 %v395
        %v3514 = vunpack.c.l.b16 %v396
        %v3515 = vunpack.c.h.b16 %v396
        %v3516 = vunpack.c.l.b16 %v397
        %v3517 = vunpack.c.h.b16 %v397
        %v3518 = vunpack.c.l.b16 %v398
        %v3519 = vunpack.c.h.b16 %v398
        %v3520 = vunpack.c.l.b16 %v399
        %v3521 = vunpack.c.h.b16 %v399
        %v3522 = vunpack.c.l.b16 %v400
        %v3523 = vunpack.c.h.b16 %v400
        %v3524 = vunpack.c.l.b16 %v401
        %v3525 = vunpack.c.h.b16 %v401
        %v3526 = vunpack.c.l.b16 %v402
        %v3527 = vunpack.c.h.b16 %v402
        %v3528 = vunpack.c.l.b16 %v403
        %v3529 = vunpack.c.h.b16 %v403
        %v3530 = vunpack.c.l.b16 %v404
        %v3531 = vunpack.c.h.b16 %v404
        %v3532 = vunpack.c.l.b16 %v405
        %v3533 = vunpack.c.h.b16 %v405
        %v3534 = vunpack.c.l.b16 %v406
        %v3535 = vunpack.c.h.b16 %v406
        %v3536 = vunpack.c.l.b16 %v407
        %v3537 = vunpack.c.h.b16 %v407
        %v3538 = vunpack.c.l.b16 %v408
        %v3539 = vunpack.c.h.b16 %v408
        %v3540 = vunpack.c.l.b16 %v409
        %v3541 = vunpack.c.h.b16 %v409
        %v3542 = vunpack.c.l.b16 %v410
        %v3543 = vunpack.c.h.b16 %v410
        %v3544 = vunpack.c.l.b16 %v411
        %v3545 = vunpack.c.h.b16 %v411
        %v3546 = vunpack.c.l.b16 %v412
        %v3547 = vunpack.c.h.b16 %v412
        %v3548 = vunpack.c.l.b16 %v413
        %v3549 = vunpack.c.h.b16 %v413
        %v3550 = vunpack.c.l.b16 %v414
        %v3551 = vunpack.c.h.b16 %v414
        %v3552 = vunpack.c.l.b16 %v415
        %v3553 = vunpack.c.h.b16 %v415
        %v3554 = vunpack.c.l.b16 %v416
        %v3555 = vunpack.c.h.b16 %v416
        %v3556 = vunpack.c.l.b16 %v417
        %v3557 = vunpack.c.h.b16 %v417
        %v3558 = vunpack.c.l.b16 %v418
        %v3559 = vunpack.c.h.b16 %v418
        %v3560 = vunpack.c.l.b16 %v419
        %v3561 = vunpack.c.h.b16 %v419
        %v3562 = vunpack.c.l.b16 %v420
        %v3563 = vunpack.c.h.b16 %v420
        %v3564 = vunpack.c.l.b16 %v421
        %v3565 = vunpack.c.h.b16 %v421
        %v3566 = vunpack.c.l.b16 %v422
        %v3567 = vunpack.c.h.b16 %v422
        %v3568 = vunpack.c.l.b16 %v423
        %v3569 = vunpack.c.h.b16 %v423
        %v3570 = vunpack.c.l.b16 %v424
        %v3571 = vunpack.c.h.b16 %v424
        %v3572 = vunpack.c.l.b16 %v425
        %v3573 = vunpack.c.h.b16 %v425
        %v3574 = vunpack.c.l.b16 %v426
        %v3575 = vunpack.c.h.b16 %v426
        %v3576 = vunpack.c.l.b16 %v427
        %v3577 = vunpack.c.h.b16 %v427
        %v3578 = vunpack.c.l.b16 %v428
        %v3579 = vunpack.c.h.b16 %v428
        %v3580 = vunpack.c.l.b16 %v429
        %v3581 = vunpack.c.h.b16 %v429
        %v3582 = vunpack.c.l.b16 %v430
        %v3583 = vunpack.c.h.b16 %v430
        %v3584 = vunpack.c.l.b16 %v431
        %v3585 = vunpack.c.h.b16 %v431
        %v3586 = vunpack.c.l.b16 %v432
        %v3587 = vunpack.c.h.b16 %v432
        %v3588 = vunpack.c.l.b16 %v433
        %v3589 = vunpack.c.h.b16 %v433
        %v3590 = vunpack.c.l.b16 %v434
        %v3591 = vunpack.c.h.b16 %v434
        %v3592 = vunpack.c.l.b16 %v435
        %v3593 = vunpack.c.h.b16 %v435
        %v3594 = vunpack.c.l.b16 %v436
        %v3595 = vunpack.c.h.b16 %v436
        %v3596 = vunpack.c.l.b16 %v437
        %v3597 = vunpack.c.h.b16 %v437
        %v3598 = vunpack.c.l.b16 %v438
        %v3599 = vunpack.c.h.b16 %v438
        %v3600 = vunpack.c.l.b16 %v439
        %v3601 = vunpack.c.h.b16 %v439
        %v3602 = vunpack.c.l.b16 %v440
        %v3603 = vunpack.c.h.b16 %v440
        %v3604 = vunpack.c.l.b16 %v441
        %v3605 = vunpack.c.h.b16 %v441
        %v3606 = vunpack.c.l.b16 %v442
        %v3607 = vunpack.c.h.b16 %v442
        %v3608 = vunpack.c.l.b16 %v443
        %v3609 = vunpack.c.h.b16 %v443
        %v3610 = vunpack.c.l.b16 %v444
        %v3611 = vunpack.c.h.b16 %v444
        %v3612 = vunpack.c.l.b16 %v445
        %v3613 = vunpack.c.h.b16 %v445
        %v3614 = vunpack.c.l.b16 %v446
        %v3615 = vunpack.c.h.b16 %v446
        %v3616 = vunpack.c.l.b16 %v447
        %v3617 = vunpack.c.h.b16 %v447
        %v3618 = vunpack.c.l.b16 %v448
        %v3619 = vunpack.c.h.b16 %v448
        %v3620 = vunpack.c.l.b16 %v449
        %v3621 = vunpack.c.h.b16 %v449
        %v3622 = vunpack.c.l.b16 %v450
        %v3623 = vunpack.c.h.b16 %v450
        %v3624 = vunpack.c.l.b16 %v451
        %v3625 = vunpack.c.h.b16 %v451
        %v3626 = vunpack.c.l.b16 %v452
        %v3627 = vunpack.c.h.b16 %v452
        %v3628 = vunpack.c.l.b16 %v453
        %v3629 = vunpack.c.h.b16 %v453
        %v3630 = vunpack.c.l.b16 %v454
        %v3631 = vunpack.c.h.b16 %v454
        %v3632 = vunpack.c.l.b16 %v455
        %v3633 = vunpack.c.h.b16 %v455
        %v3634 = vunpack.c.l.b16 %v456
        %v3635 = vunpack.c.h.b16 %v456
        %v3636 = vunpack.c.l.b16 %v457
        %v3637 = vunpack.c.h.b16 %v457
        %v3638 = vunpack.c.l.b16 %v458
        %v3639 = vunpack.c.h.b16 %v458
        %v3640 = vunpack.c.l.b16 %v459
        %v3641 = vunpack.c.h.b16 %v459
        %v3642 = vunpack.c.l.b16 %v460
        %v3643 = vunpack.c.h.b16 %v460
        %v3644 = vunpack.c.l.b16 %v461
        %v3645 = vunpack.c.h.b16 %v461
        %v3646 = vunpack.c.l.b16 %v462
        %v3647 = vunpack.c.h.b16 %v462
        %v3648 = vunpack.c.l.b16 %v463
        %v3649 = vunpack.c.h.b16 %v463
        %v3650 = vunpack.c.l.b16 %v464
        %v3651 = vunpack.c.h.b16 %v464
        %v3652 = vunpack.c.l.b16 %v465
        %v3653 = vunpack.c.h.b16 %v465
        %v3654 = vunpack.c.l.b16 %v466
        %v3655 = vunpack.c.h.b16 %v466
        %v3656 = vunpack.c.l.b16 %v467
        %v3657 = vunpack.c.h.b16 %v467
        %v3658 = vunpack.c.l.b16 %v468
        %v3659 = vunpack.c.h.b16 %v468
        %v3660 = vunpack.c.l.b16 %v469
        %v3661 = vunpack.c.h.b16 %v469
        %v3662 = vunpack.c.l.b16 %v470
        %v3663 = vunpack.c.h.b16 %v470
        %v3664 = vunpack.c.l.b16 %v471
        %v3665 = vunpack.c.h.b16 %v471
        %v3666 = vunpack.c.l.b16 %v472
        %v3667 = vunpack.c.h.b16 %v472
        %v3668 = vunpack.c.l.b16 %v473
        %v3669 = vunpack.c.h.b16 %v473
        %v3670 = vunpack.c.l.b16 %v474
        %v3671 = vunpack.c.h.b16 %v474
        %v3672 = vunpack.c.l.b16 %v475
        %v3673 = vunpack.c.h.b16 %v475
        %v3674 = vunpack.c.l.b16 %v476
        %v3675 = vunpack.c.h.b16 %v476
        %v3676 = vunpack.c.l.b16 %v477
        %v3677 = vunpack.c.h.b16 %v477
        %v3678 = vunpack.c.l.b16 %v478
        %v3679 = vunpack.c.h.b16 %v478
        %v3680 = vunpack.c.l.b16 %v479
        %v3681 = vunpack.c.h.b16 %v479
        %v3682 = vunpack.c.l.b16 %v480
        %v3683 = vunpack.c.h.b16 %v480
        %v3684 = vunpack.c.l.b16 %v481
        %v3685 = vunpack.c.h.b16 %v481
        %v3686 = vunpack.c.l.b16 %v482
        %v3687 = vunpack.c.h.b16 %v482
        %v3688 = vunpack.c.l.b16 %v483
        %v3689 = vunpack.c.h.b16 %v483
        %v3690 = vunpack.c.l.b16 %v484
        %v3691 = vunpack.c.h.b16 %v484
        %v3692 = vunpack.c.l.b16 %v485
        %v3693 = vunpack.c.h.b16 %v485
        %v3694 = vunpack.c.l.b16 %v486
        %v3695 = vunpack.c.h.b16 %v486
        %v3696 = vunpack.c.l.b16 %v487
        %v3697 = vunpack.c.h.b16 %v487
        %v3698 = vunpack.c.l.b16 %v488
        %v3699 = vunpack.c.h.b16 %v488
        %v3700 = vunpack.c.l.b16 %v489
        %v3701 = vunpack.c.h.b16 %v489
        %v3702 = vunpack.c.l.b16 %v490
        %v3703 = vunpack.c.h.b16 %v490
        %v3704 = vunpack.c.l.b16 %v491
        %v3705 = vunpack.c.h.b16 %v491
        %v3706 = vunpack.c.l.b16 %v492
        %v3707 = vunpack.c.h.b16 %v492
        %v3708 = vunpack.c.l.b16 %v493
        %v3709 = vunpack.c.h.b16 %v493
        %v3710 = vunpack.c.l.b16 %v494
        %v3711 = vunpack.c.h.b16 %v494
        %v3712 = vunpack.c.l.b16 %v495
        %v3713 = vunpack.c.h.b16 %v495
        %v3714 = vunpack.c.l.b16 %v496
        %v3715 = vunpack.c.h.b16 %v496
        %v3716 = vunpack.c.l.b16 %v497
        %v3717 = vunpack.c.h.b16 %v497
        %v3718 = vunpack.c.l.b16 %v498
        %v3719 = vunpack.c.h.b16 %v498
        %v3720 = vunpack.c.l.b16 %v499
        %v3721 = vunpack.c.h.b16 %v499
        %v3722 = vunpack.c.l.b16 %v500
        %v3723 = vunpack.c.h.b16 %v500
        %v3724 = vunpack.c.l.b16 %v501
        %v3725 = vunpack.c.h.b16 %v501
        %v3726 = vunpack.c.l.b16 %v502
        %v3727 = vunpack.c.h.b16 %v502
        %v3728 = vunpack.c.l.b16 %v503
        %v3729 = vunpack.c.h.b16 %v503
        %v3730 = vunpack.c.l.b16 %v504
        %v3731 = vunpack.c.h.b16 %v504
        %v3732 = vunpack.c.l.b16 %v505
        %v3733 = vunpack.c.h.b16 %v505
        %v3734 = vunpack.c.l.b16 %v506
        %v3735 = vunpack.c.h.b16 %v506
        %v3736 = vunpack.c.l.b16 %v507
        %v3737 = vunpack.c.h.b16 %v507
        %v3738 = vunpack.c.l.b16 %v508
        %v3739 = vunpack.c.h.b16 %v508
        %v3740 = vunpack.c.l.b16 %v509
        %v3741 = vunpack.c.h.b16 %v509
        %v3742 = vunpack.c.l.b16 %v510
        %v3743 = vunpack.c.h.b16 %v510
        %v3744 = vunpack.c.l.b16 %v511
        %v3745 = vunpack.c.h.b16 %v511
        %v3746 = vunpack.c.l.b16 %v512
        %v3747 = vunpack.c.h.b16 %v512
        %v3748 = vunpack.c.l.b16 %v513
        %v3749 = vunpack.c.h.b16 %v513
        %v3750 = vunpack.c.l.b16 %v514
        %v3751 = vunpack.c.h.b16 %v514
        %v3752 = vunpack.c.l.b16 %v515
        %v3753 = vunpack.c.h.b16 %v515
        %v3754 = vunpack.c.l.b16 %v516
        %v3755 = vunpack.c.h.b16 %v516
        %v3756 = vunpack.c.l.b16 %v517
        %v3757 = vunpack.c.h.b16 %v517
        %v3758 = vunpack.c.l.b16 %v518
        %v3759 = vunpack.c.h.b16 %v518
        %v3760 = vunpack.c.l.b16 %v519
        %v3761 = vunpack.c.h.b16 %v519
        %v3762 = vunpack.c.l.b16 %v520
        %v3763 = vunpack.c.h.b16 %v520
        %v3764 = vunpack.c.l.b16 %v521
        %v3765 = vunpack.c.h.b16 %v521
        %v3766 = vunpack.c.l.b16 %v522
        %v3767 = vunpack.c.h.b16 %v522
        %v3768 = vunpack.c.l.b16 %v523
        %v3769 = vunpack.c.h.b16 %v523
        %v3770 = vunpack.c.l.b16 %v524
        %v3771 = vunpack.c.h.b16 %v524
        %v3772 = vunpack.c.l.b16 %v525
        %v3773 = vunpack.c.h.b16 %v525
        %v3774 = vunpack.c.l.b16 %v526
        %v3775 = vunpack.c.h.b16 %v526
        %v3776 = vunpack.c.l.b16 %v527
        %v3777 = vunpack.c.h.b16 %v527
        %v3778 = vunpack.c.l.b16 %v528
        %v3779 = vunpack.c.h.b16 %v528
        %v3780 = vunpack.c.l.b16 %v529
        %v3781 = vunpack.c.h.b16 %v529
        %v3782 = vunpack.c.l.b16 %v530
        %v3783 = vunpack.c.h.b16 %v530
        %v3784 = vunpack.c.l.b16 %v531
        %v3785 = vunpack.c.h.b16 %v531
        %v3786 = vunpack.c.l.b16 %v532
        %v3787 = vunpack.c.h.b16 %v532
        %v3788 = vunpack.c.l.b16 %v533
        %v3789 = vunpack.c.h.b16 %v533
        %v3790 = vunpack.c.l.b16 %v534
        %v3791 = vunpack.c.h.b16 %v534
        %v3792 = vunpack.c.l.b16 %v535
        %v3793 = vunpack.c.h.b16 %v535
        %v3794 = vunpack.c.l.b16 %v536
        %v3795 = vunpack.c.h.b16 %v536
        %v3796 = vunpack.c.l.b16 %v537
        %v3797 = vunpack.c.h.b16 %v537
        %v3798 = vunpack.c.l.b16 %v538
        %v3799 = vunpack.c.h.b16 %v538
        %v3800 = vunpack.c.l.b16 %v539
        %v3801 = vunpack.c.h.b16 %v539
        %v3802 = vunpack.c.l.b16 %v540
        %v3803 = vunpack.c.h.b16 %v540
        %v3804 = vunpack.c.l.b16 %v541
        %v3805 = vunpack.c.h.b16 %v541
        %v3806 = vunpack.c.l.b16 %v542
        %v3807 = vunpack.c.h.b16 %v542
        %v3808 = vunpack.c.l.b16 %v543
        %v3809 = vunpack.c.h.b16 %v543
        %v3810 = vunpack.c.l.b16 %v544
        %v3811 = vunpack.c.h.b16 %v544
        %v3812 = vunpack.c.l.b16 %v545
        %v3813 = vunpack.c.h.b16 %v545
        %v3814 = vunpack.c.l.b16 %v546
        %v3815 = vunpack.c.h.b16 %v546
        %v3816 = vunpack.c.l.b16 %v547
        %v3817 = vunpack.c.h.b16 %v547
        %v3818 = vunpack.c.l.b16 %v548
        %v3819 = vunpack.c.h.b16 %v548
        %v3820 = vunpack.c.l.b16 %v549
        %v3821 = vunpack.c.h.b16 %v549
        %v3822 = vunpack.c.l.b16 %v550
        %v3823 = vunpack.c.h.b16 %v550
        %v3824 = vunpack.c.l.b16 %v551
        %v3825 = vunpack.c.h.b16 %v551
        %v3826 = vunpack.c.l.b16 %v552
        %v3827 = vunpack.c.h.b16 %v552
        %v3828 = vunpack.c.l.b16 %v553
        %v3829 = vunpack.c.h.b16 %v553
        %v3830 = vunpack.c.l.b16 %v554
        %v3831 = vunpack.c.h.b16 %v554
        %v3832 = vunpack.c.l.b16 %v555
        %v3833 = vunpack.c.h.b16 %v555
        %v3834 = vunpack.c.l.b16 %v556
        %v3835 = vunpack.c.h.b16 %v556
        %v3836 = vunpack.c.l.b16 %v557
        %v3837 = vunpack.c.h.b16 %v557
        %v3838 = vunpack.c.l.b16 %v558
        %v3839 = vunpack.c.h.b16 %v558
        %v3840 = vunpack.c.l.b16 %v559
        %v3841 = vunpack.c.h.b16 %v559
        %v3842 = vunpack.c.l.b16 %v560
        %v3843 = vunpack.c.h.b16 %v560
        %v3844 = vunpack.c.l.b16 %v561
        %v3845 = vunpack.c.h.b16 %v561
        %v3846 = vunpack.c.l.b16 %v562
        %v3847 = vunpack.c.h.b16 %v562
        %v3848 = vunpack.c.l.b16 %v563
        %v3849 = vunpack.c.h.b16 %v563
        %v3850 = vunpack.c.l.b16 %v564
        %v3851 = vunpack.c.h.b16 %v564
        %v3852 = vunpack.c.l.b16 %v565
        %v3853 = vunpack.c.h.b16 %v565
        %v3854 = vunpack.c.l.b16 %v566
        %v3855 = vunpack.c.h.b16 %v566
        %v3856 = vunpack.c.l.b16 %v567
        %v3857 = vunpack.c.h.b16 %v567
        %v3858 = vunpack.c.l.b16 %v568
        %v3859 = vunpack.c.h.b16 %v568
        %v3860 = vunpack.c.l.b16 %v569
        %v3861 = vunpack.c.h.b16 %v569
        %v3862 = vunpack.c.l.b16 %v570
        %v3863 = vunpack.c.h.b16 %v570
        %v3864 = vunpack.c.l.b16 %v571
        %v3865 = vunpack.c.h.b16 %v571
        %v3866 = vunpack.c.l.b16 %v572
        %v3867 = vunpack.c.h.b16 %v572
        %v3868 = vunpack.c.l.b16 %v573
        %v3869 = vunpack.c.h.b16 %v573
        %v3870 = vunpack.c.l.b16 %v574
        %v3871 = vunpack.c.h.b16 %v574
        %v3872 = vunpack.c.l.b16 %v575
        %v3873 = vunpack.c.h.b16 %v575
        %v3874 = vunpack.c.l.b16 %v576
        %v3875 = vunpack.c.h.b16 %v576
        %v3876 = vunpack.c.l.b16 %v577
        %v3877 = vunpack.c.h.b16 %v577
        %v3878 = vunpack.c.l.b16 %v578
        %v3879 = vunpack.c.h.b16 %v578
        %v3880 = vunpack.c.l.b16 %v579
        %v3881 = vunpack.c.h.b16 %v579
        %v3882 = vunpack.c.l.b16 %v580
        %v3883 = vunpack.c.h.b16 %v580
        %v3884 = vunpack.c.l.b16 %v581
        %v3885 = vunpack.c.h.b16 %v581
        %v3886 = vunpack.c.l.b16 %v582
        %v3887 = vunpack.c.h.b16 %v582
        %v3888 = vunpack.c.l.b16 %v583
        %v3889 = vunpack.c.h.b16 %v583
        %v3890 = vunpack.c.l.b16 %v584
        %v3891 = vunpack.c.h.b16 %v584
        %v3892 = vunpack.c.l.b16 %v585
        %v3893 = vunpack.c.h.b16 %v585
        %v3894 = vunpack.c.l.b16 %v586
        %v3895 = vunpack.c.h.b16 %v586
        %v3896 = vunpack.c.l.b16 %v587
        %v3897 = vunpack.c.h.b16 %v587
        %v3898 = vunpack.c.l.b16 %v588
        %v3899 = vunpack.c.h.b16 %v588
        %v3900 = vunpack.c.l.b16 %v589
        %v3901 = vunpack.c.h.b16 %v589
        %v3902 = vunpack.c.l.b16 %v590
        %v3903 = vunpack.c.h.b16 %v590
        %v3904 = vunpack.c.l.b16 %v591
        %v3905 = vunpack.c.h.b16 %v591
        %v3906 = vunpack.c.l.b16 %v592
        %v3907 = vunpack.c.h.b16 %v592
        %v3908 = vunpack.c.l.b16 %v593
        %v3909 = vunpack.c.h.b16 %v593
        %v3910 = vunpack.c.l.b16 %v594
        %v3911 = vunpack.c.h.b16 %v594
        %v3912 = vunpack.c.l.b16 %v595
        %v3913 = vunpack.c.h.b16 %v595
        %v3914 = vunpack.c.l.b16 %v596
        %v3915 = vunpack.c.h.b16 %v596
        %v3916 = vunpack.c.l.b16 %v597
        %v3917 = vunpack.c.h.b16 %v597
        %v3918 = vunpack.c.l.b16 %v598
        %v3919 = vunpack.c.h.b16 %v598
        %v3920 = vunpack.c.l.b16 %v599
        %v3921 = vunpack.c.h.b16 %v599
        %v3922 = vunpack.c.l.b16 %v600
        %v3923 = vunpack.c.h.b16 %v600
        %v3924 = vunpack.c.l.b16 %v601
        %v3925 = vunpack.c.h.b16 %v601
        %v3926 = vunpack.c.l.b16 %v602
        %v3927 = vunpack.c.h.b16 %v602
        %v3928 = vunpack.c.l.b16 %v603
        %v3929 = vunpack.c.h.b16 %v603
        %v3930 = vunpack.c.l.b16 %v604
        %v3931 = vunpack.c.h.b16 %v604
        %v3932 = vunpack.c.l.b16 %v605
        %v3933 = vunpack.c.h.b16 %v605
        %v3934 = vunpack.c.l.b16 %v606
        %v3935 = vunpack.c.h.b16 %v606
        %v3936 = vunpack.c.l.b16 %v607
        %v3937 = vunpack.c.h.b16 %v607
        %v3938 = vunpack.c.l.b16 %v608
        %v3939 = vunpack.c.h.b16 %v608
        %v3940 = vunpack.c.l.b16 %v609
        %v3941 = vunpack.c.h.b16 %v609
        %v3942 = vunpack.c.l.b16 %v610
        %v3943 = vunpack.c.h.b16 %v610
        %v3944 = vunpack.c.l.b16 %v611
        %v3945 = vunpack.c.h.b16 %v611
        %v3946 = vunpack.c.l.b16 %v612
        %v3947 = vunpack.c.h.b16 %v612
        %v3948 = vunpack.c.l.b16 %v613
        %v3949 = vunpack.c.h.b16 %v613
        %v3950 = vunpack.c.l.b16 %v614
        %v3951 = vunpack.c.h.b16 %v614
        %v3952 = vunpack.c.l.b16 %v615
        %v3953 = vunpack.c.h.b16 %v615
        %v3954 = vunpack.c.l.b16 %v616
        %v3955 = vunpack.c.h.b16 %v616
        %v3956 = vunpack.c.l.b16 %v617
        %v3957 = vunpack.c.h.b16 %v617
        %v3958 = vunpack.c.l.b16 %v618
        %v3959 = vunpack.c.h.b16 %v618
        %v3960 = vunpack.c.l.b16 %v619
        %v3961 = vunpack.c.h.b16 %v619
        %v3962 = vunpack.c.l.b16 %v620
        %v3963 = vunpack.c.h.b16 %v620
        %v3964 = vunpack.c.l.b16 %v621
        %v3965 = vunpack.c.h.b16 %v621
        %v3966 = vunpack.c.l.b16 %v622
        %v3967 = vunpack.c.h.b16 %v622
        %v3968 = vunpack.c.l.b16 %v623
        %v3969 = vunpack.c.h.b16 %v623
        %v3970 = vunpack.c.l.b16 %v624
        %v3971 = vunpack.c.h.b16 %v624
        %v3972 = vunpack.c.l.b16 %v625
        %v3973 = vunpack.c.h.b16 %v625
        %v3974 = vunpack.c.l.b16 %v626
        %v3975 = vunpack.c.h.b16 %v626
        %v3976 = vunpack.c.l.b16 %v627
        %v3977 = vunpack.c.h.b16 %v627
        %v3978 = vunpack.c.l.b16 %v628
        %v3979 = vunpack.c.h.b16 %v628
        %v3980 = vunpack.c.l.b16 %v629
        %v3981 = vunpack.c.h.b16 %v629
        %v3982 = vunpack.c.l.b16 %v630
        %v3983 = vunpack.c.h.b16 %v630
        %v3984 = vunpack.c.l.b16 %v631
        %v3985 = vunpack.c.h.b16 %v631
        %v3986 = vunpack.c.l.b16 %v632
        %v3987 = vunpack.c.h.b16 %v632
        %v3988 = vunpack.c.l.b16 %v633
        %v3989 = vunpack.c.h.b16 %v633
        %v3990 = vunpack.c.l.b16 %v634
        %v3991 = vunpack.c.h.b16 %v634
        %v3992 = vunpack.c.l.b16 %v635
        %v3993 = vunpack.c.h.b16 %v635
        %v3994 = vunpack.c.l.b16 %v636
        %v3995 = vunpack.c.h.b16 %v636
        %v3996 = vunpack.c.l.b16 %v637
        %v3997 = vunpack.c.h.b16 %v637
        %v3998 = vunpack.c.l.b16 %v638
        %v3999 = vunpack.c.h.b16 %v638
        %v4000 = vunpack.c.l.b16 %v639
        %v4001 = vunpack.c.h.b16 %v639
        %v4002 = vunpack.c.l.b16 %v640
        %v4003 = vunpack.c.h.b16 %v640
        %v4004 = vunpack.c.l.b16 %v641
        %v4005 = vunpack.c.h.b16 %v641
        %v4006 = vunpack.c.l.b16 %v642
        %v4007 = vunpack.c.h.b16 %v642
        %v4008 = vunpack.c.l.b16 %v643
        %v4009 = vunpack.c.h.b16 %v643
        %v4010 = vunpack.c.l.b16 %v644
        %v4011 = vunpack.c.h.b16 %v644
        %v4012 = vunpack.c.l.b16 %v645
        %v4013 = vunpack.c.h.b16 %v645
        %v4014 = vunpack.c.l.b16 %v646
        %v4015 = vunpack.c.h.b16 %v646
        %v4016 = vunpack.c.l.b16 %v647
        %v4017 = vunpack.c.h.b16 %v647
        %v4018 = vunpack.c.l.b16 %v648
        %v4019 = vunpack.c.h.b16 %v648
        %v4020 = vunpack.c.l.b16 %v649
        %v4021 = vunpack.c.h.b16 %v649
        %v4022 = vunpack.c.l.b16 %v650
        %v4023 = vunpack.c.h.b16 %v650
        %v4024 = vunpack.c.l.b16 %v651
        %v4025 = vunpack.c.h.b16 %v651
        %v4026 = vunpack.c.l.b16 %v652
        %v4027 = vunpack.c.h.b16 %v652
        %v4028 = vunpack.c.l.b16 %v653
        %v4029 = vunpack.c.h.b16 %v653
        %v4030 = vunpack.c.l.b16 %v654
        %v4031 = vunpack.c.h.b16 %v654
        %v4032 = vunpack.c.l.b16 %v655
        %v4033 = vunpack.c.h.b16 %v655
        %v4034 = vunpack.c.l.b16 %v656
        %v4035 = vunpack.c.h.b16 %v656
        %v4036 = vunpack.c.l.b16 %v657
        %v4037 = vunpack.c.h.b16 %v657
        %v4038 = vunpack.c.l.b16 %v658
        %v4039 = vunpack.c.h.b16 %v658
        %v4040 = vunpack.c.l.b16 %v659
        %v4041 = vunpack.c.h.b16 %v659
        %v4042 = vunpack.c.l.b16 %v660
        %v4043 = vunpack.c.h.b16 %v660
        %v4044 = vunpack.c.l.b16 %v661
        %v4045 = vunpack.c.h.b16 %v661
        %v4046 = vunpack.c.l.b16 %v662
        %v4047 = vunpack.c.h.b16 %v662
        %v4048 = vunpack.c.l.b16 %v663
        %v4049 = vunpack.c.h.b16 %v663
        %v4050 = vunpack.c.l.b16 %v664
        %v4051 = vunpack.c.h.b16 %v664
        %v4052 = vunpack.c.l.b16 %v665
        %v4053 = vunpack.c.h.b16 %v665
        %v4054 = vunpack.c.l.b16 %v666
        %v4055 = vunpack.c.h.b16 %v666
        %v4056 = vunpack.c.l.b16 %v667
        %v4057 = vunpack.c.h.b16 %v667
        %v4058 = vunpack.c.l.b16 %v668
        %v4059 = vunpack.c.h.b16 %v668
        %v4060 = vunpack.c.l.b16 %v669
        %v4061 = vunpack.c.h.b16 %v669
        %v4062 = vunpack.c.l.b16 %v670
        %v4063 = vunpack.c.h.b16 %v670
        %v4064 = vunpack.c.l.b16 %v671
        %v4065 = vunpack.c.h.b16 %v671
        %v4066 = vunpack.c.l.b16 %v672
        %v4067 = vunpack.c.h.b16 %v672
        %v4068 = vunpack.c.l.b16 %v673
        %v4069 = vunpack.c.h.b16 %v673
        %v4070 = vunpack.c.l.b16 %v674
        %v4071 = vunpack.c.h.b16 %v674
        %v4072 = vunpack.c.l.b16 %v675
        %v4073 = vunpack.c.h.b16 %v675
        %v4074 = vunpack.c.l.b16 %v676
        %v4075 = vunpack.c.h.b16 %v676
        %v4076 = vunpack.c.l.b16 %v677
        %v4077 = vunpack.c.h.b16 %v677
        %v4078 = vunpack.c.l.b16 %v678
        %v4079 = vunpack.c.h.b16 %v678
        %v4080 = vunpack.c.l.b16 %v679
        %v4081 = vunpack.c.h.b16 %v679
        %v4082 = vunpack.c.l.b16 %v680
        %v4083 = vunpack.c.h.b16 %v680
        %v4084 = vunpack.c.l.b16 %v681
        %v4085 = vunpack.c.h.b16 %v681
        %v4086 = vunpack.c.l.b16 %v682
        %v4087 = vunpack.c.h.b16 %v682
        %v4088 = vunpack.c.l.b16 %v683
        %v4089 = vunpack.c.h.b16 %v683
        %v4090 = vunpack.c.l.b16 %v684
        %v4091 = vunpack.c.h.b16 %v684
        %v4092 = vunpack.c.l.b16 %v685
        %v4093 = vunpack.c.h.b16 %v685
        %v4094 = vunpack.c.l.b16 %v686
        %v4095 = vunpack.c.h.b16 %v686
        %v4096 = vunpack.c.l.b16 %v687
        %v4097 = vunpack.c.h.b16 %v687
        %v4098 = vunpack.c.l.b16 %v688
        %v4099 = vunpack.c.h.b16 %v688
        %v4100 = vunpack.c.l.b16 %v689
        %v4101 = vunpack.c.h.b16 %v689
        %v4102 = vunpack.c.l.b16 %v690
        %v4103 = vunpack.c.h.b16 %v690
        %v4104 = vunpack.c.l.b16 %v691
        %v4105 = vunpack.c.h.b16 %v691
        %v4106 = vunpack.c.l.b16 %v692
        %v4107 = vunpack.c.h.b16 %v692
        %v4108 = vunpack.c.l.b16 %v693
        %v4109 = vunpack.c.h.b16 %v693
        %v4110 = vunpack.c.l.b16 %v694
        %v4111 = vunpack.c.h.b16 %v694
        %v4112 = vunpack.c.l.b16 %v695
        %v4113 = vunpack.c.h.b16 %v695
        %v4114 = vunpack.c.l.b16 %v696
        %v4115 = vunpack.c.h.b16 %v696
        %v4116 = vunpack.c.l.b16 %v697
        %v4117 = vunpack.c.h.b16 %v697
        %v4118 = vunpack.c.l.b16 %v698
        %v4119 = vunpack.c.h.b16 %v698
        %v4120 = vunpack.c.l.b16 %v699
        %v4121 = vunpack.c.h.b16 %v699
        %v4122 = vunpack.c.l.b16 %v700
        %v4123 = vunpack.c.h.b16 %v700
        %v4124 = vunpack.c.l.b16 %v701
        %v4125 = vunpack.c.h.b16 %v701
        %v4126 = vunpack.c.l.b16 %v702
        %v4127 = vunpack.c.h.b16 %v702
        %v4128 = vunpack.c.l.b16 %v703
        %v4129 = vunpack.c.h.b16 %v703
        %v4130 = vunpack.c.l.b16 %v704
        %v4131 = vunpack.c.h.b16 %v704
        %v4132 = vunpack.c.l.b16 %v705
        %v4133 = vunpack.c.h.b16 %v705
        %v4134 = vunpack.c.l.b16 %v706
        %v4135 = vunpack.c.h.b16 %v706
        %v4136 = vunpack.c.l.b16 %v707
        %v4137 = vunpack.c.h.b16 %v707
        %v4138 = vunpack.c.l.b16 %v708
        %v4139 = vunpack.c.h.b16 %v708
        %v4140 = vunpack.c.l.b16 %v709
        %v4141 = vunpack.c.h.b16 %v709
        %v4142 = vunpack.c.l.b16 %v710
        %v4143 = vunpack.c.h.b16 %v710
        %v4144 = vunpack.c.l.b16 %v711
        %v4145 = vunpack.c.h.b16 %v711
        %v4146 = vunpack.c.l.b16 %v712
        %v4147 = vunpack.c.h.b16 %v712
        %v4148 = vunpack.c.l.b16 %v713
        %v4149 = vunpack.c.h.b16 %v713
        %v4150 = vunpack.c.l.b16 %v714
        %v4151 = vunpack.c.h.b16 %v714
        %v4152 = vunpack.c.l.b16 %v715
        %v4153 = vunpack.c.h.b16 %v715
        %v4154 = vunpack.c.l.b16 %v716
        %v4155 = vunpack.c.h.b16 %v716
        %v4156 = vunpack.c.l.b16 %v717
        %v4157 = vunpack.c.h.b16 %v717
        %v4158 = vunpack.c.l.b16 %v718
        %v4159 = vunpack.c.h.b16 %v718
        %v4160 = vunpack.c.l.b16 %v719
        %v4161 = vunpack.c.h.b16 %v719
        %v4162 = vunpack.c.l.b16 %v720
        %v4163 = vunpack.c.h.b16 %v720
        %v4164 = vunpack.c.l.b16 %v721
        %v4165 = vunpack.c.h.b16 %v721
        %v4166 = vunpack.c.l.b16 %v722
        %v4167 = vunpack.c.h.b16 %v722
        %v4168 = vunpack.c.l.b16 %v723
        %v4169 = vunpack.c.h.b16 %v723
        %v4170 = vunpack.c.l.b16 %v724
        %v4171 = vunpack.c.h.b16 %v724
        %v4172 = vunpack.c.l.b16 %v725
        %v4173 = vunpack.c.h.b16 %v725
        %v4174 = vunpack.c.l.b16 %v726
        %v4175 = vunpack.c.h.b16 %v726
        %v4176 = vunpack.c.l.b16 %v727
        %v4177 = vunpack.c.h.b16 %v727
        %v4178 = vunpack.c.l.b16 %v728
        %v4179 = vunpack.c.h.b16 %v728
        %v4180 = vunpack.c.l.b16 %v729
        %v4181 = vunpack.c.h.b16 %v729
        %v4182 = vunpack.c.l.b16 %v730
        %v4183 = vunpack.c.h.b16 %v730
        %v4184 = vunpack.c.l.b16 %v731
        %v4185 = vunpack.c.h.b16 %v731
        %v4186 = vunpack.c.l.b16 %v732
        %v4187 = vunpack.c.h.b16 %v732
        %v4188 = vunpack.c.l.b16 %v733
        %v4189 = vunpack.c.h.b16 %v733
        %v4190 = vunpack.c.l.b16 %v734
        %v4191 = vunpack.c.h.b16 %v734
        %v4192 = vunpack.c.l.b16 %v735
        %v4193 = vunpack.c.h.b16 %v735
        %v4194 = vunpack.c.l.b16 %v736
        %v4195 = vunpack.c.h.b16 %v736
        %v4196 = vunpack.c.l.b16 %v737
        %v4197 = vunpack.c.h.b16 %v737
        %v4198 = vunpack.c.l.b16 %v738
        %v4199 = vunpack.c.h.b16 %v738
        %v4200 = vunpack.c.l.b16 %v739
        %v4201 = vunpack.c.h.b16 %v739
        %v4202 = vunpack.c.l.b16 %v740
        %v4203 = vunpack.c.h.b16 %v740
        %v4204 = vunpack.c.l.b16 %v741
        %v4205 = vunpack.c.h.b16 %v741
        %v4206 = vunpack.c.l.b16 %v742
        %v4207 = vunpack.c.h.b16 %v742
        %v4208 = vunpack.c.l.b16 %v743
        %v4209 = vunpack.c.h.b16 %v743
        %v4210 = vunpack.c.l.b16 %v744
        %v4211 = vunpack.c.h.b16 %v744
        %v4212 = vunpack.c.l.b16 %v745
        %v4213 = vunpack.c.h.b16 %v745
        %v4214 = vunpack.c.l.b16 %v746
        %v4215 = vunpack.c.h.b16 %v746
        %v4216 = vunpack.c.l.b16 %v747
        %v4217 = vunpack.c.h.b16 %v747
        %v4218 = vunpack.c.l.b16 %v748
        %v4219 = vunpack.c.h.b16 %v748
        %v4220 = vunpack.c.l.b16 %v749
        %v4221 = vunpack.c.h.b16 %v749
        %v4222 = vunpack.c.l.b16 %v750
        %v4223 = vunpack.c.h.b16 %v750
        %v4224 = vunpack.c.l.b16 %v751
        %v4225 = vunpack.c.h.b16 %v751
        %v4226 = vunpack.c.l.b16 %v752
        %v4227 = vunpack.c.h.b16 %v752
        %v4228 = vunpack.c.l.b16 %v753
        %v4229 = vunpack.c.h.b16 %v753
        %v4230 = vunpack.c.l.b16 %v754
        %v4231 = vunpack.c.h.b16 %v754
        %v4232 = vunpack.c.l.b16 %v755
        %v4233 = vunpack.c.h.b16 %v755
        %v4234 = vunpack.c.l.b16 %v756
        %v4235 = vunpack.c.h.b16 %v756
        %v4236 = vunpack.c.l.b16 %v757
        %v4237 = vunpack.c.h.b16 %v757
        %v4238 = vunpack.c.l.b16 %v758
        %v4239 = vunpack.c.h.b16 %v758
        %v4240 = vunpack.c.l.b16 %v759
        %v4241 = vunpack.c.h.b16 %v759
        %v4242 = vunpack.c.l.b16 %v760
        %v4243 = vunpack.c.h.b16 %v760
        %v4244 = vunpack.c.l.b16 %v761
        %v4245 = vunpack.c.h.b16 %v761
        %v4246 = vunpack.c.l.b16 %v762
        %v4247 = vunpack.c.h.b16 %v762
        %v4248 = vunpack.c.l.b16 %v763
        %v4249 = vunpack.c.h.b16 %v763
        %v4250 = vunpack.c.l.b16 %v764
        %v4251 = vunpack.c.h.b16 %v764
        %v4252 = vunpack.c.l.b16 %v765
        %v4253 = vunpack.c.h.b16 %v765
        %v4254 = vunpack.c.l.b16 %v766
        %v4255 = vunpack.c.h.b16 %v766
        %v4256 = vunpack.c.l.b16 %v767
        %v4257 = vunpack.c.h.b16 %v767
        %v4258 = vunpack.c.l.b16 %v768
        %v4259 = vunpack.c.h.b16 %v768
        %v4260 = vunpack.c.l.b16 %v769
        %v4261 = vunpack.c.h.b16 %v769
        %v4262 = vunpack.c.l.b16 %v770
        %v4263 = vunpack.c.h.b16 %v770
        %v4264 = vunpack.c.l.b16 %v771
        %v4265 = vunpack.c.h.b16 %v771
        %v4266 = vunpack.c.l.b16 %v772
        %v4267 = vunpack.c.h.b16 %v772
        %v4268 = vunpack.c.l.b16 %v773
        %v4269 = vunpack.c.h.b16 %v773
        %v4270 = vunpack.c.l.b16 %v774
        %v4271 = vunpack.c.h.b16 %v774
        %v4272 = vunpack.c.l.b16 %v775
        %v4273 = vunpack.c.h.b16 %v775
        %v4274 = vunpack.c.l.b16 %v776
        %v4275 = vunpack.c.h.b16 %v776
        %v4276 = vunpack.c.l.b16 %v777
        %v4277 = vunpack.c.h.b16 %v777
        %v4278 = vunpack.c.l.b16 %v778
        %v4279 = vunpack.c.h.b16 %v778
        %v4280 = vunpack.c.l.b16 %v779
        %v4281 = vunpack.c.h.b16 %v779
        %v4282 = vunpack.c.l.b16 %v780
        %v4283 = vunpack.c.h.b16 %v780
        %v4284 = vunpack.c.l.b16 %v781
        %v4285 = vunpack.c.h.b16 %v781
        %v4286 = vunpack.c.l.b16 %v782
        %v4287 = vunpack.c.h.b16 %v782
        %v4288 = vunpack.c.l.b16 %v783
        %v4289 = vunpack.c.h.b16 %v783
        %v4290 = vunpack.c.l.b16 %v784
        %v4291 = vunpack.c.h.b16 %v784
        %v4292 = vunpack.c.l.b16 %v785
        %v4293 = vunpack.c.h.b16 %v785
        %v4294 = vunpack.c.l.b16 %v786
        %v4295 = vunpack.c.h.b16 %v786
        %v4296 = vunpack.c.l.b16 %v787
        %v4297 = vunpack.c.h.b16 %v787
        %v4298 = vunpack.c.l.b16 %v788
        %v4299 = vunpack.c.h.b16 %v788
        %v4300 = vunpack.c.l.b16 %v789
        %v4301 = vunpack.c.h.b16 %v789
        %v4302 = vunpack.c.l.b16 %v790
        %v4303 = vunpack.c.h.b16 %v790
        %v4304 = vunpack.c.l.b16 %v791
        %v4305 = vunpack.c.h.b16 %v791
        %v4306 = vunpack.c.l.b16 %v792
        %v4307 = vunpack.c.h.b16 %v792
        %v4308 = vunpack.c.l.b16 %v793
        %v4309 = vunpack.c.h.b16 %v793
        %v4310 = vunpack.c.l.b16 %v794
        %v4311 = vunpack.c.h.b16 %v794
        %v4312 = vunpack.c.l.b16 %v795
        %v4313 = vunpack.c.h.b16 %v795
        %v4314 = vunpack.c.l.b16 %v796
        %v4315 = vunpack.c.h.b16 %v796
        %v4316 = vunpack.c.l.b16 %v797
        %v4317 = vunpack.c.h.b16 %v797
        %v4318 = vunpack.c.l.b16 %v798
        %v4319 = vunpack.c.h.b16 %v798
        %v4320 = vunpack.c.l.b16 %v799
        %v4321 = vunpack.c.h.b16 %v799
        %v4322 = vunpack.c.l.b16 %v800
        %v4323 = vunpack.c.h.b16 %v800
        %v4324 = vunpack.c.l.b16 %v801
        %v4325 = vunpack.c.h.b16 %v801
        %v4326 = vunpack.c.l.b16 %v802
        %v4327 = vunpack.c.h.b16 %v802
        %v4328 = vunpack.c.l.b16 %v803
        %v4329 = vunpack.c.h.b16 %v803
        %v4330 = vunpack.c.l.b16 %v804
        %v4331 = vunpack.c.h.b16 %v804
        %v4332 = vunpack.c.l.b16 %v805
        %v4333 = vunpack.c.h.b16 %v805
        %v4334 = vunpack.c.l.b16 %v806
        %v4335 = vunpack.c.h.b16 %v806
        %v4336 = vunpack.c.l.b16 %v807
        %v4337 = vunpack.c.h.b16 %v807
        %v4338 = vunpack.c.l.b16 %v808
        %v4339 = vunpack.c.h.b16 %v808
        %v4340 = vunpack.c.l.b16 %v809
        %v4341 = vunpack.c.h.b16 %v809
        %v4342 = vunpack.c.l.b16 %v810
        %v4343 = vunpack.c.h.b16 %v810
        %v4344 = vunpack.c.l.b16 %v811
        %v4345 = vunpack.c.h.b16 %v811
        %v4346 = vunpack.c.l.b16 %v812
        %v4347 = vunpack.c.h.b16 %v812
        %v4348 = vunpack.c.l.b16 %v813
        %v4349 = vunpack.c.h.b16 %v813
        %v4350 = vunpack.c.l.b16 %v814
        %v4351 = vunpack.c.h.b16 %v814
        %v4352 = vunpack.c.l.b16 %v815
        %v4353 = vunpack.c.h.b16 %v815
        %v4354 = vunpack.c.l.b16 %v816
        %v4355 = vunpack.c.h.b16 %v816
        %v4356 = vunpack.c.l.b16 %v817
        %v4357 = vunpack.c.h.b16 %v817
        %v4358 = vunpack.c.l.b16 %v818
        %v4359 = vunpack.c.h.b16 %v818
        %v4360 = vunpack.c.l.b16 %v819
        %v4361 = vunpack.c.h.b16 %v819
        %v4362 = vunpack.c.l.b16 %v820
        %v4363 = vunpack.c.h.b16 %v820
        %v4364 = vunpack.c.l.b16 %v821
        %v4365 = vunpack.c.h.b16 %v821
        %v4366 = vunpack.c.l.b16 %v822
        %v4367 = vunpack.c.h.b16 %v822
        %v4368 = vunpack.c.l.b16 %v823
        %v4369 = vunpack.c.h.b16 %v823
        %v4370 = vunpack.c.l.b16 %v824
        %v4371 = vunpack.c.h.b16 %v824
        %v4372 = vunpack.c.l.b16 %v825
        %v4373 = vunpack.c.h.b16 %v825
        %v4374 = vunpack.c.l.b16 %v826
        %v4375 = vunpack.c.h.b16 %v826
        %v4376 = vunpack.c.l.b16 %v827
        %v4377 = vunpack.c.h.b16 %v827
        %v4378 = vunpack.c.l.b16 %v828
        %v4379 = vunpack.c.h.b16 %v828
        %v4380 = vunpack.c.l.b16 %v829
        %v4381 = vunpack.c.h.b16 %v829
        %v4382 = vunpack.c.l.b16 %v830
        %v4383 = vunpack.c.h.b16 %v830
        %v4384 = vunpack.c.l.b16 %v831
        %v4385 = vunpack.c.h.b16 %v831
        %v4386 = vunpack.c.l.b16 %v832
        %v4387 = vunpack.c.h.b16 %v832
        %v4388 = vunpack.c.l.b16 %v833
        %v4389 = vunpack.c.h.b16 %v833
        %v4390 = vunpack.c.l.b16 %v834
        %v4391 = vunpack.c.h.b16 %v834
        %v4392 = vunpack.c.l.b16 %v835
        %v4393 = vunpack.c.h.b16 %v835
        %v4394 = vunpack.c.l.b16 %v836
        %v4395 = vunpack.c.h.b16 %v836
        %v4396 = vunpack.c.l.b16 %v837
        %v4397 = vunpack.c.h.b16 %v837
        %v4398 = vunpack.c.l.b16 %v838
        %v4399 = vunpack.c.h.b16 %v838
        %v4400 = vunpack.c.l.b16 %v839
        %v4401 = vunpack.c.h.b16 %v839
        %v4402 = vunpack.c.l.b16 %v840
        %v4403 = vunpack.c.h.b16 %v840
        %v4404 = vunpack.c.l.b16 %v841
        %v4405 = vunpack.c.h.b16 %v841
        %v4406 = vunpack.c.l.b16 %v842
        %v4407 = vunpack.c.h.b16 %v842
        %v4408 = vunpack.c.l.b16 %v843
        %v4409 = vunpack.c.h.b16 %v843
        %v4410 = vunpack.c.l.b16 %v844
        %v4411 = vunpack.c.h.b16 %v844
        %v4412 = vunpack.c.l.b16 %v845
        %v4413 = vunpack.c.h.b16 %v845
        %v4414 = vunpack.c.l.b16 %v846
        %v4415 = vunpack.c.h.b16 %v846
        %v4416 = vunpack.c.l.b16 %v847
        %v4417 = vunpack.c.h.b16 %v847
        %v4418 = vunpack.c.l.b16 %v848
        %v4419 = vunpack.c.h.b16 %v848
        %v4420 = vunpack.c.l.b16 %v849
        %v4421 = vunpack.c.h.b16 %v849
        %v4422 = vunpack.c.l.b16 %v850
        %v4423 = vunpack.c.h.b16 %v850
        %v4424 = vunpack.c.l.b16 %v851
        %v4425 = vunpack.c.h.b16 %v851
        %v4426 = vunpack.c.l.b16 %v852
        %v4427 = vunpack.c.h.b16 %v852
        %v4428 = vunpack.c.l.b16 %v853
        %v4429 = vunpack.c.h.b16 %v853
        %v4430 = vunpack.c.l.b16 %v854
        %v4431 = vunpack.c.h.b16 %v854
        %v4432 = vunpack.c.l.b16 %v855
        %v4433 = vunpack.c.h.b16 %v855
        %v4434 = vunpack.c.l.b16 %v856
        %v4435 = vunpack.c.h.b16 %v856
        %v4436 = vunpack.c.l.b16 %v857
        %v4437 = vunpack.c.h.b16 %v857
        %v4438 = vunpack.c.l.b16 %v858
        %v4439 = vunpack.c.h.b16 %v858
        %v4440 = vunpack.c.l.b16 %v859
        %v4441 = vunpack.c.h.b16 %v859
        %v4442 = vunpack.c.l.b16 %v860
        %v4443 = vunpack.c.h.b16 %v860
        %v4444 = vunpack.c.l.b16 %v861
        %v4445 = vunpack.c.h.b16 %v861
        %v4446 = vunpack.c.l.b16 %v862
        %v4447 = vunpack.c.h.b16 %v862
        %v4448 = vunpack.c.l.b16 %v863
        %v4449 = vunpack.c.h.b16 %v863
        %v4450 = vunpack.c.l.b16 %v864
        %v4451 = vunpack.c.h.b16 %v864
        %v4452 = vunpack.c.l.b16 %v865
        %v4453 = vunpack.c.h.b16 %v865
        %v4454 = vunpack.c.l.b16 %v866
        %v4455 = vunpack.c.h.b16 %v866
        %v4456 = vunpack.c.l.b16 %v867
        %v4457 = vunpack.c.h.b16 %v867
        %v4458 = vunpack.c.l.b16 %v868
        %v4459 = vunpack.c.h.b16 %v868
        %v4460 = vunpack.c.l.b16 %v869
        %v4461 = vunpack.c.h.b16 %v869
        %v4462 = vunpack.c.l.b16 %v870
        %v4463 = vunpack.c.h.b16 %v870
        %v4464 = vunpack.c.l.b16 %v871
        %v4465 = vunpack.c.h.b16 %v871
        %v4466 = vunpack.c.l.b16 %v872
        %v4467 = vunpack.c.h.b16 %v872
        %v4468 = vunpack.c.l.b16 %v873
        %v4469 = vunpack.c.h.b16 %v873
        %v4470 = vunpack.c.l.b16 %v874
        %v4471 = vunpack.c.h.b16 %v874
        %v4472 = vunpack.c.l.b16 %v875
        %v4473 = vunpack.c.h.b16 %v875
        %v4474 = vunpack.c.l.b16 %v876
        %v4475 = vunpack.c.h.b16 %v876
        %v4476 = vunpack.c.l.b16 %v877
        %v4477 = vunpack.c.h.b16 %v877
        %v4478 = vunpack.c.l.b16 %v878
        %v4479 = vunpack.c.h.b16 %v878
        %v4480 = vunpack.c.l.b16 %v879
        %v4481 = vunpack.c.h.b16 %v879
        %v4482 = vunpack.c.l.b16 %v880
        %v4483 = vunpack.c.h.b16 %v880
        %v4484 = vunpack.c.l.b16 %v881
        %v4485 = vunpack.c.h.b16 %v881
        %v4486 = vunpack.c.l.b16 %v882
        %v4487 = vunpack.c.h.b16 %v882
        %v4488 = vunpack.c.l.b16 %v883
        %v4489 = vunpack.c.h.b16 %v883
        %v4490 = vunpack.c.l.b16 %v884
        %v4491 = vunpack.c.h.b16 %v884
        %v4492 = vunpack.c.l.b16 %v885
        %v4493 = vunpack.c.h.b16 %v885
        %v4494 = vunpack.c.l.b16 %v886
        %v4495 = vunpack.c.h.b16 %v886
        %v4496 = vunpack.c.l.b16 %v887
        %v4497 = vunpack.c.h.b16 %v887
        %v4498 = vunpack.c.l.b16 %v888
        %v4499 = vunpack.c.h.b16 %v888
        %v4500 = vunpack.c.l.b16 %v889
        %v4501 = vunpack.c.h.b16 %v889
        %v4502 = vunpack.c.l.b16 %v890
        %v4503 = vunpack.c.h.b16 %v890
        %v4504 = vunpack.c.l.b16 %v891
        %v4505 = vunpack.c.h.b16 %v891
        %v4506 = vunpack.c.l.b16 %v892
        %v4507 = vunpack.c.h.b16 %v892
        %v4508 = vunpack.c.l.b16 %v893
        %v4509 = vunpack.c.h.b16 %v893
        %v4510 = vunpack.c.l.b16 %v894
        %v4511 = vunpack.c.h.b16 %v894
        %v4512 = vunpack.c.l.b16 %v895
        %v4513 = vunpack.c.h.b16 %v895
        %v4514 = vunpack.c.l.b16 %v896
        %v4515 = vunpack.c.h.b16 %v896
        %v4516 = vunpack.c.l.b16 %v897
        %v4517 = vunpack.c.h.b16 %v897
        %v4518 = vunpack.c.l.b16 %v898
        %v4519 = vunpack.c.h.b16 %v898
        %v4520 = vunpack.c.l.b16 %v899
        %v4521 = vunpack.c.h.b16 %v899
        %v4522 = vunpack.c.l.b16 %v900
        %v4523 = vunpack.c.h.b16 %v900
        %v4524 = vunpack.c.l.b16 %v901
        %v4525 = vunpack.c.h.b16 %v901
        %v4526 = vunpack.c.l.b16 %v902
        %v4527 = vunpack.c.h.b16 %v902
        %v4528 = vunpack.c.l.b16 %v903
        %v4529 = vunpack.c.h.b16 %v903
        %v4530 = vunpack.c.l.b16 %v904
        %v4531 = vunpack.c.h.b16 %v904
        %v4532 = vunpack.c.l.b16 %v905
        %v4533 = vunpack.c.h.b16 %v905
        %v4534 = vunpack.c.l.b16 %v906
        %v4535 = vunpack.c.h.b16 %v906
        %v4536 = vunpack.c.l.b16 %v907
        %v4537 = vunpack.c.h.b16 %v907
        %v4538 = vunpack.c.l.b16 %v908
        %v4539 = vunpack.c.h.b16 %v908
        %v4540 = vunpack.c.l.b16 %v909
        %v4541 = vunpack.c.h.b16 %v909
        %v4542 = vunpack.c.l.b16 %v910
        %v4543 = vunpack.c.h.b16 %v910
        %v4544 = vunpack.c.l.b16 %v911
        %v4545 = vunpack.c.h.b16 %v911
        %v4546 = vunpack.c.l.b16 %v912
        %v4547 = vunpack.c.h.b16 %v912
        %v4548 = vunpack.c.l.b16 %v913
        %v4549 = vunpack.c.h.b16 %v913
        %v4550 = vunpack.c.l.b16 %v914
        %v4551 = vunpack.c.h.b16 %v914
        %v4552 = vunpack.c.l.b16 %v915
        %v4553 = vunpack.c.h.b16 %v915
        %v4554 = vunpack.c.l.b16 %v916
        %v4555 = vunpack.c.h.b16 %v916
        %v4556 = vunpack.c.l.b16 %v917
        %v4557 = vunpack.c.h.b16 %v917
        %v4558 = vunpack.c.l.b16 %v918
        %v4559 = vunpack.c.h.b16 %v918
        %v4560 = vunpack.c.l.b16 %v919
        %v4561 = vunpack.c.h.b16 %v919
        %v4562 = vunpack.c.l.b16 %v920
        %v4563 = vunpack.c.h.b16 %v920
        %v4564 = vunpack.c.l.b16 %v921
        %v4565 = vunpack.c.h.b16 %v921
        %v4566 = vunpack.c.l.b16 %v922
        %v4567 = vunpack.c.h.b16 %v922
        %v4568 = vunpack.c.l.b16 %v923
        %v4569 = vunpack.c.h.b16 %v923
        %v4570 = vunpack.c.l.b16 %v924
        %v4571 = vunpack.c.h.b16 %v924
        %v4572 = vunpack.c.l.b16 %v925
        %v4573 = vunpack.c.h.b16 %v925
        %v4574 = vunpack.c.l.b16 %v926
        %v4575 = vunpack.c.h.b16 %v926
        %v4576 = vunpack.c.l.b16 %v927
        %v4577 = vunpack.c.h.b16 %v927
        %v4578 = vunpack.c.l.b16 %v928
        %v4579 = vunpack.c.h.b16 %v928
        %v4580 = vunpack.c.l.b16 %v929
        %v4581 = vunpack.c.h.b16 %v929
        %v4582 = vunpack.c.l.b16 %v930
        %v4583 = vunpack.c.h.b16 %v930
        %v4584 = vunpack.c.l.b16 %v931
        %v4585 = vunpack.c.h.b16 %v931
        %v4586 = vunpack.c.l.b16 %v932
        %v4587 = vunpack.c.h.b16 %v932
        %v4588 = vunpack.c.l.b16 %v933
        %v4589 = vunpack.c.h.b16 %v933
        %v4590 = vunpack.c.l.b16 %v934
        %v4591 = vunpack.c.h.b16 %v934
        %v4592 = vunpack.c.l.b16 %v935
        %v4593 = vunpack.c.h.b16 %v935
        %v4594 = vunpack.c.l.b16 %v936
        %v4595 = vunpack.c.h.b16 %v936
        %v4596 = vunpack.c.l.b16 %v937
        %v4597 = vunpack.c.h.b16 %v937
        %v4598 = vunpack.c.l.b16 %v938
        %v4599 = vunpack.c.h.b16 %v938
        %v4600 = vunpack.c.l.b16 %v939
        %v4601 = vunpack.c.h.b16 %v939
        %v4602 = vunpack.c.l.b16 %v940
        %v4603 = vunpack.c.h.b16 %v940
        %v4604 = vunpack.c.l.b16 %v941
        %v4605 = vunpack.c.h.b16 %v941
        %v4606 = vunpack.c.l.b16 %v942
        %v4607 = vunpack.c.h.b16 %v942
        %v4608 = vunpack.c.l.b16 %v943
        %v4609 = vunpack.c.h.b16 %v943
        %v4610 = vunpack.c.l.b16 %v944
        %v4611 = vunpack.c.h.b16 %v944
        %v4612 = vunpack.c.l.b16 %v945
        %v4613 = vunpack.c.h.b16 %v945
        %v4614 = vunpack.c.l.b16 %v946
        %v4615 = vunpack.c.h.b16 %v946
        %v4616 = vunpack.c.l.b16 %v947
        %v4617 = vunpack.c.h.b16 %v947
        %v4618 = vunpack.c.l.b16 %v948
        %v4619 = vunpack.c.h.b16 %v948
        %v4620 = vunpack.c.l.b16 %v949
        %v4621 = vunpack.c.h.b16 %v949
        %v4622 = vunpack.c.l.b16 %v950
        %v4623 = vunpack.c.h.b16 %v950
        %v4624 = vunpack.c.l.b16 %v951
        %v4625 = vunpack.c.h.b16 %v951
        %v4626 = vunpack.c.l.b16 %v952
        %v4627 = vunpack.c.h.b16 %v952
        %v4628 = vunpack.c.l.b16 %v953
        %v4629 = vunpack.c.h.b16 %v953
        %v4630 = vunpack.c.l.b16 %v954
        %v4631 = vunpack.c.h.b16 %v954
        %v4632 = vunpack.c.l.b16 %v955
        %v4633 = vunpack.c.h.b16 %v955
        %v4634 = vunpack.c.l.b16 %v956
        %v4635 = vunpack.c.h.b16 %v956
        %v4636 = vunpack.c.l.b16 %v957
        %v4637 = vunpack.c.h.b16 %v957
        %v4638 = vunpack.c.l.b16 %v958
        %v4639 = vunpack.c.h.b16 %v958
        %v4640 = vunpack.c.l.b16 %v959
        %v4641 = vunpack.c.h.b16 %v959
        %v4642 = vunpack.c.l.b16 %v960
        %v4643 = vunpack.c.h.b16 %v960
        %v4644 = vunpack.c.l.b16 %v961
        %v4645 = vunpack.c.h.b16 %v961
        %v4646 = vunpack.c.l.b16 %v962
        %v4647 = vunpack.c.h.b16 %v962
        %v4648 = vunpack.c.l.b16 %v963
        %v4649 = vunpack.c.h.b16 %v963
        %v4650 = vunpack.c.l.b16 %v964
        %v4651 = vunpack.c.h.b16 %v964
        %v4652 = vunpack.c.l.b16 %v965
        %v4653 = vunpack.c.h.b16 %v965
        %v4654 = vunpack.c.l.b16 %v966
        %v4655 = vunpack.c.h.b16 %v966
        %v4656 = vunpack.c.l.b16 %v967
        %v4657 = vunpack.c.h.b16 %v967
        %v4658 = vunpack.c.l.b16 %v968
        %v4659 = vunpack.c.h.b16 %v968
        %v4660 = vunpack.c.l.b16 %v969
        %v4661 = vunpack.c.h.b16 %v969
        %v4662 = vunpack.c.l.b16 %v970
        %v4663 = vunpack.c.h.b16 %v970
        %v4664 = vunpack.c.l.b16 %v971
        %v4665 = vunpack.c.h.b16 %v971
        %v4666 = vunpack.c.l.b16 %v972
        %v4667 = vunpack.c.h.b16 %v972
        %v4668 = vunpack.c.l.b16 %v973
        %v4669 = vunpack.c.h.b16 %v973
        %v4670 = vunpack.c.l.b16 %v974
        %v4671 = vunpack.c.h.b16 %v974
        %v4672 = vunpack.c.l.b16 %v975
        %v4673 = vunpack.c.h.b16 %v975
        %v4674 = vunpack.c.l.b16 %v976
        %v4675 = vunpack.c.h.b16 %v976
        %v4676 = vunpack.c.l.b16 %v977
        %v4677 = vunpack.c.h.b16 %v977
        %v4678 = vunpack.c.l.b16 %v978
        %v4679 = vunpack.c.h.b16 %v978
        %v4680 = vunpack.c.l.b16 %v979
        %v4681 = vunpack.c.h.b16 %v979
        %v4682 = vunpack.c.l.b16 %v980
        %v4683 = vunpack.c.h.b16 %v980
        %v4684 = vunpack.c.l.b16 %v981
        %v4685 = vunpack.c.h.b16 %v981
        %v4686 = vunpack.c.l.b16 %v982
        %v4687 = vunpack.c.h.b16 %v982
        %v4688 = vunpack.c.l.b16 %v983
        %v4689 = vunpack.c.h.b16 %v983
        %v4690 = vunpack.c.l.b16 %v984
        %v4691 = vunpack.c.h.b16 %v984
        %v4692 = vunpack.c.l.b16 %v985
        %v4693 = vunpack.c.h.b16 %v985
        %v4694 = vunpack.c.l.b16 %v986
        %v4695 = vunpack.c.h.b16 %v986
        %v4696 = vunpack.c.l.b16 %v987
        %v4697 = vunpack.c.h.b16 %v987
        %v4698 = vunpack.c.l.b16 %v988
        %v4699 = vunpack.c.h.b16 %v988
        %v4700 = vunpack.c.l.b16 %v989
        %v4701 = vunpack.c.h.b16 %v989
        %v4702 = vunpack.c.l.b16 %v990
        %v4703 = vunpack.c.h.b16 %v990
        %v4704 = vunpack.c.l.b16 %v991
        %v4705 = vunpack.c.h.b16 %v991
        %v4706 = vunpack.c.l.b16 %v992
        %v4707 = vunpack.c.h.b16 %v992
        %v4708 = vunpack.c.l.b16 %v993
        %v4709 = vunpack.c.h.b16 %v993
        %v4710 = vunpack.c.l.b16 %v994
        %v4711 = vunpack.c.h.b16 %v994
        %v4712 = vunpack.c.l.b16 %v995
        %v4713 = vunpack.c.h.b16 %v995
        %v4714 = vunpack.c.l.b16 %v996
        %v4715 = vunpack.c.h.b16 %v996
        %v4716 = vunpack.c.l.b16 %v997
        %v4717 = vunpack.c.h.b16 %v997
        %v4718 = vunpack.c.l.b16 %v998
        %v4719 = vunpack.c.h.b16 %v998
        %v4720 = vunpack.c.l.b16 %v999
        %v4721 = vunpack.c.h.b16 %v999
        %v4722 = vunpack.c.l.b16 %v1000
        %v4723 = vunpack.c.h.b16 %v1000
        %v4724 = vunpack.c.l.b16 %v1001
        %v4725 = vunpack.c.h.b16 %v1001
        %v4726 = vunpack.c.l.b16 %v1002
        %v4727 = vunpack.c.h.b16 %v1002
        %v4728 = vunpack.c.l.b16 %v1003
        %v4729 = vunpack.c.h.b16 %v1003
        %v4730 = vunpack.c.l.b16 %v1004
        %v4731 = vunpack.c.h.b16 %v1004
        %v4732 = vunpack.c.l.b16 %v1005
        %v4733 = vunpack.c.h.b16 %v1005
        %v4734 = vunpack.c.l.b16 %v1006
        %v4735 = vunpack.c.h.b16 %v1006
        %v4736 = vunpack.c.l.b16 %v1007
        %v4737 = vunpack.c.h.b16 %v1007
        %v4738 = vunpack.c.l.b16 %v1008
        %v4739 = vunpack.c.h.b16 %v1008
        %v4740 = vunpack.c.l.b16 %v1009
        %v4741 = vunpack.c.h.b16 %v1009
        %v4742 = vunpack.c.l.b16 %v1010
        %v4743 = vunpack.c.h.b16 %v1010
        %v4744 = vunpack.c.l.b16 %v1011
        %v4745 = vunpack.c.h.b16 %v1011
        %v4746 = vunpack.c.l.b16 %v1012
        %v4747 = vunpack.c.h.b16 %v1012
        %v4748 = vunpack.c.l.b16 %v1013
        %v4749 = vunpack.c.h.b16 %v1013
        %v4750 = vunpack.c.l.b16 %v1014
        %v4751 = vunpack.c.h.b16 %v1014
        %v4752 = vunpack.c.l.b16 %v1015
        %v4753 = vunpack.c.h.b16 %v1015
        %v4754 = vunpack.c.l.b16 %v1016
        %v4755 = vunpack.c.h.b16 %v1016
        %v4756 = vunpack.c.l.b16 %v1017
        %v4757 = vunpack.c.h.b16 %v1017
        %v4758 = vunpack.c.l.b16 %v1018
        %v4759 = vunpack.c.h.b16 %v1018
        %v4760 = vunpack.c.l.b16 %v1019
        %v4761 = vunpack.c.h.b16 %v1019
        %v4762 = vunpack.c.l.b16 %v1020
        %v4763 = vunpack.c.h.b16 %v1020
        %v4764 = vunpack.c.l.b16 %v1021
        %v4765 = vunpack.c.h.b16 %v1021
        %v4766 = vunpack.c.l.b16 %v1022
        %v4767 = vunpack.c.h.b16 %v1022
        %v4768 = vunpack.c.l.b16 %v1023
        %v4769 = vunpack.c.h.b16 %v1023
        %v4770 = vunpack.c.l.b16 %v1024
        %v4771 = vunpack.c.h.b16 %v1024
        %v4772 = vunpack.c.l.b16 %v1025
        %v4773 = vunpack.c.h.b16 %v1025
        %v4774 = vunpack.c.l.b16 %v1026
        %v4775 = vunpack.c.h.b16 %v1026
        %v4776 = vunpack.c.l.b16 %v1027
        %v4777 = vunpack.c.h.b16 %v1027
        %v4778 = vunpack.c.l.b16 %v1028
        %v4779 = vunpack.c.h.b16 %v1028
        %v4780 = vunpack.c.l.b16 %v1029
        %v4781 = vunpack.c.h.b16 %v1029
        %v4782 = vunpack.c.l.b16 %v1030
        %v4783 = vunpack.c.h.b16 %v1030
        %v4784 = vunpack.c.l.b16 %v1031
        %v4785 = vunpack.c.h.b16 %v1031
        %v4786 = vunpack.c.l.b16 %v1032
        %v4787 = vunpack.c.h.b16 %v1032
        %v4788 = vunpack.c.l.b16 %v1033
        %v4789 = vunpack.c.h.b16 %v1033
        %v4790 = vunpack.c.l.b16 %v1034
        %v4791 = vunpack.c.h.b16 %v1034
        %v4792 = vunpack.c.l.b16 %v1035
        %v4793 = vunpack.c.h.b16 %v1035
        %v4794 = vunpack.c.l.b16 %v1036
        %v4795 = vunpack.c.h.b16 %v1036
        %v4796 = vunpack.c.l.b16 %v1037
        %v4797 = vunpack.c.h.b16 %v1037
        %v4798 = vunpack.c.l.b16 %v1038
        %v4799 = vunpack.c.h.b16 %v1038
        %v4800 = vunpack.c.l.b16 %v1039
        %v4801 = vunpack.c.h.b16 %v1039
        %v4802 = vunpack.c.l.b16 %v1040
        %v4803 = vunpack.c.h.b16 %v1040
        %v4804 = vunpack.c.l.b16 %v1041
        %v4805 = vunpack.c.h.b16 %v1041
        %v4806 = vunpack.c.l.b16 %v1042
        %v4807 = vunpack.c.h.b16 %v1042
        %v4808 = vunpack.c.l.b16 %v1043
        %v4809 = vunpack.c.h.b16 %v1043
        %v4810 = vunpack.c.l.b16 %v1044
        %v4811 = vunpack.c.h.b16 %v1044
        %v4812 = vunpack.c.l.b16 %v1045
        %v4813 = vunpack.c.h.b16 %v1045
        %v4814 = vunpack.c.l.b16 %v1046
        %v4815 = vunpack.c.h.b16 %v1046
        %v4816 = vunpack.c.l.b16 %v1047
        %v4817 = vunpack.c.h.b16 %v1047
        %v4818 = vunpack.c.l.b16 %v1048
        %v4819 = vunpack.c.h.b16 %v1048
        %v4820 = vunpack.c.l.b16 %v1049
        %v4821 = vunpack.c.h.b16 %v1049
        %v4822 = vunpack.c.l.b16 %v1050
        %v4823 = vunpack.c.h.b16 %v1050
        %v4824 = vunpack.c.l.b16 %v1051
        %v4825 = vunpack.c.h.b16 %v1051
        %v4826 = vunpack.c.l.b16 %v1052
        %v4827 = vunpack.c.h.b16 %v1052
        %v4828 = vunpack.c.l.b16 %v1053
        %v4829 = vunpack.c.h.b16 %v1053
        %v4830 = vunpack.c.l.b16 %v1054
        %v4831 = vunpack.c.h.b16 %v1054
        %v4832 = vunpack.c.l.b16 %v1055
        %v4833 = vunpack.c.h.b16 %v1055
        %v4834 = vunpack.c.l.b16 %v1056
        %v4835 = vunpack.c.h.b16 %v1056
        %v4836 = vunpack.c.l.b16 %v1057
        %v4837 = vunpack.c.h.b16 %v1057
        %v4838 = vunpack.c.l.b16 %v1058
        %v4839 = vunpack.c.h.b16 %v1058
        %v4840 = vunpack.c.l.b16 %v1059
        %v4841 = vunpack.c.h.b16 %v1059
        %v4842 = vunpack.c.l.b16 %v1060
        %v4843 = vunpack.c.h.b16 %v1060
        %v4844 = vunpack.c.l.b16 %v1061
        %v4845 = vunpack.c.h.b16 %v1061
        %v4846 = vunpack.c.l.b16 %v1062
        %v4847 = vunpack.c.h.b16 %v1062
        %v4848 = vunpack.c.l.b16 %v1063
        %v4849 = vunpack.c.h.b16 %v1063
        %v4850 = vunpack.c.l.b16 %v1064
        %v4851 = vunpack.c.h.b16 %v1064
        %v4852 = vunpack.c.l.b16 %v1065
        %v4853 = vunpack.c.h.b16 %v1065
        %v4854 = vunpack.c.l.b16 %v1066
        %v4855 = vunpack.c.h.b16 %v1066
        %v4856 = vunpack.c.l.b16 %v1067
        %v4857 = vunpack.c.h.b16 %v1067
        %v4858 = vunpack.c.l.b16 %v1068
        %v4859 = vunpack.c.h.b16 %v1068
        %v4860 = vunpack.c.l.b16 %v1069
        %v4861 = vunpack.c.h.b16 %v1069
        %v4862 = vunpack.c.l.b16 %v1070
        %v4863 = vunpack.c.h.b16 %v1070
        %v4864 = vunpack.c.l.b16 %v1071
        %v4865 = vunpack.c.h.b16 %v1071
        %v4866 = vunpack.c.l.b16 %v1072
        %v4867 = vunpack.c.h.b16 %v1072
        %v4868 = vunpack.c.l.b16 %v1073
        %v4869 = vunpack.c.h.b16 %v1073
        %v4870 = vunpack.c.l.b16 %v1074
        %v4871 = vunpack.c.h.b16 %v1074
        %v4872 = vunpack.c.l.b16 %v1075
        %v4873 = vunpack.c.h.b16 %v1075
        %v4874 = vunpack.c.l.b16 %v1076
        %v4875 = vunpack.c.h.b16 %v1076
        %v4876 = vunpack.c.l.b16 %v1077
        %v4877 = vunpack.c.h.b16 %v1077
        %v4878 = vunpack.c.l.b16 %v1078
        %v4879 = vunpack.c.h.b16 %v1078
        %v4880 = vunpack.c.l.b16 %v1079
        %v4881 = vunpack.c.h.b16 %v1079
        %v4882 = vunpack.c.l.b16 %v1080
        %v4883 = vunpack.c.h.b16 %v1080
        %v4884 = vunpack.c.l.b16 %v1081
        %v4885 = vunpack.c.h.b16 %v1081
        %v4886 = vunpack.c.l.b16 %v1082
        %v4887 = vunpack.c.h.b16 %v1082
        %v4888 = vunpack.c.l.b16 %v1083
        %v4889 = vunpack.c.h.b16 %v1083
        %v4890 = vunpack.c.l.b16 %v1084
        %v4891 = vunpack.c.h.b16 %v1084
        %v4892 = vunpack.c.l.b16 %v1085
        %v4893 = vunpack.c.h.b16 %v1085
        %v4894 = vunpack.c.l.b16 %v1086
        %v4895 = vunpack.c.h.b16 %v1086
        %v4896 = vunpack.c.l.b16 %v1087
        %v4897 = vunpack.c.h.b16 %v1087
        %v4898 = vunpack.c.l.b16 %v1088
        %v4899 = vunpack.c.h.b16 %v1088
        %v4900 = vunpack.c.l.b16 %v1089
        %v4901 = vunpack.c.h.b16 %v1089
        %v4902 = vunpack.c.l.b16 %v1090
        %v4903 = vunpack.c.h.b16 %v1090
        %v4904 = vunpack.c.l.b16 %v1091
        %v4905 = vunpack.c.h.b16 %v1091
        %v4906 = vunpack.c.l.b16 %v1092
        %v4907 = vunpack.c.h.b16 %v1092
        %v4908 = vunpack.c.l.b16 %v1093
        %v4909 = vunpack.c.h.b16 %v1093
        %v4910 = vunpack.c.l.b16 %v1094
        %v4911 = vunpack.c.h.b16 %v1094
        %v4912 = vunpack.c.l.b16 %v1095
        %v4913 = vunpack.c.h.b16 %v1095
        %v4914 = vunpack.c.l.b16 %v1096
        %v4915 = vunpack.c.h.b16 %v1096
        %v4916 = vunpack.c.l.b16 %v1097
        %v4917 = vunpack.c.h.b16 %v1097
        %v4918 = vunpack.c.l.b16 %v1098
        %v4919 = vunpack.c.h.b16 %v1098
        %v4920 = vunpack.c.l.b16 %v1099
        %v4921 = vunpack.c.h.b16 %v1099
        %v4922 = vunpack.c.l.b16 %v1100
        %v4923 = vunpack.c.h.b16 %v1100
        %v4924 = vunpack.c.l.b16 %v1101
        %v4925 = vunpack.c.h.b16 %v1101
        %v4926 = vunpack.c.l.b16 %v1102
        %v4927 = vunpack.c.h.b16 %v1102
        %v4928 = vunpack.c.l.b16 %v1103
        %v4929 = vunpack.c.h.b16 %v1103
        %v4930 = vunpack.c.l.b16 %v1104
        %v4931 = vunpack.c.h.b16 %v1104
        %v4932 = vunpack.c.l.b16 %v1105
        %v4933 = vunpack.c.h.b16 %v1105
        %v4934 = vunpack.c.l.b16 %v1106
        %v4935 = vunpack.c.h.b16 %v1106
        %v4936 = vunpack.c.l.b16 %v1107
        %v4937 = vunpack.c.h.b16 %v1107
        %v4938 = vunpack.c.l.b16 %v1108
        %v4939 = vunpack.c.h.b16 %v1108
        %v4940 = vunpack.c.l.b16 %v1109
        %v4941 = vunpack.c.h.b16 %v1109
        %v4942 = vunpack.c.l.b16 %v1110
        %v4943 = vunpack.c.h.b16 %v1110
        %v4944 = vunpack.c.l.b16 %v1111
        %v4945 = vunpack.c.h.b16 %v1111
        %v4946 = vunpack.c.l.b16 %v1112
        %v4947 = vunpack.c.h.b16 %v1112
        %v4948 = vunpack.c.l.b16 %v1113
        %v4949 = vunpack.c.h.b16 %v1113
        %v4950 = vunpack.c.l.b16 %v1114
        %v4951 = vunpack.c.h.b16 %v1114
        %v4952 = vunpack.c.l.b16 %v1115
        %v4953 = vunpack.c.h.b16 %v1115
        %v4954 = vunpack.c.l.b16 %v1116
        %v4955 = vunpack.c.h.b16 %v1116
        %v4956 = vunpack.c.l.b16 %v1117
        %v4957 = vunpack.c.h.b16 %v1117
        %v4958 = vunpack.c.l.b16 %v1118
        %v4959 = vunpack.c.h.b16 %v1118
        %v4960 = vunpack.c.l.b16 %v1119
        %v4961 = vunpack.c.h.b16 %v1119
        %v4962 = vunpack.c.l.b16 %v1120
        %v4963 = vunpack.c.h.b16 %v1120
        %v4964 = vunpack.c.l.b16 %v1121
        %v4965 = vunpack.c.h.b16 %v1121
        %v4966 = vunpack.c.l.b16 %v1122
        %v4967 = vunpack.c.h.b16 %v1122
        %v4968 = vunpack.c.l.b16 %v1123
        %v4969 = vunpack.c.h.b16 %v1123
        %v4970 = vunpack.c.l.b16 %v1124
        %v4971 = vunpack.c.h.b16 %v1124
        %v4972 = vunpack.c.l.b16 %v1125
        %v4973 = vunpack.c.h.b16 %v1125
        %v4974 = vunpack.c.l.b16 %v1126
        %v4975 = vunpack.c.h.b16 %v1126
        %v4976 = vunpack.c.l.b16 %v1127
        %v4977 = vunpack.c.h.b16 %v1127
        %v4978 = vunpack.c.l.b16 %v1128
        %v4979 = vunpack.c.h.b16 %v1128
        %v4980 = vunpack.c.l.b16 %v1129
        %v4981 = vunpack.c.h.b16 %v1129
        %v4982 = vunpack.c.l.b16 %v1130
        %v4983 = vunpack.c.h.b16 %v1130
        %v4984 = vunpack.c.l.b16 %v1131
        %v4985 = vunpack.c.h.b16 %v1131
        %v4986 = vunpack.c.l.b16 %v1132
        %v4987 = vunpack.c.h.b16 %v1132
        %v4988 = vunpack.c.l.b16 %v1133
        %v4989 = vunpack.c.h.b16 %v1133
        %v4990 = vunpack.c.l.b16 %v1134
        %v4991 = vunpack.c.h.b16 %v1134
        %v4992 = vunpack.c.l.b16 %v1135
        %v4993 = vunpack.c.h.b16 %v1135
        %v4994 = vunpack.c.l.b16 %v1136
        %v4995 = vunpack.c.h.b16 %v1136
        %v4996 = vunpack.c.l.b16 %v1137
        %v4997 = vunpack.c.h.b16 %v1137
        %v4998 = vunpack.c.l.b16 %v1138
        %v4999 = vunpack.c.h.b16 %v1138
        %v5000 = vunpack.c.l.b16 %v1139
        %v5001 = vunpack.c.h.b16 %v1139
        %v5002 = vunpack.c.l.b16 %v1140
        %v5003 = vunpack.c.h.b16 %v1140
        %v5004 = vunpack.c.l.b16 %v1141
        %v5005 = vunpack.c.h.b16 %v1141
        %v5006 = vunpack.c.l.b16 %v1142
        %v5007 = vunpack.c.h.b16 %v1142
        %v5008 = vunpack.c.l.b16 %v1143
        %v5009 = vunpack.c.h.b16 %v1143
        %v5010 = vunpack.c.l.b16 %v1144
        %v5011 = vunpack.c.h.b16 %v1144
        %v5012 = vunpack.c.l.b16 %v1145
        %v5013 = vunpack.c.h.b16 %v1145
        %v5014 = vunpack.c.l.b16 %v1146
        %v5015 = vunpack.c.h.b16 %v1146
        %v5016 = vunpack.c.l.b16 %v1147
        %v5017 = vunpack.c.h.b16 %v1147
        %v5018 = vunpack.c.l.b16 %v1148
        %v5019 = vunpack.c.h.b16 %v1148
        %v5020 = vunpack.c.l.b16 %v1149
        %v5021 = vunpack.c.h.b16 %v1149
        %v5022 = vunpack.c.l.b16 %v1150
        %v5023 = vunpack.c.h.b16 %v1150
        %v5024 = vunpack.c.l.b16 %v1151
        %v5025 = vunpack.c.h.b16 %v1151
        %v5026 = vunpack.c.l.b16 %v1152
        %v5027 = vunpack.c.h.b16 %v1152
        %v5028 = vunpack.c.l.b16 %v1153
        %v5029 = vunpack.c.h.b16 %v1153
        %v5030 = vunpack.c.l.b16 %v1154
        %v5031 = vunpack.c.h.b16 %v1154
        %v5032 = vunpack.c.l.b16 %v1155
        %v5033 = vunpack.c.h.b16 %v1155
        %v5034 = vunpack.c.l.b16 %v1156
        %v5035 = vunpack.c.h.b16 %v1156
        %v5036 = vunpack.c.l.b16 %v1157
        %v5037 = vunpack.c.h.b16 %v1157
        %v5038 = vunpack.c.l.b16 %v1158
        %v5039 = vunpack.c.h.b16 %v1158
        %v5040 = vunpack.c.l.b16 %v1159
        %v5041 = vunpack.c.h.b16 %v1159
        %v5042 = vunpack.c.l.b16 %v1160
        %v5043 = vunpack.c.h.b16 %v1160
        %v5044 = vunpack.c.l.b16 %v1161
        %v5045 = vunpack.c.h.b16 %v1161
        %v5046 = vunpack.c.l.b16 %v1162
        %v5047 = vunpack.c.h.b16 %v1162
        %v5048 = vunpack.c.l.b16 %v1163
        %v5049 = vunpack.c.h.b16 %v1163
        %v5050 = vunpack.c.l.b16 %v1164
        %v5051 = vunpack.c.h.b16 %v1164
        %v5052 = vunpack.c.l.b16 %v1165
        %v5053 = vunpack.c.h.b16 %v1165
        %v5054 = vunpack.c.l.b16 %v1166
        %v5055 = vunpack.c.h.b16 %v1166
        %v5056 = vunpack.c.l.b16 %v1167
        %v5057 = vunpack.c.h.b16 %v1167
        %v5058 = vunpack.c.l.b16 %v1168
        %v5059 = vunpack.c.h.b16 %v1168
        %v5060 = vunpack.c.l.b16 %v1169
        %v5061 = vunpack.c.h.b16 %v1169
        %v5062 = vunpack.c.l.b16 %v1170
        %v5063 = vunpack.c.h.b16 %v1170
        %v5064 = vunpack.c.l.b16 %v1171
        %v5065 = vunpack.c.h.b16 %v1171
        %v5066 = vunpack.c.l.b16 %v1172
        %v5067 = vunpack.c.h.b16 %v1172
        %v5068 = vunpack.c.l.b16 %v1173
        %v5069 = vunpack.c.h.b16 %v1173
        %v5070 = vunpack.c.l.b16 %v1174
        %v5071 = vunpack.c.h.b16 %v1174
        %v5072 = vunpack.c.l.b16 %v1175
        %v5073 = vunpack.c.h.b16 %v1175
        %v5074 = vunpack.c.l.b16 %v1176
        %v5075 = vunpack.c.h.b16 %v1176
        %v5076 = vunpack.c.l.b16 %v1177
        %v5077 = vunpack.c.h.b16 %v1177
        %v5078 = vunpack.c.l.b16 %v1178
        %v5079 = vunpack.c.h.b16 %v1178
        %v5080 = vunpack.c.l.b16 %v1179
        %v5081 = vunpack.c.h.b16 %v1179
        %v5082 = vunpack.c.l.b16 %v1180
        %v5083 = vunpack.c.h.b16 %v1180
        %v5084 = vunpack.c.l.b16 %v1181
        %v5085 = vunpack.c.h.b16 %v1181
        %v5086 = vunpack.c.l.b16 %v1182
        %v5087 = vunpack.c.h.b16 %v1182
        %v5088 = vunpack.c.l.b16 %v1183
        %v5089 = vunpack.c.h.b16 %v1183
        %v5090 = vunpack.c.l.b16 %v1184
        %v5091 = vunpack.c.h.b16 %v1184
        %v5092 = vunpack.c.l.b16 %v1185
        %v5093 = vunpack.c.h.b16 %v1185
        %v5094 = vunpack.c.l.b16 %v1186
        %v5095 = vunpack.c.h.b16 %v1186
        %v5096 = vunpack.c.l.b16 %v1187
        %v5097 = vunpack.c.h.b16 %v1187
        %v5098 = vunpack.c.l.b16 %v1188
        %v5099 = vunpack.c.h.b16 %v1188
        %v5100 = vunpack.c.l.b16 %v1189
        %v5101 = vunpack.c.h.b16 %v1189
        %v5102 = vunpack.c.l.b16 %v1190
        %v5103 = vunpack.c.h.b16 %v1190
        %v5104 = vunpack.c.l.b16 %v1191
        %v5105 = vunpack.c.h.b16 %v1191
        %v5106 = vunpack.c.l.b16 %v1192
        %v5107 = vunpack.c.h.b16 %v1192
        %v5108 = vunpack.c.l.b16 %v1193
        %v5109 = vunpack.c.h.b16 %v1193
        %v5110 = vunpack.c.l.b16 %v1194
        %v5111 = vunpack.c.h.b16 %v1194
        %v5112 = vunpack.c.l.b16 %v1195
        %v5113 = vunpack.c.h.b16 %v1195
        %v5114 = vunpack.c.l.b16 %v1196
        %v5115 = vunpack.c.h.b16 %v1196
        %v5116 = vunpack.c.l.b16 %v1197
        %v5117 = vunpack.c.h.b16 %v1197
        %v5118 = vunpack.c.l.b16 %v1198
        %v5119 = vunpack.c.h.b16 %v1198
        %v5120 = vunpack.c.l.b16 %v1199
        %v5121 = vunpack.c.h.b16 %v1199
        %v5122 = vunpack.c.l.b16 %v1200
        %v5123 = vunpack.c.h.b16 %v1200
        %v5124 = vunpack.c.l.b16 %v1201
        %v5125 = vunpack.c.h.b16 %v1201
        %v5126 = vunpack.c.l.b16 %v1202
        %v5127 = vunpack.c.h.b16 %v1202
        %v5128 = vunpack.c.l.b16 %v1203
        %v5129 = vunpack.c.h.b16 %v1203
        %v5130 = vunpack.c.l.b16 %v1204
        %v5131 = vunpack.c.h.b16 %v1204
        %v5132 = vunpack.c.l.b16 %v1205
        %v5133 = vunpack.c.h.b16 %v1205
        %v5134 = vunpack.c.l.b16 %v1206
        %v5135 = vunpack.c.h.b16 %v1206
        %v5136 = vunpack.c.l.b16 %v1207
        %v5137 = vunpack.c.h.b16 %v1207
        %v5138 = vunpack.c.l.b16 %v1208
        %v5139 = vunpack.c.h.b16 %v1208
        %v5140 = vunpack.c.l.b16 %v1209
        %v5141 = vunpack.c.h.b16 %v1209
        %v5142 = vunpack.c.l.b16 %v1210
        %v5143 = vunpack.c.h.b16 %v1210
        %v5144 = vunpack.c.l.b16 %v1211
        %v5145 = vunpack.c.h.b16 %v1211
        %v5146 = vunpack.c.l.b16 %v1212
        %v5147 = vunpack.c.h.b16 %v1212
        %v5148 = vunpack.c.l.b16 %v1213
        %v5149 = vunpack.c.h.b16 %v1213
        %v5150 = vunpack.c.l.b16 %v1214
        %v5151 = vunpack.c.h.b16 %v1214
        %v5152 = vunpack.c.l.b16 %v1215
        %v5153 = vunpack.c.h.b16 %v1215
        %v5154 = vunpack.c.l.b16 %v1216
        %v5155 = vunpack.c.h.b16 %v1216
        %v5156 = vunpack.c.l.b16 %v1217
        %v5157 = vunpack.c.h.b16 %v1217
        %v5158 = vunpack.c.l.b16 %v1218
        %v5159 = vunpack.c.h.b16 %v1218
        %v5160 = vunpack.c.l.b16 %v1219
        %v5161 = vunpack.c.h.b16 %v1219
        %v5162 = vunpack.c.l.b16 %v1220
        %v5163 = vunpack.c.h.b16 %v1220
        %v5164 = vunpack.c.l.b16 %v1221
        %v5165 = vunpack.c.h.b16 %v1221
        %v5166 = vunpack.c.l.b16 %v1222
        %v5167 = vunpack.c.h.b16 %v1222
        %v5168 = vunpack.c.l.b16 %v1223
        %v5169 = vunpack.c.h.b16 %v1223
        %v5170 = vunpack.c.l.b16 %v1224
        %v5171 = vunpack.c.h.b16 %v1224
        %v5172 = vunpack.c.l.b16 %v1225
        %v5173 = vunpack.c.h.b16 %v1225
        %v5174 = vunpack.c.l.b16 %v1226
        %v5175 = vunpack.c.h.b16 %v1226
        %v5176 = vunpack.c.l.b16 %v1227
        %v5177 = vunpack.c.h.b16 %v1227
        %v5178 = vunpack.c.l.b16 %v1228
        %v5179 = vunpack.c.h.b16 %v1228
        %v5180 = vunpack.c.l.b16 %v1229
        %v5181 = vunpack.c.h.b16 %v1229
        %v5182 = vunpack.c.l.b16 %v1230
        %v5183 = vunpack.c.h.b16 %v1230
        %v5184 = vunpack.c.l.b16 %v1231
        %v5185 = vunpack.c.h.b16 %v1231
        %v5186 = vunpack.c.l.b16 %v1232
        %v5187 = vunpack.c.h.b16 %v1232
        %v5188 = vunpack.c.l.b16 %v1233
        %v5189 = vunpack.c.h.b16 %v1233
        %v5190 = vunpack.c.l.b16 %v1234
        %v5191 = vunpack.c.h.b16 %v1234
        %v5192 = vunpack.c.l.b16 %v1235
        %v5193 = vunpack.c.h.b16 %v1235
        %v5194 = vunpack.c.l.b16 %v1236
        %v5195 = vunpack.c.h.b16 %v1236
        %v5196 = vunpack.c.l.b16 %v1237
        %v5197 = vunpack.c.h.b16 %v1237
        %v5198 = vunpack.c.l.b16 %v1238
        %v5199 = vunpack.c.h.b16 %v1238
        %v5200 = vunpack.c.l.b16 %v1239
        %v5201 = vunpack.c.h.b16 %v1239
        %v5202 = vunpack.c.l.b16 %v1240
        %v5203 = vunpack.c.h.b16 %v1240
        %v5204 = vunpack.c.l.b16 %v1241
        %v5205 = vunpack.c.h.b16 %v1241
        %v5206 = vunpack.c.l.b16 %v1242
        %v5207 = vunpack.c.h.b16 %v1242
        %v5208 = vunpack.c.l.b16 %v1243
        %v5209 = vunpack.c.h.b16 %v1243
        %v5210 = vunpack.c.l.b16 %v1244
        %v5211 = vunpack.c.h.b16 %v1244
        %v5212 = vunpack.c.l.b16 %v1245
        %v5213 = vunpack.c.h.b16 %v1245
        %v5214 = vunpack.c.l.b16 %v1246
        %v5215 = vunpack.c.h.b16 %v1246
        %v5216 = vunpack.c.l.b16 %v1247
        %v5217 = vunpack.c.h.b16 %v1247
        %v5218 = vunpack.c.l.b16 %v1248
        %v5219 = vunpack.c.h.b16 %v1248
        %v5220 = vunpack.c.l.b16 %v1249
        %v5221 = vunpack.c.h.b16 %v1249
        %v5222 = vunpack.c.l.b16 %v1250
        %v5223 = vunpack.c.h.b16 %v1250
        %v5224 = vunpack.c.l.b16 %v1251
        %v5225 = vunpack.c.h.b16 %v1251
        %v5226 = vunpack.c.l.b16 %v1252
        %v5227 = vunpack.c.h.b16 %v1252
        %v5228 = vunpack.c.l.b16 %v1253
        %v5229 = vunpack.c.h.b16 %v1253
        %v5230 = vunpack.c.l.b16 %v1254
        %v5231 = vunpack.c.h.b16 %v1254
        %v5232 = vunpack.c.l.b16 %v1255
        %v5233 = vunpack.c.h.b16 %v1255
        %v5234 = vunpack.c.l.b16 %v1256
        %v5235 = vunpack.c.h.b16 %v1256
        %v5236 = vunpack.c.l.b16 %v1257
        %v5237 = vunpack.c.h.b16 %v1257
        %v5238 = vunpack.c.l.b16 %v1258
        %v5239 = vunpack.c.h.b16 %v1258
        %v5240 = vunpack.c.l.b16 %v1259
        %v5241 = vunpack.c.h.b16 %v1259
        %v5242 = vunpack.c.l.b16 %v1260
        %v5243 = vunpack.c.h.b16 %v1260
        %v5244 = vunpack.c.l.b16 %v1261
        %v5245 = vunpack.c.h.b16 %v1261
        %v5246 = vunpack.c.l.b16 %v1262
        %v5247 = vunpack.c.h.b16 %v1262
        %v5248 = vunpack.c.l.b16 %v1263
        %v5249 = vunpack.c.h.b16 %v1263
        %v5250 = vunpack.c.l.b16 %v1264
        %v5251 = vunpack.c.h.b16 %v1264
        %v5252 = vunpack.c.l.b16 %v1265
        %v5253 = vunpack.c.h.b16 %v1265
        %v5254 = vunpack.c.l.b16 %v1266
        %v5255 = vunpack.c.h.b16 %v1266
        %v5256 = vunpack.c.l.b16 %v1267
        %v5257 = vunpack.c.h.b16 %v1267
        %v5258 = vunpack.c.l.b16 %v1268
        %v5259 = vunpack.c.h.b16 %v1268
        %v5260 = vunpack.c.l.b16 %v1269
        %v5261 = vunpack.c.h.b16 %v1269
        %v5262 = vunpack.c.l.b16 %v1270
        %v5263 = vunpack.c.h.b16 %v1270
        %v5264 = vunpack.c.l.b16 %v1271
        %v5265 = vunpack.c.h.b16 %v1271
        %v5266 = vunpack.c.l.b16 %v1272
        %v5267 = vunpack.c.h.b16 %v1272
        %v5268 = vunpack.c.l.b16 %v1273
        %v5269 = vunpack.c.h.b16 %v1273
        %v5270 = vunpack.c.l.b16 %v1274
        %v5271 = vunpack.c.h.b16 %v1274
        %v5272 = vunpack.c.l.b16 %v1275
        %v5273 = vunpack.c.h.b16 %v1275
        %v5274 = vunpack.c.l.b16 %v1276
        %v5275 = vunpack.c.h.b16 %v1276
        %v5276 = vunpack.c.l.b16 %v1277
        %v5277 = vunpack.c.h.b16 %v1277
        %v5278 = vunpack.c.l.b16 %v1278
        %v5279 = vunpack.c.h.b16 %v1278
        %v5280 = vunpack.c.l.b16 %v1279
        %v5281 = vunpack.c.h.b16 %v1279
        %v5282 = vunpack.c.l.b16 %v1280
        %v5283 = vunpack.c.h.b16 %v1280
        %v5284 = vunpack.c.l.b16 %v1281
        %v5285 = vunpack.c.h.b16 %v1281
        %v5286 = vunpack.c.l.b16 %v1282
        %v5287 = vunpack.c.h.b16 %v1282
        %v5288 = vunpack.c.l.b16 %v1283
        %v5289 = vunpack.c.h.b16 %v1283
        %v5290 = vunpack.c.l.b16 %v1284
        %v5291 = vunpack.c.h.b16 %v1284
        %v5292 = vunpack.c.l.b16 %v1285
        %v5293 = vunpack.c.h.b16 %v1285
        %v5294 = vunpack.c.l.b16 %v1286
        %v5295 = vunpack.c.h.b16 %v1286
        %v5296 = vunpack.c.l.b16 %v1287
        %v5297 = vunpack.c.h.b16 %v1287
        %v5298 = vunpack.c.l.b16 %v1288
        %v5299 = vunpack.c.h.b16 %v1288
        %v5300 = vunpack.c.l.b16 %v1289
        %v5301 = vunpack.c.h.b16 %v1289
        %v5302 = vunpack.c.l.b16 %v1290
        %v5303 = vunpack.c.h.b16 %v1290
        %v5304 = vunpack.c.l.b16 %v1291
        %v5305 = vunpack.c.h.b16 %v1291
        %v5306 = vunpack.c.l.b16 %v1292
        %v5307 = vunpack.c.h.b16 %v1292
        %v5308 = vunpack.c.l.b16 %v1293
        %v5309 = vunpack.c.h.b16 %v1293
        %v5310 = vunpack.c.l.b16 %v1294
        %v5311 = vunpack.c.h.b16 %v1294
        %v5312 = vunpack.c.l.b16 %v1295
        %v5313 = vunpack.c.h.b16 %v1295
        %v5314 = vunpack.c.l.b16 %v1296
        %v5315 = vunpack.c.h.b16 %v1296
        %v5316 = vunpack.c.l.b16 %v1297
        %v5317 = vunpack.c.h.b16 %v1297
        %v5318 = vunpack.c.l.b16 %v1298
        %v5319 = vunpack.c.h.b16 %v1298
        %v5320 = vunpack.c.l.b16 %v1299
        %v5321 = vunpack.c.h.b16 %v1299
        %v5322 = vunpack.c.l.b16 %v1300
        %v5323 = vunpack.c.h.b16 %v1300
        %v5324 = vunpack.c.l.b16 %v1301
        %v5325 = vunpack.c.h.b16 %v1301
        %v5326 = vunpack.c.l.b16 %v1302
        %v5327 = vunpack.c.h.b16 %v1302
        %v5328 = vunpack.c.l.b16 %v1303
        %v5329 = vunpack.c.h.b16 %v1303
        %v5330 = vunpack.c.l.b16 %v1304
        %v5331 = vunpack.c.h.b16 %v1304
        %v5332 = vunpack.c.l.b16 %v1305
        %v5333 = vunpack.c.h.b16 %v1305
        %v5334 = vunpack.c.l.b16 %v1306
        %v5335 = vunpack.c.h.b16 %v1306
        %v5336 = vunpack.c.l.b16 %v1307
        %v5337 = vunpack.c.h.b16 %v1307
        %v5338 = vunpack.c.l.b16 %v1308
        %v5339 = vunpack.c.h.b16 %v1308
        %v5340 = vunpack.c.l.b16 %v1309
        %v5341 = vunpack.c.h.b16 %v1309
        %v5342 = vunpack.c.l.b16 %v1310
        %v5343 = vunpack.c.h.b16 %v1310
        %v5344 = vunpack.c.l.b16 %v1311
        %v5345 = vunpack.c.h.b16 %v1311
        %v5346 = vunpack.c.l.b16 %v1312
        %v5347 = vunpack.c.h.b16 %v1312
        %v5348 = vunpack.c.l.b16 %v1313
        %v5349 = vunpack.c.h.b16 %v1313
        %v5350 = vunpack.c.l.b16 %v1314
        %v5351 = vunpack.c.h.b16 %v1314
        %v5352 = vunpack.c.l.b16 %v1315
        %v5353 = vunpack.c.h.b16 %v1315
        %v5354 = vunpack.c.l.b16 %v1316
        %v5355 = vunpack.c.h.b16 %v1316
        %v5356 = vunpack.c.l.b16 %v1317
        %v5357 = vunpack.c.h.b16 %v1317
        %v5358 = vunpack.c.l.b16 %v1318
        %v5359 = vunpack.c.h.b16 %v1318
        %v5360 = vunpack.c.l.b16 %v1319
        %v5361 = vunpack.c.h.b16 %v1319
        %v5362 = vunpack.c.l.b16 %v1320
        %v5363 = vunpack.c.h.b16 %v1320
        %v5364 = vunpack.c.l.b16 %v1321
        %v5365 = vunpack.c.h.b16 %v1321
        %v5366 = vunpack.c.l.b16 %v1322
        %v5367 = vunpack.c.h.b16 %v1322
        %v5368 = vunpack.c.l.b16 %v1323
        %v5369 = vunpack.c.h.b16 %v1323
        %v5370 = vunpack.c.l.b16 %v1324
        %v5371 = vunpack.c.h.b16 %v1324
        %v5372 = vunpack.c.l.b16 %v1325
        %v5373 = vunpack.c.h.b16 %v1325
        %v5374 = vunpack.c.l.b16 %v1326
        %v5375 = vunpack.c.h.b16 %v1326
        %v5376 = vunpack.c.l.b16 %v1327
        %v5377 = vunpack.c.h.b16 %v1327
        %v5378 = vunpack.c.l.b16 %v1328
        %v5379 = vunpack.c.h.b16 %v1328
        %v5380 = vunpack.c.l.b16 %v1329
        %v5381 = vunpack.c.h.b16 %v1329
        %v5382 = vunpack.c.l.b16 %v1330
        %v5383 = vunpack.c.h.b16 %v1330
        %v5384 = vunpack.c.l.b16 %v1331
        %v5385 = vunpack.c.h.b16 %v1331
        %v5386 = vunpack.c.l.b16 %v1332
        %v5387 = vunpack.c.h.b16 %v1332
        %v5388 = vunpack.c.l.b16 %v1333
        %v5389 = vunpack.c.h.b16 %v1333
        %v5390 = vunpack.c.l.b16 %v1334
        %v5391 = vunpack.c.h.b16 %v1334
        %v5392 = vunpack.c.l.b16 %v1335
        %v5393 = vunpack.c.h.b16 %v1335
        %v5394 = vunpack.c.l.b16 %v1336
        %v5395 = vunpack.c.h.b16 %v1336
        %v5396 = vunpack.c.l.b16 %v1337
        %v5397 = vunpack.c.h.b16 %v1337
        %v5398 = vunpack.c.l.b16 %v1338
        %v5399 = vunpack.c.h.b16 %v1338
        %v5400 = vunpack.c.l.b16 %v1339
        %v5401 = vunpack.c.h.b16 %v1339
        %v5402 = vunpack.c.l.b16 %v1340
        %v5403 = vunpack.c.h.b16 %v1340
        %v5404 = vunpack.c.l.b16 %v1341
        %v5405 = vunpack.c.h.b16 %v1341
        %v5406 = vunpack.c.l.b16 %v1342
        %v5407 = vunpack.c.h.b16 %v1342
        %v5408 = vunpack.c.l.b16 %v1343
        %v5409 = vunpack.c.h.b16 %v1343
        %v5410 = vunpack.c.l.b16 %v1344
        %v5411 = vunpack.c.h.b16 %v1344
        %v5412 = vunpack.c.l.b16 %v1345
        %v5413 = vunpack.c.h.b16 %v1345
        %v5414 = vunpack.c.l.b16 %v1346
        %v5415 = vunpack.c.h.b16 %v1346
        %v5416 = vunpack.c.l.b16 %v1347
        %v5417 = vunpack.c.h.b16 %v1347
        %v5418 = vunpack.c.l.b16 %v1348
        %v5419 = vunpack.c.h.b16 %v1348
        %v5420 = vunpack.c.l.b16 %v1349
        %v5421 = vunpack.c.h.b16 %v1349
        %v5422 = vunpack.c.l.b16 %v1350
        %v5423 = vunpack.c.h.b16 %v1350
        %v5424 = vunpack.c.l.b16 %v1351
        %v5425 = vunpack.c.h.b16 %v1351
        %v5426 = vunpack.c.l.b16 %v1352
        %v5427 = vunpack.c.h.b16 %v1352
        %v5428 = vunpack.c.l.b16 %v1353
        %v5429 = vunpack.c.h.b16 %v1353
        %v5430 = vunpack.c.l.b16 %v1354
        %v5431 = vunpack.c.h.b16 %v1354
        %v5432 = vunpack.c.l.b16 %v1355
        %v5433 = vunpack.c.h.b16 %v1355
        %v5434 = vunpack.c.l.b16 %v1356
        %v5435 = vunpack.c.h.b16 %v1356
        %v5436 = vunpack.c.l.b16 %v1357
        %v5437 = vunpack.c.h.b16 %v1357
        %v5438 = vunpack.c.l.b16 %v1358
        %v5439 = vunpack.c.h.b16 %v1358
        %v5440 = vunpack.c.l.b16 %v1359
        %v5441 = vunpack.c.h.b16 %v1359
        %v5442 = vunpack.c.l.b16 %v1360
        %v5443 = vunpack.c.h.b16 %v1360
        %v5444 = vunpack.c.l.b16 %v1361
        %v5445 = vunpack.c.h.b16 %v1361
        %v5446 = vunpack.c.l.b16 %v1362
        %v5447 = vunpack.c.h.b16 %v1362
        %v5448 = vunpack.c.l.b16 %v1363
        %v5449 = vunpack.c.h.b16 %v1363
        %v5450 = vunpack.c.l.b16 %v1364
        %v5451 = vunpack.c.h.b16 %v1364
        %v5452 = vunpack.c.l.b16 %v1365
        %v5453 = vunpack.c.h.b16 %v1365
        %v5454 = vunpack.c.l.b16 %v1366
        %v5455 = vunpack.c.h.b16 %v1366
        %v5456 = vunpack.c.l.b16 %v1367
        %v5457 = vunpack.c.h.b16 %v1367
        %v5458 = vunpack.c.l.b16 %v1368
        %v5459 = vunpack.c.h.b16 %v1368
        %v5460 = vunpack.c.l.b16 %v1369
        %v5461 = vunpack.c.h.b16 %v1369
        %v5462 = vunpack.c.l.b16 %v1370
        %v5463 = vunpack.c.h.b16 %v1370
        %v5464 = vunpack.c.l.b16 %v1371
        %v5465 = vunpack.c.h.b16 %v1371
        %v5466 = vunpack.c.l.b16 %v1372
        %v5467 = vunpack.c.h.b16 %v1372
        %v5468 = vunpack.c.l.b16 %v1373
        %v5469 = vunpack.c.h.b16 %v1373
        %v5470 = vunpack.c.l.b16 %v1374
        %v5471 = vunpack.c.h.b16 %v1374
        %v5472 = vunpack.c.l.b16 %v1375
        %v5473 = vunpack.c.h.b16 %v1375
        %v5474 = vunpack.c.l.b16 %v1376
        %v5475 = vunpack.c.h.b16 %v1376
        %v5476 = vunpack.c.l.b16 %v1377
        %v5477 = vunpack.c.h.b16 %v1377
        %v5478 = vunpack.c.l.b16 %v1378
        %v5479 = vunpack.c.h.b16 %v1378
        %v5480 = vunpack.c.l.b16 %v1379
        %v5481 = vunpack.c.h.b16 %v1379
        %v5482 = vunpack.c.l.b16 %v1380
        %v5483 = vunpack.c.h.b16 %v1380
        %v5484 = vunpack.c.l.b16 %v1381
        %v5485 = vunpack.c.h.b16 %v1381
        %v5486 = vunpack.c.l.b16 %v1382
        %v5487 = vunpack.c.h.b16 %v1382
        %v5488 = vunpack.c.l.b16 %v1383
        %v5489 = vunpack.c.h.b16 %v1383
        %v5490 = vunpack.c.l.b16 %v1384
        %v5491 = vunpack.c.h.b16 %v1384
        %v5492 = vunpack.c.l.b16 %v1385
        %v5493 = vunpack.c.h.b16 %v1385
        %v5494 = vunpack.c.l.b16 %v1386
        %v5495 = vunpack.c.h.b16 %v1386
        %v5496 = vunpack.c.l.b16 %v1387
        %v5497 = vunpack.c.h.b16 %v1387
        %v5498 = vunpack.c.l.b16 %v1388
        %v5499 = vunpack.c.h.b16 %v1388
        %v5500 = vunpack.c.l.b16 %v1389
        %v5501 = vunpack.c.h.b16 %v1389
        %v5502 = vunpack.c.l.b16 %v1390
        %v5503 = vunpack.c.h.b16 %v1390
        %v5504 = vunpack.c.l.b16 %v1391
        %v5505 = vunpack.c.h.b16 %v1391
        %v5506 = vunpack.c.l.b16 %v1392
        %v5507 = vunpack.c.h.b16 %v1392
        %v5508 = vunpack.c.l.b16 %v1393
        %v5509 = vunpack.c.h.b16 %v1393
        %v5510 = vunpack.c.l.b16 %v1394
        %v5511 = vunpack.c.h.b16 %v1394
        %v5512 = vunpack.c.l.b16 %v1395
        %v5513 = vunpack.c.h.b16 %v1395
        %v5514 = vunpack.c.l.b16 %v1396
        %v5515 = vunpack.c.h.b16 %v1396
        %v5516 = vunpack.c.l.b16 %v1397
        %v5517 = vunpack.c.h.b16 %v1397
        %v5518 = vunpack.c.l.b16 %v1398
        %v5519 = vunpack.c.h.b16 %v1398
        %v5520 = vunpack.c.l.b16 %v1399
        %v5521 = vunpack.c.h.b16 %v1399
        %v5522 = vunpack.c.l.b16 %v1400
        %v5523 = vunpack.c.h.b16 %v1400
        %v5524 = vunpack.c.l.b16 %v1401
        %v5525 = vunpack.c.h.b16 %v1401
        %v5526 = vunpack.c.l.b16 %v1402
        %v5527 = vunpack.c.h.b16 %v1402
        %v5528 = vunpack.c.l.b16 %v1403
        %v5529 = vunpack.c.h.b16 %v1403
        %v5530 = vunpack.c.l.b16 %v1404
        %v5531 = vunpack.c.h.b16 %v1404
        %v5532 = vunpack.c.l.b16 %v1405
        %v5533 = vunpack.c.h.b16 %v1405
        %v5534 = vunpack.c.l.b16 %v1406
        %v5535 = vunpack.c.h.b16 %v1406
        %v5536 = vunpack.c.l.b16 %v1407
        %v5537 = vunpack.c.h.b16 %v1407
        %v5538 = vunpack.c.l.b16 %v1408
        %v5539 = vunpack.c.h.b16 %v1408
        %v5540 = vunpack.c.l.b16 %v1409
        %v5541 = vunpack.c.h.b16 %v1409
        %v5542 = vunpack.c.l.b16 %v1410
        %v5543 = vunpack.c.h.b16 %v1410
        %v5544 = vunpack.c.l.b16 %v1411
        %v5545 = vunpack.c.h.b16 %v1411
        %v5546 = vunpack.c.l.b16 %v1412
        %v5547 = vunpack.c.h.b16 %v1412
        %v5548 = vunpack.c.l.b16 %v1413
        %v5549 = vunpack.c.h.b16 %v1413
        %v5550 = vunpack.c.l.b16 %v1414
        %v5551 = vunpack.c.h.b16 %v1414
        %v5552 = vunpack.c.l.b16 %v1415
        %v5553 = vunpack.c.h.b16 %v1415
        %v5554 = vunpack.c.l.b16 %v1416
        %v5555 = vunpack.c.h.b16 %v1416
        %v5556 = vunpack.c.l.b16 %v1417
        %v5557 = vunpack.c.h.b16 %v1417
        %v5558 = vunpack.c.l.b16 %v1418
        %v5559 = vunpack.c.h.b16 %v1418
        %v5560 = vunpack.c.l.b16 %v1419
        %v5561 = vunpack.c.h.b16 %v1419
        %v5562 = vunpack.c.l.b16 %v1420
        %v5563 = vunpack.c.h.b16 %v1420
        %v5564 = vunpack.c.l.b16 %v1421
        %v5565 = vunpack.c.h.b16 %v1421
        %v5566 = vunpack.c.l.b16 %v1422
        %v5567 = vunpack.c.h.b16 %v1422
        %v5568 = vunpack.c.l.b16 %v1423
        %v5569 = vunpack.c.h.b16 %v1423
        %v5570 = vunpack.c.l.b16 %v1424
        %v5571 = vunpack.c.h.b16 %v1424
        %v5572 = vunpack.c.l.b16 %v1425
        %v5573 = vunpack.c.h.b16 %v1425
        %v5574 = vunpack.c.l.b16 %v1426
        %v5575 = vunpack.c.h.b16 %v1426
        %v5576 = vunpack.c.l.b16 %v1427
        %v5577 = vunpack.c.h.b16 %v1427
        %v5578 = vunpack.c.l.b16 %v1428
        %v5579 = vunpack.c.h.b16 %v1428
        %v5580 = vunpack.c.l.b16 %v1429
        %v5581 = vunpack.c.h.b16 %v1429
        %v5582 = vunpack.c.l.b16 %v1430
        %v5583 = vunpack.c.h.b16 %v1430
        %v5584 = vunpack.c.l.b16 %v1431
        %v5585 = vunpack.c.h.b16 %v1431
        %v5586 = vunpack.c.l.b16 %v1432
        %v5587 = vunpack.c.h.b16 %v1432
        %v5588 = vunpack.c.l.b16 %v1433
        %v5589 = vunpack.c.h.b16 %v1433
        %v5590 = vunpack.c.l.b16 %v1434
        %v5591 = vunpack.c.h.b16 %v1434
        %v5592 = vunpack.c.l.b16 %v1435
        %v5593 = vunpack.c.h.b16 %v1435
        %v5594 = vunpack.c.l.b16 %v1436
        %v5595 = vunpack.c.h.b16 %v1436
        %v5596 = vunpack.c.l.b16 %v1437
        %v5597 = vunpack.c.h.b16 %v1437
        %v5598 = vunpack.c.l.b16 %v1438
        %v5599 = vunpack.c.h.b16 %v1438
        %v5600 = vunpack.c.l.b16 %v1439
        %v5601 = vunpack.c.h.b16 %v1439
        %v5602 = vunpack.c.l.b16 %v1440
        %v5603 = vunpack.c.h.b16 %v1440
        %v5604 = vunpack.c.l.b16 %v1441
        %v5605 = vunpack.c.h.b16 %v1441
        %v5606 = vunpack.c.l.b16 %v1442
        %v5607 = vunpack.c.h.b16 %v1442
        %v5608 = vunpack.c.l.b16 %v1443
        %v5609 = vunpack.c.h.b16 %v1443
        %v5610 = vunpack.c.l.b16 %v1444
        %v5611 = vunpack.c.h.b16 %v1444
        %v5612 = vunpack.c.l.b16 %v1445
        %v5613 = vunpack.c.h.b16 %v1445
        %v5614 = vunpack.c.l.b16 %v1446
        %v5615 = vunpack.c.h.b16 %v1446
        %v5616 = vunpack.c.l.b16 %v1447
        %v5617 = vunpack.c.h.b16 %v1447
        %v5618 = vunpack.c.l.b16 %v1448
        %v5619 = vunpack.c.h.b16 %v1448
        %v5620 = vunpack.c.l.b16 %v1449
        %v5621 = vunpack.c.h.b16 %v1449
        %v5622 = vunpack.c.l.b16 %v1450
        %v5623 = vunpack.c.h.b16 %v1450
        %v5624 = vunpack.c.l.b16 %v1451
        %v5625 = vunpack.c.h.b16 %v1451
        %v5626 = vunpack.c.l.b16 %v1452
        %v5627 = vunpack.c.h.b16 %v1452
        %v5628 = vunpack.c.l.b16 %v1453
        %v5629 = vunpack.c.h.b16 %v1453
        %v5630 = vunpack.c.l.b16 %v1454
        %v5631 = vunpack.c.h.b16 %v1454
        %v5632 = vunpack.c.l.b16 %v1455
        %v5633 = vunpack.c.h.b16 %v1455
        %v5634 = vunpack.c.l.b16 %v1456
        %v5635 = vunpack.c.h.b16 %v1456
        %v5636 = vunpack.c.l.b16 %v1457
        %v5637 = vunpack.c.h.b16 %v1457
        %v5638 = vunpack.c.l.b16 %v1458
        %v5639 = vunpack.c.h.b16 %v1458
        %v5640 = vunpack.c.l.b16 %v1459
        %v5641 = vunpack.c.h.b16 %v1459
        %v5642 = vunpack.c.l.b16 %v1460
        %v5643 = vunpack.c.h.b16 %v1460
        %v5644 = vunpack.c.l.b16 %v1461
        %v5645 = vunpack.c.h.b16 %v1461
        %v5646 = vunpack.c.l.b16 %v1462
        %v5647 = vunpack.c.h.b16 %v1462
        %v5648 = vunpack.c.l.b16 %v1463
        %v5649 = vunpack.c.h.b16 %v1463
        %v5650 = vunpack.c.l.b16 %v1464
        %v5651 = vunpack.c.h.b16 %v1464
        %v5652 = vunpack.c.l.b16 %v1465
        %v5653 = vunpack.c.h.b16 %v1465
        %v5654 = vunpack.c.l.b16 %v1466
        %v5655 = vunpack.c.h.b16 %v1466
        %v5656 = vunpack.c.l.b16 %v1467
        %v5657 = vunpack.c.h.b16 %v1467
        %v5658 = vunpack.c.l.b16 %v1468
        %v5659 = vunpack.c.h.b16 %v1468
        %v5660 = vunpack.c.l.b16 %v1469
        %v5661 = vunpack.c.h.b16 %v1469
        %v5662 = vunpack.c.l.b16 %v1470
        %v5663 = vunpack.c.h.b16 %v1470
        %v5664 = vunpack.c.l.b16 %v1471
        %v5665 = vunpack.c.h.b16 %v1471
        %v5666 = vunpack.c.l.b16 %v1472
        %v5667 = vunpack.c.h.b16 %v1472
        %v5668 = vunpack.c.l.b16 %v1473
        %v5669 = vunpack.c.h.b16 %v1473
        %v5670 = vunpack.c.l.b16 %v1474
        %v5671 = vunpack.c.h.b16 %v1474
        %v5672 = vunpack.c.l.b16 %v1475
        %v5673 = vunpack.c.h.b16 %v1475
        %v5674 = vunpack.c.l.b16 %v1476
        %v5675 = vunpack.c.h.b16 %v1476
        %v5676 = vunpack.c.l.b16 %v1477
        %v5677 = vunpack.c.h.b16 %v1477
        %v5678 = vunpack.c.l.b16 %v1478
        %v5679 = vunpack.c.h.b16 %v1478
        %v5680 = vunpack.c.l.b16 %v1479
        %v5681 = vunpack.c.h.b16 %v1479
        %v5682 = vunpack.c.l.b16 %v1480
        %v5683 = vunpack.c.h.b16 %v1480
        %v5684 = vunpack.c.l.b16 %v1481
        %v5685 = vunpack.c.h.b16 %v1481
        %v5686 = vunpack.c.l.b16 %v1482
        %v5687 = vunpack.c.h.b16 %v1482
        %v5688 = vunpack.c.l.b16 %v1483
        %v5689 = vunpack.c.h.b16 %v1483
        %v5690 = vunpack.c.l.b16 %v1484
        %v5691 = vunpack.c.h.b16 %v1484
        %v5692 = vunpack.c.l.b16 %v1485
        %v5693 = vunpack.c.h.b16 %v1485
        %v5694 = vunpack.c.l.b16 %v1486
        %v5695 = vunpack.c.h.b16 %v1486
        %v5696 = vunpack.c.l.b16 %v1487
        %v5697 = vunpack.c.h.b16 %v1487
        %v5698 = vunpack.c.l.b16 %v1488
        %v5699 = vunpack.c.h.b16 %v1488
        %v5700 = vunpack.c.l.b16 %v1489
        %v5701 = vunpack.c.h.b16 %v1489
        %v5702 = vunpack.c.l.b16 %v1490
        %v5703 = vunpack.c.h.b16 %v1490
        %v5704 = vunpack.c.l.b16 %v1491
        %v5705 = vunpack.c.h.b16 %v1491
        %v5706 = vunpack.c.l.b16 %v1492
        %v5707 = vunpack.c.h.b16 %v1492
        %v5708 = vunpack.c.l.b16 %v1493
        %v5709 = vunpack.c.h.b16 %v1493
        %v5710 = vunpack.c.l.b16 %v1494
        %v5711 = vunpack.c.h.b16 %v1494
        %v5712 = vunpack.c.l.b16 %v1495
        %v5713 = vunpack.c.h.b16 %v1495
        %v5714 = vunpack.c.l.b16 %v1496
        %v5715 = vunpack.c.h.b16 %v1496
        %v5716 = vunpack.c.l.b16 %v1497
        %v5717 = vunpack.c.h.b16 %v1497
        %v5718 = vunpack.c.l.b16 %v1498
        %v5719 = vunpack.c.h.b16 %v1498
        %v5720 = vunpack.c.l.b16 %v1499
        %v5721 = vunpack.c.h.b16 %v1499
        %v5722 = vunpack.c.l.b16 %v1500
        %v5723 = vunpack.c.h.b16 %v1500
        %v5724 = vunpack.c.l.b16 %v1501
        %v5725 = vunpack.c.h.b16 %v1501
        %v5726 = vunpack.c.l.b16 %v1502
        %v5727 = vunpack.c.h.b16 %v1502
        %v5728 = vunpack.c.l.b16 %v1503
        %v5729 = vunpack.c.h.b16 %v1503
        %v5730 = vunpack.c.l.b16 %v1504
        %v5731 = vunpack.c.h.b16 %v1504
        %v5732 = vunpack.c.l.b16 %v1505
        %v5733 = vunpack.c.h.b16 %v1505
        %v5734 = vunpack.c.l.b16 %v1506
        %v5735 = vunpack.c.h.b16 %v1506
        %v5736 = vunpack.c.l.b16 %v1507
        %v5737 = vunpack.c.h.b16 %v1507
        %v5738 = vunpack.c.l.b16 %v1508
        %v5739 = vunpack.c.h.b16 %v1508
        %v5740 = vunpack.c.l.b16 %v1509
        %v5741 = vunpack.c.h.b16 %v1509
        %v5742 = vunpack.c.l.b16 %v1510
        %v5743 = vunpack.c.h.b16 %v1510
        %v5744 = vunpack.c.l.b16 %v1511
        %v5745 = vunpack.c.h.b16 %v1511
        %v5746 = vunpack.c.l.b16 %v1512
        %v5747 = vunpack.c.h.b16 %v1512
        %v5748 = vunpack.c.l.b16 %v1513
        %v5749 = vunpack.c.h.b16 %v1513
        %v5750 = vunpack.c.l.b16 %v1514
        %v5751 = vunpack.c.h.b16 %v1514
        %v5752 = vunpack.c.l.b16 %v1515
        %v5753 = vunpack.c.h.b16 %v1515
        %v5754 = vunpack.c.l.b16 %v1516
        %v5755 = vunpack.c.h.b16 %v1516
        %v5756 = vunpack.c.l.b16 %v1517
        %v5757 = vunpack.c.h.b16 %v1517
        %v5758 = vunpack.c.l.b16 %v1518
        %v5759 = vunpack.c.h.b16 %v1518
        %v5760 = vunpack.c.l.b16 %v1519
        %v5761 = vunpack.c.h.b16 %v1519
        %v5762 = vunpack.c.l.b16 %v1520
        %v5763 = vunpack.c.h.b16 %v1520
        %v5764 = vunpack.c.l.b16 %v1521
        %v5765 = vunpack.c.h.b16 %v1521
        %v5766 = vunpack.c.l.b16 %v1522
        %v5767 = vunpack.c.h.b16 %v1522
        %v5768 = vunpack.c.l.b16 %v1523
        %v5769 = vunpack.c.h.b16 %v1523
        %v5770 = vunpack.c.l.b16 %v1524
        %v5771 = vunpack.c.h.b16 %v1524
        %v5772 = vunpack.c.l.b16 %v1525
        %v5773 = vunpack.c.h.b16 %v1525
        %v5774 = vunpack.c.l.b16 %v1526
        %v5775 = vunpack.c.h.b16 %v1526
        %v5776 = vunpack.c.l.b16 %v1527
        %v5777 = vunpack.c.h.b16 %v1527
        %v5778 = vunpack.c.l.b16 %v1528
        %v5779 = vunpack.c.h.b16 %v1528
        %v5780 = vunpack.c.l.b16 %v1529
        %v5781 = vunpack.c.h.b16 %v1529
        %v5782 = vunpack.c.l.b16 %v1530
        %v5783 = vunpack.c.h.b16 %v1530
        %v5784 = vunpack.c.l.b16 %v1531
        %v5785 = vunpack.c.h.b16 %v1531
        %v5786 = vunpack.c.l.b16 %v1532
        %v5787 = vunpack.c.h.b16 %v1532
        %v5788 = vunpack.c.l.b16 %v1533
        %v5789 = vunpack.c.h.b16 %v1533
        %v5790 = vunpack.c.l.b16 %v1534
        %v5791 = vunpack.c.h.b16 %v1534
        %v5792 = vunpack.c.l.b16 %v1535
        %v5793 = vunpack.c.h.b16 %v1535
        %v5794 = vunpack.c.l.b16 %v1536
        %v5795 = vunpack.c.h.b16 %v1536
        %v5796 = vunpack.c.l.b16 %v1537
        %v5797 = vunpack.c.h.b16 %v1537
        %v5798 = vunpack.c.l.b16 %v1538
        %v5799 = vunpack.c.h.b16 %v1538
        %v5800 = vunpack.c.l.b16 %v1539
        %v5801 = vunpack.c.h.b16 %v1539
        %v5802 = vunpack.c.l.b16 %v1540
        %v5803 = vunpack.c.h.b16 %v1540
        %v5804 = vunpack.c.l.b16 %v1541
        %v5805 = vunpack.c.h.b16 %v1541
        %v5806 = vunpack.c.l.b16 %v1542
        %v5807 = vunpack.c.h.b16 %v1542
        %v5808 = vunpack.c.l.b16 %v1543
        %v5809 = vunpack.c.h.b16 %v1543
        %v5810 = vunpack.c.l.b16 %v1544
        %v5811 = vunpack.c.h.b16 %v1544
        %v5812 = vunpack.c.l.b16 %v1545
        %v5813 = vunpack.c.h.b16 %v1545
        %v5814 = vunpack.c.l.b16 %v1546
        %v5815 = vunpack.c.h.b16 %v1546
        %v5816 = vunpack.c.l.b16 %v1547
        %v5817 = vunpack.c.h.b16 %v1547
        %v5818 = vunpack.c.l.b16 %v1548
        %v5819 = vunpack.c.h.b16 %v1548
        %v5820 = vunpack.c.l.b16 %v1549
        %v5821 = vunpack.c.h.b16 %v1549
        %v5822 = vunpack.c.l.b16 %v1550
        %v5823 = vunpack.c.h.b16 %v1550
        %v5824 = vunpack.c.l.b16 %v1551
        %v5825 = vunpack.c.h.b16 %v1551
        %v5826 = vunpack.c.l.b16 %v1552
        %v5827 = vunpack.c.h.b16 %v1552
        %v5828 = vunpack.c.l.b16 %v1553
        %v5829 = vunpack.c.h.b16 %v1553
        %v5830 = vunpack.c.l.b16 %v1554
        %v5831 = vunpack.c.h.b16 %v1554
        %v5832 = vunpack.c.l.b16 %v1555
        %v5833 = vunpack.c.h.b16 %v1555
        %v5834 = vunpack.c.l.b16 %v1556
        %v5835 = vunpack.c.h.b16 %v1556
        %v5836 = vunpack.c.l.b16 %v1557
        %v5837 = vunpack.c.h.b16 %v1557
        %v5838 = vunpack.c.l.b16 %v1558
        %v5839 = vunpack.c.h.b16 %v1558
        %v5840 = vunpack.c.l.b16 %v1559
        %v5841 = vunpack.c.h.b16 %v1559
        %v5842 = vunpack.c.l.b16 %v1560
        %v5843 = vunpack.c.h.b16 %v1560
        %v5844 = vunpack.c.l.b16 %v1561
        %v5845 = vunpack.c.h.b16 %v1561
        %v5846 = vunpack.c.l.b16 %v1562
        %v5847 = vunpack.c.h.b16 %v1562
        %v5848 = vunpack.c.l.b16 %v1563
        %v5849 = vunpack.c.h.b16 %v1563
        %v5850 = vunpack.c.l.b16 %v1564
        %v5851 = vunpack.c.h.b16 %v1564
        %v5852 = vunpack.c.l.b16 %v1565
        %v5853 = vunpack.c.h.b16 %v1565
        %v5854 = vunpack.c.l.b16 %v1566
        %v5855 = vunpack.c.h.b16 %v1566
        %v5856 = vunpack.c.l.b16 %v1567
        %v5857 = vunpack.c.h.b16 %v1567
        %v5858 = vunpack.c.l.b16 %v1568
        %v5859 = vunpack.c.h.b16 %v1568
        %v5860 = vunpack.c.l.b16 %v1569
        %v5861 = vunpack.c.h.b16 %v1569
        %v5862 = vunpack.c.l.b16 %v1570
        %v5863 = vunpack.c.h.b16 %v1570
        %v5864 = vunpack.c.l.b16 %v1571
        %v5865 = vunpack.c.h.b16 %v1571
        %v5866 = vunpack.c.l.b16 %v1572
        %v5867 = vunpack.c.h.b16 %v1572
        %v5868 = vunpack.c.l.b16 %v1573
        %v5869 = vunpack.c.h.b16 %v1573
        %v5870 = vunpack.c.l.b16 %v1574
        %v5871 = vunpack.c.h.b16 %v1574
        %v5872 = vunpack.c.l.b16 %v1575
        %v5873 = vunpack.c.h.b16 %v1575
        %v5874 = vunpack.c.l.b16 %v1576
        %v5875 = vunpack.c.h.b16 %v1576
        %v5876 = vunpack.c.l.b16 %v1577
        %v5877 = vunpack.c.h.b16 %v1577
        %v5878 = vunpack.c.l.b16 %v1578
        %v5879 = vunpack.c.h.b16 %v1578
        %v5880 = vunpack.c.l.b16 %v1579
        %v5881 = vunpack.c.h.b16 %v1579
        %v5882 = vunpack.c.l.b16 %v1580
        %v5883 = vunpack.c.h.b16 %v1580
        %v5884 = vunpack.c.l.b16 %v1581
        %v5885 = vunpack.c.h.b16 %v1581
        %v5886 = vunpack.c.l.b16 %v1582
        %v5887 = vunpack.c.h.b16 %v1582
        %v5888 = vunpack.c.l.b16 %v1583
        %v5889 = vunpack.c.h.b16 %v1583
        %v5890 = vunpack.c.l.b16 %v1584
        %v5891 = vunpack.c.h.b16 %v1584
        %v5892 = vunpack.c.l.b16 %v1585
        %v5893 = vunpack.c.h.b16 %v1585
        %v5894 = vunpack.c.l.b16 %v1586
        %v5895 = vunpack.c.h.b16 %v1586
        %v5896 = vunpack.c.l.b16 %v1587
        %v5897 = vunpack.c.h.b16 %v1587
        %v5898 = vunpack.c.l.b16 %v1588
        %v5899 = vunpack.c.h.b16 %v1588
        %v5900 = vunpack.c.l.b16 %v1589
        %v5901 = vunpack.c.h.b16 %v1589
        %v5902 = vunpack.c.l.b16 %v1590
        %v5903 = vunpack.c.h.b16 %v1590
        %v5904 = vunpack.c.l.b16 %v1591
        %v5905 = vunpack.c.h.b16 %v1591
        %v5906 = vunpack.c.l.b16 %v1592
        %v5907 = vunpack.c.h.b16 %v1592
        %v5908 = vunpack.c.l.b16 %v1593
        %v5909 = vunpack.c.h.b16 %v1593
        %v5910 = vunpack.c.l.b16 %v1594
        %v5911 = vunpack.c.h.b16 %v1594
        %v5912 = vunpack.c.l.b16 %v1595
        %v5913 = vunpack.c.h.b16 %v1595
        %v5914 = vunpack.c.l.b16 %v1596
        %v5915 = vunpack.c.h.b16 %v1596
        %v5916 = vunpack.c.l.b16 %v1597
        %v5917 = vunpack.c.h.b16 %v1597
        %v5918 = vunpack.c.l.b16 %v1598
        %v5919 = vunpack.c.h.b16 %v1598
        %v5920 = vunpack.c.l.b16 %v1599
        %v5921 = vunpack.c.h.b16 %v1599
        %v5922 = vunpack.c.l.b16 %v1600
        %v5923 = vunpack.c.h.b16 %v1600
        %v5924 = vunpack.c.l.b16 %v1601
        %v5925 = vunpack.c.h.b16 %v1601
        %v5926 = vunpack.c.l.b16 %v1602
        %v5927 = vunpack.c.h.b16 %v1602
        %v5928 = vunpack.c.l.b16 %v1603
        %v5929 = vunpack.c.h.b16 %v1603
        %v5930 = vunpack.c.l.b16 %v1604
        %v5931 = vunpack.c.h.b16 %v1604
        %v5932 = vunpack.c.l.b16 %v1605
        %v5933 = vunpack.c.h.b16 %v1605
        %v5934 = vunpack.c.l.b16 %v1606
        %v5935 = vunpack.c.h.b16 %v1606
        %v5936 = vunpack.c.l.b16 %v1607
        %v5937 = vunpack.c.h.b16 %v1607
        %v5938 = vunpack.c.l.b16 %v1608
        %v5939 = vunpack.c.h.b16 %v1608
        %v5940 = vunpack.c.l.b16 %v1609
        %v5941 = vunpack.c.h.b16 %v1609
        %v5942 = vunpack.c.l.b16 %v1610
        %v5943 = vunpack.c.h.b16 %v1610
        %v5944 = vunpack.c.l.b16 %v1611
        %v5945 = vunpack.c.h.b16 %v1611
        %v5946 = vunpack.c.l.b16 %v1612
        %v5947 = vunpack.c.h.b16 %v1612
        %v5948 = vunpack.c.l.b16 %v1613
        %v5949 = vunpack.c.h.b16 %v1613
        %v5950 = vunpack.c.l.b16 %v1614
        %v5951 = vunpack.c.h.b16 %v1614
        %v5952 = vunpack.c.l.b16 %v1615
        %v5953 = vunpack.c.h.b16 %v1615
        %v5954 = vunpack.c.l.b16 %v1616
        %v5955 = vunpack.c.h.b16 %v1616
        %v5956 = vunpack.c.l.b16 %v1617
        %v5957 = vunpack.c.h.b16 %v1617
        %v5958 = vunpack.c.l.b16 %v1618
        %v5959 = vunpack.c.h.b16 %v1618
        %v5960 = vunpack.c.l.b16 %v1619
        %v5961 = vunpack.c.h.b16 %v1619
        %v5962 = vunpack.c.l.b16 %v1620
        %v5963 = vunpack.c.h.b16 %v1620
        %v5964 = vunpack.c.l.b16 %v1621
        %v5965 = vunpack.c.h.b16 %v1621
        %v5966 = vunpack.c.l.b16 %v1622
        %v5967 = vunpack.c.h.b16 %v1622
        %v5968 = vunpack.c.l.b16 %v1623
        %v5969 = vunpack.c.h.b16 %v1623
        %v5970 = vunpack.c.l.b16 %v1624
        %v5971 = vunpack.c.h.b16 %v1624
        %v5972 = vunpack.c.l.b16 %v1625
        %v5973 = vunpack.c.h.b16 %v1625
        %v5974 = vunpack.c.l.b16 %v1626
        %v5975 = vunpack.c.h.b16 %v1626
        %v5976 = vunpack.c.l.b16 %v1627
        %v5977 = vunpack.c.h.b16 %v1627
        %v5978 = vunpack.c.l.b16 %v1628
        %v5979 = vunpack.c.h.b16 %v1628
        %v5980 = vunpack.c.l.b16 %v1629
        %v5981 = vunpack.c.h.b16 %v1629
        %v5982 = vunpack.c.l.b16 %v1630
        %v5983 = vunpack.c.h.b16 %v1630
        %v5984 = vunpack.c.l.b16 %v1631
        %v5985 = vunpack.c.h.b16 %v1631
        %v5986 = vunpack.c.l.b16 %v1632
        %v5987 = vunpack.c.h.b16 %v1632
        %v5988 = vunpack.c.l.b16 %v1633
        %v5989 = vunpack.c.h.b16 %v1633
        %v5990 = vunpack.c.l.b16 %v1634
        %v5991 = vunpack.c.h.b16 %v1634
        %v5992 = vunpack.c.l.b16 %v1635
        %v5993 = vunpack.c.h.b16 %v1635
        %v5994 = vunpack.c.l.b16 %v1636
        %v5995 = vunpack.c.h.b16 %v1636
        %v5996 = vunpack.c.l.b16 %v1637
        %v5997 = vunpack.c.h.b16 %v1637
        %v5998 = vunpack.c.l.b16 %v1638
        %v5999 = vunpack.c.h.b16 %v1638
        %v6000 = vunpack.c.l.b16 %v1639
        %v6001 = vunpack.c.h.b16 %v1639
        %v6002 = vunpack.c.l.b16 %v1640
        %v6003 = vunpack.c.h.b16 %v1640
        %v6004 = vunpack.c.l.b16 %v1641
        %v6005 = vunpack.c.h.b16 %v1641
        %v6006 = vunpack.c.l.b16 %v1642
        %v6007 = vunpack.c.h.b16 %v1642
        %v6008 = vunpack.c.l.b16 %v1643
        %v6009 = vunpack.c.h.b16 %v1643
        %v6010 = vunpack.c.l.b16 %v1644
        %v6011 = vunpack.c.h.b16 %v1644
        %v6012 = vunpack.c.l.b16 %v1645
        %v6013 = vunpack.c.h.b16 %v1645
        %v6014 = vunpack.c.l.b16 %v1646
        %v6015 = vunpack.c.h.b16 %v1646
        %v6016 = vunpack.c.l.b16 %v1647
        %v6017 = vunpack.c.h.b16 %v1647
        %v6018 = vunpack.c.l.b16 %v1648
        %v6019 = vunpack.c.h.b16 %v1648
        %v6020 = vunpack.c.l.b16 %v1649
        %v6021 = vunpack.c.h.b16 %v1649
        %v6022 = vunpack.c.l.b16 %v1650
        %v6023 = vunpack.c.h.b16 %v1650
        %v6024 = vunpack.c.l.b16 %v1651
        %v6025 = vunpack.c.h.b16 %v1651
        %v6026 = vunpack.c.l.b16 %v1652
        %v6027 = vunpack.c.h.b16 %v1652
        %v6028 = vunpack.c.l.b16 %v1653
        %v6029 = vunpack.c.h.b16 %v1653
        %v6030 = vunpack.c.l.b16 %v1654
        %v6031 = vunpack.c.h.b16 %v1654
        %v6032 = vunpack.c.l.b16 %v1655
        %v6033 = vunpack.c.h.b16 %v1655
        %v6034 = vunpack.c.l.b16 %v1656
        %v6035 = vunpack.c.h.b16 %v1656
        %v6036 = vunpack.c.l.b16 %v1657
        %v6037 = vunpack.c.h.b16 %v1657
        %v6038 = vunpack.c.l.b16 %v1658
        %v6039 = vunpack.c.h.b16 %v1658
        %v6040 = vunpack.c.l.b16 %v1659
        %v6041 = vunpack.c.h.b16 %v1659
        %v6042 = vunpack.c.l.b16 %v1660
        %v6043 = vunpack.c.h.b16 %v1660
        %v6044 = vunpack.c.l.b16 %v1661
        %v6045 = vunpack.c.h.b16 %v1661
        %v6046 = vunpack.c.l.b16 %v1662
        %v6047 = vunpack.c.h.b16 %v1662
        %v6048 = vunpack.c.l.b16 %v1663
        %v6049 = vunpack.c.h.b16 %v1663
        %v6050 = vunpack.c.l.b16 %v1664
        %v6051 = vunpack.c.h.b16 %v1664
        %v6052 = vunpack.c.l.b16 %v1665
        %v6053 = vunpack.c.h.b16 %v1665
        %v6054 = vunpack.c.l.b16 %v1666
        %v6055 = vunpack.c.h.b16 %v1666
        %v6056 = vunpack.c.l.b16 %v1667
        %v6057 = vunpack.c.h.b16 %v1667
        %v6058 = vunpack.c.l.b16 %v1668
        %v6059 = vunpack.c.h.b16 %v1668
        %v6060 = vunpack.c.l.b16 %v1669
        %v6061 = vunpack.c.h.b16 %v1669
        %v6062 = vunpack.c.l.b16 %v1670
        %v6063 = vunpack.c.h.b16 %v1670
        %v6064 = vunpack.c.l.b16 %v1671
        %v6065 = vunpack.c.h.b16 %v1671
        %v6066 = vunpack.c.l.b16 %v1672
        %v6067 = vunpack.c.h.b16 %v1672
        %v6068 = vunpack.c.l.b16 %v1673
        %v6069 = vunpack.c.h.b16 %v1673
        %v6070 = vunpack.c.l.b16 %v1674
        %v6071 = vunpack.c.h.b16 %v1674
        %v6072 = vunpack.c.l.b16 %v1675
        %v6073 = vunpack.c.h.b16 %v1675
        %v6074 = vunpack.c.l.b16 %v1676
        %v6075 = vunpack.c.h.b16 %v1676
        %v6076 = vunpack.c.l.b16 %v1677
        %v6077 = vunpack.c.h.b16 %v1677
        %v6078 = vunpack.c.l.b16 %v1678
        %v6079 = vunpack.c.h.b16 %v1678
        %v6080 = vunpack.c.l.b16 %v1679
        %v6081 = vunpack.c.h.b16 %v1679
        %v6082 = vunpack.c.l.b16 %v1680
        %v6083 = vunpack.c.h.b16 %v1680
        %v6084 = vunpack.c.l.b16 %v1681
        %v6085 = vunpack.c.h.b16 %v1681
        %v6086 = vunpack.c.l.b16 %v1682
        %v6087 = vunpack.c.h.b16 %v1682
        %v6088 = vunpack.c.l.b16 %v1683
        %v6089 = vunpack.c.h.b16 %v1683
        %v6090 = vunpack.c.l.b16 %v1684
        %v6091 = vunpack.c.h.b16 %v1684
        %v6092 = vunpack.c.l.b16 %v1685
        %v6093 = vunpack.c.h.b16 %v1685
        %v6094 = vunpack.c.l.b16 %v1686
        %v6095 = vunpack.c.h.b16 %v1686
        %v6096 = vunpack.c.l.b16 %v1687
        %v6097 = vunpack.c.h.b16 %v1687
        %v6098 = vunpack.c.l.b16 %v1688
        %v6099 = vunpack.c.h.b16 %v1688
        %v6100 = vunpack.c.l.b16 %v1689
        %v6101 = vunpack.c.h.b16 %v1689
        %v6102 = vunpack.c.l.b16 %v1690
        %v6103 = vunpack.c.h.b16 %v1690
        %v6104 = vunpack.c.l.b16 %v1691
        %v6105 = vunpack.c.h.b16 %v1691
        %v6106 = vunpack.c.l.b16 %v1692
        %v6107 = vunpack.c.h.b16 %v1692
        %v6108 = vunpack.c.l.b16 %v1693
        %v6109 = vunpack.c.h.b16 %v1693
        %v6110 = vunpack.c.l.b16 %v1694
        %v6111 = vunpack.c.h.b16 %v1694
        %v6112 = vunpack.c.l.b16 %v1695
        %v6113 = vunpack.c.h.b16 %v1695
        %v6114 = vunpack.c.l.b16 %v1696
        %v6115 = vunpack.c.h.b16 %v1696
        %v6116 = vunpack.c.l.b16 %v1697
        %v6117 = vunpack.c.h.b16 %v1697
        %v6118 = vunpack.c.l.b16 %v1698
        %v6119 = vunpack.c.h.b16 %v1698
        %v6120 = vunpack.c.l.b16 %v1699
        %v6121 = vunpack.c.h.b16 %v1699
        %v6122 = vunpack.c.l.b16 %v1700
        %v6123 = vunpack.c.h.b16 %v1700
        %v6124 = vunpack.c.l.b16 %v1701
        %v6125 = vunpack.c.h.b16 %v1701
        %v6126 = vunpack.c.l.b16 %v1702
        %v6127 = vunpack.c.h.b16 %v1702
        %v6128 = vunpack.c.l.b16 %v1703
        %v6129 = vunpack.c.h.b16 %v1703
        %v6130 = vunpack.c.l.b16 %v1704
        %v6131 = vunpack.c.h.b16 %v1704
        %v6132 = vunpack.c.l.b16 %v1705
        %v6133 = vunpack.c.h.b16 %v1705
        %v6134 = vunpack.c.l.b16 %v1706
        %v6135 = vunpack.c.h.b16 %v1706
        %v6136 = vunpack.c.l.b16 %v1707
        %v6137 = vunpack.c.h.b16 %v1707
        %v6138 = vunpack.c.l.b16 %v1708
        %v6139 = vunpack.c.h.b16 %v1708
        %v6140 = vunpack.c.l.b16 %v1709
        %v6141 = vunpack.c.h.b16 %v1709
        %v6142 = vunpack.c.l.b16 %v1710
        %v6143 = vunpack.c.h.b16 %v1710
        %v6144 = vunpack.c.l.b16 %v1711
        %v6145 = vunpack.c.h.b16 %v1711
        %v6146 = vunpack.c.l.b16 %v1712
        %v6147 = vunpack.c.h.b16 %v1712
        %v6148 = vunpack.c.l.b16 %v1713
        %v6149 = vunpack.c.h.b16 %v1713
        %v6150 = vunpack.c.l.b16 %v1714
        %v6151 = vunpack.c.h.b16 %v1714
        %v6152 = vunpack.c.l.b16 %v1715
        %v6153 = vunpack.c.h.b16 %v1715
        %v6154 = vunpack.c.l.b16 %v1716
        %v6155 = vunpack.c.h.b16 %v1716
        %v6156 = vunpack.c.l.b16 %v1717
        %v6157 = vunpack.c.h.b16 %v1717
        %v6158 = vunpack.c.l.b16 %v1718
        %v6159 = vunpack.c.h.b16 %v1718
        %v6160 = vunpack.c.l.b16 %v1719
        %v6161 = vunpack.c.h.b16 %v1719
        %v6162 = vunpack.c.l.b16 %v1720
        %v6163 = vunpack.c.h.b16 %v1720
        %v6164 = vunpack.c.l.b16 %v1721
        %v6165 = vunpack.c.h.b16 %v1721
        %v6166 = vunpack.c.l.b16 %v1722
        %v6167 = vunpack.c.h.b16 %v1722
        %v6168 = vunpack.c.l.b16 %v1723
        %v6169 = vunpack.c.h.b16 %v1723
        %v6170 = vunpack.c.l.b16 %v1724
        %v6171 = vunpack.c.h.b16 %v1724
        %v6172 = vunpack.c.l.b16 %v1725
        %v6173 = vunpack.c.h.b16 %v1725
        %v6174 = vunpack.c.l.b16 %v1726
        %v6175 = vunpack.c.h.b16 %v1726
        %v6176 = vunpack.c.l.b16 %v1727
        %v6177 = vunpack.c.h.b16 %v1727
        %v6178 = vunpack.c.l.b16 %v1728
        %v6179 = vunpack.c.h.b16 %v1728
        %v6180 = vunpack.c.l.b16 %v1729
        %v6181 = vunpack.c.h.b16 %v1729
        %v6182 = vunpack.c.l.b16 %v1730
        %v6183 = vunpack.c.h.b16 %v1730
        %v6184 = vunpack.c.l.b16 %v1731
        %v6185 = vunpack.c.h.b16 %v1731
        %v6186 = vunpack.c.l.b16 %v1732
        %v6187 = vunpack.c.h.b16 %v1732
        %v6188 = vunpack.c.l.b16 %v1733
        %v6189 = vunpack.c.h.b16 %v1733
        %v6190 = vunpack.c.l.b16 %v1734
        %v6191 = vunpack.c.h.b16 %v1734
        %v6192 = vunpack.c.l.b16 %v1735
        %v6193 = vunpack.c.h.b16 %v1735
        %v6194 = vunpack.c.l.b16 %v1736
        %v6195 = vunpack.c.h.b16 %v1736
        %v6196 = vunpack.c.l.b16 %v1737
        %v6197 = vunpack.c.h.b16 %v1737
        %v6198 = vunpack.c.l.b16 %v1738
        %v6199 = vunpack.c.h.b16 %v1738
        %v6200 = vunpack.c.l.b16 %v1739
        %v6201 = vunpack.c.h.b16 %v1739
        %v6202 = vunpack.c.l.b16 %v1740
        %v6203 = vunpack.c.h.b16 %v1740
        %v6204 = vunpack.c.l.b16 %v1741
        %v6205 = vunpack.c.h.b16 %v1741
        %v6206 = vunpack.c.l.b16 %v1742
        %v6207 = vunpack.c.h.b16 %v1742
        %v6208 = vunpack.c.l.b16 %v1743
        %v6209 = vunpack.c.h.b16 %v1743
        %v6210 = vunpack.c.l.b16 %v1744
        %v6211 = vunpack.c.h.b16 %v1744
        %v6212 = vunpack.c.l.b16 %v1745
        %v6213 = vunpack.c.h.b16 %v1745
        %v6214 = vunpack.c.l.b16 %v1746
        %v6215 = vunpack.c.h.b16 %v1746
        %v6216 = vunpack.c.l.b16 %v1747
        %v6217 = vunpack.c.h.b16 %v1747
        %v6218 = vunpack.c.l.b16 %v1748
        %v6219 = vunpack.c.h.b16 %v1748
        %v6220 = vunpack.c.l.b16 %v1749
        %v6221 = vunpack.c.h.b16 %v1749
        %v6222 = vunpack.c.l.b16 %v1750
        %v6223 = vunpack.c.h.b16 %v1750
        %v6224 = vunpack.c.l.b16 %v1751
        %v6225 = vunpack.c.h.b16 %v1751
        %v6226 = vunpack.c.l.b16 %v1752
        %v6227 = vunpack.c.h.b16 %v1752
        %v6228 = vunpack.c.l.b16 %v1753
        %v6229 = vunpack.c.h.b16 %v1753
        %v6230 = vunpack.c.l.b16 %v1754
        %v6231 = vunpack.c.h.b16 %v1754
        %v6232 = vunpack.c.l.b16 %v1755
        %v6233 = vunpack.c.h.b16 %v1755
        %v6234 = vunpack.c.l.b16 %v1756
        %v6235 = vunpack.c.h.b16 %v1756
        %v6236 = vunpack.c.l.b16 %v1757
        %v6237 = vunpack.c.h.b16 %v1757
        %v6238 = vunpack.c.l.b16 %v1758
        %v6239 = vunpack.c.h.b16 %v1758
        %v6240 = vunpack.c.l.b16 %v1759
        %v6241 = vunpack.c.h.b16 %v1759
        %v6242 = vunpack.c.l.b16 %v1760
        %v6243 = vunpack.c.h.b16 %v1760
        %v6244 = vunpack.c.l.b16 %v1761
        %v6245 = vunpack.c.h.b16 %v1761
        %v6246 = vunpack.c.l.b16 %v1762
        %v6247 = vunpack.c.h.b16 %v1762
        %v6248 = vunpack.c.l.b16 %v1763
        %v6249 = vunpack.c.h.b16 %v1763
        %v6250 = vunpack.c.l.b16 %v1764
        %v6251 = vunpack.c.h.b16 %v1764
        %v6252 = vunpack.c.l.b16 %v1765
        %v6253 = vunpack.c.h.b16 %v1765
        %v6254 = vunpack.c.l.b16 %v1766
        %v6255 = vunpack.c.h.b16 %v1766
        %v6256 = vunpack.c.l.b16 %v1767
        %v6257 = vunpack.c.h.b16 %v1767
        %v6258 = vunpack.c.l.b16 %v1768
        %v6259 = vunpack.c.h.b16 %v1768
        %v6260 = vunpack.c.l.b16 %v1769
        %v6261 = vunpack.c.h.b16 %v1769
        %v6262 = vunpack.c.l.b16 %v1770
        %v6263 = vunpack.c.h.b16 %v1770
        %v6264 = vunpack.c.l.b16 %v1771
        %v6265 = vunpack.c.h.b16 %v1771
        %v6266 = vunpack.c.l.b16 %v1772
        %v6267 = vunpack.c.h.b16 %v1772
        %v6268 = vunpack.c.l.b16 %v1773
        %v6269 = vunpack.c.h.b16 %v1773
        %v6270 = vunpack.c.l.b16 %v1774
        %v6271 = vunpack.c.h.b16 %v1774
        %v6272 = vunpack.c.l.b16 %v1775
        %v6273 = vunpack.c.h.b16 %v1775
        %v6274 = vunpack.c.l.b16 %v1776
        %v6275 = vunpack.c.h.b16 %v1776
        %v6276 = vunpack.c.l.b16 %v1777
        %v6277 = vunpack.c.h.b16 %v1777
        %v6278 = vunpack.c.l.b16 %v1778
        %v6279 = vunpack.c.h.b16 %v1778
        %v6280 = vunpack.c.l.b16 %v1779
        %v6281 = vunpack.c.h.b16 %v1779
        %v6282 = vunpack.c.l.b16 %v1780
        %v6283 = vunpack.c.h.b16 %v1780
        %v6284 = vunpack.c.l.b16 %v1781
        %v6285 = vunpack.c.h.b16 %v1781
        %v6286 = vunpack.c.l.b16 %v1782
        %v6287 = vunpack.c.h.b16 %v1782
        %v6288 = vunpack.c.l.b16 %v1783
        %v6289 = vunpack.c.h.b16 %v1783
        %v6290 = vunpack.c.l.b16 %v1784
        %v6291 = vunpack.c.h.b16 %v1784
        %v6292 = vunpack.c.l.b16 %v1785
        %v6293 = vunpack.c.h.b16 %v1785
        %v6294 = vunpack.c.l.b16 %v1786
        %v6295 = vunpack.c.h.b16 %v1786
        %v6296 = vunpack.c.l.b16 %v1787
        %v6297 = vunpack.c.h.b16 %v1787
        %v6298 = vunpack.c.l.b16 %v1788
        %v6299 = vunpack.c.h.b16 %v1788
        %v6300 = vunpack.c.l.b16 %v1789
        %v6301 = vunpack.c.h.b16 %v1789
        %v6302 = vunpack.c.l.b16 %v1790
        %v6303 = vunpack.c.h.b16 %v1790
        %v6304 = vunpack.c.l.b16 %v1791
        %v6305 = vunpack.c.h.b16 %v1791
        %v6306 = vunpack.c.l.b16 %v1792
        %v6307 = vunpack.c.h.b16 %v1792
        %v6308 = vunpack.c.l.b16 %v1793
        %v6309 = vunpack.c.h.b16 %v1793
        %v6310 = vunpack.c.l.b16 %v1794
        %v6311 = vunpack.c.h.b16 %v1794
        %v6312 = vunpack.c.l.b16 %v1795
        %v6313 = vunpack.c.h.b16 %v1795
        %v6314 = vunpack.c.l.b16 %v1796
        %v6315 = vunpack.c.h.b16 %v1796
        %v6316 = vunpack.c.l.b16 %v1797
        %v6317 = vunpack.c.h.b16 %v1797
        %v6318 = vunpack.c.l.b16 %v1798
        %v6319 = vunpack.c.h.b16 %v1798
        %v6320 = vunpack.c.l.b16 %v1799
        %v6321 = vunpack.c.h.b16 %v1799
        %v6322 = vunpack.c.l.b16 %v1800
        %v6323 = vunpack.c.h.b16 %v1800
        %v6324 = vunpack.c.l.b16 %v1801
        %v6325 = vunpack.c.h.b16 %v1801
        %v6326 = vunpack.c.l.b16 %v1802
        %v6327 = vunpack.c.h.b16 %v1802
        %v6328 = vunpack.c.l.b16 %v1803
        %v6329 = vunpack.c.h.b16 %v1803
        %v6330 = vunpack.c.l.b16 %v1804
        %v6331 = vunpack.c.h.b16 %v1804
        %v6332 = vunpack.c.l.b16 %v1805
        %v6333 = vunpack.c.h.b16 %v1805
        %v6334 = vunpack.c.l.b16 %v1806
        %v6335 = vunpack.c.h.b16 %v1806
        %v6336 = vunpack.c.l.b16 %v1807
        %v6337 = vunpack.c.h.b16 %v1807
        %v6338 = vunpack.c.l.b16 %v1808
        %v6339 = vunpack.c.h.b16 %v1808
        %v6340 = vunpack.c.l.b16 %v1809
        %v6341 = vunpack.c.h.b16 %v1809
        %v6342 = vunpack.c.l.b16 %v1810
        %v6343 = vunpack.c.h.b16 %v1810
        %v6344 = vunpack.c.l.b16 %v1811
        %v6345 = vunpack.c.h.b16 %v1811
        %v6346 = vunpack.c.l.b16 %v1812
        %v6347 = vunpack.c.h.b16 %v1812
        %v6348 = vunpack.c.l.b16 %v1813
        %v6349 = vunpack.c.h.b16 %v1813
        %v6350 = vunpack.c.l.b16 %v1814
        %v6351 = vunpack.c.h.b16 %v1814
        %v6352 = vunpack.c.l.b16 %v1815
        %v6353 = vunpack.c.h.b16 %v1815
        %v6354 = vunpack.c.l.b16 %v1816
        %v6355 = vunpack.c.h.b16 %v1816
        %v6356 = vunpack.c.l.b16 %v1817
        %v6357 = vunpack.c.h.b16 %v1817
        %v6358 = vunpack.c.l.b16 %v1818
        %v6359 = vunpack.c.h.b16 %v1818
        %v6360 = vunpack.c.l.b16 %v1819
        %v6361 = vunpack.c.h.b16 %v1819
        %v6362 = vunpack.c.l.b16 %v1820
        %v6363 = vunpack.c.h.b16 %v1820
        %v6364 = vunpack.c.l.b16 %v1821
        %v6365 = vunpack.c.h.b16 %v1821
        %v6366 = vunpack.c.l.b16 %v1822
        %v6367 = vunpack.c.h.b16 %v1822
        %v6368 = vunpack.c.l.b16 %v1823
        %v6369 = vunpack.c.h.b16 %v1823
        %v6370 = vunpack.c.l.b16 %v1824
        %v6371 = vunpack.c.h.b16 %v1824
        %v6372 = vunpack.c.l.b16 %v1825
        %v6373 = vunpack.c.h.b16 %v1825
        %v6374 = vunpack.c.l.b16 %v1826
        %v6375 = vunpack.c.h.b16 %v1826
        %v6376 = vunpack.c.l.b16 %v1827
        %v6377 = vunpack.c.h.b16 %v1827
        %v6378 = vunpack.c.l.b16 %v1828
        %v6379 = vunpack.c.h.b16 %v1828
        %v6380 = vunpack.c.l.b16 %v1829
        %v6381 = vunpack.c.h.b16 %v1829
        %v6382 = vunpack.c.l.b16 %v1830
        %v6383 = vunpack.c.h.b16 %v1830
        %v6384 = vunpack.c.l.b16 %v1831
        %v6385 = vunpack.c.h.b16 %v1831
        %v6386 = vunpack.c.l.b16 %v1832
        %v6387 = vunpack.c.h.b16 %v1832
        %v6388 = vunpack.c.l.b16 %v1833
        %v6389 = vunpack.c.h.b16 %v1833
        %v6390 = vunpack.c.l.b16 %v1834
        %v6391 = vunpack.c.h.b16 %v1834
        %v6392 = vunpack.c.l.b16 %v1835
        %v6393 = vunpack.c.h.b16 %v1835
        %v6394 = vunpack.c.l.b16 %v1836
        %v6395 = vunpack.c.h.b16 %v1836
        %v6396 = vunpack.c.l.b16 %v1837
        %v6397 = vunpack.c.h.b16 %v1837
        %v6398 = vunpack.c.l.b16 %v1838
        %v6399 = vunpack.c.h.b16 %v1838
        %v6400 = vunpack.c.l.b16 %v1839
        %v6401 = vunpack.c.h.b16 %v1839
        %v6402 = vunpack.c.l.b16 %v1840
        %v6403 = vunpack.c.h.b16 %v1840
        %v6404 = vunpack.c.l.b16 %v1841
        %v6405 = vunpack.c.h.b16 %v1841
        %v6406 = vunpack.c.l.b16 %v1842
        %v6407 = vunpack.c.h.b16 %v1842
        %v6408 = vunpack.c.l.b16 %v1843
        %v6409 = vunpack.c.h.b16 %v1843
        %v6410 = vunpack.c.l.b16 %v1844
        %v6411 = vunpack.c.h.b16 %v1844
        %v6412 = vunpack.c.l.b16 %v1845
        %v6413 = vunpack.c.h.b16 %v1845
        %v6414 = vunpack.c.l.b16 %v1846
        %v6415 = vunpack.c.h.b16 %v1846
        %v6416 = vunpack.c.l.b16 %v1847
        %v6417 = vunpack.c.h.b16 %v1847
        %v6418 = vunpack.c.l.b16 %v1848
        %v6419 = vunpack.c.h.b16 %v1848
        %v6420 = vunpack.c.l.b16 %v1849
        %v6421 = vunpack.c.h.b16 %v1849
        %v6422 = vunpack.c.l.b16 %v1850
        %v6423 = vunpack.c.h.b16 %v1850
        %v6424 = vunpack.c.l.b16 %v1851
        %v6425 = vunpack.c.h.b16 %v1851
        %v6426 = vunpack.c.l.b16 %v1852
        %v6427 = vunpack.c.h.b16 %v1852
        %v6428 = vunpack.c.l.b16 %v1853
        %v6429 = vunpack.c.h.b16 %v1853
        %v6430 = vunpack.c.l.b16 %v1854
        %v6431 = vunpack.c.h.b16 %v1854
        %v6432 = vunpack.c.l.b16 %v1855
        %v6433 = vunpack.c.h.b16 %v1855
        %v6434 = vunpack.c.l.b16 %v1856
        %v6435 = vunpack.c.h.b16 %v1856
        %v6436 = vunpack.c.l.b16 %v1857
        %v6437 = vunpack.c.h.b16 %v1857
        %v6438 = vunpack.c.l.b16 %v1858
        %v6439 = vunpack.c.h.b16 %v1858
        %v6440 = vunpack.c.l.b16 %v1859
        %v6441 = vunpack.c.h.b16 %v1859
        %v6442 = vunpack.c.l.b16 %v1860
        %v6443 = vunpack.c.h.b16 %v1860
        %v6444 = vunpack.c.l.b16 %v1861
        %v6445 = vunpack.c.h.b16 %v1861
        %v6446 = vunpack.c.l.b16 %v1862
        %v6447 = vunpack.c.h.b16 %v1862
        %v6448 = vunpack.c.l.b16 %v1863
        %v6449 = vunpack.c.h.b16 %v1863
        %v6450 = vunpack.c.l.b16 %v1864
        %v6451 = vunpack.c.h.b16 %v1864
        %v6452 = vunpack.c.l.b16 %v1865
        %v6453 = vunpack.c.h.b16 %v1865
        %v6454 = vunpack.c.l.b16 %v1866
        %v6455 = vunpack.c.h.b16 %v1866
        %v6456 = vunpack.c.l.b16 %v1867
        %v6457 = vunpack.c.h.b16 %v1867
        %v6458 = vunpack.c.l.b16 %v1868
        %v6459 = vunpack.c.h.b16 %v1868
        %v6460 = vunpack.c.l.b16 %v1869
        %v6461 = vunpack.c.h.b16 %v1869
        %v6462 = vunpack.c.l.b16 %v1870
        %v6463 = vunpack.c.h.b16 %v1870
        %v6464 = vunpack.c.l.b16 %v1871
        %v6465 = vunpack.c.h.b16 %v1871
        %v6466 = vunpack.c.l.b16 %v1872
        %v6467 = vunpack.c.h.b16 %v1872
        %v6468 = vunpack.c.l.b16 %v1873
        %v6469 = vunpack.c.h.b16 %v1873
        %v6470 = vunpack.c.l.b16 %v1874
        %v6471 = vunpack.c.h.b16 %v1874
        %v6472 = vunpack.c.l.b16 %v1875
        %v6473 = vunpack.c.h.b16 %v1875
        %v6474 = vunpack.c.l.b16 %v1876
        %v6475 = vunpack.c.h.b16 %v1876
        %v6476 = vunpack.c.l.b16 %v1877
        %v6477 = vunpack.c.h.b16 %v1877
        %v6478 = vunpack.c.l.b16 %v1878
        %v6479 = vunpack.c.h.b16 %v1878
        %v6480 = vunpack.c.l.b16 %v1879
        %v6481 = vunpack.c.h.b16 %v1879
        %v6482 = vunpack.c.l.b16 %v1880
        %v6483 = vunpack.c.h.b16 %v1880
        %v6484 = vunpack.c.l.b16 %v1881
        %v6485 = vunpack.c.h.b16 %v1881
        %v6486 = vunpack.c.l.b16 %v1882
        %v6487 = vunpack.c.h.b16 %v1882
        %v6488 = vunpack.c.l.b16 %v1883
        %v6489 = vunpack.c.h.b16 %v1883
        %v6490 = vunpack.c.l.b16 %v1884
        %v6491 = vunpack.c.h.b16 %v1884
        %v6492 = vunpack.c.l.b16 %v1885
        %v6493 = vunpack.c.h.b16 %v1885
        %v6494 = vunpack.c.l.b16 %v1886
        %v6495 = vunpack.c.h.b16 %v1886
        %v6496 = vunpack.c.l.b16 %v1887
        %v6497 = vunpack.c.h.b16 %v1887
        %v6498 = vunpack.c.l.b16 %v1888
        %v6499 = vunpack.c.h.b16 %v1888
        %v6500 = vunpack.c.l.b16 %v1889
        %v6501 = vunpack.c.h.b16 %v1889
        %v6502 = vunpack.c.l.b16 %v1890
        %v6503 = vunpack.c.h.b16 %v1890
        %v6504 = vunpack.c.l.b16 %v1891
        %v6505 = vunpack.c.h.b16 %v1891
        %v6506 = vunpack.c.l.b16 %v1892
        %v6507 = vunpack.c.h.b16 %v1892
        %v6508 = vunpack.c.l.b16 %v1893
        %v6509 = vunpack.c.h.b16 %v1893
        %v6510 = vunpack.c.l.b16 %v1894
        %v6511 = vunpack.c.h.b16 %v1894
        %v6512 = vunpack.c.l.b16 %v1895
        %v6513 = vunpack.c.h.b16 %v1895
        %v6514 = vunpack.c.l.b16 %v1896
        %v6515 = vunpack.c.h.b16 %v1896
        %v6516 = vunpack.c.l.b16 %v1897
        %v6517 = vunpack.c.h.b16 %v1897
        %v6518 = vunpack.c.l.b16 %v1898
        %v6519 = vunpack.c.h.b16 %v1898
        %v6520 = vunpack.c.l.b16 %v1899
        %v6521 = vunpack.c.h.b16 %v1899
        %v6522 = vunpack.c.l.b16 %v1900
        %v6523 = vunpack.c.h.b16 %v1900
        %v6524 = vunpack.c.l.b16 %v1901
        %v6525 = vunpack.c.h.b16 %v1901
        %v6526 = vunpack.c.l.b16 %v1902
        %v6527 = vunpack.c.h.b16 %v1902
        %v6528 = vunpack.c.l.b16 %v1903
        %v6529 = vunpack.c.h.b16 %v1903
        %v6530 = vunpack.c.l.b16 %v1904
        %v6531 = vunpack.c.h.b16 %v1904
        %v6532 = vunpack.c.l.b16 %v1905
        %v6533 = vunpack.c.h.b16 %v1905
        %v6534 = vunpack.c.l.b16 %v1906
        %v6535 = vunpack.c.h.b16 %v1906
        %v6536 = vunpack.c.l.b16 %v1907
        %v6537 = vunpack.c.h.b16 %v1907
        %v6538 = vunpack.c.l.b16 %v1908
        %v6539 = vunpack.c.h.b16 %v1908
        %v6540 = vunpack.c.l.b16 %v1909
        %v6541 = vunpack.c.h.b16 %v1909
        %v6542 = vunpack.c.l.b16 %v1910
        %v6543 = vunpack.c.h.b16 %v1910
        %v6544 = vunpack.c.l.b16 %v1911
        %v6545 = vunpack.c.h.b16 %v1911
        %v6546 = vunpack.c.l.b16 %v1912
        %v6547 = vunpack.c.h.b16 %v1912
        %v6548 = vunpack.c.l.b16 %v1913
        %v6549 = vunpack.c.h.b16 %v1913
        %v6550 = vunpack.c.l.b16 %v1914
        %v6551 = vunpack.c.h.b16 %v1914
        %v6552 = vunpack.c.l.b16 %v1915
        %v6553 = vunpack.c.h.b16 %v1915
        %v6554 = vunpack.c.l.b16 %v1916
        %v6555 = vunpack.c.h.b16 %v1916
        %v6556 = vunpack.c.l.b16 %v1917
        %v6557 = vunpack.c.h.b16 %v1917
        %v6558 = vunpack.c.l.b16 %v1918
        %v6559 = vunpack.c.h.b16 %v1918
        %v6560 = vunpack.c.l.b16 %v1919
        %v6561 = vunpack.c.h.b16 %v1919
        %v6562 = vunpack.c.l.b16 %v1920
        %v6563 = vunpack.c.h.b16 %v1920
        %v6564 = vunpack.c.l.b16 %v1921
        %v6565 = vunpack.c.h.b16 %v1921
        %v6566 = vunpack.c.l.b16 %v1922
        %v6567 = vunpack.c.h.b16 %v1922
        %v6568 = vunpack.c.l.b16 %v1923
        %v6569 = vunpack.c.h.b16 %v1923
        %v6570 = vunpack.c.l.b16 %v1924
        %v6571 = vunpack.c.h.b16 %v1924
        %v6572 = vunpack.c.l.b16 %v1925
        %v6573 = vunpack.c.h.b16 %v1925
        %v6574 = vunpack.c.l.b16 %v1926
        %v6575 = vunpack.c.h.b16 %v1926
        %v6576 = vunpack.c.l.b16 %v1927
        %v6577 = vunpack.c.h.b16 %v1927
        %v6578 = vpack.c.b16 %v3522, %v3506
        %v6579 = vpack.c.b16 %v3523, %v3507
        %v6580 = vpack.c.b16 %v3524, %v3508
        %v6581 = vpack.c.b16 %v3525, %v3509
        %v6582 = vpack.c.b16 %v3526, %v3510
        %v6583 = vpack.c.b16 %v3527, %v3511
        %v6584 = vpack.c.b16 %v3528, %v3512
        %v6585 = vpack.c.b16 %v3529, %v3513
        %v6586 = vpack.c.b16 %v3530, %v3514
        %v6587 = vpack.c.b16 %v3531, %v3515
        %v6588 = vpack.c.b16 %v3532, %v3516
        %v6589 = vpack.c.b16 %v3533, %v3517
        %v6590 = vpack.c.b16 %v3534, %v3518
        %v6591 = vpack.c.b16 %v3535, %v3519
        %v6592 = vpack.c.b16 %v3536, %v3520
        %v6593 = vpack.c.b16 %v3537, %v3521
        %v6594 = vpack.c.b16 %v3554, %v3538
        %v6595 = vpack.c.b16 %v3555, %v3539
        %v6596 = vpack.c.b16 %v3556, %v3540
        %v6597 = vpack.c.b16 %v3557, %v3541
        %v6598 = vpack.c.b16 %v3558, %v3542
        %v6599 = vpack.c.b16 %v3559, %v3543
        %v6600 = vpack.c.b16 %v3560, %v3544
        %v6601 = vpack.c.b16 %v3561, %v3545
        %v6602 = vpack.c.b16 %v3562, %v3546
        %v6603 = vpack.c.b16 %v3563, %v3547
        %v6604 = vpack.c.b16 %v3564, %v3548
        %v6605 = vpack.c.b16 %v3565, %v3549
        %v6606 = vpack.c.b16 %v3566, %v3550
        %v6607 = vpack.c.b16 %v3567, %v3551
        %v6608 = vpack.c.b16 %v3568, %v3552
        %v6609 = vpack.c.b16 %v3569, %v3553
        %v6610 = vpack.c.b16 %v3586, %v3570
        %v6611 = vpack.c.b16 %v3587, %v3571
        %v6612 = vpack.c.b16 %v3588, %v3572
        %v6613 = vpack.c.b16 %v3589, %v3573
        %v6614 = vpack.c.b16 %v3590, %v3574
        %v6615 = vpack.c.b16 %v3591, %v3575
        %v6616 = vpack.c.b16 %v3592, %v3576
        %v6617 = vpack.c.b16 %v3593, %v3577
        %v6618 = vpack.c.b16 %v3594, %v3578
        %v6619 = vpack.c.b16 %v3595, %v3579
        %v6620 = vpack.c.b16 %v3596, %v3580
        %v6621 = vpack.c.b16 %v3597, %v3581
        %v6622 = vpack.c.b16 %v3598, %v3582
        %v6623 = vpack.c.b16 %v3599, %v3583
        %v6624 = vpack.c.b16 %v3600, %v3584
        %v6625 = vpack.c.b16 %v3601, %v3585
        %v6626 = vpack.c.b16 %v3618, %v3602
        %v6627 = vpack.c.b16 %v3619, %v3603
        %v6628 = vpack.c.b16 %v3620, %v3604
        %v6629 = vpack.c.b16 %v3621, %v3605
        %v6630 = vpack.c.b16 %v3622, %v3606
        %v6631 = vpack.c.b16 %v3623, %v3607
        %v6632 = vpack.c.b16 %v3624, %v3608
        %v6633 = vpack.c.b16 %v3625, %v3609
        %v6634 = vpack.c.b16 %v3626, %v3610
        %v6635 = vpack.c.b16 %v3627, %v3611
        %v6636 = vpack.c.b16 %v3628, %v3612
        %v6637 = vpack.c.b16 %v3629, %v3613
        %v6638 = vpack.c.b16 %v3630, %v3614
        %v6639 = vpack.c.b16 %v3631, %v3615
        %v6640 = vpack.c.b16 %v3632, %v3616
        %v6641 = vpack.c.b16 %v3633, %v3617
        %v6642 = vpack.c.b16 %v3650, %v3634
        %v6643 = vpack.c.b16 %v3651, %v3635
        %v6644 = vpack.c.b16 %v3652, %v3636
        %v6645 = vpack.c.b16 %v3653, %v3637
        %v6646 = vpack.c.b16 %v3654, %v3638
        %v6647 = vpack.c.b16 %v3655, %v3639
        %v6648 = vpack.c.b16 %v3656, %v3640
        %v6649 = vpack.c.b16 %v3657, %v3641
        %v6650 = vpack.c.b16 %v3658, %v3642
        %v6651 = vpack.c.b16 %v3659, %v3643
        %v6652 = vpack.c.b16 %v3660, %v3644
        %v6653 = vpack.c.b16 %v3661, %v3645
        %v6654 = vpack.c.b16 %v3662, %v3646
        %v6655 = vpack.c.b16 %v3663, %v3647
        %v6656 = vpack.c.b16 %v3664, %v3648
        %v6657 = vpack.c.b16 %v3665, %v3649
        %v6658 = vpack.c.b16 %v3682, %v3666
        %v6659 = vpack.c.b16 %v3683, %v3667
        %v6660 = vpack.c.b16 %v3684, %v3668
        %v6661 = vpack.c.b16 %v3685, %v3669
        %v6662 = vpack.c.b16 %v3686, %v3670
        %v6663 = vpack.c.b16 %v3687, %v3671
        %v6664 = vpack.c.b16 %v3688, %v3672
        %v6665 = vpack.c.b16 %v3689, %v3673
        %v6666 = vpack.c.b16 %v3690, %v3674
        %v6667 = vpack.c.b16 %v3691, %v3675
        %v6668 = vpack.c.b16 %v3692, %v3676
        %v6669 = vpack.c.b16 %v3693, %v3677
        %v6670 = vpack.c.b16 %v3694, %v3678
        %v6671 = vpack.c.b16 %v3695, %v3679
        %v6672 = vpack.c.b16 %v3696, %v3680
        %v6673 = vpack.c.b16 %v3697, %v3681
        %v6674 = vpack.c.b16 %v3714, %v3698
        %v6675 = vpack.c.b16 %v3715, %v3699
        %v6676 = vpack.c.b16 %v3716, %v3700
        %v6677 = vpack.c.b16 %v3717, %v3701
        %v6678 = vpack.c.b16 %v3718, %v3702
        %v6679 = vpack.c.b16 %v3719, %v3703
        %v6680 = vpack.c.b16 %v3720, %v3704
        %v6681 = vpack.c.b16 %v3721, %v3705
        %v6682 = vpack.c.b16 %v3722, %v3706
        %v6683 = vpack.c.b16 %v3723, %v3707
        %v6684 = vpack.c.b16 %v3724, %v3708
        %v6685 = vpack.c.b16 %v3725, %v3709
        %v6686 = vpack.c.b16 %v3726, %v3710
        %v6687 = vpack.c.b16 %v3727, %v3711
        %v6688 = vpack.c.b16 %v3728, %v3712
        %v6689 = vpack.c.b16 %v3729, %v3713
        %v6690 = vpack.c.b16 %v3746, %v3730
        %v6691 = vpack.c.b16 %v3747, %v3731
        %v6692 = vpack.c.b16 %v3748, %v3732
        %v6693 = vpack.c.b16 %v3749, %v3733
        %v6694 = vpack.c.b16 %v3750, %v3734
        %v6695 = vpack.c.b16 %v3751, %v3735
        %v6696 = vpack.c.b16 %v3752, %v3736
        %v6697 = vpack.c.b16 %v3753, %v3737
        %v6698 = vpack.c.b16 %v3754, %v3738
        %v6699 = vpack.c.b16 %v3755, %v3739
        %v6700 = vpack.c.b16 %v3756, %v3740
        %v6701 = vpack.c.b16 %v3757, %v3741
        %v6702 = vpack.c.b16 %v3758, %v3742
        %v6703 = vpack.c.b16 %v3759, %v3743
        %v6704 = vpack.c.b16 %v3760, %v3744
        %v6705 = vpack.c.b16 %v3761, %v3745
        %v6706 = vpack.c.b16 %v3778, %v3762
        %v6707 = vpack.c.b16 %v3779, %v3763
        %v6708 = vpack.c.b16 %v3780, %v3764
        %v6709 = vpack.c.b16 %v3781, %v3765
        %v6710 = vpack.c.b16 %v3782, %v3766
        %v6711 = vpack.c.b16 %v3783, %v3767
        %v6712 = vpack.c.b16 %v3784, %v3768
        %v6713 = vpack.c.b16 %v3785, %v3769
        %v6714 = vpack.c.b16 %v3786, %v3770
        %v6715 = vpack.c.b16 %v3787, %v3771
        %v6716 = vpack.c.b16 %v3788, %v3772
        %v6717 = vpack.c.b16 %v3789, %v3773
        %v6718 = vpack.c.b16 %v3790, %v3774
        %v6719 = vpack.c.b16 %v3791, %v3775
        %v6720 = vpack.c.b16 %v3792, %v3776
        %v6721 = vpack.c.b16 %v3793, %v3777
        %v6722 = vpack.c.b16 %v3810, %v3794
        %v6723 = vpack.c.b16 %v3811, %v3795
        %v6724 = vpack.c.b16 %v3812, %v3796
        %v6725 = vpack.c.b16 %v3813, %v3797
        %v6726 = vpack.c.b16 %v3814, %v3798
        %v6727 = vpack.c.b16 %v3815, %v3799
        %v6728 = vpack.c.b16 %v3816, %v3800
        %v6729 = vpack.c.b16 %v3817, %v3801
        %v6730 = vpack.c.b16 %v3818, %v3802
        %v6731 = vpack.c.b16 %v3819, %v3803
        %v6732 = vpack.c.b16 %v3820, %v3804
        %v6733 = vpack.c.b16 %v3821, %v3805
        %v6734 = vpack.c.b16 %v3822, %v3806
        %v6735 = vpack.c.b16 %v3823, %v3807
        %v6736 = vpack.c.b16 %v3824, %v3808
        %v6737 = vpack.c.b16 %v3825, %v3809
        %v6738 = vpack.c.b16 %v3842, %v3826
        %v6739 = vpack.c.b16 %v3843, %v3827
        %v6740 = vpack.c.b16 %v3844, %v3828
        %v6741 = vpack.c.b16 %v3845, %v3829
        %v6742 = vpack.c.b16 %v3846, %v3830
        %v6743 = vpack.c.b16 %v3847, %v3831
        %v6744 = vpack.c.b16 %v3848, %v3832
        %v6745 = vpack.c.b16 %v3849, %v3833
        %v6746 = vpack.c.b16 %v3850, %v3834
        %v6747 = vpack.c.b16 %v3851, %v3835
        %v6748 = vpack.c.b16 %v3852, %v3836
        %v6749 = vpack.c.b16 %v3853, %v3837
        %v6750 = vpack.c.b16 %v3854, %v3838
        %v6751 = vpack.c.b16 %v3855, %v3839
        %v6752 = vpack.c.b16 %v3856, %v3840
        %v6753 = vpack.c.b16 %v3857, %v3841
        %v6754 = vpack.c.b16 %v3874, %v3858
        %v6755 = vpack.c.b16 %v3875, %v3859
        %v6756 = vpack.c.b16 %v3876, %v3860
        %v6757 = vpack.c.b16 %v3877, %v3861
        %v6758 = vpack.c.b16 %v3878, %v3862
        %v6759 = vpack.c.b16 %v3879, %v3863
        %v6760 = vpack.c.b16 %v3880, %v3864
        %v6761 = vpack.c.b16 %v3881, %v3865
        %v6762 = vpack.c.b16 %v3882, %v3866
        %v6763 = vpack.c.b16 %v3883, %v3867
        %v6764 = vpack.c.b16 %v3884, %v3868
        %v6765 = vpack.c.b16 %v3885, %v3869
        %v6766 = vpack.c.b16 %v3886, %v3870
        %v6767 = vpack.c.b16 %v3887, %v3871
        %v6768 = vpack.c.b16 %v3888, %v3872
        %v6769 = vpack.c.b16 %v3889, %v3873
        %v6770 = vpack.c.b16 %v3906, %v3890
        %v6771 = vpack.c.b16 %v3907, %v3891
        %v6772 = vpack.c.b16 %v3908, %v3892
        %v6773 = vpack.c.b16 %v3909, %v3893
        %v6774 = vpack.c.b16 %v3910, %v3894
        %v6775 = vpack.c.b16 %v3911, %v3895
        %v6776 = vpack.c.b16 %v3912, %v3896
        %v6777 = vpack.c.b16 %v3913, %v3897
        %v6778 = vpack.c.b16 %v3914, %v3898
        %v6779 = vpack.c.b16 %v3915, %v3899
        %v6780 = vpack.c.b16 %v3916, %v3900
        %v6781 = vpack.c.b16 %v3917, %v3901
        %v6782 = vpack.c.b16 %v3918, %v3902
        %v6783 = vpack.c.b16 %v3919, %v3903
        %v6784 = vpack.c.b16 %v3920, %v3904
        %v6785 = vpack.c.b16 %v3921, %v3905
        %v6786 = vpack.c.b16 %v3938, %v3922
        %v6787 = vpack.c.b16 %v3939, %v3923
        %v6788 = vpack.c.b16 %v3940, %v3924
        %v6789 = vpack.c.b16 %v3941, %v3925
        %v6790 = vpack.c.b16 %v3942, %v3926
        %v6791 = vpack.c.b16 %v3943, %v3927
        %v6792 = vpack.c.b16 %v3944, %v3928
        %v6793 = vpack.c.b16 %v3945, %v3929
        %v6794 = vpack.c.b16 %v3946, %v3930
        %v6795 = vpack.c.b16 %v3947, %v3931
        %v6796 = vpack.c.b16 %v3948, %v3932
        %v6797 = vpack.c.b16 %v3949, %v3933
        %v6798 = vpack.c.b16 %v3950, %v3934
        %v6799 = vpack.c.b16 %v3951, %v3935
        %v6800 = vpack.c.b16 %v3952, %v3936
        %v6801 = vpack.c.b16 %v3953, %v3937
        %v6802 = vpack.c.b16 %v3970, %v3954
        %v6803 = vpack.c.b16 %v3971, %v3955
        %v6804 = vpack.c.b16 %v3972, %v3956
        %v6805 = vpack.c.b16 %v3973, %v3957
        %v6806 = vpack.c.b16 %v3974, %v3958
        %v6807 = vpack.c.b16 %v3975, %v3959
        %v6808 = vpack.c.b16 %v3976, %v3960
        %v6809 = vpack.c.b16 %v3977, %v3961
        %v6810 = vpack.c.b16 %v3978, %v3962
        %v6811 = vpack.c.b16 %v3979, %v3963
        %v6812 = vpack.c.b16 %v3980, %v3964
        %v6813 = vpack.c.b16 %v3981, %v3965
        %v6814 = vpack.c.b16 %v3982, %v3966
        %v6815 = vpack.c.b16 %v3983, %v3967
        %v6816 = vpack.c.b16 %v3984, %v3968
        %v6817 = vpack.c.b16 %v3985, %v3969
        %v6818 = vpack.c.b16 %v4002, %v3986
        %v6819 = vpack.c.b16 %v4003, %v3987
        %v6820 = vpack.c.b16 %v4004, %v3988
        %v6821 = vpack.c.b16 %v4005, %v3989
        %v6822 = vpack.c.b16 %v4006, %v3990
        %v6823 = vpack.c.b16 %v4007, %v3991
        %v6824 = vpack.c.b16 %v4008, %v3992
        %v6825 = vpack.c.b16 %v4009, %v3993
        %v6826 = vpack.c.b16 %v4010, %v3994
        %v6827 = vpack.c.b16 %v4011, %v3995
        %v6828 = vpack.c.b16 %v4012, %v3996
        %v6829 = vpack.c.b16 %v4013, %v3997
        %v6830 = vpack.c.b16 %v4014, %v3998
        %v6831 = vpack.c.b16 %v4015, %v3999
        %v6832 = vpack.c.b16 %v4016, %v4000
        %v6833 = vpack.c.b16 %v4017, %v4001
        %v6834 = vpack.c.b16 %v4034, %v4018
        %v6835 = vpack.c.b16 %v4035, %v4019
        %v6836 = vpack.c.b16 %v4036, %v4020
        %v6837 = vpack.c.b16 %v4037, %v4021
        %v6838 = vpack.c.b16 %v4038, %v4022
        %v6839 = vpack.c.b16 %v4039, %v4023
        %v6840 = vpack.c.b16 %v4040, %v4024
        %v6841 = vpack.c.b16 %v4041, %v4025
        %v6842 = vpack.c.b16 %v4042, %v4026
        %v6843 = vpack.c.b16 %v4043, %v4027
        %v6844 = vpack.c.b16 %v4044, %v4028
        %v6845 = vpack.c.b16 %v4045, %v4029
        %v6846 = vpack.c.b16 %v4046, %v4030
        %v6847 = vpack.c.b16 %v4047, %v4031
        %v6848 = vpack.c.b16 %v4048, %v4032
        %v6849 = vpack.c.b16 %v4049, %v4033
        %v6850 = vpack.c.b16 %v4066, %v4050
        %v6851 = vpack.c.b16 %v4067, %v4051
        %v6852 = vpack.c.b16 %v4068, %v4052
        %v6853 = vpack.c.b16 %v4069, %v4053
        %v6854 = vpack.c.b16 %v4070, %v4054
        %v6855 = vpack.c.b16 %v4071, %v4055
        %v6856 = vpack.c.b16 %v4072, %v4056
        %v6857 = vpack.c.b16 %v4073, %v4057
        %v6858 = vpack.c.b16 %v4074, %v4058
        %v6859 = vpack.c.b16 %v4075, %v4059
        %v6860 = vpack.c.b16 %v4076, %v4060
        %v6861 = vpack.c.b16 %v4077, %v4061
        %v6862 = vpack.c.b16 %v4078, %v4062
        %v6863 = vpack.c.b16 %v4079, %v4063
        %v6864 = vpack.c.b16 %v4080, %v4064
        %v6865 = vpack.c.b16 %v4081, %v4065
        %v6866 = vpack.c.b16 %v4098, %v4082
        %v6867 = vpack.c.b16 %v4099, %v4083
        %v6868 = vpack.c.b16 %v4100, %v4084
        %v6869 = vpack.c.b16 %v4101, %v4085
        %v6870 = vpack.c.b16 %v4102, %v4086
        %v6871 = vpack.c.b16 %v4103, %v4087
        %v6872 = vpack.c.b16 %v4104, %v4088
        %v6873 = vpack.c.b16 %v4105, %v4089
        %v6874 = vpack.c.b16 %v4106, %v4090
        %v6875 = vpack.c.b16 %v4107, %v4091
        %v6876 = vpack.c.b16 %v4108, %v4092
        %v6877 = vpack.c.b16 %v4109, %v4093
        %v6878 = vpack.c.b16 %v4110, %v4094
        %v6879 = vpack.c.b16 %v4111, %v4095
        %v6880 = vpack.c.b16 %v4112, %v4096
        %v6881 = vpack.c.b16 %v4113, %v4097
        %v6882 = vpack.c.b16 %v4130, %v4114
        %v6883 = vpack.c.b16 %v4131, %v4115
        %v6884 = vpack.c.b16 %v4132, %v4116
        %v6885 = vpack.c.b16 %v4133, %v4117
        %v6886 = vpack.c.b16 %v4134, %v4118
        %v6887 = vpack.c.b16 %v4135, %v4119
        %v6888 = vpack.c.b16 %v4136, %v4120
        %v6889 = vpack.c.b16 %v4137, %v4121
        %v6890 = vpack.c.b16 %v4138, %v4122
        %v6891 = vpack.c.b16 %v4139, %v4123
        %v6892 = vpack.c.b16 %v4140, %v4124
        %v6893 = vpack.c.b16 %v4141, %v4125
        %v6894 = vpack.c.b16 %v4142, %v4126
        %v6895 = vpack.c.b16 %v4143, %v4127
        %v6896 = vpack.c.b16 %v4144, %v4128
        %v6897 = vpack.c.b16 %v4145, %v4129
        %v6898 = vpack.c.b16 %v4162, %v4146
        %v6899 = vpack.c.b16 %v4163, %v4147
        %v6900 = vpack.c.b16 %v4164, %v4148
        %v6901 = vpack.c.b16 %v4165, %v4149
        %v6902 = vpack.c.b16 %v4166, %v4150
        %v6903 = vpack.c.b16 %v4167, %v4151
        %v6904 = vpack.c.b16 %v4168, %v4152
        %v6905 = vpack.c.b16 %v4169, %v4153
        %v6906 = vpack.c.b16 %v4170, %v4154
        %v6907 = vpack.c.b16 %v4171, %v4155
        %v6908 = vpack.c.b16 %v4172, %v4156
        %v6909 = vpack.c.b16 %v4173, %v4157
        %v6910 = vpack.c.b16 %v4174, %v4158
        %v6911 = vpack.c.b16 %v4175, %v4159
        %v6912 = vpack.c.b16 %v4176, %v4160
        %v6913 = vpack.c.b16 %v4177, %v4161
        %v6914 = vpack.c.b16 %v4194, %v4178
        %v6915 = vpack.c.b16 %v4195, %v4179
        %v6916 = vpack.c.b16 %v4196, %v4180
        %v6917 = vpack.c.b16 %v4197, %v4181
        %v6918 = vpack.c.b16 %v4198, %v4182
        %v6919 = vpack.c.b16 %v4199, %v4183
        %v6920 = vpack.c.b16 %v4200, %v4184
        %v6921 = vpack.c.b16 %v4201, %v4185
        %v6922 = vpack.c.b16 %v4202, %v4186
        %v6923 = vpack.c.b16 %v4203, %v4187
        %v6924 = vpack.c.b16 %v4204, %v4188
        %v6925 = vpack.c.b16 %v4205, %v4189
        %v6926 = vpack.c.b16 %v4206, %v4190
        %v6927 = vpack.c.b16 %v4207, %v4191
        %v6928 = vpack.c.b16 %v4208, %v4192
        %v6929 = vpack.c.b16 %v4209, %v4193
        %v6930 = vpack.c.b16 %v4226, %v4210
        %v6931 = vpack.c.b16 %v4227, %v4211
        %v6932 = vpack.c.b16 %v4228, %v4212
        %v6933 = vpack.c.b16 %v4229, %v4213
        %v6934 = vpack.c.b16 %v4230, %v4214
        %v6935 = vpack.c.b16 %v4231, %v4215
        %v6936 = vpack.c.b16 %v4232, %v4216
        %v6937 = vpack.c.b16 %v4233, %v4217
        %v6938 = vpack.c.b16 %v4234, %v4218
        %v6939 = vpack.c.b16 %v4235, %v4219
        %v6940 = vpack.c.b16 %v4236, %v4220
        %v6941 = vpack.c.b16 %v4237, %v4221
        %v6942 = vpack.c.b16 %v4238, %v4222
        %v6943 = vpack.c.b16 %v4239, %v4223
        %v6944 = vpack.c.b16 %v4240, %v4224
        %v6945 = vpack.c.b16 %v4241, %v4225
        %v6946 = vpack.c.b16 %v4258, %v4242
        %v6947 = vpack.c.b16 %v4259, %v4243
        %v6948 = vpack.c.b16 %v4260, %v4244
        %v6949 = vpack.c.b16 %v4261, %v4245
        %v6950 = vpack.c.b16 %v4262, %v4246
        %v6951 = vpack.c.b16 %v4263, %v4247
        %v6952 = vpack.c.b16 %v4264, %v4248
        %v6953 = vpack.c.b16 %v4265, %v4249
        %v6954 = vpack.c.b16 %v4266, %v4250
        %v6955 = vpack.c.b16 %v4267, %v4251
        %v6956 = vpack.c.b16 %v4268, %v4252
        %v6957 = vpack.c.b16 %v4269, %v4253
        %v6958 = vpack.c.b16 %v4270, %v4254
        %v6959 = vpack.c.b16 %v4271, %v4255
        %v6960 = vpack.c.b16 %v4272, %v4256
        %v6961 = vpack.c.b16 %v4273, %v4257
        %v6962 = vpack.c.b16 %v4290, %v4274
        %v6963 = vpack.c.b16 %v4291, %v4275
        %v6964 = vpack.c.b16 %v4292, %v4276
        %v6965 = vpack.c.b16 %v4293, %v4277
        %v6966 = vpack.c.b16 %v4294, %v4278
        %v6967 = vpack.c.b16 %v4295, %v4279
        %v6968 = vpack.c.b16 %v4296, %v4280
        %v6969 = vpack.c.b16 %v4297, %v4281
        %v6970 = vpack.c.b16 %v4298, %v4282
        %v6971 = vpack.c.b16 %v4299, %v4283
        %v6972 = vpack.c.b16 %v4300, %v4284
        %v6973 = vpack.c.b16 %v4301, %v4285
        %v6974 = vpack.c.b16 %v4302, %v4286
        %v6975 = vpack.c.b16 %v4303, %v4287
        %v6976 = vpack.c.b16 %v4304, %v4288
        %v6977 = vpack.c.b16 %v4305, %v4289
        %v6978 = vpack.c.b16 %v4322, %v4306
        %v6979 = vpack.c.b16 %v4323, %v4307
        %v6980 = vpack.c.b16 %v4324, %v4308
        %v6981 = vpack.c.b16 %v4325, %v4309
        %v6982 = vpack.c.b16 %v4326, %v4310
        %v6983 = vpack.c.b16 %v4327, %v4311
        %v6984 = vpack.c.b16 %v4328, %v4312
        %v6985 = vpack.c.b16 %v4329, %v4313
        %v6986 = vpack.c.b16 %v4330, %v4314
        %v6987 = vpack.c.b16 %v4331, %v4315
        %v6988 = vpack.c.b16 %v4332, %v4316
        %v6989 = vpack.c.b16 %v4333, %v4317
        %v6990 = vpack.c.b16 %v4334, %v4318
        %v6991 = vpack.c.b16 %v4335, %v4319
        %v6992 = vpack.c.b16 %v4336, %v4320
        %v6993 = vpack.c.b16 %v4337, %v4321
        %v6994 = vpack.c.b16 %v4354, %v4338
        %v6995 = vpack.c.b16 %v4355, %v4339
        %v6996 = vpack.c.b16 %v4356, %v4340
        %v6997 = vpack.c.b16 %v4357, %v4341
        %v6998 = vpack.c.b16 %v4358, %v4342
        %v6999 = vpack.c.b16 %v4359, %v4343
        %v7000 = vpack.c.b16 %v4360, %v4344
        %v7001 = vpack.c.b16 %v4361, %v4345
        %v7002 = vpack.c.b16 %v4362, %v4346
        %v7003 = vpack.c.b16 %v4363, %v4347
        %v7004 = vpack.c.b16 %v4364, %v4348
        %v7005 = vpack.c.b16 %v4365, %v4349
        %v7006 = vpack.c.b16 %v4366, %v4350
        %v7007 = vpack.c.b16 %v4367, %v4351
        %v7008 = vpack.c.b16 %v4368, %v4352
        %v7009 = vpack.c.b16 %v4369, %v4353
        %v7010 = vpack.c.b16 %v4386, %v4370
        %v7011 = vpack.c.b16 %v4387, %v4371
        %v7012 = vpack.c.b16 %v4388, %v4372
        %v7013 = vpack.c.b16 %v4389, %v4373
        %v7014 = vpack.c.b16 %v4390, %v4374
        %v7015 = vpack.c.b16 %v4391, %v4375
        %v7016 = vpack.c.b16 %v4392, %v4376
        %v7017 = vpack.c.b16 %v4393, %v4377
        %v7018 = vpack.c.b16 %v4394, %v4378
        %v7019 = vpack.c.b16 %v4395, %v4379
        %v7020 = vpack.c.b16 %v4396, %v4380
        %v7021 = vpack.c.b16 %v4397, %v4381
        %v7022 = vpack.c.b16 %v4398, %v4382
        %v7023 = vpack.c.b16 %v4399, %v4383
        %v7024 = vpack.c.b16 %v4400, %v4384
        %v7025 = vpack.c.b16 %v4401, %v4385
        %v7026 = vpack.c.b16 %v4418, %v4402
        %v7027 = vpack.c.b16 %v4419, %v4403
        %v7028 = vpack.c.b16 %v4420, %v4404
        %v7029 = vpack.c.b16 %v4421, %v4405
        %v7030 = vpack.c.b16 %v4422, %v4406
        %v7031 = vpack.c.b16 %v4423, %v4407
        %v7032 = vpack.c.b16 %v4424, %v4408
        %v7033 = vpack.c.b16 %v4425, %v4409
        %v7034 = vpack.c.b16 %v4426, %v4410
        %v7035 = vpack.c.b16 %v4427, %v4411
        %v7036 = vpack.c.b16 %v4428, %v4412
        %v7037 = vpack.c.b16 %v4429, %v4413
        %v7038 = vpack.c.b16 %v4430, %v4414
        %v7039 = vpack.c.b16 %v4431, %v4415
        %v7040 = vpack.c.b16 %v4432, %v4416
        %v7041 = vpack.c.b16 %v4433, %v4417
        %v7042 = vpack.c.b16 %v4450, %v4434
        %v7043 = vpack.c.b16 %v4451, %v4435
        %v7044 = vpack.c.b16 %v4452, %v4436
        %v7045 = vpack.c.b16 %v4453, %v4437
        %v7046 = vpack.c.b16 %v4454, %v4438
        %v7047 = vpack.c.b16 %v4455, %v4439
        %v7048 = vpack.c.b16 %v4456, %v4440
        %v7049 = vpack.c.b16 %v4457, %v4441
        %v7050 = vpack.c.b16 %v4458, %v4442
        %v7051 = vpack.c.b16 %v4459, %v4443
        %v7052 = vpack.c.b16 %v4460, %v4444
        %v7053 = vpack.c.b16 %v4461, %v4445
        %v7054 = vpack.c.b16 %v4462, %v4446
        %v7055 = vpack.c.b16 %v4463, %v4447
        %v7056 = vpack.c.b16 %v4464, %v4448
        %v7057 = vpack.c.b16 %v4465, %v4449
        %v7058 = vpack.c.b16 %v4482, %v4466
        %v7059 = vpack.c.b16 %v4483, %v4467
        %v7060 = vpack.c.b16 %v4484, %v4468
        %v7061 = vpack.c.b16 %v4485, %v4469
        %v7062 = vpack.c.b16 %v4486, %v4470
        %v7063 = vpack.c.b16 %v4487, %v4471
        %v7064 = vpack.c.b16 %v4488, %v4472
        %v7065 = vpack.c.b16 %v4489, %v4473
        %v7066 = vpack.c.b16 %v4490, %v4474
        %v7067 = vpack.c.b16 %v4491, %v4475
        %v7068 = vpack.c.b16 %v4492, %v4476
        %v7069 = vpack.c.b16 %v4493, %v4477
        %v7070 = vpack.c.b16 %v4494, %v4478
        %v7071 = vpack.c.b16 %v4495, %v4479
        %v7072 = vpack.c.b16 %v4496, %v4480
        %v7073 = vpack.c.b16 %v4497, %v4481
        %v7074 = vpack.c.b16 %v4514, %v4498
        %v7075 = vpack.c.b16 %v4515, %v4499
        %v7076 = vpack.c.b16 %v4516, %v4500
        %v7077 = vpack.c.b16 %v4517, %v4501
        %v7078 = vpack.c.b16 %v4518, %v4502
        %v7079 = vpack.c.b16 %v4519, %v4503
        %v7080 = vpack.c.b16 %v4520, %v4504
        %v7081 = vpack.c.b16 %v4521, %v4505
        %v7082 = vpack.c.b16 %v4522, %v4506
        %v7083 = vpack.c.b16 %v4523, %v4507
        %v7084 = vpack.c.b16 %v4524, %v4508
        %v7085 = vpack.c.b16 %v4525, %v4509
        %v7086 = vpack.c.b16 %v4526, %v4510
        %v7087 = vpack.c.b16 %v4527, %v4511
        %v7088 = vpack.c.b16 %v4528, %v4512
        %v7089 = vpack.c.b16 %v4529, %v4513
        %v7090 = vpack.c.b16 %v4546, %v4530
        %v7091 = vpack.c.b16 %v4547, %v4531
        %v7092 = vpack.c.b16 %v4548, %v4532
        %v7093 = vpack.c.b16 %v4549, %v4533
        %v7094 = vpack.c.b16 %v4550, %v4534
        %v7095 = vpack.c.b16 %v4551, %v4535
        %v7096 = vpack.c.b16 %v4552, %v4536
        %v7097 = vpack.c.b16 %v4553, %v4537
        %v7098 = vpack.c.b16 %v4554, %v4538
        %v7099 = vpack.c.b16 %v4555, %v4539
        %v7100 = vpack.c.b16 %v4556, %v4540
        %v7101 = vpack.c.b16 %v4557, %v4541
        %v7102 = vpack.c.b16 %v4558, %v4542
        %v7103 = vpack.c.b16 %v4559, %v4543
        %v7104 = vpack.c.b16 %v4560, %v4544
        %v7105 = vpack.c.b16 %v4561, %v4545
        %v7106 = vpack.c.b16 %v4578, %v4562
        %v7107 = vpack.c.b16 %v4579, %v4563
        %v7108 = vpack.c.b16 %v4580, %v4564
        %v7109 = vpack.c.b16 %v4581, %v4565
        %v7110 = vpack.c.b16 %v4582, %v4566
        %v7111 = vpack.c.b16 %v4583, %v4567
        %v7112 = vpack.c.b16 %v4584, %v4568
        %v7113 = vpack.c.b16 %v4585, %v4569
        %v7114 = vpack.c.b16 %v4586, %v4570
        %v7115 = vpack.c.b16 %v4587, %v4571
        %v7116 = vpack.c.b16 %v4588, %v4572
        %v7117 = vpack.c.b16 %v4589, %v4573
        %v7118 = vpack.c.b16 %v4590, %v4574
        %v7119 = vpack.c.b16 %v4591, %v4575
        %v7120 = vpack.c.b16 %v4592, %v4576
        %v7121 = vpack.c.b16 %v4593, %v4577
        %v7122 = vpack.c.b16 %v4610, %v4594
        %v7123 = vpack.c.b16 %v4611, %v4595
        %v7124 = vpack.c.b16 %v4612, %v4596
        %v7125 = vpack.c.b16 %v4613, %v4597
        %v7126 = vpack.c.b16 %v4614, %v4598
        %v7127 = vpack.c.b16 %v4615, %v4599
        %v7128 = vpack.c.b16 %v4616, %v4600
        %v7129 = vpack.c.b16 %v4617, %v4601
        %v7130 = vpack.c.b16 %v4618, %v4602
        %v7131 = vpack.c.b16 %v4619, %v4603
        %v7132 = vpack.c.b16 %v4620, %v4604
        %v7133 = vpack.c.b16 %v4621, %v4605
        %v7134 = vpack.c.b16 %v4622, %v4606
        %v7135 = vpack.c.b16 %v4623, %v4607
        %v7136 = vpack.c.b16 %v4624, %v4608
        %v7137 = vpack.c.b16 %v4625, %v4609
        %v7138 = vpack.c.b16 %v4642, %v4626
        %v7139 = vpack.c.b16 %v4643, %v4627
        %v7140 = vpack.c.b16 %v4644, %v4628
        %v7141 = vpack.c.b16 %v4645, %v4629
        %v7142 = vpack.c.b16 %v4646, %v4630
        %v7143 = vpack.c.b16 %v4647, %v4631
        %v7144 = vpack.c.b16 %v4648, %v4632
        %v7145 = vpack.c.b16 %v4649, %v4633
        %v7146 = vpack.c.b16 %v4650, %v4634
        %v7147 = vpack.c.b16 %v4651, %v4635
        %v7148 = vpack.c.b16 %v4652, %v4636
        %v7149 = vpack.c.b16 %v4653, %v4637
        %v7150 = vpack.c.b16 %v4654, %v4638
        %v7151 = vpack.c.b16 %v4655, %v4639
        %v7152 = vpack.c.b16 %v4656, %v4640
        %v7153 = vpack.c.b16 %v4657, %v4641
        %v7154 = vpack.c.b16 %v4674, %v4658
        %v7155 = vpack.c.b16 %v4675, %v4659
        %v7156 = vpack.c.b16 %v4676, %v4660
        %v7157 = vpack.c.b16 %v4677, %v4661
        %v7158 = vpack.c.b16 %v4678, %v4662
        %v7159 = vpack.c.b16 %v4679, %v4663
        %v7160 = vpack.c.b16 %v4680, %v4664
        %v7161 = vpack.c.b16 %v4681, %v4665
        %v7162 = vpack.c.b16 %v4682, %v4666
        %v7163 = vpack.c.b16 %v4683, %v4667
        %v7164 = vpack.c.b16 %v4684, %v4668
        %v7165 = vpack.c.b16 %v4685, %v4669
        %v7166 = vpack.c.b16 %v4686, %v4670
        %v7167 = vpack.c.b16 %v4687, %v4671
        %v7168 = vpack.c.b16 %v4688, %v4672
        %v7169 = vpack.c.b16 %v4689, %v4673
        %v7170 = vpack.c.b16 %v4706, %v4690
        %v7171 = vpack.c.b16 %v4707, %v4691
        %v7172 = vpack.c.b16 %v4708, %v4692
        %v7173 = vpack.c.b16 %v4709, %v4693
        %v7174 = vpack.c.b16 %v4710, %v4694
        %v7175 = vpack.c.b16 %v4711, %v4695
        %v7176 = vpack.c.b16 %v4712, %v4696
        %v7177 = vpack.c.b16 %v4713, %v4697
        %v7178 = vpack.c.b16 %v4714, %v4698
        %v7179 = vpack.c.b16 %v4715, %v4699
        %v7180 = vpack.c.b16 %v4716, %v4700
        %v7181 = vpack.c.b16 %v4717, %v4701
        %v7182 = vpack.c.b16 %v4718, %v4702
        %v7183 = vpack.c.b16 %v4719, %v4703
        %v7184 = vpack.c.b16 %v4720, %v4704
        %v7185 = vpack.c.b16 %v4721, %v4705
        %v7186 = vpack.c.b16 %v4738, %v4722
        %v7187 = vpack.c.b16 %v4739, %v4723
        %v7188 = vpack.c.b16 %v4740, %v4724
        %v7189 = vpack.c.b16 %v4741, %v4725
        %v7190 = vpack.c.b16 %v4742, %v4726
        %v7191 = vpack.c.b16 %v4743, %v4727
        %v7192 = vpack.c.b16 %v4744, %v4728
        %v7193 = vpack.c.b16 %v4745, %v4729
        %v7194 = vpack.c.b16 %v4746, %v4730
        %v7195 = vpack.c.b16 %v4747, %v4731
        %v7196 = vpack.c.b16 %v4748, %v4732
        %v7197 = vpack.c.b16 %v4749, %v4733
        %v7198 = vpack.c.b16 %v4750, %v4734
        %v7199 = vpack.c.b16 %v4751, %v4735
        %v7200 = vpack.c.b16 %v4752, %v4736
        %v7201 = vpack.c.b16 %v4753, %v4737
        %v7202 = vpack.c.b16 %v4770, %v4754
        %v7203 = vpack.c.b16 %v4771, %v4755
        %v7204 = vpack.c.b16 %v4772, %v4756
        %v7205 = vpack.c.b16 %v4773, %v4757
        %v7206 = vpack.c.b16 %v4774, %v4758
        %v7207 = vpack.c.b16 %v4775, %v4759
        %v7208 = vpack.c.b16 %v4776, %v4760
        %v7209 = vpack.c.b16 %v4777, %v4761
        %v7210 = vpack.c.b16 %v4778, %v4762
        %v7211 = vpack.c.b16 %v4779, %v4763
        %v7212 = vpack.c.b16 %v4780, %v4764
        %v7213 = vpack.c.b16 %v4781, %v4765
        %v7214 = vpack.c.b16 %v4782, %v4766
        %v7215 = vpack.c.b16 %v4783, %v4767
        %v7216 = vpack.c.b16 %v4784, %v4768
        %v7217 = vpack.c.b16 %v4785, %v4769
        %v7218 = vpack.c.b16 %v4802, %v4786
        %v7219 = vpack.c.b16 %v4803, %v4787
        %v7220 = vpack.c.b16 %v4804, %v4788
        %v7221 = vpack.c.b16 %v4805, %v4789
        %v7222 = vpack.c.b16 %v4806, %v4790
        %v7223 = vpack.c.b16 %v4807, %v4791
        %v7224 = vpack.c.b16 %v4808, %v4792
        %v7225 = vpack.c.b16 %v4809, %v4793
        %v7226 = vpack.c.b16 %v4810, %v4794
        %v7227 = vpack.c.b16 %v4811, %v4795
        %v7228 = vpack.c.b16 %v4812, %v4796
        %v7229 = vpack.c.b16 %v4813, %v4797
        %v7230 = vpack.c.b16 %v4814, %v4798
        %v7231 = vpack.c.b16 %v4815, %v4799
        %v7232 = vpack.c.b16 %v4816, %v4800
        %v7233 = vpack.c.b16 %v4817, %v4801
        %v7234 = vpack.c.b16 %v4834, %v4818
        %v7235 = vpack.c.b16 %v4835, %v4819
        %v7236 = vpack.c.b16 %v4836, %v4820
        %v7237 = vpack.c.b16 %v4837, %v4821
        %v7238 = vpack.c.b16 %v4838, %v4822
        %v7239 = vpack.c.b16 %v4839, %v4823
        %v7240 = vpack.c.b16 %v4840, %v4824
        %v7241 = vpack.c.b16 %v4841, %v4825
        %v7242 = vpack.c.b16 %v4842, %v4826
        %v7243 = vpack.c.b16 %v4843, %v4827
        %v7244 = vpack.c.b16 %v4844, %v4828
        %v7245 = vpack.c.b16 %v4845, %v4829
        %v7246 = vpack.c.b16 %v4846, %v4830
        %v7247 = vpack.c.b16 %v4847, %v4831
        %v7248 = vpack.c.b16 %v4848, %v4832
        %v7249 = vpack.c.b16 %v4849, %v4833
        %v7250 = vpack.c.b16 %v4866, %v4850
        %v7251 = vpack.c.b16 %v4867, %v4851
        %v7252 = vpack.c.b16 %v4868, %v4852
        %v7253 = vpack.c.b16 %v4869, %v4853
        %v7254 = vpack.c.b16 %v4870, %v4854
        %v7255 = vpack.c.b16 %v4871, %v4855
        %v7256 = vpack.c.b16 %v4872, %v4856
        %v7257 = vpack.c.b16 %v4873, %v4857
        %v7258 = vpack.c.b16 %v4874, %v4858
        %v7259 = vpack.c.b16 %v4875, %v4859
        %v7260 = vpack.c.b16 %v4876, %v4860
        %v7261 = vpack.c.b16 %v4877, %v4861
        %v7262 = vpack.c.b16 %v4878, %v4862
        %v7263 = vpack.c.b16 %v4879, %v4863
        %v7264 = vpack.c.b16 %v4880, %v4864
        %v7265 = vpack.c.b16 %v4881, %v4865
        %v7266 = vpack.c.b16 %v4898, %v4882
        %v7267 = vpack.c.b16 %v4899, %v4883
        %v7268 = vpack.c.b16 %v4900, %v4884
        %v7269 = vpack.c.b16 %v4901, %v4885
        %v7270 = vpack.c.b16 %v4902, %v4886
        %v7271 = vpack.c.b16 %v4903, %v4887
        %v7272 = vpack.c.b16 %v4904, %v4888
        %v7273 = vpack.c.b16 %v4905, %v4889
        %v7274 = vpack.c.b16 %v4906, %v4890
        %v7275 = vpack.c.b16 %v4907, %v4891
        %v7276 = vpack.c.b16 %v4908, %v4892
        %v7277 = vpack.c.b16 %v4909, %v4893
        %v7278 = vpack.c.b16 %v4910, %v4894
        %v7279 = vpack.c.b16 %v4911, %v4895
        %v7280 = vpack.c.b16 %v4912, %v4896
        %v7281 = vpack.c.b16 %v4913, %v4897
        %v7282 = vpack.c.b16 %v4930, %v4914
        %v7283 = vpack.c.b16 %v4931, %v4915
        %v7284 = vpack.c.b16 %v4932, %v4916
        %v7285 = vpack.c.b16 %v4933, %v4917
        %v7286 = vpack.c.b16 %v4934, %v4918
        %v7287 = vpack.c.b16 %v4935, %v4919
        %v7288 = vpack.c.b16 %v4936, %v4920
        %v7289 = vpack.c.b16 %v4937, %v4921
        %v7290 = vpack.c.b16 %v4938, %v4922
        %v7291 = vpack.c.b16 %v4939, %v4923
        %v7292 = vpack.c.b16 %v4940, %v4924
        %v7293 = vpack.c.b16 %v4941, %v4925
        %v7294 = vpack.c.b16 %v4942, %v4926
        %v7295 = vpack.c.b16 %v4943, %v4927
        %v7296 = vpack.c.b16 %v4944, %v4928
        %v7297 = vpack.c.b16 %v4945, %v4929
        %v7298 = vpack.c.b16 %v4962, %v4946
        %v7299 = vpack.c.b16 %v4963, %v4947
        %v7300 = vpack.c.b16 %v4964, %v4948
        %v7301 = vpack.c.b16 %v4965, %v4949
        %v7302 = vpack.c.b16 %v4966, %v4950
        %v7303 = vpack.c.b16 %v4967, %v4951
        %v7304 = vpack.c.b16 %v4968, %v4952
        %v7305 = vpack.c.b16 %v4969, %v4953
        %v7306 = vpack.c.b16 %v4970, %v4954
        %v7307 = vpack.c.b16 %v4971, %v4955
        %v7308 = vpack.c.b16 %v4972, %v4956
        %v7309 = vpack.c.b16 %v4973, %v4957
        %v7310 = vpack.c.b16 %v4974, %v4958
        %v7311 = vpack.c.b16 %v4975, %v4959
        %v7312 = vpack.c.b16 %v4976, %v4960
        %v7313 = vpack.c.b16 %v4977, %v4961
        %v7314 = vpack.c.b16 %v4994, %v4978
        %v7315 = vpack.c.b16 %v4995, %v4979
        %v7316 = vpack.c.b16 %v4996, %v4980
        %v7317 = vpack.c.b16 %v4997, %v4981
        %v7318 = vpack.c.b16 %v4998, %v4982
        %v7319 = vpack.c.b16 %v4999, %v4983
        %v7320 = vpack.c.b16 %v5000, %v4984
        %v7321 = vpack.c.b16 %v5001, %v4985
        %v7322 = vpack.c.b16 %v5002, %v4986
        %v7323 = vpack.c.b16 %v5003, %v4987
        %v7324 = vpack.c.b16 %v5004, %v4988
        %v7325 = vpack.c.b16 %v5005, %v4989
        %v7326 = vpack.c.b16 %v5006, %v4990
        %v7327 = vpack.c.b16 %v5007, %v4991
        %v7328 = vpack.c.b16 %v5008, %v4992
        %v7329 = vpack.c.b16 %v5009, %v4993
        %v7330 = vpack.c.b16 %v5026, %v5010
        %v7331 = vpack.c.b16 %v5027, %v5011
        %v7332 = vpack.c.b16 %v5028, %v5012
        %v7333 = vpack.c.b16 %v5029, %v5013
        %v7334 = vpack.c.b16 %v5030, %v5014
        %v7335 = vpack.c.b16 %v5031, %v5015
        %v7336 = vpack.c.b16 %v5032, %v5016
        %v7337 = vpack.c.b16 %v5033, %v5017
        %v7338 = vpack.c.b16 %v5034, %v5018
        %v7339 = vpack.c.b16 %v5035, %v5019
        %v7340 = vpack.c.b16 %v5036, %v5020
        %v7341 = vpack.c.b16 %v5037, %v5021
        %v7342 = vpack.c.b16 %v5038, %v5022
        %v7343 = vpack.c.b16 %v5039, %v5023
        %v7344 = vpack.c.b16 %v5040, %v5024
        %v7345 = vpack.c.b16 %v5041, %v5025
        %v7346 = vpack.c.b16 %v5058, %v5042
        %v7347 = vpack.c.b16 %v5059, %v5043
        %v7348 = vpack.c.b16 %v5060, %v5044
        %v7349 = vpack.c.b16 %v5061, %v5045
        %v7350 = vpack.c.b16 %v5062, %v5046
        %v7351 = vpack.c.b16 %v5063, %v5047
        %v7352 = vpack.c.b16 %v5064, %v5048
        %v7353 = vpack.c.b16 %v5065, %v5049
        %v7354 = vpack.c.b16 %v5066, %v5050
        %v7355 = vpack.c.b16 %v5067, %v5051
        %v7356 = vpack.c.b16 %v5068, %v5052
        %v7357 = vpack.c.b16 %v5069, %v5053
        %v7358 = vpack.c.b16 %v5070, %v5054
        %v7359 = vpack.c.b16 %v5071, %v5055
        %v7360 = vpack.c.b16 %v5072, %v5056
        %v7361 = vpack.c.b16 %v5073, %v5057
        %v7362 = vpack.c.b16 %v5090, %v5074
        %v7363 = vpack.c.b16 %v5091, %v5075
        %v7364 = vpack.c.b16 %v5092, %v5076
        %v7365 = vpack.c.b16 %v5093, %v5077
        %v7366 = vpack.c.b16 %v5094, %v5078
        %v7367 = vpack.c.b16 %v5095, %v5079
        %v7368 = vpack.c.b16 %v5096, %v5080
        %v7369 = vpack.c.b16 %v5097, %v5081
        %v7370 = vpack.c.b16 %v5098, %v5082
        %v7371 = vpack.c.b16 %v5099, %v5083
        %v7372 = vpack.c.b16 %v5100, %v5084
        %v7373 = vpack.c.b16 %v5101, %v5085
        %v7374 = vpack.c.b16 %v5102, %v5086
        %v7375 = vpack.c.b16 %v5103, %v5087
        %v7376 = vpack.c.b16 %v5104, %v5088
        %v7377 = vpack.c.b16 %v5105, %v5089
        %v7378 = vpack.c.b16 %v5122, %v5106
        %v7379 = vpack.c.b16 %v5123, %v5107
        %v7380 = vpack.c.b16 %v5124, %v5108
        %v7381 = vpack.c.b16 %v5125, %v5109
        %v7382 = vpack.c.b16 %v5126, %v5110
        %v7383 = vpack.c.b16 %v5127, %v5111
        %v7384 = vpack.c.b16 %v5128, %v5112
        %v7385 = vpack.c.b16 %v5129, %v5113
        %v7386 = vpack.c.b16 %v5130, %v5114
        %v7387 = vpack.c.b16 %v5131, %v5115
        %v7388 = vpack.c.b16 %v5132, %v5116
        %v7389 = vpack.c.b16 %v5133, %v5117
        %v7390 = vpack.c.b16 %v5134, %v5118
        %v7391 = vpack.c.b16 %v5135, %v5119
        %v7392 = vpack.c.b16 %v5136, %v5120
        %v7393 = vpack.c.b16 %v5137, %v5121
        %v7394 = vpack.c.b16 %v5154, %v5138
        %v7395 = vpack.c.b16 %v5155, %v5139
        %v7396 = vpack.c.b16 %v5156, %v5140
        %v7397 = vpack.c.b16 %v5157, %v5141
        %v7398 = vpack.c.b16 %v5158, %v5142
        %v7399 = vpack.c.b16 %v5159, %v5143
        %v7400 = vpack.c.b16 %v5160, %v5144
        %v7401 = vpack.c.b16 %v5161, %v5145
        %v7402 = vpack.c.b16 %v5162, %v5146
        %v7403 = vpack.c.b16 %v5163, %v5147
        %v7404 = vpack.c.b16 %v5164, %v5148
        %v7405 = vpack.c.b16 %v5165, %v5149
        %v7406 = vpack.c.b16 %v5166, %v5150
        %v7407 = vpack.c.b16 %v5167, %v5151
        %v7408 = vpack.c.b16 %v5168, %v5152
        %v7409 = vpack.c.b16 %v5169, %v5153
        %v7410 = vpack.c.b16 %v5186, %v5170
        %v7411 = vpack.c.b16 %v5187, %v5171
        %v7412 = vpack.c.b16 %v5188, %v5172
        %v7413 = vpack.c.b16 %v5189, %v5173
        %v7414 = vpack.c.b16 %v5190, %v5174
        %v7415 = vpack.c.b16 %v5191, %v5175
        %v7416 = vpack.c.b16 %v5192, %v5176
        %v7417 = vpack.c.b16 %v5193, %v5177
        %v7418 = vpack.c.b16 %v5194, %v5178
        %v7419 = vpack.c.b16 %v5195, %v5179
        %v7420 = vpack.c.b16 %v5196, %v5180
        %v7421 = vpack.c.b16 %v5197, %v5181
        %v7422 = vpack.c.b16 %v5198, %v5182
        %v7423 = vpack.c.b16 %v5199, %v5183
        %v7424 = vpack.c.b16 %v5200, %v5184
        %v7425 = vpack.c.b16 %v5201, %v5185
        %v7426 = vpack.c.b16 %v5218, %v5202
        %v7427 = vpack.c.b16 %v5219, %v5203
        %v7428 = vpack.c.b16 %v5220, %v5204
        %v7429 = vpack.c.b16 %v5221, %v5205
        %v7430 = vpack.c.b16 %v5222, %v5206
        %v7431 = vpack.c.b16 %v5223, %v5207
        %v7432 = vpack.c.b16 %v5224, %v5208
        %v7433 = vpack.c.b16 %v5225, %v5209
        %v7434 = vpack.c.b16 %v5226, %v5210
        %v7435 = vpack.c.b16 %v5227, %v5211
        %v7436 = vpack.c.b16 %v5228, %v5212
        %v7437 = vpack.c.b16 %v5229, %v5213
        %v7438 = vpack.c.b16 %v5230, %v5214
        %v7439 = vpack.c.b16 %v5231, %v5215
        %v7440 = vpack.c.b16 %v5232, %v5216
        %v7441 = vpack.c.b16 %v5233, %v5217
        %v7442 = vpack.c.b16 %v5250, %v5234
        %v7443 = vpack.c.b16 %v5251, %v5235
        %v7444 = vpack.c.b16 %v5252, %v5236
        %v7445 = vpack.c.b16 %v5253, %v5237
        %v7446 = vpack.c.b16 %v5254, %v5238
        %v7447 = vpack.c.b16 %v5255, %v5239
        %v7448 = vpack.c.b16 %v5256, %v5240
        %v7449 = vpack.c.b16 %v5257, %v5241
        %v7450 = vpack.c.b16 %v5258, %v5242
        %v7451 = vpack.c.b16 %v5259, %v5243
        %v7452 = vpack.c.b16 %v5260, %v5244
        %v7453 = vpack.c.b16 %v5261, %v5245
        %v7454 = vpack.c.b16 %v5262, %v5246
        %v7455 = vpack.c.b16 %v5263, %v5247
        %v7456 = vpack.c.b16 %v5264, %v5248
        %v7457 = vpack.c.b16 %v5265, %v5249
        %v7458 = vpack.c.b16 %v5282, %v5266
        %v7459 = vpack.c.b16 %v5283, %v5267
        %v7460 = vpack.c.b16 %v5284, %v5268
        %v7461 = vpack.c.b16 %v5285, %v5269
        %v7462 = vpack.c.b16 %v5286, %v5270
        %v7463 = vpack.c.b16 %v5287, %v5271
        %v7464 = vpack.c.b16 %v5288, %v5272
        %v7465 = vpack.c.b16 %v5289, %v5273
        %v7466 = vpack.c.b16 %v5290, %v5274
        %v7467 = vpack.c.b16 %v5291, %v5275
        %v7468 = vpack.c.b16 %v5292, %v5276
        %v7469 = vpack.c.b16 %v5293, %v5277
        %v7470 = vpack.c.b16 %v5294, %v5278
        %v7471 = vpack.c.b16 %v5295, %v5279
        %v7472 = vpack.c.b16 %v5296, %v5280
        %v7473 = vpack.c.b16 %v5297, %v5281
        %v7474 = vpack.c.b16 %v5314, %v5298
        %v7475 = vpack.c.b16 %v5315, %v5299
        %v7476 = vpack.c.b16 %v5316, %v5300
        %v7477 = vpack.c.b16 %v5317, %v5301
        %v7478 = vpack.c.b16 %v5318, %v5302
        %v7479 = vpack.c.b16 %v5319, %v5303
        %v7480 = vpack.c.b16 %v5320, %v5304
        %v7481 = vpack.c.b16 %v5321, %v5305
        %v7482 = vpack.c.b16 %v5322, %v5306
        %v7483 = vpack.c.b16 %v5323, %v5307
        %v7484 = vpack.c.b16 %v5324, %v5308
        %v7485 = vpack.c.b16 %v5325, %v5309
        %v7486 = vpack.c.b16 %v5326, %v5310
        %v7487 = vpack.c.b16 %v5327, %v5311
        %v7488 = vpack.c.b16 %v5328, %v5312
        %v7489 = vpack.c.b16 %v5329, %v5313
        %v7490 = vpack.c.b16 %v5346, %v5330
        %v7491 = vpack.c.b16 %v5347, %v5331
        %v7492 = vpack.c.b16 %v5348, %v5332
        %v7493 = vpack.c.b16 %v5349, %v5333
        %v7494 = vpack.c.b16 %v5350, %v5334
        %v7495 = vpack.c.b16 %v5351, %v5335
        %v7496 = vpack.c.b16 %v5352, %v5336
        %v7497 = vpack.c.b16 %v5353, %v5337
        %v7498 = vpack.c.b16 %v5354, %v5338
        %v7499 = vpack.c.b16 %v5355, %v5339
        %v7500 = vpack.c.b16 %v5356, %v5340
        %v7501 = vpack.c.b16 %v5357, %v5341
        %v7502 = vpack.c.b16 %v5358, %v5342
        %v7503 = vpack.c.b16 %v5359, %v5343
        %v7504 = vpack.c.b16 %v5360, %v5344
        %v7505 = vpack.c.b16 %v5361, %v5345
        %v7506 = vpack.c.b16 %v5378, %v5362
        %v7507 = vpack.c.b16 %v5379, %v5363
        %v7508 = vpack.c.b16 %v5380, %v5364
        %v7509 = vpack.c.b16 %v5381, %v5365
        %v7510 = vpack.c.b16 %v5382, %v5366
        %v7511 = vpack.c.b16 %v5383, %v5367
        %v7512 = vpack.c.b16 %v5384, %v5368
        %v7513 = vpack.c.b16 %v5385, %v5369
        %v7514 = vpack.c.b16 %v5386, %v5370
        %v7515 = vpack.c.b16 %v5387, %v5371
        %v7516 = vpack.c.b16 %v5388, %v5372
        %v7517 = vpack.c.b16 %v5389, %v5373
        %v7518 = vpack.c.b16 %v5390, %v5374
        %v7519 = vpack.c.b16 %v5391, %v5375
        %v7520 = vpack.c.b16 %v5392, %v5376
        %v7521 = vpack.c.b16 %v5393, %v5377
        %v7522 = vpack.c.b16 %v5410, %v5394
        %v7523 = vpack.c.b16 %v5411, %v5395
        %v7524 = vpack.c.b16 %v5412, %v5396
        %v7525 = vpack.c.b16 %v5413, %v5397
        %v7526 = vpack.c.b16 %v5414, %v5398
        %v7527 = vpack.c.b16 %v5415, %v5399
        %v7528 = vpack.c.b16 %v5416, %v5400
        %v7529 = vpack.c.b16 %v5417, %v5401
        %v7530 = vpack.c.b16 %v5418, %v5402
        %v7531 = vpack.c.b16 %v5419, %v5403
        %v7532 = vpack.c.b16 %v5420, %v5404
        %v7533 = vpack.c.b16 %v5421, %v5405
        %v7534 = vpack.c.b16 %v5422, %v5406
        %v7535 = vpack.c.b16 %v5423, %v5407
        %v7536 = vpack.c.b16 %v5424, %v5408
        %v7537 = vpack.c.b16 %v5425, %v5409
        %v7538 = vpack.c.b16 %v5442, %v5426
        %v7539 = vpack.c.b16 %v5443, %v5427
        %v7540 = vpack.c.b16 %v5444, %v5428
        %v7541 = vpack.c.b16 %v5445, %v5429
        %v7542 = vpack.c.b16 %v5446, %v5430
        %v7543 = vpack.c.b16 %v5447, %v5431
        %v7544 = vpack.c.b16 %v5448, %v5432
        %v7545 = vpack.c.b16 %v5449, %v5433
        %v7546 = vpack.c.b16 %v5450, %v5434
        %v7547 = vpack.c.b16 %v5451, %v5435
        %v7548 = vpack.c.b16 %v5452, %v5436
        %v7549 = vpack.c.b16 %v5453, %v5437
        %v7550 = vpack.c.b16 %v5454, %v5438
        %v7551 = vpack.c.b16 %v5455, %v5439
        %v7552 = vpack.c.b16 %v5456, %v5440
        %v7553 = vpack.c.b16 %v5457, %v5441
        %v7554 = vpack.c.b16 %v5474, %v5458
        %v7555 = vpack.c.b16 %v5475, %v5459
        %v7556 = vpack.c.b16 %v5476, %v5460
        %v7557 = vpack.c.b16 %v5477, %v5461
        %v7558 = vpack.c.b16 %v5478, %v5462
        %v7559 = vpack.c.b16 %v5479, %v5463
        %v7560 = vpack.c.b16 %v5480, %v5464
        %v7561 = vpack.c.b16 %v5481, %v5465
        %v7562 = vpack.c.b16 %v5482, %v5466
        %v7563 = vpack.c.b16 %v5483, %v5467
        %v7564 = vpack.c.b16 %v5484, %v5468
        %v7565 = vpack.c.b16 %v5485, %v5469
        %v7566 = vpack.c.b16 %v5486, %v5470
        %v7567 = vpack.c.b16 %v5487, %v5471
        %v7568 = vpack.c.b16 %v5488, %v5472
        %v7569 = vpack.c.b16 %v5489, %v5473
        %v7570 = vpack.c.b16 %v5506, %v5490
        %v7571 = vpack.c.b16 %v5507, %v5491
        %v7572 = vpack.c.b16 %v5508, %v5492
        %v7573 = vpack.c.b16 %v5509, %v5493
        %v7574 = vpack.c.b16 %v5510, %v5494
        %v7575 = vpack.c.b16 %v5511, %v5495
        %v7576 = vpack.c.b16 %v5512, %v5496
        %v7577 = vpack.c.b16 %v5513, %v5497
        %v7578 = vpack.c.b16 %v5514, %v5498
        %v7579 = vpack.c.b16 %v5515, %v5499
        %v7580 = vpack.c.b16 %v5516, %v5500
        %v7581 = vpack.c.b16 %v5517, %v5501
        %v7582 = vpack.c.b16 %v5518, %v5502
        %v7583 = vpack.c.b16 %v5519, %v5503
        %v7584 = vpack.c.b16 %v5520, %v5504
        %v7585 = vpack.c.b16 %v5521, %v5505
        %v7586 = vpack.c.b16 %v5538, %v5522
        %v7587 = vpack.c.b16 %v5539, %v5523
        %v7588 = vpack.c.b16 %v5540, %v5524
        %v7589 = vpack.c.b16 %v5541, %v5525
        %v7590 = vpack.c.b16 %v5542, %v5526
        %v7591 = vpack.c.b16 %v5543, %v5527
        %v7592 = vpack.c.b16 %v5544, %v5528
        %v7593 = vpack.c.b16 %v5545, %v5529
        %v7594 = vpack.c.b16 %v5546, %v5530
        %v7595 = vpack.c.b16 %v5547, %v5531
        %v7596 = vpack.c.b16 %v5548, %v5532
        %v7597 = vpack.c.b16 %v5549, %v5533
        %v7598 = vpack.c.b16 %v5550, %v5534
        %v7599 = vpack.c.b16 %v5551, %v5535
        %v7600 = vpack.c.b16 %v5552, %v5536
        %v7601 = vpack.c.b16 %v5553, %v5537
        %v7602 = vpack.c.b16 %v5570, %v5554
        %v7603 = vpack.c.b16 %v5571, %v5555
        %v7604 = vpack.c.b16 %v5572, %v5556
        %v7605 = vpack.c.b16 %v5573, %v5557
        %v7606 = vpack.c.b16 %v5574, %v5558
        %v7607 = vpack.c.b16 %v5575, %v5559
        %v7608 = vpack.c.b16 %v5576, %v5560
        %v7609 = vpack.c.b16 %v5577, %v5561
        %v7610 = vpack.c.b16 %v5578, %v5562
        %v7611 = vpack.c.b16 %v5579, %v5563
        %v7612 = vpack.c.b16 %v5580, %v5564
        %v7613 = vpack.c.b16 %v5581, %v5565
        %v7614 = vpack.c.b16 %v5582, %v5566
        %v7615 = vpack.c.b16 %v5583, %v5567
        %v7616 = vpack.c.b16 %v5584, %v5568
        %v7617 = vpack.c.b16 %v5585, %v5569
        %v7618 = vpack.c.b16 %v5602, %v5586
        %v7619 = vpack.c.b16 %v5603, %v5587
        %v7620 = vpack.c.b16 %v5604, %v5588
        %v7621 = vpack.c.b16 %v5605, %v5589
        %v7622 = vpack.c.b16 %v5606, %v5590
        %v7623 = vpack.c.b16 %v5607, %v5591
        %v7624 = vpack.c.b16 %v5608, %v5592
        %v7625 = vpack.c.b16 %v5609, %v5593
        %v7626 = vpack.c.b16 %v5610, %v5594
        %v7627 = vpack.c.b16 %v5611, %v5595
        %v7628 = vpack.c.b16 %v5612, %v5596
        %v7629 = vpack.c.b16 %v5613, %v5597
        %v7630 = vpack.c.b16 %v5614, %v5598
        %v7631 = vpack.c.b16 %v5615, %v5599
        %v7632 = vpack.c.b16 %v5616, %v5600
        %v7633 = vpack.c.b16 %v5617, %v5601
        %v7634 = vpack.c.b16 %v5634, %v5618
        %v7635 = vpack.c.b16 %v5635, %v5619
        %v7636 = vpack.c.b16 %v5636, %v5620
        %v7637 = vpack.c.b16 %v5637, %v5621
        %v7638 = vpack.c.b16 %v5638, %v5622
        %v7639 = vpack.c.b16 %v5639, %v5623
        %v7640 = vpack.c.b16 %v5640, %v5624
        %v7641 = vpack.c.b16 %v5641, %v5625
        %v7642 = vpack.c.b16 %v5642, %v5626
        %v7643 = vpack.c.b16 %v5643, %v5627
        %v7644 = vpack.c.b16 %v5644, %v5628
        %v7645 = vpack.c.b16 %v5645, %v5629
        %v7646 = vpack.c.b16 %v5646, %v5630
        %v7647 = vpack.c.b16 %v5647, %v5631
        %v7648 = vpack.c.b16 %v5648, %v5632
        %v7649 = vpack.c.b16 %v5649, %v5633
        %v7650 = vpack.c.b16 %v5666, %v5650
        %v7651 = vpack.c.b16 %v5667, %v5651
        %v7652 = vpack.c.b16 %v5668, %v5652
        %v7653 = vpack.c.b16 %v5669, %v5653
        %v7654 = vpack.c.b16 %v5670, %v5654
        %v7655 = vpack.c.b16 %v5671, %v5655
        %v7656 = vpack.c.b16 %v5672, %v5656
        %v7657 = vpack.c.b16 %v5673, %v5657
        %v7658 = vpack.c.b16 %v5674, %v5658
        %v7659 = vpack.c.b16 %v5675, %v5659
        %v7660 = vpack.c.b16 %v5676, %v5660
        %v7661 = vpack.c.b16 %v5677, %v5661
        %v7662 = vpack.c.b16 %v5678, %v5662
        %v7663 = vpack.c.b16 %v5679, %v5663
        %v7664 = vpack.c.b16 %v5680, %v5664
        %v7665 = vpack.c.b16 %v5681, %v5665
        %v7666 = vpack.c.b16 %v5698, %v5682
        %v7667 = vpack.c.b16 %v5699, %v5683
        %v7668 = vpack.c.b16 %v5700, %v5684
        %v7669 = vpack.c.b16 %v5701, %v5685
        %v7670 = vpack.c.b16 %v5702, %v5686
        %v7671 = vpack.c.b16 %v5703, %v5687
        %v7672 = vpack.c.b16 %v5704, %v5688
        %v7673 = vpack.c.b16 %v5705, %v5689
        %v7674 = vpack.c.b16 %v5706, %v5690
        %v7675 = vpack.c.b16 %v5707, %v5691
        %v7676 = vpack.c.b16 %v5708, %v5692
        %v7677 = vpack.c.b16 %v5709, %v5693
        %v7678 = vpack.c.b16 %v5710, %v5694
        %v7679 = vpack.c.b16 %v5711, %v5695
        %v7680 = vpack.c.b16 %v5712, %v5696
        %v7681 = vpack.c.b16 %v5713, %v5697
        %v7682 = vpack.c.b16 %v5730, %v5714
        %v7683 = vpack.c.b16 %v5731, %v5715
        %v7684 = vpack.c.b16 %v5732, %v5716
        %v7685 = vpack.c.b16 %v5733, %v5717
        %v7686 = vpack.c.b16 %v5734, %v5718
        %v7687 = vpack.c.b16 %v5735, %v5719
        %v7688 = vpack.c.b16 %v5736, %v5720
        %v7689 = vpack.c.b16 %v5737, %v5721
        %v7690 = vpack.c.b16 %v5738, %v5722
        %v7691 = vpack.c.b16 %v5739, %v5723
        %v7692 = vpack.c.b16 %v5740, %v5724
        %v7693 = vpack.c.b16 %v5741, %v5725
        %v7694 = vpack.c.b16 %v5742, %v5726
        %v7695 = vpack.c.b16 %v5743, %v5727
        %v7696 = vpack.c.b16 %v5744, %v5728
        %v7697 = vpack.c.b16 %v5745, %v5729
        %v7698 = vpack.c.b16 %v5762, %v5746
        %v7699 = vpack.c.b16 %v5763, %v5747
        %v7700 = vpack.c.b16 %v5764, %v5748
        %v7701 = vpack.c.b16 %v5765, %v5749
        %v7702 = vpack.c.b16 %v5766, %v5750
        %v7703 = vpack.c.b16 %v5767, %v5751
        %v7704 = vpack.c.b16 %v5768, %v5752
        %v7705 = vpack.c.b16 %v5769, %v5753
        %v7706 = vpack.c.b16 %v5770, %v5754
        %v7707 = vpack.c.b16 %v5771, %v5755
        %v7708 = vpack.c.b16 %v5772, %v5756
        %v7709 = vpack.c.b16 %v5773, %v5757
        %v7710 = vpack.c.b16 %v5774, %v5758
        %v7711 = vpack.c.b16 %v5775, %v5759
        %v7712 = vpack.c.b16 %v5776, %v5760
        %v7713 = vpack.c.b16 %v5777, %v5761
        %v7714 = vpack.c.b16 %v5794, %v5778
        %v7715 = vpack.c.b16 %v5795, %v5779
        %v7716 = vpack.c.b16 %v5796, %v5780
        %v7717 = vpack.c.b16 %v5797, %v5781
        %v7718 = vpack.c.b16 %v5798, %v5782
        %v7719 = vpack.c.b16 %v5799, %v5783
        %v7720 = vpack.c.b16 %v5800, %v5784
        %v7721 = vpack.c.b16 %v5801, %v5785
        %v7722 = vpack.c.b16 %v5802, %v5786
        %v7723 = vpack.c.b16 %v5803, %v5787
        %v7724 = vpack.c.b16 %v5804, %v5788
        %v7725 = vpack.c.b16 %v5805, %v5789
        %v7726 = vpack.c.b16 %v5806, %v5790
        %v7727 = vpack.c.b16 %v5807, %v5791
        %v7728 = vpack.c.b16 %v5808, %v5792
        %v7729 = vpack.c.b16 %v5809, %v5793
        %v7730 = vpack.c.b16 %v5826, %v5810
        %v7731 = vpack.c.b16 %v5827, %v5811
        %v7732 = vpack.c.b16 %v5828, %v5812
        %v7733 = vpack.c.b16 %v5829, %v5813
        %v7734 = vpack.c.b16 %v5830, %v5814
        %v7735 = vpack.c.b16 %v5831, %v5815
        %v7736 = vpack.c.b16 %v5832, %v5816
        %v7737 = vpack.c.b16 %v5833, %v5817
        %v7738 = vpack.c.b16 %v5834, %v5818
        %v7739 = vpack.c.b16 %v5835, %v5819
        %v7740 = vpack.c.b16 %v5836, %v5820
        %v7741 = vpack.c.b16 %v5837, %v5821
        %v7742 = vpack.c.b16 %v5838, %v5822
        %v7743 = vpack.c.b16 %v5839, %v5823
        %v7744 = vpack.c.b16 %v5840, %v5824
        %v7745 = vpack.c.b16 %v5841, %v5825
        %v7746 = vpack.c.b16 %v5858, %v5842
        %v7747 = vpack.c.b16 %v5859, %v5843
        %v7748 = vpack.c.b16 %v5860, %v5844
        %v7749 = vpack.c.b16 %v5861, %v5845
        %v7750 = vpack.c.b16 %v5862, %v5846
        %v7751 = vpack.c.b16 %v5863, %v5847
        %v7752 = vpack.c.b16 %v5864, %v5848
        %v7753 = vpack.c.b16 %v5865, %v5849
        %v7754 = vpack.c.b16 %v5866, %v5850
        %v7755 = vpack.c.b16 %v5867, %v5851
        %v7756 = vpack.c.b16 %v5868, %v5852
        %v7757 = vpack.c.b16 %v5869, %v5853
        %v7758 = vpack.c.b16 %v5870, %v5854
        %v7759 = vpack.c.b16 %v5871, %v5855
        %v7760 = vpack.c.b16 %v5872, %v5856
        %v7761 = vpack.c.b16 %v5873, %v5857
        %v7762 = vpack.c.b16 %v5890, %v5874
        %v7763 = vpack.c.b16 %v5891, %v5875
        %v7764 = vpack.c.b16 %v5892, %v5876
        %v7765 = vpack.c.b16 %v5893, %v5877
        %v7766 = vpack.c.b16 %v5894, %v5878
        %v7767 = vpack.c.b16 %v5895, %v5879
        %v7768 = vpack.c.b16 %v5896, %v5880
        %v7769 = vpack.c.b16 %v5897, %v5881
        %v7770 = vpack.c.b16 %v5898, %v5882
        %v7771 = vpack.c.b16 %v5899, %v5883
        %v7772 = vpack.c.b16 %v5900, %v5884
        %v7773 = vpack.c.b16 %v5901, %v5885
        %v7774 = vpack.c.b16 %v5902, %v5886
        %v7775 = vpack.c.b16 %v5903, %v5887
        %v7776 = vpack.c.b16 %v5904, %v5888
        %v7777 = vpack.c.b16 %v5905, %v5889
        %v7778 = vpack.c.b16 %v5922, %v5906
        %v7779 = vpack.c.b16 %v5923, %v5907
        %v7780 = vpack.c.b16 %v5924, %v5908
        %v7781 = vpack.c.b16 %v5925, %v5909
        %v7782 = vpack.c.b16 %v5926, %v5910
        %v7783 = vpack.c.b16 %v5927, %v5911
        %v7784 = vpack.c.b16 %v5928, %v5912
        %v7785 = vpack.c.b16 %v5929, %v5913
        %v7786 = vpack.c.b16 %v5930, %v5914
        %v7787 = vpack.c.b16 %v5931, %v5915
        %v7788 = vpack.c.b16 %v5932, %v5916
        %v7789 = vpack.c.b16 %v5933, %v5917
        %v7790 = vpack.c.b16 %v5934, %v5918
        %v7791 = vpack.c.b16 %v5935, %v5919
        %v7792 = vpack.c.b16 %v5936, %v5920
        %v7793 = vpack.c.b16 %v5937, %v5921
        %v7794 = vpack.c.b16 %v5954, %v5938
        %v7795 = vpack.c.b16 %v5955, %v5939
        %v7796 = vpack.c.b16 %v5956, %v5940
        %v7797 = vpack.c.b16 %v5957, %v5941
        %v7798 = vpack.c.b16 %v5958, %v5942
        %v7799 = vpack.c.b16 %v5959, %v5943
        %v7800 = vpack.c.b16 %v5960, %v5944
        %v7801 = vpack.c.b16 %v5961, %v5945
        %v7802 = vpack.c.b16 %v5962, %v5946
        %v7803 = vpack.c.b16 %v5963, %v5947
        %v7804 = vpack.c.b16 %v5964, %v5948
        %v7805 = vpack.c.b16 %v5965, %v5949
        %v7806 = vpack.c.b16 %v5966, %v5950
        %v7807 = vpack.c.b16 %v5967, %v5951
        %v7808 = vpack.c.b16 %v5968, %v5952
        %v7809 = vpack.c.b16 %v5969, %v5953
        %v7810 = vpack.c.b16 %v5986, %v5970
        %v7811 = vpack.c.b16 %v5987, %v5971
        %v7812 = vpack.c.b16 %v5988, %v5972
        %v7813 = vpack.c.b16 %v5989, %v5973
        %v7814 = vpack.c.b16 %v5990, %v5974
        %v7815 = vpack.c.b16 %v5991, %v5975
        %v7816 = vpack.c.b16 %v5992, %v5976
        %v7817 = vpack.c.b16 %v5993, %v5977
        %v7818 = vpack.c.b16 %v5994, %v5978
        %v7819 = vpack.c.b16 %v5995, %v5979
        %v7820 = vpack.c.b16 %v5996, %v5980
        %v7821 = vpack.c.b16 %v5997, %v5981
        %v7822 = vpack.c.b16 %v5998, %v5982
        %v7823 = vpack.c.b16 %v5999, %v5983
        %v7824 = vpack.c.b16 %v6000, %v5984
        %v7825 = vpack.c.b16 %v6001, %v5985
        %v7826 = vpack.c.b16 %v6018, %v6002
        %v7827 = vpack.c.b16 %v6019, %v6003
        %v7828 = vpack.c.b16 %v6020, %v6004
        %v7829 = vpack.c.b16 %v6021, %v6005
        %v7830 = vpack.c.b16 %v6022, %v6006
        %v7831 = vpack.c.b16 %v6023, %v6007
        %v7832 = vpack.c.b16 %v6024, %v6008
        %v7833 = vpack.c.b16 %v6025, %v6009
        %v7834 = vpack.c.b16 %v6026, %v6010
        %v7835 = vpack.c.b16 %v6027, %v6011
        %v7836 = vpack.c.b16 %v6028, %v6012
        %v7837 = vpack.c.b16 %v6029, %v6013
        %v7838 = vpack.c.b16 %v6030, %v6014
        %v7839 = vpack.c.b16 %v6031, %v6015
        %v7840 = vpack.c.b16 %v6032, %v6016
        %v7841 = vpack.c.b16 %v6033, %v6017
        %v7842 = vpack.c.b16 %v6050, %v6034
        %v7843 = vpack.c.b16 %v6051, %v6035
        %v7844 = vpack.c.b16 %v6052, %v6036
        %v7845 = vpack.c.b16 %v6053, %v6037
        %v7846 = vpack.c.b16 %v6054, %v6038
        %v7847 = vpack.c.b16 %v6055, %v6039
        %v7848 = vpack.c.b16 %v6056, %v6040
        %v7849 = vpack.c.b16 %v6057, %v6041
        %v7850 = vpack.c.b16 %v6058, %v6042
        %v7851 = vpack.c.b16 %v6059, %v6043
        %v7852 = vpack.c.b16 %v6060, %v6044
        %v7853 = vpack.c.b16 %v6061, %v6045
        %v7854 = vpack.c.b16 %v6062, %v6046
        %v7855 = vpack.c.b16 %v6063, %v6047
        %v7856 = vpack.c.b16 %v6064, %v6048
        %v7857 = vpack.c.b16 %v6065, %v6049
        %v7858 = vpack.c.b16 %v6082, %v6066
        %v7859 = vpack.c.b16 %v6083, %v6067
        %v7860 = vpack.c.b16 %v6084, %v6068
        %v7861 = vpack.c.b16 %v6085, %v6069
        %v7862 = vpack.c.b16 %v6086, %v6070
        %v7863 = vpack.c.b16 %v6087, %v6071
        %v7864 = vpack.c.b16 %v6088, %v6072
        %v7865 = vpack.c.b16 %v6089, %v6073
        %v7866 = vpack.c.b16 %v6090, %v6074
        %v7867 = vpack.c.b16 %v6091, %v6075
        %v7868 = vpack.c.b16 %v6092, %v6076
        %v7869 = vpack.c.b16 %v6093, %v6077
        %v7870 = vpack.c.b16 %v6094, %v6078
        %v7871 = vpack.c.b16 %v6095, %v6079
        %v7872 = vpack.c.b16 %v6096, %v6080
        %v7873 = vpack.c.b16 %v6097, %v6081
        %v7874 = vpack.c.b16 %v6114, %v6098
        %v7875 = vpack.c.b16 %v6115, %v6099
        %v7876 = vpack.c.b16 %v6116, %v6100
        %v7877 = vpack.c.b16 %v6117, %v6101
        %v7878 = vpack.c.b16 %v6118, %v6102
        %v7879 = vpack.c.b16 %v6119, %v6103
        %v7880 = vpack.c.b16 %v6120, %v6104
        %v7881 = vpack.c.b16 %v6121, %v6105
        %v7882 = vpack.c.b16 %v6122, %v6106
        %v7883 = vpack.c.b16 %v6123, %v6107
        %v7884 = vpack.c.b16 %v6124, %v6108
        %v7885 = vpack.c.b16 %v6125, %v6109
        %v7886 = vpack.c.b16 %v6126, %v6110
        %v7887 = vpack.c.b16 %v6127, %v6111
        %v7888 = vpack.c.b16 %v6128, %v6112
        %v7889 = vpack.c.b16 %v6129, %v6113
        %v7890 = vpack.c.b16 %v6146, %v6130
        %v7891 = vpack.c.b16 %v6147, %v6131
        %v7892 = vpack.c.b16 %v6148, %v6132
        %v7893 = vpack.c.b16 %v6149, %v6133
        %v7894 = vpack.c.b16 %v6150, %v6134
        %v7895 = vpack.c.b16 %v6151, %v6135
        %v7896 = vpack.c.b16 %v6152, %v6136
        %v7897 = vpack.c.b16 %v6153, %v6137
        %v7898 = vpack.c.b16 %v6154, %v6138
        %v7899 = vpack.c.b16 %v6155, %v6139
        %v7900 = vpack.c.b16 %v6156, %v6140
        %v7901 = vpack.c.b16 %v6157, %v6141
        %v7902 = vpack.c.b16 %v6158, %v6142
        %v7903 = vpack.c.b16 %v6159, %v6143
        %v7904 = vpack.c.b16 %v6160, %v6144
        %v7905 = vpack.c.b16 %v6161, %v6145
        %v7906 = vpack.c.b16 %v6178, %v6162
        %v7907 = vpack.c.b16 %v6179, %v6163
        %v7908 = vpack.c.b16 %v6180, %v6164
        %v7909 = vpack.c.b16 %v6181, %v6165
        %v7910 = vpack.c.b16 %v6182, %v6166
        %v7911 = vpack.c.b16 %v6183, %v6167
        %v7912 = vpack.c.b16 %v6184, %v6168
        %v7913 = vpack.c.b16 %v6185, %v6169
        %v7914 = vpack.c.b16 %v6186, %v6170
        %v7915 = vpack.c.b16 %v6187, %v6171
        %v7916 = vpack.c.b16 %v6188, %v6172
        %v7917 = vpack.c.b16 %v6189, %v6173
        %v7918 = vpack.c.b16 %v6190, %v6174
        %v7919 = vpack.c.b16 %v6191, %v6175
        %v7920 = vpack.c.b16 %v6192, %v6176
        %v7921 = vpack.c.b16 %v6193, %v6177
        %v7922 = vpack.c.b16 %v6210, %v6194
        %v7923 = vpack.c.b16 %v6211, %v6195
        %v7924 = vpack.c.b16 %v6212, %v6196
        %v7925 = vpack.c.b16 %v6213, %v6197
        %v7926 = vpack.c.b16 %v6214, %v6198
        %v7927 = vpack.c.b16 %v6215, %v6199
        %v7928 = vpack.c.b16 %v6216, %v6200
        %v7929 = vpack.c.b16 %v6217, %v6201
        %v7930 = vpack.c.b16 %v6218, %v6202
        %v7931 = vpack.c.b16 %v6219, %v6203
        %v7932 = vpack.c.b16 %v6220, %v6204
        %v7933 = vpack.c.b16 %v6221, %v6205
        %v7934 = vpack.c.b16 %v6222, %v6206
        %v7935 = vpack.c.b16 %v6223, %v6207
        %v7936 = vpack.c.b16 %v6224, %v6208
        %v7937 = vpack.c.b16 %v6225, %v6209
        %v7938 = vpack.c.b16 %v6242, %v6226
        %v7939 = vpack.c.b16 %v6243, %v6227
        %v7940 = vpack.c.b16 %v6244, %v6228
        %v7941 = vpack.c.b16 %v6245, %v6229
        %v7942 = vpack.c.b16 %v6246, %v6230
        %v7943 = vpack.c.b16 %v6247, %v6231
        %v7944 = vpack.c.b16 %v6248, %v6232
        %v7945 = vpack.c.b16 %v6249, %v6233
        %v7946 = vpack.c.b16 %v6250, %v6234
        %v7947 = vpack.c.b16 %v6251, %v6235
        %v7948 = vpack.c.b16 %v6252, %v6236
        %v7949 = vpack.c.b16 %v6253, %v6237
        %v7950 = vpack.c.b16 %v6254, %v6238
        %v7951 = vpack.c.b16 %v6255, %v6239
        %v7952 = vpack.c.b16 %v6256, %v6240
        %v7953 = vpack.c.b16 %v6257, %v6241
        %v7954 = vpack.c.b16 %v6274, %v6258
        %v7955 = vpack.c.b16 %v6275, %v6259
        %v7956 = vpack.c.b16 %v6276, %v6260
        %v7957 = vpack.c.b16 %v6277, %v6261
        %v7958 = vpack.c.b16 %v6278, %v6262
        %v7959 = vpack.c.b16 %v6279, %v6263
        %v7960 = vpack.c.b16 %v6280, %v6264
        %v7961 = vpack.c.b16 %v6281, %v6265
        %v7962 = vpack.c.b16 %v6282, %v6266
        %v7963 = vpack.c.b16 %v6283, %v6267
        %v7964 = vpack.c.b16 %v6284, %v6268
        %v7965 = vpack.c.b16 %v6285, %v6269
        %v7966 = vpack.c.b16 %v6286, %v6270
        %v7967 = vpack.c.b16 %v6287, %v6271
        %v7968 = vpack.c.b16 %v6288, %v6272
        %v7969 = vpack.c.b16 %v6289, %v6273
        %v7970 = vpack.c.b16 %v6306, %v6290
        %v7971 = vpack.c.b16 %v6307, %v6291
        %v7972 = vpack.c.b16 %v6308, %v6292
        %v7973 = vpack.c.b16 %v6309, %v6293
        %v7974 = vpack.c.b16 %v6310, %v6294
        %v7975 = vpack.c.b16 %v6311, %v6295
        %v7976 = vpack.c.b16 %v6312, %v6296
        %v7977 = vpack.c.b16 %v6313, %v6297
        %v7978 = vpack.c.b16 %v6314, %v6298
        %v7979 = vpack.c.b16 %v6315, %v6299
        %v7980 = vpack.c.b16 %v6316, %v6300
        %v7981 = vpack.c.b16 %v6317, %v6301
        %v7982 = vpack.c.b16 %v6318, %v6302
        %v7983 = vpack.c.b16 %v6319, %v6303
        %v7984 = vpack.c.b16 %v6320, %v6304
        %v7985 = vpack.c.b16 %v6321, %v6305
        %v7986 = vpack.c.b16 %v6338, %v6322
        %v7987 = vpack.c.b16 %v6339, %v6323
        %v7988 = vpack.c.b16 %v6340, %v6324
        %v7989 = vpack.c.b16 %v6341, %v6325
        %v7990 = vpack.c.b16 %v6342, %v6326
        %v7991 = vpack.c.b16 %v6343, %v6327
        %v7992 = vpack.c.b16 %v6344, %v6328
        %v7993 = vpack.c.b16 %v6345, %v6329
        %v7994 = vpack.c.b16 %v6346, %v6330
        %v7995 = vpack.c.b16 %v6347, %v6331
        %v7996 = vpack.c.b16 %v6348, %v6332
        %v7997 = vpack.c.b16 %v6349, %v6333
        %v7998 = vpack.c.b16 %v6350, %v6334
        %v7999 = vpack.c.b16 %v6351, %v6335
        %v8000 = vpack.c.b16 %v6352, %v6336
        %v8001 = vpack.c.b16 %v6353, %v6337
        %v8002 = vpack.c.b16 %v6370, %v6354
        %v8003 = vpack.c.b16 %v6371, %v6355
        %v8004 = vpack.c.b16 %v6372, %v6356
        %v8005 = vpack.c.b16 %v6373, %v6357
        %v8006 = vpack.c.b16 %v6374, %v6358
        %v8007 = vpack.c.b16 %v6375, %v6359
        %v8008 = vpack.c.b16 %v6376, %v6360
        %v8009 = vpack.c.b16 %v6377, %v6361
        %v8010 = vpack.c.b16 %v6378, %v6362
        %v8011 = vpack.c.b16 %v6379, %v6363
        %v8012 = vpack.c.b16 %v6380, %v6364
        %v8013 = vpack.c.b16 %v6381, %v6365
        %v8014 = vpack.c.b16 %v6382, %v6366
        %v8015 = vpack.c.b16 %v6383, %v6367
        %v8016 = vpack.c.b16 %v6384, %v6368
        %v8017 = vpack.c.b16 %v6385, %v6369
        %v8018 = vpack.c.b16 %v6402, %v6386
        %v8019 = vpack.c.b16 %v6403, %v6387
        %v8020 = vpack.c.b16 %v6404, %v6388
        %v8021 = vpack.c.b16 %v6405, %v6389
        %v8022 = vpack.c.b16 %v6406, %v6390
        %v8023 = vpack.c.b16 %v6407, %v6391
        %v8024 = vpack.c.b16 %v6408, %v6392
        %v8025 = vpack.c.b16 %v6409, %v6393
        %v8026 = vpack.c.b16 %v6410, %v6394
        %v8027 = vpack.c.b16 %v6411, %v6395
        %v8028 = vpack.c.b16 %v6412, %v6396
        %v8029 = vpack.c.b16 %v6413, %v6397
        %v8030 = vpack.c.b16 %v6414, %v6398
        %v8031 = vpack.c.b16 %v6415, %v6399
        %v8032 = vpack.c.b16 %v6416, %v6400
        %v8033 = vpack.c.b16 %v6417, %v6401
        %v8034 = vpack.c.b16 %v6434, %v6418
        %v8035 = vpack.c.b16 %v6435, %v6419
        %v8036 = vpack.c.b16 %v6436, %v6420
        %v8037 = vpack.c.b16 %v6437, %v6421
        %v8038 = vpack.c.b16 %v6438, %v6422
        %v8039 = vpack.c.b16 %v6439, %v6423
        %v8040 = vpack.c.b16 %v6440, %v6424
        %v8041 = vpack.c.b16 %v6441, %v6425
        %v8042 = vpack.c.b16 %v6442, %v6426
        %v8043 = vpack.c.b16 %v6443, %v6427
        %v8044 = vpack.c.b16 %v6444, %v6428
        %v8045 = vpack.c.b16 %v6445, %v6429
        %v8046 = vpack.c.b16 %v6446, %v6430
        %v8047 = vpack.c.b16 %v6447, %v6431
        %v8048 = vpack.c.b16 %v6448, %v6432
        %v8049 = vpack.c.b16 %v6449, %v6433
        %v8050 = vpack.c.b16 %v6466, %v6450
        %v8051 = vpack.c.b16 %v6467, %v6451
        %v8052 = vpack.c.b16 %v6468, %v6452
        %v8053 = vpack.c.b16 %v6469, %v6453
        %v8054 = vpack.c.b16 %v6470, %v6454
        %v8055 = vpack.c.b16 %v6471, %v6455
        %v8056 = vpack.c.b16 %v6472, %v6456
        %v8057 = vpack.c.b16 %v6473, %v6457
        %v8058 = vpack.c.b16 %v6474, %v6458
        %v8059 = vpack.c.b16 %v6475, %v6459
        %v8060 = vpack.c.b16 %v6476, %v6460
        %v8061 = vpack.c.b16 %v6477, %v6461
        %v8062 = vpack.c.b16 %v6478, %v6462
        %v8063 = vpack.c.b16 %v6479, %v6463
        %v8064 = vpack.c.b16 %v6480, %v6464
        %v8065 = vpack.c.b16 %v6481, %v6465
        %v8066 = vpack.c.b16 %v6498, %v6482
        %v8067 = vpack.c.b16 %v6499, %v6483
        %v8068 = vpack.c.b16 %v6500, %v6484
        %v8069 = vpack.c.b16 %v6501, %v6485
        %v8070 = vpack.c.b16 %v6502, %v6486
        %v8071 = vpack.c.b16 %v6503, %v6487
        %v8072 = vpack.c.b16 %v6504, %v6488
        %v8073 = vpack.c.b16 %v6505, %v6489
        %v8074 = vpack.c.b16 %v6506, %v6490
        %v8075 = vpack.c.b16 %v6507, %v6491
        %v8076 = vpack.c.b16 %v6508, %v6492
        %v8077 = vpack.c.b16 %v6509, %v6493
        %v8078 = vpack.c.b16 %v6510, %v6494
        %v8079 = vpack.c.b16 %v6511, %v6495
        %v8080 = vpack.c.b16 %v6512, %v6496
        %v8081 = vpack.c.b16 %v6513, %v6497
        %v8082 = vpack.c.b16 %v6530, %v6514
        %v8083 = vpack.c.b16 %v6531, %v6515
        %v8084 = vpack.c.b16 %v6532, %v6516
        %v8085 = vpack.c.b16 %v6533, %v6517
        %v8086 = vpack.c.b16 %v6534, %v6518
        %v8087 = vpack.c.b16 %v6535, %v6519
        %v8088 = vpack.c.b16 %v6536, %v6520
        %v8089 = vpack.c.b16 %v6537, %v6521
        %v8090 = vpack.c.b16 %v6538, %v6522
        %v8091 = vpack.c.b16 %v6539, %v6523
        %v8092 = vpack.c.b16 %v6540, %v6524
        %v8093 = vpack.c.b16 %v6541, %v6525
        %v8094 = vpack.c.b16 %v6542, %v6526
        %v8095 = vpack.c.b16 %v6543, %v6527
        %v8096 = vpack.c.b16 %v6544, %v6528
        %v8097 = vpack.c.b16 %v6545, %v6529
        %v8098 = vpack.c.b16 %v6562, %v6546
        %v8099 = vpack.c.b16 %v6563, %v6547
        %v8100 = vpack.c.b16 %v6564, %v6548
        %v8101 = vpack.c.b16 %v6565, %v6549
        %v8102 = vpack.c.b16 %v6566, %v6550
        %v8103 = vpack.c.b16 %v6567, %v6551
        %v8104 = vpack.c.b16 %v6568, %v6552
        %v8105 = vpack.c.b16 %v6569, %v6553
        %v8106 = vpack.c.b16 %v6570, %v6554
        %v8107 = vpack.c.b16 %v6571, %v6555
        %v8108 = vpack.c.b16 %v6572, %v6556
        %v8109 = vpack.c.b16 %v6573, %v6557
        %v8110 = vpack.c.b16 %v6574, %v6558
        %v8111 = vpack.c.b16 %v6575, %v6559
        %v8112 = vpack.c.b16 %v6576, %v6560
        %v8113 = vpack.c.b16 %v6577, %v6561
        %9650 = vmatprep.subr.bf16.mxu0 %v6579
        %9651 = vmatpush1.bf16.msra.mxu0 %v6578
        %9652 = vmatprep.subr.bf16.mxu0 %v6595
        %9653 = vmatpush1.bf16.msra.mxu0 %v6594
        %9654 = vmatprep.subr.bf16.mxu0 %v6611
        %9655 = vmatpush1.bf16.msra.mxu0 %v6610
        %9656 = vmatprep.subr.bf16.mxu0 %v6627
        %9657 = vmatpush1.bf16.msra.mxu0 %v6626
        %9658 = vmatprep.subr.bf16.mxu0 %v6643
        %9659 = vmatpush1.bf16.msra.mxu0 %v6642
        %9660 = vmatprep.subr.bf16.mxu0 %v6659
        %9661 = vmatpush1.bf16.msra.mxu0 %v6658
        %9662 = vmatprep.subr.bf16.mxu0 %v6675
        %9663 = vmatpush1.bf16.msra.mxu0 %v6674
        %9664 = vmatprep.subr.bf16.mxu0 %v6691
        %9665 = vmatpush1.bf16.msra.mxu0 %v6690
        %9666 = vmatprep.subr.bf16.mxu0 %v6707
        %9667 = vmatpush1.bf16.msra.mxu0 %v6706
        %9668 = vmatprep.subr.bf16.mxu0 %v6723
        %9669 = vmatpush1.bf16.msra.mxu0 %v6722
        %9670 = vmatprep.subr.bf16.mxu0 %v6739
        %9671 = vmatpush1.bf16.msra.mxu0 %v6738
        %9672 = vmatprep.subr.bf16.mxu0 %v6755
        %9673 = vmatpush1.bf16.msra.mxu0 %v6754
        %9674 = vmatprep.subr.bf16.mxu0 %v6771
        %9675 = vmatpush1.bf16.msra.mxu0 %v6770
        %9676 = vmatprep.subr.bf16.mxu0 %v6787
        %9677 = vmatpush1.bf16.msra.mxu0 %v6786
        %9678 = vmatprep.subr.bf16.mxu0 %v6803
        %9679 = vmatpush1.bf16.msra.mxu0 %v6802
        %9680 = vmatprep.subr.bf16.mxu0 %v6819
        %9681 = vmatpush1.bf16.msra.mxu0 %v6818
        %9682 = vmatprep.mubr.bf16.mxu0 %v1947
        %9683 = vmatmul.mubr.bf16.gmra.mrb[0].mxu0 %v1946
        %v9684 = vpop.f32.mrb[0].mxu0
        %v9685 = vadd.f32 0.0, %v9684
        %v9686 = vpop.f32.mrb[0].mxu0
        %v9687 = vadd.f32 0.0, %v9686
        %v9688 = vpop.f32.mrb[0].mxu0
        %v9689 = vpop.f32.mrb[0].mxu0
        %9690 = vdwg.mxu0
        %9691 = vmatprep.subr.bf16.mxu0 %v6835
        %9692 = vmatpush1.bf16.msra.mxu0 %v6834
        %9693 = vmatprep.subr.bf16.mxu0 %v6851
        %9694 = vmatpush1.bf16.msra.mxu0 %v6850
        %9695 = vmatprep.subr.bf16.mxu0 %v6867
        %9696 = vmatpush1.bf16.msra.mxu0 %v6866
        %9697 = vmatprep.subr.bf16.mxu0 %v6883
        %9698 = vmatpush1.bf16.msra.mxu0 %v6882
        %9699 = vmatprep.subr.bf16.mxu0 %v6899
        %9700 = vmatpush1.bf16.msra.mxu0 %v6898
        %9701 = vmatprep.subr.bf16.mxu0 %v6915
        %9702 = vmatpush1.bf16.msra.mxu0 %v6914
        %9703 = vmatprep.subr.bf16.mxu0 %v6931
        %9704 = vmatpush1.bf16.msra.mxu0 %v6930
        %9705 = vmatprep.subr.bf16.mxu0 %v6947
        %9706 = vmatpush1.bf16.msra.mxu0 %v6946
        %9707 = vmatprep.subr.bf16.mxu0 %v6963
        %9708 = vmatpush1.bf16.msra.mxu0 %v6962
        %9709 = vmatprep.subr.bf16.mxu0 %v6979
        %9710 = vmatpush1.bf16.msra.mxu0 %v6978
        %9711 = vmatprep.subr.bf16.mxu0 %v6995
        %9712 = vmatpush1.bf16.msra.mxu0 %v6994
        %9713 = vmatprep.subr.bf16.mxu0 %v7011
        %9714 = vmatpush1.bf16.msra.mxu0 %v7010
        %9715 = vmatprep.subr.bf16.mxu0 %v7027
        %9716 = vmatpush1.bf16.msra.mxu0 %v7026
        %9717 = vmatprep.subr.bf16.mxu0 %v7043
        %9718 = vmatpush1.bf16.msra.mxu0 %v7042
        %9719 = vmatprep.subr.bf16.mxu0 %v7059
        %9720 = vmatpush1.bf16.msra.mxu0 %v7058
        %9721 = vmatprep.subr.bf16.mxu0 %v7075
        %9722 = vmatpush1.bf16.msra.mxu0 %v7074
        %9723 = vmatprep.mubr.bf16.mxu0 %v1949
        %9724 = vmatmul.mubr.bf16.gmra.mrb[0].mxu0 %v1948
        %v9725 = vpop.f32.mrb[0].mxu0
        %v9726 = vadd.f32 %v9685, %v9725
        %v9727 = vpop.f32.mrb[0].mxu0
        %v9728 = vadd.f32 %v9687, %v9727
        %v9729 = vpop.f32.mrb[0].mxu0
        %v9730 = vpop.f32.mrb[0].mxu0
        %9731 = vdwg.mxu0
        %9732 = vmatprep.subr.bf16.mxu0 %v7091
        %9733 = vmatpush1.bf16.msra.mxu0 %v7090
        %9734 = vmatprep.subr.bf16.mxu0 %v7107
        %9735 = vmatpush1.bf16.msra.mxu0 %v7106
        %9736 = vmatprep.subr.bf16.mxu0 %v7123
        %9737 = vmatpush1.bf16.msra.mxu0 %v7122
        %9738 = vmatprep.subr.bf16.mxu0 %v7139
        %9739 = vmatpush1.bf16.msra.mxu0 %v7138
        %9740 = vmatprep.subr.bf16.mxu0 %v7155
        %9741 = vmatpush1.bf16.msra.mxu0 %v7154
        %9742 = vmatprep.subr.bf16.mxu0 %v7171
        %9743 = vmatpush1.bf16.msra.mxu0 %v7170
        %9744 = vmatprep.subr.bf16.mxu0 %v7187
        %9745 = vmatpush1.bf16.msra.mxu0 %v7186
        %9746 = vmatprep.subr.bf16.mxu0 %v7203
        %9747 = vmatpush1.bf16.msra.mxu0 %v7202
        %9748 = vmatprep.subr.bf16.mxu0 %v7219
        %9749 = vmatpush1.bf16.msra.mxu0 %v7218
        %9750 = vmatprep.subr.bf16.mxu0 %v7235
        %9751 = vmatpush1.bf16.msra.mxu0 %v7234
        %9752 = vmatprep.subr.bf16.mxu0 %v7251
        %9753 = vmatpush1.bf16.msra.mxu0 %v7250
        %9754 = vmatprep.subr.bf16.mxu0 %v7267
        %9755 = vmatpush1.bf16.msra.mxu0 %v7266
        %9756 = vmatprep.subr.bf16.mxu0 %v7283
        %9757 = vmatpush1.bf16.msra.mxu0 %v7282
        %9758 = vmatprep.subr.bf16.mxu0 %v7299
        %9759 = vmatpush1.bf16.msra.mxu0 %v7298
        %9760 = vmatprep.subr.bf16.mxu0 %v7315
        %9761 = vmatpush1.bf16.msra.mxu0 %v7314
        %9762 = vmatprep.subr.bf16.mxu0 %v7331
        %9763 = vmatpush1.bf16.msra.mxu0 %v7330
        %9764 = vmatprep.mubr.bf16.mxu0 %v1951
        %9765 = vmatmul.mubr.bf16.gmra.mrb[0].mxu0 %v1950
        %v9766 = vpop.f32.mrb[0].mxu0
        %v9767 = vadd.f32 %v9726, %v9766
        %v9768 = vpop.f32.mrb[0].mxu0
        %v9769 = vadd.f32 %v9728, %v9768
        %v9770 = vpop.f32.mrb[0].mxu0
        %v9771 = vpop.f32.mrb[0].mxu0
        %9772 = vdwg.mxu0
        %9773 = vmatprep.subr.bf16.mxu0 %v7347
        %9774 = vmatpush1.bf16.msra.mxu0 %v7346
        %9775 = vmatprep.subr.bf16.mxu0 %v7363
        %9776 = vmatpush1.bf16.msra.mxu0 %v7362
        %9777 = vmatprep.subr.bf16.mxu0 %v7379
        %9778 = vmatpush1.bf16.msra.mxu0 %v7378
        %9779 = vmatprep.subr.bf16.mxu0 %v7395
        %9780 = vmatpush1.bf16.msra.mxu0 %v7394
        %9781 = vmatprep.subr.bf16.mxu0 %v7411
        %9782 = vmatpush1.bf16.msra.mxu0 %v7410
        %9783 = vmatprep.subr.bf16.mxu0 %v7427
        %9784 = vmatpush1.bf16.msra.mxu0 %v7426
        %9785 = vmatprep.subr.bf16.mxu0 %v7443
        %9786 = vmatpush1.bf16.msra.mxu0 %v7442
        %9787 = vmatprep.subr.bf16.mxu0 %v7459
        %9788 = vmatpush1.bf16.msra.mxu0 %v7458
        %9789 = vmatprep.subr.bf16.mxu0 %v7475
        %9790 = vmatpush1.bf16.msra.mxu0 %v7474
        %9791 = vmatprep.subr.bf16.mxu0 %v7491
        %9792 = vmatpush1.bf16.msra.mxu0 %v7490
        %9793 = vmatprep.subr.bf16.mxu0 %v7507
        %9794 = vmatpush1.bf16.msra.mxu0 %v7506
        %9795 = vmatprep.subr.bf16.mxu0 %v7523
        %9796 = vmatpush1.bf16.msra.mxu0 %v7522
        %9797 = vmatprep.subr.bf16.mxu0 %v7539
        %9798 = vmatpush1.bf16.msra.mxu0 %v7538
        %9799 = vmatprep.subr.bf16.mxu0 %v7555
        %9800 = vmatpush1.bf16.msra.mxu0 %v7554
        %9801 = vmatprep.subr.bf16.mxu0 %v7571
        %9802 = vmatpush1.bf16.msra.mxu0 %v7570
        %9803 = vmatprep.subr.bf16.mxu0 %v7587
        %9804 = vmatpush1.bf16.msra.mxu0 %v7586
        %9805 = vmatprep.mubr.bf16.mxu0 %v1953
        %9806 = vmatmul.mubr.bf16.gmra.mrb[0].mxu0 %v1952
        %v9807 = vpop.f32.mrb[0].mxu0
        %v9808 = vadd.f32 %v9767, %v9807
        %v9809 = vpop.f32.mrb[0].mxu0
        %v9810 = vadd.f32 %v9769, %v9809
        %v9811 = vpop.f32.mrb[0].mxu0
        %v9812 = vpop.f32.mrb[0].mxu0
        %9813 = vdwg.mxu0
        %9814 = vmatprep.subr.bf16.mxu0 %v7603
        %9815 = vmatpush1.bf16.msra.mxu0 %v7602
        %9816 = vmatprep.subr.bf16.mxu0 %v7619
        %9817 = vmatpush1.bf16.msra.mxu0 %v7618
        %9818 = vmatprep.subr.bf16.mxu0 %v7635
        %9819 = vmatpush1.bf16.msra.mxu0 %v7634
        %9820 = vmatprep.subr.bf16.mxu0 %v7651
        %9821 = vmatpush1.bf16.msra.mxu0 %v7650
        %9822 = vmatprep.subr.bf16.mxu0 %v7667
        %9823 = vmatpush1.bf16.msra.mxu0 %v7666
        %9824 = vmatprep.subr.bf16.mxu0 %v7683
        %9825 = vmatpush1.bf16.msra.mxu0 %v7682
        %9826 = vmatprep.subr.bf16.mxu0 %v7699
        %9827 = vmatpush1.bf16.msra.mxu0 %v7698
        %9828 = vmatprep.subr.bf16.mxu0 %v7715
        %9829 = vmatpush1.bf16.msra.mxu0 %v7714
        %9830 = vmatprep.subr.bf16.mxu0 %v7731
        %9831 = vmatpush1.bf16.msra.mxu0 %v7730
        %9832 = vmatprep.subr.bf16.mxu0 %v7747
        %9833 = vmatpush1.bf16.msra.mxu0 %v7746
        %9834 = vmatprep.subr.bf16.mxu0 %v7763
        %9835 = vmatpush1.bf16.msra.mxu0 %v7762
        %9836 = vmatprep.subr.bf16.mxu0 %v7779
        %9837 = vmatpush1.bf16.msra.mxu0 %v7778
        %9838 = vmatprep.subr.bf16.mxu0 %v7795
        %9839 = vmatpush1.bf16.msra.mxu0 %v7794
        %9840 = vmatprep.subr.bf16.mxu0 %v7811
        %9841 = vmatpush1.bf16.msra.mxu0 %v7810
        %9842 = vmatprep.subr.bf16.mxu0 %v7827
        %9843 = vmatpush1.bf16.msra.mxu0 %v7826
        %9844 = vmatprep.subr.bf16.mxu0 %v7843
        %9845 = vmatpush1.bf16.msra.mxu0 %v7842
        %9846 = vmatprep.mubr.bf16.mxu0 %v1955
        %9847 = vmatmul.mubr.bf16.gmra.mrb[0].mxu0 %v1954
        %v9848 = vpop.f32.mrb[0].mxu0
        %v9849 = vadd.f32 %v9808, %v9848
        %v9850 = vpop.f32.mrb[0].mxu0
        %v9851 = vadd.f32 %v9810, %v9850
        %v9852 = vpop.f32.mrb[0].mxu0
        %v9853 = vpop.f32.mrb[0].mxu0
        %9854 = vdwg.mxu0
        %9855 = vmatprep.subr.bf16.mxu0 %v7859
        %9856 = vmatpush1.bf16.msra.mxu0 %v7858
        %9857 = vmatprep.subr.bf16.mxu0 %v7875
        %9858 = vmatpush1.bf16.msra.mxu0 %v7874
        %9859 = vmatprep.subr.bf16.mxu0 %v7891
        %9860 = vmatpush1.bf16.msra.mxu0 %v7890
        %9861 = vmatprep.subr.bf16.mxu0 %v7907
        %9862 = vmatpush1.bf16.msra.mxu0 %v7906
        %9863 = vmatprep.subr.bf16.mxu0 %v7923
        %9864 = vmatpush1.bf16.msra.mxu0 %v7922
        %9865 = vmatprep.subr.bf16.mxu0 %v7939
        %9866 = vmatpush1.bf16.msra.mxu0 %v7938
        %9867 = vmatprep.subr.bf16.mxu0 %v7955
        %9868 = vmatpush1.bf16.msra.mxu0 %v7954
        %9869 = vmatprep.subr.bf16.mxu0 %v7971
        %9870 = vmatpush1.bf16.msra.mxu0 %v7970
        %9871 = vmatprep.subr.bf16.mxu0 %v7987
        %9872 = vmatpush1.bf16.msra.mxu0 %v7986
        %9873 = vmatprep.subr.bf16.mxu0 %v8003
        %9874 = vmatpush1.bf16.msra.mxu0 %v8002
        %9875 = vmatprep.subr.bf16.mxu0 %v8019
        %9876 = vmatpush1.bf16.msra.mxu0 %v8018
        %9877 = vmatprep.subr.bf16.mxu0 %v8035
        %9878 = vmatpush1.bf16.msra.mxu0 %v8034
        %9879 = vmatprep.subr.bf16.mxu0 %v8051
        %9880 = vmatpush1.bf16.msra.mxu0 %v8050
        %9881 = vmatprep.subr.bf16.mxu0 %v8067
        %9882 = vmatpush1.bf16.msra.mxu0 %v8066
        %9883 = vmatprep.subr.bf16.mxu0 %v8083
        %9884 = vmatpush1.bf16.msra.mxu0 %v8082
        %9885 = vmatprep.subr.bf16.mxu0 %v8099
        %9886 = vmatpush1.bf16.msra.mxu0 %v8098
        %9887 = vmatprep.mubr.bf16.mxu0 %v1957
        %9888 = vmatmul.mubr.bf16.gmra.mrb[0].mxu0 %v1956
        %v9889 = vpop.f32.mrb[0].mxu0
        %v9890 = vadd.f32 %v9849, %v9889
        %v9891 = vpop.f32.mrb[0].mxu0
        %v9892 = vadd.f32 %v9851, %v9891
        %v9893 = vpop.f32.mrb[0].mxu0
        %v9894 = vpop.f32.mrb[0].mxu0
        %9895 = vdwg.mxu0
        %9896 = vmatprep.subr.bf16.mxu0 %v6581
        %9897 = vmatpush1.bf16.msra.mxu0 %v6580
        %9898 = vmatprep.subr.bf16.mxu0 %v6597
        %9899 = vmatpush1.bf16.msra.mxu0 %v6596
        %9900 = vmatprep.subr.bf16.mxu0 %v6613
        %9901 = vmatpush1.bf16.msra.mxu0 %v6612
        %9902 = vmatprep.subr.bf16.mxu0 %v6629
        %9903 = vmatpush1.bf16.msra.mxu0 %v6628
        %9904 = vmatprep.subr.bf16.mxu0 %v6645
        %9905 = vmatpush1.bf16.msra.mxu0 %v6644
        %9906 = vmatprep.subr.bf16.mxu0 %v6661
        %9907 = vmatpush1.bf16.msra.mxu0 %v6660
        %9908 = vmatprep.subr.bf16.mxu0 %v6677
        %9909 = vmatpush1.bf16.msra.mxu0 %v6676
        %9910 = vmatprep.subr.bf16.mxu0 %v6693
        %9911 = vmatpush1.bf16.msra.mxu0 %v6692
        %9912 = vmatprep.subr.bf16.mxu0 %v6709
        %9913 = vmatpush1.bf16.msra.mxu0 %v6708
        %9914 = vmatprep.subr.bf16.mxu0 %v6725
        %9915 = vmatpush1.bf16.msra.mxu0 %v6724
        %9916 = vmatprep.subr.bf16.mxu0 %v6741
        %9917 = vmatpush1.bf16.msra.mxu0 %v6740
        %9918 = vmatprep.subr.bf16.mxu0 %v6757
        %9919 = vmatpush1.bf16.msra.mxu0 %v6756
        %9920 = vmatprep.subr.bf16.mxu0 %v6773
        %9921 = vmatpush1.bf16.msra.mxu0 %v6772
        %9922 = vmatprep.subr.bf16.mxu0 %v6789
        %9923 = vmatpush1.bf16.msra.mxu0 %v6788
        %9924 = vmatprep.subr.bf16.mxu0 %v6805
        %9925 = vmatpush1.bf16.msra.mxu0 %v6804
        %9926 = vmatprep.subr.bf16.mxu0 %v6821
        %9927 = vmatpush1.bf16.msra.mxu0 %v6820
        %9928 = vmatprep.mubr.bf16.mxu0 %v1947
        %9929 = vmatmul.mubr.bf16.gmra.mrb[0].mxu0 %v1946
        %v9930 = vpop.f32.mrb[0].mxu0
        %v9931 = vadd.f32 0.0, %v9930
        %v9932 = vpop.f32.mrb[0].mxu0
        %v9933 = vadd.f32 0.0, %v9932
        %v9934 = vpop.f32.mrb[0].mxu0
        %v9935 = vpop.f32.mrb[0].mxu0
        %9936 = vdwg.mxu0
        %9937 = vmatprep.subr.bf16.mxu0 %v6837
        %9938 = vmatpush1.bf16.msra.mxu0 %v6836
        %9939 = vmatprep.subr.bf16.mxu0 %v6853
        %9940 = vmatpush1.bf16.msra.mxu0 %v6852
        %9941 = vmatprep.subr.bf16.mxu0 %v6869
        %9942 = vmatpush1.bf16.msra.mxu0 %v6868
        %9943 = vmatprep.subr.bf16.mxu0 %v6885
        %9944 = vmatpush1.bf16.msra.mxu0 %v6884
        %9945 = vmatprep.subr.bf16.mxu0 %v6901
        %9946 = vmatpush1.bf16.msra.mxu0 %v6900
        %9947 = vmatprep.subr.bf16.mxu0 %v6917
        %9948 = vmatpush1.bf16.msra.mxu0 %v6916
        %9949 = vmatprep.subr.bf16.mxu0 %v6933
        %9950 = vmatpush1.bf16.msra.mxu0 %v6932
        %9951 = vmatprep.subr.bf16.mxu0 %v6949
        %9952 = vmatpush1.bf16.msra.mxu0 %v6948
        %9953 = vmatprep.subr.bf16.mxu0 %v6965
        %9954 = vmatpush1.bf16.msra.mxu0 %v6964
        %9955 = vmatprep.subr.bf16.mxu0 %v6981
        %9956 = vmatpush1.bf16.msra.mxu0 %v6980
        %9957 = vmatprep.subr.bf16.mxu0 %v6997
        %9958 = vmatpush1.bf16.msra.mxu0 %v6996
        %9959 = vmatprep.subr.bf16.mxu0 %v7013
        %9960 = vmatpush1.bf16.msra.mxu0 %v7012
        %9961 = vmatprep.subr.bf16.mxu0 %v7029
        %9962 = vmatpush1.bf16.msra.mxu0 %v7028
        %9963 = vmatprep.subr.bf16.mxu0 %v7045
        %9964 = vmatpush1.bf16.msra.mxu0 %v7044
        %9965 = vmatprep.subr.bf16.mxu0 %v7061
        %9966 = vmatpush1.bf16.msra.mxu0 %v7060
        %9967 = vmatprep.subr.bf16.mxu0 %v7077
        %9968 = vmatpush1.bf16.msra.mxu0 %v7076
        %9969 = vmatprep.mubr.bf16.mxu0 %v1949
        %9970 = vmatmul.mubr.bf16.gmra.mrb[0].mxu0 %v1948
        %v9971 = vpop.f32.mrb[0].mxu0
        %v9972 = vadd.f32 %v9931, %v9971
        %v9973 = vpop.f32.mrb[0].mxu0
        %v9974 = vadd.f32 %v9933, %v9973
        %v9975 = vpop.f32.mrb[0].mxu0
        %v9976 = vpop.f32.mrb[0].mxu0
        %9977 = vdwg.mxu0
        %9978 = vmatprep.subr.bf16.mxu0 %v7093
        %9979 = vmatpush1.bf16.msra.mxu0 %v7092
        %9980 = vmatprep.subr.bf16.mxu0 %v7109
        %9981 = vmatpush1.bf16.msra.mxu0 %v7108
        %9982 = vmatprep.subr.bf16.mxu0 %v7125
        %9983 = vmatpush1.bf16.msra.mxu0 %v7124
        %9984 = vmatprep.subr.bf16.mxu0 %v7141
        %9985 = vmatpush1.bf16.msra.mxu0 %v7140
        %9986 = vmatprep.subr.bf16.mxu0 %v7157
        %9987 = vmatpush1.bf16.msra.mxu0 %v7156
        %9988 = vmatprep.subr.bf16.mxu0 %v7173
        %9989 = vmatpush1.bf16.msra.mxu0 %v7172
        %9990 = vmatprep.subr.bf16.mxu0 %v7189
        %9991 = vmatpush1.bf16.msra.mxu0 %v7188
        %9992 = vmatprep.subr.bf16.mxu0 %v7205
        %9993 = vmatpush1.bf16.msra.mxu0 %v7204
        %9994 = vmatprep.subr.bf16.mxu0 %v7221
        %9995 = vmatpush1.bf16.msra.mxu0 %v7220
        %9996 = vmatprep.subr.bf16.mxu0 %v7237
        %9997 = vmatpush1.bf16.msra.mxu0 %v7236
        %9998 = vmatprep.subr.bf16.mxu0 %v7253
        %9999 = vmatpush1.bf16.msra.mxu0 %v7252
        %10000 = vmatprep.subr.bf16.mxu0 %v7269
        %10001 = vmatpush1.bf16.msra.mxu0 %v7268
        %10002 = vmatprep.subr.bf16.mxu0 %v7285
        %10003 = vmatpush1.bf16.msra.mxu0 %v7284
        %10004 = vmatprep.subr.bf16.mxu0 %v7301
        %10005 = vmatpush1.bf16.msra.mxu0 %v7300
        %10006 = vmatprep.subr.bf16.mxu0 %v7317
        %10007 = vmatpush1.bf16.msra.mxu0 %v7316
        %10008 = vmatprep.subr.bf16.mxu0 %v7333
        %10009 = vmatpush1.bf16.msra.mxu0 %v7332
        %10010 = vmatprep.mubr.bf16.mxu0 %v1951
        %10011 = vmatmul.mubr.bf16.gmra.mrb[0].mxu0 %v1950
        %v10012 = vpop.f32.mrb[0].mxu0
        %v10013 = vadd.f32 %v9972, %v10012
        %v10014 = vpop.f32.mrb[0].mxu0
        %v10015 = vadd.f32 %v9974, %v10014
        %v10016 = vpop.f32.mrb[0].mxu0
        %v10017 = vpop.f32.mrb[0].mxu0
        %10018 = vdwg.mxu0
        %10019 = vmatprep.subr.bf16.mxu0 %v7349
        %10020 = vmatpush1.bf16.msra.mxu0 %v7348
        %10021 = vmatprep.subr.bf16.mxu0 %v7365
        %10022 = vmatpush1.bf16.msra.mxu0 %v7364
        %10023 = vmatprep.subr.bf16.mxu0 %v7381
        %10024 = vmatpush1.bf16.msra.mxu0 %v7380
        %10025 = vmatprep.subr.bf16.mxu0 %v7397
        %10026 = vmatpush1.bf16.msra.mxu0 %v7396
        %10027 = vmatprep.subr.bf16.mxu0 %v7413
        %10028 = vmatpush1.bf16.msra.mxu0 %v7412
        %10029 = vmatprep.subr.bf16.mxu0 %v7429
        %10030 = vmatpush1.bf16.msra.mxu0 %v7428
        %10031 = vmatprep.subr.bf16.mxu0 %v7445
        %10032 = vmatpush1.bf16.msra.mxu0 %v7444
        %10033 = vmatprep.subr.bf16.mxu0 %v7461
        %10034 = vmatpush1.bf16.msra.mxu0 %v7460
        %10035 = vmatprep.subr.bf16.mxu0 %v7477
        %10036 = vmatpush1.bf16.msra.mxu0 %v7476
        %10037 = vmatprep.subr.bf16.mxu0 %v7493
        %10038 = vmatpush1.bf16.msra.mxu0 %v7492
        %10039 = vmatprep.subr.bf16.mxu0 %v7509
        %10040 = vmatpush1.bf16.msra.mxu0 %v7508
        %10041 = vmatprep.subr.bf16.mxu0 %v7525
        %10042 = vmatpush1.bf16.msra.mxu0 %v7524
        %10043 = vmatprep.subr.bf16.mxu0 %v7541
        %10044 = vmatpush1.bf16.msra.mxu0 %v7540
        %10045 = vmatprep.subr.bf16.mxu0 %v7557
        %10046 = vmatpush1.bf16.msra.mxu0 %v7556
        %10047 = vmatprep.subr.bf16.mxu0 %v7573
        %10048 = vmatpush1.bf16.msra.mxu0 %v7572
        %10049 = vmatprep.subr.bf16.mxu0 %v7589
        %10050 = vmatpush1.bf16.msra.mxu0 %v7588
        %10051 = vmatprep.mubr.bf16.mxu0 %v1953
        %10052 = vmatmul.mubr.bf16.gmra.mrb[0].mxu0 %v1952
        %v10053 = vpop.f32.mrb[0].mxu0
        %v10054 = vadd.f32 %v10013, %v10053
        %v10055 = vpop.f32.mrb[0].mxu0
        %v10056 = vadd.f32 %v10015, %v10055
        %v10057 = vpop.f32.mrb[0].mxu0
        %v10058 = vpop.f32.mrb[0].mxu0
        %10059 = vdwg.mxu0
        %10060 = vmatprep.subr.bf16.mxu0 %v7605
        %10061 = vmatpush1.bf16.msra.mxu0 %v7604
        %10062 = vmatprep.subr.bf16.mxu0 %v7621
        %10063 = vmatpush1.bf16.msra.mxu0 %v7620
        %10064 = vmatprep.subr.bf16.mxu0 %v7637
        %10065 = vmatpush1.bf16.msra.mxu0 %v7636
        %10066 = vmatprep.subr.bf16.mxu0 %v7653
        %10067 = vmatpush1.bf16.msra.mxu0 %v7652
        %10068 = vmatprep.subr.bf16.mxu0 %v7669
        %10069 = vmatpush1.bf16.msra.mxu0 %v7668
        %10070 = vmatprep.subr.bf16.mxu0 %v7685
        %10071 = vmatpush1.bf16.msra.mxu0 %v7684
        %10072 = vmatprep.subr.bf16.mxu0 %v7701
        %10073 = vmatpush1.bf16.msra.mxu0 %v7700
        %10074 = vmatprep.subr.bf16.mxu0 %v7717
        %10075 = vmatpush1.bf16.msra.mxu0 %v7716
        %10076 = vmatprep.subr.bf16.mxu0 %v7733
        %10077 = vmatpush1.bf16.msra.mxu0 %v7732
        %10078 = vmatprep.subr.bf16.mxu0 %v7749
        %10079 = vmatpush1.bf16.msra.mxu0 %v7748
        %10080 = vmatprep.subr.bf16.mxu0 %v7765
        %10081 = vmatpush1.bf16.msra.mxu0 %v7764
        %10082 = vmatprep.subr.bf16.mxu0 %v7781
        %10083 = vmatpush1.bf16.msra.mxu0 %v7780
        %10084 = vmatprep.subr.bf16.mxu0 %v7797
        %10085 = vmatpush1.bf16.msra.mxu0 %v7796
        %10086 = vmatprep.subr.bf16.mxu0 %v7813
        %10087 = vmatpush1.bf16.msra.mxu0 %v7812
        %10088 = vmatprep.subr.bf16.mxu0 %v7829
        %10089 = vmatpush1.bf16.msra.mxu0 %v7828
        %10090 = vmatprep.subr.bf16.mxu0 %v7845
        %10091 = vmatpush1.bf16.msra.mxu0 %v7844
        %10092 = vmatprep.mubr.bf16.mxu0 %v1955
        %10093 = vmatmul.mubr.bf16.gmra.mrb[0].mxu0 %v1954
        %v10094 = vpop.f32.mrb[0].mxu0
        %v10095 = vadd.f32 %v10054, %v10094
        %v10096 = vpop.f32.mrb[0].mxu0
        %v10097 = vadd.f32 %v10056, %v10096
        %v10098 = vpop.f32.mrb[0].mxu0
        %v10099 = vpop.f32.mrb[0].mxu0
        %10100 = vdwg.mxu0
        %10101 = vmatprep.subr.bf16.mxu0 %v7861
        %10102 = vmatpush1.bf16.msra.mxu0 %v7860
        %10103 = vmatprep.subr.bf16.mxu0 %v7877
        %10104 = vmatpush1.bf16.msra.mxu0 %v7876
        %10105 = vmatprep.subr.bf16.mxu0 %v7893
        %10106 = vmatpush1.bf16.msra.mxu0 %v7892
        %10107 = vmatprep.subr.bf16.mxu0 %v7909
        %10108 = vmatpush1.bf16.msra.mxu0 %v7908
        %10109 = vmatprep.subr.bf16.mxu0 %v7925
        %10110 = vmatpush1.bf16.msra.mxu0 %v7924
        %10111 = vmatprep.subr.bf16.mxu0 %v7941
        %10112 = vmatpush1.bf16.msra.mxu0 %v7940
        %10113 = vmatprep.subr.bf16.mxu0 %v7957
        %10114 = vmatpush1.bf16.msra.mxu0 %v7956
        %10115 = vmatprep.subr.bf16.mxu0 %v7973
        %10116 = vmatpush1.bf16.msra.mxu0 %v7972
        %10117 = vmatprep.subr.bf16.mxu0 %v7989
        %10118 = vmatpush1.bf16.msra.mxu0 %v7988
        %10119 = vmatprep.subr.bf16.mxu0 %v8005
        %10120 = vmatpush1.bf16.msra.mxu0 %v8004
        %10121 = vmatprep.subr.bf16.mxu0 %v8021
        %10122 = vmatpush1.bf16.msra.mxu0 %v8020
        %10123 = vmatprep.subr.bf16.mxu0 %v8037
        %10124 = vmatpush1.bf16.msra.mxu0 %v8036
        %10125 = vmatprep.subr.bf16.mxu0 %v8053
        %10126 = vmatpush1.bf16.msra.mxu0 %v8052
        %10127 = vmatprep.subr.bf16.mxu0 %v8069
        %10128 = vmatpush1.bf16.msra.mxu0 %v8068
        %10129 = vmatprep.subr.bf16.mxu0 %v8085
        %10130 = vmatpush1.bf16.msra.mxu0 %v8084
        %10131 = vmatprep.subr.bf16.mxu0 %v8101
        %10132 = vmatpush1.bf16.msra.mxu0 %v8100
        %10133 = vmatprep.mubr.bf16.mxu0 %v1957
        %10134 = vmatmul.mubr.bf16.gmra.mrb[0].mxu0 %v1956
        %v10135 = vpop.f32.mrb[0].mxu0
        %v10136 = vadd.f32 %v10095, %v10135
        %v10137 = vpop.f32.mrb[0].mxu0
        %v10138 = vadd.f32 %v10097, %v10137
        %v10139 = vpop.f32.mrb[0].mxu0
        %v10140 = vpop.f32.mrb[0].mxu0
        %10141 = vdwg.mxu0
        %10142 = vmatprep.subr.bf16.mxu0 %v6583
        %10143 = vmatpush1.bf16.msra.mxu0 %v6582
        %10144 = vmatprep.subr.bf16.mxu0 %v6599
        %10145 = vmatpush1.bf16.msra.mxu0 %v6598
        %10146 = vmatprep.subr.bf16.mxu0 %v6615
        %10147 = vmatpush1.bf16.msra.mxu0 %v6614
        %10148 = vmatprep.subr.bf16.mxu0 %v6631
        %10149 = vmatpush1.bf16.msra.mxu0 %v6630
        %10150 = vmatprep.subr.bf16.mxu0 %v6647
        %10151 = vmatpush1.bf16.msra.mxu0 %v6646
        %10152 = vmatprep.subr.bf16.mxu0 %v6663
        %10153 = vmatpush1.bf16.msra.mxu0 %v6662
        %10154 = vmatprep.subr.bf16.mxu0 %v6679
        %10155 = vmatpush1.bf16.msra.mxu0 %v6678
        %10156 = vmatprep.subr.bf16.mxu0 %v6695
        %10157 = vmatpush1.bf16.msra.mxu0 %v6694
        %10158 = vmatprep.subr.bf16.mxu0 %v6711
        %10159 = vmatpush1.bf16.msra.mxu0 %v6710
        %10160 = vmatprep.subr.bf16.mxu0 %v6727
        %10161 = vmatpush1.bf16.msra.mxu0 %v6726
        %10162 = vmatprep.subr.bf16.mxu0 %v6743
        %10163 = vmatpush1.bf16.msra.mxu0 %v6742
        %10164 = vmatprep.subr.bf16.mxu0 %v6759
        %10165 = vmatpush1.bf16.msra.mxu0 %v6758
        %10166 = vmatprep.subr.bf16.mxu0 %v6775
        %10167 = vmatpush1.bf16.msra.mxu0 %v6774
        %10168 = vmatprep.subr.bf16.mxu0 %v6791
        %10169 = vmatpush1.bf16.msra.mxu0 %v6790
        %10170 = vmatprep.subr.bf16.mxu0 %v6807
        %10171 = vmatpush1.bf16.msra.mxu0 %v6806
        %10172 = vmatprep.subr.bf16.mxu0 %v6823
        %10173 = vmatpush1.bf16.msra.mxu0 %v6822
        %10174 = vmatprep.mubr.bf16.mxu0 %v1947
        %10175 = vmatmul.mubr.bf16.gmra.mrb[0].mxu0 %v1946
        %v10176 = vpop.f32.mrb[0].mxu0
        %v10177 = vadd.f32 0.0, %v10176
        %v10178 = vpop.f32.mrb[0].mxu0
        %v10179 = vadd.f32 0.0, %v10178
        %v10180 = vpop.f32.mrb[0].mxu0
        %v10181 = vpop.f32.mrb[0].mxu0
        %10182 = vdwg.mxu0
        %10183 = vmatprep.subr.bf16.mxu0 %v6839
        %10184 = vmatpush1.bf16.msra.mxu0 %v6838
        %10185 = vmatprep.subr.bf16.mxu0 %v6855
        %10186 = vmatpush1.bf16.msra.mxu0 %v6854
        %10187 = vmatprep.subr.bf16.mxu0 %v6871
        %10188 = vmatpush1.bf16.msra.mxu0 %v6870
        %10189 = vmatprep.subr.bf16.mxu0 %v6887
        %10190 = vmatpush1.bf16.msra.mxu0 %v6886
        %10191 = vmatprep.subr.bf16.mxu0 %v6903
        %10192 = vmatpush1.bf16.msra.mxu0 %v6902
        %10193 = vmatprep.subr.bf16.mxu0 %v6919
        %10194 = vmatpush1.bf16.msra.mxu0 %v6918
        %10195 = vmatprep.subr.bf16.mxu0 %v6935
        %10196 = vmatpush1.bf16.msra.mxu0 %v6934
        %10197 = vmatprep.subr.bf16.mxu0 %v6951
        %10198 = vmatpush1.bf16.msra.mxu0 %v6950
        %10199 = vmatprep.subr.bf16.mxu0 %v6967
        %10200 = vmatpush1.bf16.msra.mxu0 %v6966
        %10201 = vmatprep.subr.bf16.mxu0 %v6983
        %10202 = vmatpush1.bf16.msra.mxu0 %v6982
        %10203 = vmatprep.subr.bf16.mxu0 %v6999
        %10204 = vmatpush1.bf16.msra.mxu0 %v6998
        %10205 = vmatprep.subr.bf16.mxu0 %v7015
        %10206 = vmatpush1.bf16.msra.mxu0 %v7014
        %10207 = vmatprep.subr.bf16.mxu0 %v7031
        %10208 = vmatpush1.bf16.msra.mxu0 %v7030
        %10209 = vmatprep.subr.bf16.mxu0 %v7047
        %10210 = vmatpush1.bf16.msra.mxu0 %v7046
        %10211 = vmatprep.subr.bf16.mxu0 %v7063
        %10212 = vmatpush1.bf16.msra.mxu0 %v7062
        %10213 = vmatprep.subr.bf16.mxu0 %v7079
        %10214 = vmatpush1.bf16.msra.mxu0 %v7078
        %10215 = vmatprep.mubr.bf16.mxu0 %v1949
        %10216 = vmatmul.mubr.bf16.gmra.mrb[0].mxu0 %v1948
        %v10217 = vpop.f32.mrb[0].mxu0
        %v10218 = vadd.f32 %v10177, %v10217
        %v10219 = vpop.f32.mrb[0].mxu0
        %v10220 = vadd.f32 %v10179, %v10219
        %v10221 = vpop.f32.mrb[0].mxu0
        %v10222 = vpop.f32.mrb[0].mxu0
        %10223 = vdwg.mxu0
        %10224 = vmatprep.subr.bf16.mxu0 %v7095
        %10225 = vmatpush1.bf16.msra.mxu0 %v7094
        %10226 = vmatprep.subr.bf16.mxu0 %v7111
        %10227 = vmatpush1.bf16.msra.mxu0 %v7110
        %10228 = vmatprep.subr.bf16.mxu0 %v7127
        %10229 = vmatpush1.bf16.msra.mxu0 %v7126
        %10230 = vmatprep.subr.bf16.mxu0 %v7143
        %10231 = vmatpush1.bf16.msra.mxu0 %v7142
        %10232 = vmatprep.subr.bf16.mxu0 %v7159
        %10233 = vmatpush1.bf16.msra.mxu0 %v7158
        %10234 = vmatprep.subr.bf16.mxu0 %v7175
        %10235 = vmatpush1.bf16.msra.mxu0 %v7174
        %10236 = vmatprep.subr.bf16.mxu0 %v7191
        %10237 = vmatpush1.bf16.msra.mxu0 %v7190
        %10238 = vmatprep.subr.bf16.mxu0 %v7207
        %10239 = vmatpush1.bf16.msra.mxu0 %v7206
        %10240 = vmatprep.subr.bf16.mxu0 %v7223
        %10241 = vmatpush1.bf16.msra.mxu0 %v7222
        %10242 = vmatprep.subr.bf16.mxu0 %v7239
        %10243 = vmatpush1.bf16.msra.mxu0 %v7238
        %10244 = vmatprep.subr.bf16.mxu0 %v7255
        %10245 = vmatpush1.bf16.msra.mxu0 %v7254
        %10246 = vmatprep.subr.bf16.mxu0 %v7271
        %10247 = vmatpush1.bf16.msra.mxu0 %v7270
        %10248 = vmatprep.subr.bf16.mxu0 %v7287
        %10249 = vmatpush1.bf16.msra.mxu0 %v7286
        %10250 = vmatprep.subr.bf16.mxu0 %v7303
        %10251 = vmatpush1.bf16.msra.mxu0 %v7302
        %10252 = vmatprep.subr.bf16.mxu0 %v7319
        %10253 = vmatpush1.bf16.msra.mxu0 %v7318
        %10254 = vmatprep.subr.bf16.mxu0 %v7335
        %10255 = vmatpush1.bf16.msra.mxu0 %v7334
        %10256 = vmatprep.mubr.bf16.mxu0 %v1951
        %10257 = vmatmul.mubr.bf16.gmra.mrb[0].mxu0 %v1950
        %v10258 = vpop.f32.mrb[0].mxu0
        %v10259 = vadd.f32 %v10218, %v10258
        %v10260 = vpop.f32.mrb[0].mxu0
        %v10261 = vadd.f32 %v10220, %v10260
        %v10262 = vpop.f32.mrb[0].mxu0
        %v10263 = vpop.f32.mrb[0].mxu0
        %10264 = vdwg.mxu0
        %10265 = vmatprep.subr.bf16.mxu0 %v7351
        %10266 = vmatpush1.bf16.msra.mxu0 %v7350
        %10267 = vmatprep.subr.bf16.mxu0 %v7367
        %10268 = vmatpush1.bf16.msra.mxu0 %v7366
        %10269 = vmatprep.subr.bf16.mxu0 %v7383
        %10270 = vmatpush1.bf16.msra.mxu0 %v7382
        %10271 = vmatprep.subr.bf16.mxu0 %v7399
        %10272 = vmatpush1.bf16.msra.mxu0 %v7398
        %10273 = vmatprep.subr.bf16.mxu0 %v7415
        %10274 = vmatpush1.bf16.msra.mxu0 %v7414
        %10275 = vmatprep.subr.bf16.mxu0 %v7431
        %10276 = vmatpush1.bf16.msra.mxu0 %v7430
        %10277 = vmatprep.subr.bf16.mxu0 %v7447
        %10278 = vmatpush1.bf16.msra.mxu0 %v7446
        %10279 = vmatprep.subr.bf16.mxu0 %v7463
        %10280 = vmatpush1.bf16.msra.mxu0 %v7462
        %10281 = vmatprep.subr.bf16.mxu0 %v7479
        %10282 = vmatpush1.bf16.msra.mxu0 %v7478
        %10283 = vmatprep.subr.bf16.mxu0 %v7495
        %10284 = vmatpush1.bf16.msra.mxu0 %v7494
        %10285 = vmatprep.subr.bf16.mxu0 %v7511
        %10286 = vmatpush1.bf16.msra.mxu0 %v7510
        %10287 = vmatprep.subr.bf16.mxu0 %v7527
        %10288 = vmatpush1.bf16.msra.mxu0 %v7526
        %10289 = vmatprep.subr.bf16.mxu0 %v7543
        %10290 = vmatpush1.bf16.msra.mxu0 %v7542
        %10291 = vmatprep.subr.bf16.mxu0 %v7559
        %10292 = vmatpush1.bf16.msra.mxu0 %v7558
        %10293 = vmatprep.subr.bf16.mxu0 %v7575
        %10294 = vmatpush1.bf16.msra.mxu0 %v7574
        %10295 = vmatprep.subr.bf16.mxu0 %v7591
        %10296 = vmatpush1.bf16.msra.mxu0 %v7590
        %10297 = vmatprep.mubr.bf16.mxu0 %v1953
        %10298 = vmatmul.mubr.bf16.gmra.mrb[0].mxu0 %v1952
        %v10299 = vpop.f32.mrb[0].mxu0
        %v10300 = vadd.f32 %v10259, %v10299
        %v10301 = vpop.f32.mrb[0].mxu0
        %v10302 = vadd.f32 %v10261, %v10301
        %v10303 = vpop.f32.mrb[0].mxu0
        %v10304 = vpop.f32.mrb[0].mxu0
        %10305 = vdwg.mxu0
        %10306 = vmatprep.subr.bf16.mxu0 %v7607
        %10307 = vmatpush1.bf16.msra.mxu0 %v7606
        %10308 = vmatprep.subr.bf16.mxu0 %v7623
        %10309 = vmatpush1.bf16.msra.mxu0 %v7622
        %10310 = vmatprep.subr.bf16.mxu0 %v7639
        %10311 = vmatpush1.bf16.msra.mxu0 %v7638
        %10312 = vmatprep.subr.bf16.mxu0 %v7655
        %10313 = vmatpush1.bf16.msra.mxu0 %v7654
        %10314 = vmatprep.subr.bf16.mxu0 %v7671
        %10315 = vmatpush1.bf16.msra.mxu0 %v7670
        %10316 = vmatprep.subr.bf16.mxu0 %v7687
        %10317 = vmatpush1.bf16.msra.mxu0 %v7686
        %10318 = vmatprep.subr.bf16.mxu0 %v7703
        %10319 = vmatpush1.bf16.msra.mxu0 %v7702
        %10320 = vmatprep.subr.bf16.mxu0 %v7719
        %10321 = vmatpush1.bf16.msra.mxu0 %v7718
        %10322 = vmatprep.subr.bf16.mxu0 %v7735
        %10323 = vmatpush1.bf16.msra.mxu0 %v7734
        %10324 = vmatprep.subr.bf16.mxu0 %v7751
        %10325 = vmatpush1.bf16.msra.mxu0 %v7750
        %10326 = vmatprep.subr.bf16.mxu0 %v7767
        %10327 = vmatpush1.bf16.msra.mxu0 %v7766
        %10328 = vmatprep.subr.bf16.mxu0 %v7783
        %10329 = vmatpush1.bf16.msra.mxu0 %v7782
        %10330 = vmatprep.subr.bf16.mxu0 %v7799
        %10331 = vmatpush1.bf16.msra.mxu0 %v7798
        %10332 = vmatprep.subr.bf16.mxu0 %v7815
        %10333 = vmatpush1.bf16.msra.mxu0 %v7814
        %10334 = vmatprep.subr.bf16.mxu0 %v7831
        %10335 = vmatpush1.bf16.msra.mxu0 %v7830
        %10336 = vmatprep.subr.bf16.mxu0 %v7847
        %10337 = vmatpush1.bf16.msra.mxu0 %v7846
        %10338 = vmatprep.mubr.bf16.mxu0 %v1955
        %10339 = vmatmul.mubr.bf16.gmra.mrb[0].mxu0 %v1954
        %v10340 = vpop.f32.mrb[0].mxu0
        %v10341 = vadd.f32 %v10300, %v10340
        %v10342 = vpop.f32.mrb[0].mxu0
        %v10343 = vadd.f32 %v10302, %v10342
        %v10344 = vpop.f32.mrb[0].mxu0
        %v10345 = vpop.f32.mrb[0].mxu0
        %10346 = vdwg.mxu0
        %10347 = vmatprep.subr.bf16.mxu0 %v7863
        %10348 = vmatpush1.bf16.msra.mxu0 %v7862
        %10349 = vmatprep.subr.bf16.mxu0 %v7879
        %10350 = vmatpush1.bf16.msra.mxu0 %v7878
        %10351 = vmatprep.subr.bf16.mxu0 %v7895
        %10352 = vmatpush1.bf16.msra.mxu0 %v7894
        %10353 = vmatprep.subr.bf16.mxu0 %v7911
        %10354 = vmatpush1.bf16.msra.mxu0 %v7910
        %10355 = vmatprep.subr.bf16.mxu0 %v7927
        %10356 = vmatpush1.bf16.msra.mxu0 %v7926
        %10357 = vmatprep.subr.bf16.mxu0 %v7943
        %10358 = vmatpush1.bf16.msra.mxu0 %v7942
        %10359 = vmatprep.subr.bf16.mxu0 %v7959
        %10360 = vmatpush1.bf16.msra.mxu0 %v7958
        %10361 = vmatprep.subr.bf16.mxu0 %v7975
        %10362 = vmatpush1.bf16.msra.mxu0 %v7974
        %10363 = vmatprep.subr.bf16.mxu0 %v7991
        %10364 = vmatpush1.bf16.msra.mxu0 %v7990
        %10365 = vmatprep.subr.bf16.mxu0 %v8007
        %10366 = vmatpush1.bf16.msra.mxu0 %v8006
        %10367 = vmatprep.subr.bf16.mxu0 %v8023
        %10368 = vmatpush1.bf16.msra.mxu0 %v8022
        %10369 = vmatprep.subr.bf16.mxu0 %v8039
        %10370 = vmatpush1.bf16.msra.mxu0 %v8038
        %10371 = vmatprep.subr.bf16.mxu0 %v8055
        %10372 = vmatpush1.bf16.msra.mxu0 %v8054
        %10373 = vmatprep.subr.bf16.mxu0 %v8071
        %10374 = vmatpush1.bf16.msra.mxu0 %v8070
        %10375 = vmatprep.subr.bf16.mxu0 %v8087
        %10376 = vmatpush1.bf16.msra.mxu0 %v8086
        %10377 = vmatprep.subr.bf16.mxu0 %v8103
        %10378 = vmatpush1.bf16.msra.mxu0 %v8102
        %10379 = vmatprep.mubr.bf16.mxu0 %v1957
        %10380 = vmatmul.mubr.bf16.gmra.mrb[0].mxu0 %v1956
        %v10381 = vpop.f32.mrb[0].mxu0
        %v10382 = vadd.f32 %v10341, %v10381
        %v10383 = vpop.f32.mrb[0].mxu0
        %v10384 = vadd.f32 %v10343, %v10383
        %v10385 = vpop.f32.mrb[0].mxu0
        %v10386 = vpop.f32.mrb[0].mxu0
        %10387 = vdwg.mxu0
        %10388 = vmatprep.subr.bf16.mxu0 %v6585
        %10389 = vmatpush1.bf16.msra.mxu0 %v6584
        %10390 = vmatprep.subr.bf16.mxu0 %v6601
        %10391 = vmatpush1.bf16.msra.mxu0 %v6600
        %10392 = vmatprep.subr.bf16.mxu0 %v6617
        %10393 = vmatpush1.bf16.msra.mxu0 %v6616
        %10394 = vmatprep.subr.bf16.mxu0 %v6633
        %10395 = vmatpush1.bf16.msra.mxu0 %v6632
        %10396 = vmatprep.subr.bf16.mxu0 %v6649
        %10397 = vmatpush1.bf16.msra.mxu0 %v6648
        %10398 = vmatprep.subr.bf16.mxu0 %v6665
        %10399 = vmatpush1.bf16.msra.mxu0 %v6664
        %10400 = vmatprep.subr.bf16.mxu0 %v6681
        %10401 = vmatpush1.bf16.msra.mxu0 %v6680
        %10402 = vmatprep.subr.bf16.mxu0 %v6697
        %10403 = vmatpush1.bf16.msra.mxu0 %v6696
        %10404 = vmatprep.subr.bf16.mxu0 %v6713
        %10405 = vmatpush1.bf16.msra.mxu0 %v6712
        %10406 = vmatprep.subr.bf16.mxu0 %v6729
        %10407 = vmatpush1.bf16.msra.mxu0 %v6728
        %10408 = vmatprep.subr.bf16.mxu0 %v6745
        %10409 = vmatpush1.bf16.msra.mxu0 %v6744
        %10410 = vmatprep.subr.bf16.mxu0 %v6761
        %10411 = vmatpush1.bf16.msra.mxu0 %v6760
        %10412 = vmatprep.subr.bf16.mxu0 %v6777
        %10413 = vmatpush1.bf16.msra.mxu0 %v6776
        %10414 = vmatprep.subr.bf16.mxu0 %v6793
        %10415 = vmatpush1.bf16.msra.mxu0 %v6792
        %10416 = vmatprep.subr.bf16.mxu0 %v6809
        %10417 = vmatpush1.bf16.msra.mxu0 %v6808
        %10418 = vmatprep.subr.bf16.mxu0 %v6825
        %10419 = vmatpush1.bf16.msra.mxu0 %v6824
        %10420 = vmatprep.mubr.bf16.mxu0 %v1947
        %10421 = vmatmul.mubr.bf16.gmra.mrb[0].mxu0 %v1946
        %v10422 = vpop.f32.mrb[0].mxu0
        %v10423 = vadd.f32 0.0, %v10422
        %v10424 = vpop.f32.mrb[0].mxu0
        %v10425 = vadd.f32 0.0, %v10424
        %v10426 = vpop.f32.mrb[0].mxu0
        %v10427 = vpop.f32.mrb[0].mxu0
        %10428 = vdwg.mxu0
        %10429 = vmatprep.subr.bf16.mxu0 %v6841
        %10430 = vmatpush1.bf16.msra.mxu0 %v6840
        %10431 = vmatprep.subr.bf16.mxu0 %v6857
        %10432 = vmatpush1.bf16.msra.mxu0 %v6856
        %10433 = vmatprep.subr.bf16.mxu0 %v6873
        %10434 = vmatpush1.bf16.msra.mxu0 %v6872
        %10435 = vmatprep.subr.bf16.mxu0 %v6889
        %10436 = vmatpush1.bf16.msra.mxu0 %v6888
        %10437 = vmatprep.subr.bf16.mxu0 %v6905
        %10438 = vmatpush1.bf16.msra.mxu0 %v6904
        %10439 = vmatprep.subr.bf16.mxu0 %v6921
        %10440 = vmatpush1.bf16.msra.mxu0 %v6920
        %10441 = vmatprep.subr.bf16.mxu0 %v6937
        %10442 = vmatpush1.bf16.msra.mxu0 %v6936
        %10443 = vmatprep.subr.bf16.mxu0 %v6953
        %10444 = vmatpush1.bf16.msra.mxu0 %v6952
        %10445 = vmatprep.subr.bf16.mxu0 %v6969
        %10446 = vmatpush1.bf16.msra.mxu0 %v6968
        %10447 = vmatprep.subr.bf16.mxu0 %v6985
        %10448 = vmatpush1.bf16.msra.mxu0 %v6984
        %10449 = vmatprep.subr.bf16.mxu0 %v7001
        %10450 = vmatpush1.bf16.msra.mxu0 %v7000
        %10451 = vmatprep.subr.bf16.mxu0 %v7017
        %10452 = vmatpush1.bf16.msra.mxu0 %v7016
        %10453 = vmatprep.subr.bf16.mxu0 %v7033
        %10454 = vmatpush1.bf16.msra.mxu0 %v7032
        %10455 = vmatprep.subr.bf16.mxu0 %v7049
        %10456 = vmatpush1.bf16.msra.mxu0 %v7048
        %10457 = vmatprep.subr.bf16.mxu0 %v7065
        %10458 = vmatpush1.bf16.msra.mxu0 %v7064
        %10459 = vmatprep.subr.bf16.mxu0 %v7081
        %10460 = vmatpush1.bf16.msra.mxu0 %v7080
        %10461 = vmatprep.mubr.bf16.mxu0 %v1949
        %10462 = vmatmul.mubr.bf16.gmra.mrb[0].mxu0 %v1948
        %v10463 = vpop.f32.mrb[0].mxu0
        %v10464 = vadd.f32 %v10423, %v10463
        %v10465 = vpop.f32.mrb[0].mxu0
        %v10466 = vadd.f32 %v10425, %v10465
        %v10467 = vpop.f32.mrb[0].mxu0
        %v10468 = vpop.f32.mrb[0].mxu0
        %10469 = vdwg.mxu0
        %10470 = vmatprep.subr.bf16.mxu0 %v7097
        %10471 = vmatpush1.bf16.msra.mxu0 %v7096
        %10472 = vmatprep.subr.bf16.mxu0 %v7113
        %10473 = vmatpush1.bf16.msra.mxu0 %v7112
        %10474 = vmatprep.subr.bf16.mxu0 %v7129
        %10475 = vmatpush1.bf16.msra.mxu0 %v7128
        %10476 = vmatprep.subr.bf16.mxu0 %v7145
        %10477 = vmatpush1.bf16.msra.mxu0 %v7144
        %10478 = vmatprep.subr.bf16.mxu0 %v7161
        %10479 = vmatpush1.bf16.msra.mxu0 %v7160
        %10480 = vmatprep.subr.bf16.mxu0 %v7177
        %10481 = vmatpush1.bf16.msra.mxu0 %v7176
        %10482 = vmatprep.subr.bf16.mxu0 %v7193
        %10483 = vmatpush1.bf16.msra.mxu0 %v7192
        %10484 = vmatprep.subr.bf16.mxu0 %v7209
        %10485 = vmatpush1.bf16.msra.mxu0 %v7208
        %10486 = vmatprep.subr.bf16.mxu0 %v7225
        %10487 = vmatpush1.bf16.msra.mxu0 %v7224
        %10488 = vmatprep.subr.bf16.mxu0 %v7241
        %10489 = vmatpush1.bf16.msra.mxu0 %v7240
        %10490 = vmatprep.subr.bf16.mxu0 %v7257
        %10491 = vmatpush1.bf16.msra.mxu0 %v7256
        %10492 = vmatprep.subr.bf16.mxu0 %v7273
        %10493 = vmatpush1.bf16.msra.mxu0 %v7272
        %10494 = vmatprep.subr.bf16.mxu0 %v7289
        %10495 = vmatpush1.bf16.msra.mxu0 %v7288
        %10496 = vmatprep.subr.bf16.mxu0 %v7305
        %10497 = vmatpush1.bf16.msra.mxu0 %v7304
        %10498 = vmatprep.subr.bf16.mxu0 %v7321
        %10499 = vmatpush1.bf16.msra.mxu0 %v7320
        %10500 = vmatprep.subr.bf16.mxu0 %v7337
        %10501 = vmatpush1.bf16.msra.mxu0 %v7336
        %10502 = vmatprep.mubr.bf16.mxu0 %v1951
        %10503 = vmatmul.mubr.bf16.gmra.mrb[0].mxu0 %v1950
        %v10504 = vpop.f32.mrb[0].mxu0
        %v10505 = vadd.f32 %v10464, %v10504
        %v10506 = vpop.f32.mrb[0].mxu0
        %v10507 = vadd.f32 %v10466, %v10506
        %v10508 = vpop.f32.mrb[0].mxu0
        %v10509 = vpop.f32.mrb[0].mxu0
        %10510 = vdwg.mxu0
        %10511 = vmatprep.subr.bf16.mxu0 %v7353
        %10512 = vmatpush1.bf16.msra.mxu0 %v7352
        %10513 = vmatprep.subr.bf16.mxu0 %v7369
        %10514 = vmatpush1.bf16.msra.mxu0 %v7368
        %10515 = vmatprep.subr.bf16.mxu0 %v7385
        %10516 = vmatpush1.bf16.msra.mxu0 %v7384
        %10517 = vmatprep.subr.bf16.mxu0 %v7401
        %10518 = vmatpush1.bf16.msra.mxu0 %v7400
        %10519 = vmatprep.subr.bf16.mxu0 %v7417
        %10520 = vmatpush1.bf16.msra.mxu0 %v7416
        %10521 = vmatprep.subr.bf16.mxu0 %v7433
        %10522 = vmatpush1.bf16.msra.mxu0 %v7432
        %10523 = vmatprep.subr.bf16.mxu0 %v7449
        %10524 = vmatpush1.bf16.msra.mxu0 %v7448
        %10525 = vmatprep.subr.bf16.mxu0 %v7465
        %10526 = vmatpush1.bf16.msra.mxu0 %v7464
        %10527 = vmatprep.subr.bf16.mxu0 %v7481
        %10528 = vmatpush1.bf16.msra.mxu0 %v7480
        %10529 = vmatprep.subr.bf16.mxu0 %v7497
        %10530 = vmatpush1.bf16.msra.mxu0 %v7496
        %10531 = vmatprep.subr.bf16.mxu0 %v7513
        %10532 = vmatpush1.bf16.msra.mxu0 %v7512
        %10533 = vmatprep.subr.bf16.mxu0 %v7529
        %10534 = vmatpush1.bf16.msra.mxu0 %v7528
        %10535 = vmatprep.subr.bf16.mxu0 %v7545
        %10536 = vmatpush1.bf16.msra.mxu0 %v7544
        %10537 = vmatprep.subr.bf16.mxu0 %v7561
        %10538 = vmatpush1.bf16.msra.mxu0 %v7560
        %10539 = vmatprep.subr.bf16.mxu0 %v7577
        %10540 = vmatpush1.bf16.msra.mxu0 %v7576
        %10541 = vmatprep.subr.bf16.mxu0 %v7593
        %10542 = vmatpush1.bf16.msra.mxu0 %v7592
        %10543 = vmatprep.mubr.bf16.mxu0 %v1953
        %10544 = vmatmul.mubr.bf16.gmra.mrb[0].mxu0 %v1952
        %v10545 = vpop.f32.mrb[0].mxu0
        %v10546 = vadd.f32 %v10505, %v10545
        %v10547 = vpop.f32.mrb[0].mxu0
        %v10548 = vadd.f32 %v10507, %v10547
        %v10549 = vpop.f32.mrb[0].mxu0
        %v10550 = vpop.f32.mrb[0].mxu0
        %10551 = vdwg.mxu0
        %10552 = vmatprep.subr.bf16.mxu0 %v7609
        %10553 = vmatpush1.bf16.msra.mxu0 %v7608
        %10554 = vmatprep.subr.bf16.mxu0 %v7625
        %10555 = vmatpush1.bf16.msra.mxu0 %v7624
        %10556 = vmatprep.subr.bf16.mxu0 %v7641
        %10557 = vmatpush1.bf16.msra.mxu0 %v7640
        %10558 = vmatprep.subr.bf16.mxu0 %v7657
        %10559 = vmatpush1.bf16.msra.mxu0 %v7656
        %10560 = vmatprep.subr.bf16.mxu0 %v7673
        %10561 = vmatpush1.bf16.msra.mxu0 %v7672
        %10562 = vmatprep.subr.bf16.mxu0 %v7689
        %10563 = vmatpush1.bf16.msra.mxu0 %v7688
        %10564 = vmatprep.subr.bf16.mxu0 %v7705
        %10565 = vmatpush1.bf16.msra.mxu0 %v7704
        %10566 = vmatprep.subr.bf16.mxu0 %v7721
        %10567 = vmatpush1.bf16.msra.mxu0 %v7720
        %10568 = vmatprep.subr.bf16.mxu0 %v7737
        %10569 = vmatpush1.bf16.msra.mxu0 %v7736
        %10570 = vmatprep.subr.bf16.mxu0 %v7753
        %10571 = vmatpush1.bf16.msra.mxu0 %v7752
        %10572 = vmatprep.subr.bf16.mxu0 %v7769
        %10573 = vmatpush1.bf16.msra.mxu0 %v7768
        %10574 = vmatprep.subr.bf16.mxu0 %v7785
        %10575 = vmatpush1.bf16.msra.mxu0 %v7784
        %10576 = vmatprep.subr.bf16.mxu0 %v7801
        %10577 = vmatpush1.bf16.msra.mxu0 %v7800
        %10578 = vmatprep.subr.bf16.mxu0 %v7817
        %10579 = vmatpush1.bf16.msra.mxu0 %v7816
        %10580 = vmatprep.subr.bf16.mxu0 %v7833
        %10581 = vmatpush1.bf16.msra.mxu0 %v7832
        %10582 = vmatprep.subr.bf16.mxu0 %v7849
        %10583 = vmatpush1.bf16.msra.mxu0 %v7848
        %10584 = vmatprep.mubr.bf16.mxu0 %v1955
        %10585 = vmatmul.mubr.bf16.gmra.mrb[0].mxu0 %v1954
        %v10586 = vpop.f32.mrb[0].mxu0
        %v10587 = vadd.f32 %v10546, %v10586
        %v10588 = vpop.f32.mrb[0].mxu0
        %v10589 = vadd.f32 %v10548, %v10588
        %v10590 = vpop.f32.mrb[0].mxu0
        %v10591 = vpop.f32.mrb[0].mxu0
        %10592 = vdwg.mxu0
        %10593 = vmatprep.subr.bf16.mxu0 %v7865
        %10594 = vmatpush1.bf16.msra.mxu0 %v7864
        %10595 = vmatprep.subr.bf16.mxu0 %v7881
        %10596 = vmatpush1.bf16.msra.mxu0 %v7880
        %10597 = vmatprep.subr.bf16.mxu0 %v7897
        %10598 = vmatpush1.bf16.msra.mxu0 %v7896
        %10599 = vmatprep.subr.bf16.mxu0 %v7913
        %10600 = vmatpush1.bf16.msra.mxu0 %v7912
        %10601 = vmatprep.subr.bf16.mxu0 %v7929
        %10602 = vmatpush1.bf16.msra.mxu0 %v7928
        %10603 = vmatprep.subr.bf16.mxu0 %v7945
        %10604 = vmatpush1.bf16.msra.mxu0 %v7944
        %10605 = vmatprep.subr.bf16.mxu0 %v7961
        %10606 = vmatpush1.bf16.msra.mxu0 %v7960
        %10607 = vmatprep.subr.bf16.mxu0 %v7977
        %10608 = vmatpush1.bf16.msra.mxu0 %v7976
        %10609 = vmatprep.subr.bf16.mxu0 %v7993
        %10610 = vmatpush1.bf16.msra.mxu0 %v7992
        %10611 = vmatprep.subr.bf16.mxu0 %v8009
        %10612 = vmatpush1.bf16.msra.mxu0 %v8008
        %10613 = vmatprep.subr.bf16.mxu0 %v8025
        %10614 = vmatpush1.bf16.msra.mxu0 %v8024
        %10615 = vmatprep.subr.bf16.mxu0 %v8041
        %10616 = vmatpush1.bf16.msra.mxu0 %v8040
        %10617 = vmatprep.subr.bf16.mxu0 %v8057
        %10618 = vmatpush1.bf16.msra.mxu0 %v8056
        %10619 = vmatprep.subr.bf16.mxu0 %v8073
        %10620 = vmatpush1.bf16.msra.mxu0 %v8072
        %10621 = vmatprep.subr.bf16.mxu0 %v8089
        %10622 = vmatpush1.bf16.msra.mxu0 %v8088
        %10623 = vmatprep.subr.bf16.mxu0 %v8105
        %10624 = vmatpush1.bf16.msra.mxu0 %v8104
        %10625 = vmatprep.mubr.bf16.mxu0 %v1957
        %10626 = vmatmul.mubr.bf16.gmra.mrb[0].mxu0 %v1956
        %v10627 = vpop.f32.mrb[0].mxu0
        %v10628 = vadd.f32 %v10587, %v10627
        %v10629 = vpop.f32.mrb[0].mxu0
        %v10630 = vadd.f32 %v10589, %v10629
        %v10631 = vpop.f32.mrb[0].mxu0
        %v10632 = vpop.f32.mrb[0].mxu0
        %10633 = vdwg.mxu0
        %10634 = vmatprep.subr.bf16.mxu0 %v6587
        %10635 = vmatpush1.bf16.msra.mxu0 %v6586
        %10636 = vmatprep.subr.bf16.mxu0 %v6603
        %10637 = vmatpush1.bf16.msra.mxu0 %v6602
        %10638 = vmatprep.subr.bf16.mxu0 %v6619
        %10639 = vmatpush1.bf16.msra.mxu0 %v6618
        %10640 = vmatprep.subr.bf16.mxu0 %v6635
        %10641 = vmatpush1.bf16.msra.mxu0 %v6634
        %10642 = vmatprep.subr.bf16.mxu0 %v6651
        %10643 = vmatpush1.bf16.msra.mxu0 %v6650
        %10644 = vmatprep.subr.bf16.mxu0 %v6667
        %10645 = vmatpush1.bf16.msra.mxu0 %v6666
        %10646 = vmatprep.subr.bf16.mxu0 %v6683
        %10647 = vmatpush1.bf16.msra.mxu0 %v6682
        %10648 = vmatprep.subr.bf16.mxu0 %v6699
        %10649 = vmatpush1.bf16.msra.mxu0 %v6698
        %10650 = vmatprep.subr.bf16.mxu0 %v6715
        %10651 = vmatpush1.bf16.msra.mxu0 %v6714
        %10652 = vmatprep.subr.bf16.mxu0 %v6731
        %10653 = vmatpush1.bf16.msra.mxu0 %v6730
        %10654 = vmatprep.subr.bf16.mxu0 %v6747
        %10655 = vmatpush1.bf16.msra.mxu0 %v6746
        %10656 = vmatprep.subr.bf16.mxu0 %v6763
        %10657 = vmatpush1.bf16.msra.mxu0 %v6762
        %10658 = vmatprep.subr.bf16.mxu0 %v6779
        %10659 = vmatpush1.bf16.msra.mxu0 %v6778
        %10660 = vmatprep.subr.bf16.mxu0 %v6795
        %10661 = vmatpush1.bf16.msra.mxu0 %v6794
        %10662 = vmatprep.subr.bf16.mxu0 %v6811
        %10663 = vmatpush1.bf16.msra.mxu0 %v6810
        %10664 = vmatprep.subr.bf16.mxu0 %v6827
        %10665 = vmatpush1.bf16.msra.mxu0 %v6826
        %10666 = vmatprep.mubr.bf16.mxu0 %v1947
        %10667 = vmatmul.mubr.bf16.gmra.mrb[0].mxu0 %v1946
        %v10668 = vpop.f32.mrb[0].mxu0
        %v10669 = vadd.f32 0.0, %v10668
        %v10670 = vpop.f32.mrb[0].mxu0
        %v10671 = vadd.f32 0.0, %v10670
        %v10672 = vpop.f32.mrb[0].mxu0
        %v10673 = vpop.f32.mrb[0].mxu0
        %10674 = vdwg.mxu0
        %10675 = vmatprep.subr.bf16.mxu0 %v6843
        %10676 = vmatpush1.bf16.msra.mxu0 %v6842
        %10677 = vmatprep.subr.bf16.mxu0 %v6859
        %10678 = vmatpush1.bf16.msra.mxu0 %v6858
        %10679 = vmatprep.subr.bf16.mxu0 %v6875
        %10680 = vmatpush1.bf16.msra.mxu0 %v6874
        %10681 = vmatprep.subr.bf16.mxu0 %v6891
        %10682 = vmatpush1.bf16.msra.mxu0 %v6890
        %10683 = vmatprep.subr.bf16.mxu0 %v6907
        %10684 = vmatpush1.bf16.msra.mxu0 %v6906
        %10685 = vmatprep.subr.bf16.mxu0 %v6923
        %10686 = vmatpush1.bf16.msra.mxu0 %v6922
        %10687 = vmatprep.subr.bf16.mxu0 %v6939
        %10688 = vmatpush1.bf16.msra.mxu0 %v6938
        %10689 = vmatprep.subr.bf16.mxu0 %v6955
        %10690 = vmatpush1.bf16.msra.mxu0 %v6954
        %10691 = vmatprep.subr.bf16.mxu0 %v6971
        %10692 = vmatpush1.bf16.msra.mxu0 %v6970
        %10693 = vmatprep.subr.bf16.mxu0 %v6987
        %10694 = vmatpush1.bf16.msra.mxu0 %v6986
        %10695 = vmatprep.subr.bf16.mxu0 %v7003
        %10696 = vmatpush1.bf16.msra.mxu0 %v7002
        %10697 = vmatprep.subr.bf16.mxu0 %v7019
        %10698 = vmatpush1.bf16.msra.mxu0 %v7018
        %10699 = vmatprep.subr.bf16.mxu0 %v7035
        %10700 = vmatpush1.bf16.msra.mxu0 %v7034
        %10701 = vmatprep.subr.bf16.mxu0 %v7051
        %10702 = vmatpush1.bf16.msra.mxu0 %v7050
        %10703 = vmatprep.subr.bf16.mxu0 %v7067
        %10704 = vmatpush1.bf16.msra.mxu0 %v7066
        %10705 = vmatprep.subr.bf16.mxu0 %v7083
        %10706 = vmatpush1.bf16.msra.mxu0 %v7082
        %10707 = vmatprep.mubr.bf16.mxu0 %v1949
        %10708 = vmatmul.mubr.bf16.gmra.mrb[0].mxu0 %v1948
        %v10709 = vpop.f32.mrb[0].mxu0
        %v10710 = vadd.f32 %v10669, %v10709
        %v10711 = vpop.f32.mrb[0].mxu0
        %v10712 = vadd.f32 %v10671, %v10711
        %v10713 = vpop.f32.mrb[0].mxu0
        %v10714 = vpop.f32.mrb[0].mxu0
        %10715 = vdwg.mxu0
        %10716 = vmatprep.subr.bf16.mxu0 %v7099
        %10717 = vmatpush1.bf16.msra.mxu0 %v7098
        %10718 = vmatprep.subr.bf16.mxu0 %v7115
        %10719 = vmatpush1.bf16.msra.mxu0 %v7114
        %10720 = vmatprep.subr.bf16.mxu0 %v7131
        %10721 = vmatpush1.bf16.msra.mxu0 %v7130
        %10722 = vmatprep.subr.bf16.mxu0 %v7147
        %10723 = vmatpush1.bf16.msra.mxu0 %v7146
        %10724 = vmatprep.subr.bf16.mxu0 %v7163
        %10725 = vmatpush1.bf16.msra.mxu0 %v7162
        %10726 = vmatprep.subr.bf16.mxu0 %v7179
        %10727 = vmatpush1.bf16.msra.mxu0 %v7178
        %10728 = vmatprep.subr.bf16.mxu0 %v7195
        %10729 = vmatpush1.bf16.msra.mxu0 %v7194
        %10730 = vmatprep.subr.bf16.mxu0 %v7211
        %10731 = vmatpush1.bf16.msra.mxu0 %v7210
        %10732 = vmatprep.subr.bf16.mxu0 %v7227
        %10733 = vmatpush1.bf16.msra.mxu0 %v7226
        %10734 = vmatprep.subr.bf16.mxu0 %v7243
        %10735 = vmatpush1.bf16.msra.mxu0 %v7242
        %10736 = vmatprep.subr.bf16.mxu0 %v7259
        %10737 = vmatpush1.bf16.msra.mxu0 %v7258
        %10738 = vmatprep.subr.bf16.mxu0 %v7275
        %10739 = vmatpush1.bf16.msra.mxu0 %v7274
        %10740 = vmatprep.subr.bf16.mxu0 %v7291
        %10741 = vmatpush1.bf16.msra.mxu0 %v7290
        %10742 = vmatprep.subr.bf16.mxu0 %v7307
        %10743 = vmatpush1.bf16.msra.mxu0 %v7306
        %10744 = vmatprep.subr.bf16.mxu0 %v7323
        %10745 = vmatpush1.bf16.msra.mxu0 %v7322
        %10746 = vmatprep.subr.bf16.mxu0 %v7339
        %10747 = vmatpush1.bf16.msra.mxu0 %v7338
        %10748 = vmatprep.mubr.bf16.mxu0 %v1951
        %10749 = vmatmul.mubr.bf16.gmra.mrb[0].mxu0 %v1950
        %v10750 = vpop.f32.mrb[0].mxu0
        %v10751 = vadd.f32 %v10710, %v10750
        %v10752 = vpop.f32.mrb[0].mxu0
        %v10753 = vadd.f32 %v10712, %v10752
        %v10754 = vpop.f32.mrb[0].mxu0
        %v10755 = vpop.f32.mrb[0].mxu0
        %10756 = vdwg.mxu0
        %10757 = vmatprep.subr.bf16.mxu0 %v7355
        %10758 = vmatpush1.bf16.msra.mxu0 %v7354
        %10759 = vmatprep.subr.bf16.mxu0 %v7371
        %10760 = vmatpush1.bf16.msra.mxu0 %v7370
        %10761 = vmatprep.subr.bf16.mxu0 %v7387
        %10762 = vmatpush1.bf16.msra.mxu0 %v7386
        %10763 = vmatprep.subr.bf16.mxu0 %v7403
        %10764 = vmatpush1.bf16.msra.mxu0 %v7402
        %10765 = vmatprep.subr.bf16.mxu0 %v7419
        %10766 = vmatpush1.bf16.msra.mxu0 %v7418
        %10767 = vmatprep.subr.bf16.mxu0 %v7435
        %10768 = vmatpush1.bf16.msra.mxu0 %v7434
        %10769 = vmatprep.subr.bf16.mxu0 %v7451
        %10770 = vmatpush1.bf16.msra.mxu0 %v7450
        %10771 = vmatprep.subr.bf16.mxu0 %v7467
        %10772 = vmatpush1.bf16.msra.mxu0 %v7466
        %10773 = vmatprep.subr.bf16.mxu0 %v7483
        %10774 = vmatpush1.bf16.msra.mxu0 %v7482
        %10775 = vmatprep.subr.bf16.mxu0 %v7499
        %10776 = vmatpush1.bf16.msra.mxu0 %v7498
        %10777 = vmatprep.subr.bf16.mxu0 %v7515
        %10778 = vmatpush1.bf16.msra.mxu0 %v7514
        %10779 = vmatprep.subr.bf16.mxu0 %v7531
        %10780 = vmatpush1.bf16.msra.mxu0 %v7530
        %10781 = vmatprep.subr.bf16.mxu0 %v7547
        %10782 = vmatpush1.bf16.msra.mxu0 %v7546
        %10783 = vmatprep.subr.bf16.mxu0 %v7563
        %10784 = vmatpush1.bf16.msra.mxu0 %v7562
        %10785 = vmatprep.subr.bf16.mxu0 %v7579
        %10786 = vmatpush1.bf16.msra.mxu0 %v7578
        %10787 = vmatprep.subr.bf16.mxu0 %v7595
        %10788 = vmatpush1.bf16.msra.mxu0 %v7594
        %10789 = vmatprep.mubr.bf16.mxu0 %v1953
        %10790 = vmatmul.mubr.bf16.gmra.mrb[0].mxu0 %v1952
        %v10791 = vpop.f32.mrb[0].mxu0
        %v10792 = vadd.f32 %v10751, %v10791
        %v10793 = vpop.f32.mrb[0].mxu0
        %v10794 = vadd.f32 %v10753, %v10793
        %v10795 = vpop.f32.mrb[0].mxu0
        %v10796 = vpop.f32.mrb[0].mxu0
        %10797 = vdwg.mxu0
        %10798 = vmatprep.subr.bf16.mxu0 %v7611
        %10799 = vmatpush1.bf16.msra.mxu0 %v7610
        %10800 = vmatprep.subr.bf16.mxu0 %v7627
        %10801 = vmatpush1.bf16.msra.mxu0 %v7626
        %10802 = vmatprep.subr.bf16.mxu0 %v7643
        %10803 = vmatpush1.bf16.msra.mxu0 %v7642
        %10804 = vmatprep.subr.bf16.mxu0 %v7659
        %10805 = vmatpush1.bf16.msra.mxu0 %v7658
        %10806 = vmatprep.subr.bf16.mxu0 %v7675
        %10807 = vmatpush1.bf16.msra.mxu0 %v7674
        %10808 = vmatprep.subr.bf16.mxu0 %v7691
        %10809 = vmatpush1.bf16.msra.mxu0 %v7690
        %10810 = vmatprep.subr.bf16.mxu0 %v7707
        %10811 = vmatpush1.bf16.msra.mxu0 %v7706
        %10812 = vmatprep.subr.bf16.mxu0 %v7723
        %10813 = vmatpush1.bf16.msra.mxu0 %v7722
        %10814 = vmatprep.subr.bf16.mxu0 %v7739
        %10815 = vmatpush1.bf16.msra.mxu0 %v7738
        %10816 = vmatprep.subr.bf16.mxu0 %v7755
        %10817 = vmatpush1.bf16.msra.mxu0 %v7754
        %10818 = vmatprep.subr.bf16.mxu0 %v7771
        %10819 = vmatpush1.bf16.msra.mxu0 %v7770
        %10820 = vmatprep.subr.bf16.mxu0 %v7787
        %10821 = vmatpush1.bf16.msra.mxu0 %v7786
        %10822 = vmatprep.subr.bf16.mxu0 %v7803
        %10823 = vmatpush1.bf16.msra.mxu0 %v7802
        %10824 = vmatprep.subr.bf16.mxu0 %v7819
        %10825 = vmatpush1.bf16.msra.mxu0 %v7818
        %10826 = vmatprep.subr.bf16.mxu0 %v7835
        %10827 = vmatpush1.bf16.msra.mxu0 %v7834
        %10828 = vmatprep.subr.bf16.mxu0 %v7851
        %10829 = vmatpush1.bf16.msra.mxu0 %v7850
        %10830 = vmatprep.mubr.bf16.mxu0 %v1955
        %10831 = vmatmul.mubr.bf16.gmra.mrb[0].mxu0 %v1954
        %v10832 = vpop.f32.mrb[0].mxu0
        %v10833 = vadd.f32 %v10792, %v10832
        %v10834 = vpop.f32.mrb[0].mxu0
        %v10835 = vadd.f32 %v10794, %v10834
        %v10836 = vpop.f32.mrb[0].mxu0
        %v10837 = vpop.f32.mrb[0].mxu0
        %10838 = vdwg.mxu0
        %10839 = vmatprep.subr.bf16.mxu0 %v7867
        %10840 = vmatpush1.bf16.msra.mxu0 %v7866
        %10841 = vmatprep.subr.bf16.mxu0 %v7883
        %10842 = vmatpush1.bf16.msra.mxu0 %v7882
        %10843 = vmatprep.subr.bf16.mxu0 %v7899
        %10844 = vmatpush1.bf16.msra.mxu0 %v7898
        %10845 = vmatprep.subr.bf16.mxu0 %v7915
        %10846 = vmatpush1.bf16.msra.mxu0 %v7914
        %10847 = vmatprep.subr.bf16.mxu0 %v7931
        %10848 = vmatpush1.bf16.msra.mxu0 %v7930
        %10849 = vmatprep.subr.bf16.mxu0 %v7947
        %10850 = vmatpush1.bf16.msra.mxu0 %v7946
        %10851 = vmatprep.subr.bf16.mxu0 %v7963
        %10852 = vmatpush1.bf16.msra.mxu0 %v7962
        %10853 = vmatprep.subr.bf16.mxu0 %v7979
        %10854 = vmatpush1.bf16.msra.mxu0 %v7978
        %10855 = vmatprep.subr.bf16.mxu0 %v7995
        %10856 = vmatpush1.bf16.msra.mxu0 %v7994
        %10857 = vmatprep.subr.bf16.mxu0 %v8011
        %10858 = vmatpush1.bf16.msra.mxu0 %v8010
        %10859 = vmatprep.subr.bf16.mxu0 %v8027
        %10860 = vmatpush1.bf16.msra.mxu0 %v8026
        %10861 = vmatprep.subr.bf16.mxu0 %v8043
        %10862 = vmatpush1.bf16.msra.mxu0 %v8042
        %10863 = vmatprep.subr.bf16.mxu0 %v8059
        %10864 = vmatpush1.bf16.msra.mxu0 %v8058
        %10865 = vmatprep.subr.bf16.mxu0 %v8075
        %10866 = vmatpush1.bf16.msra.mxu0 %v8074
        %10867 = vmatprep.subr.bf16.mxu0 %v8091
        %10868 = vmatpush1.bf16.msra.mxu0 %v8090
        %10869 = vmatprep.subr.bf16.mxu0 %v8107
        %10870 = vmatpush1.bf16.msra.mxu0 %v8106
        %10871 = vmatprep.mubr.bf16.mxu0 %v1957
        %10872 = vmatmul.mubr.bf16.gmra.mrb[0].mxu0 %v1956
        %v10873 = vpop.f32.mrb[0].mxu0
        %v10874 = vadd.f32 %v10833, %v10873
        %v10875 = vpop.f32.mrb[0].mxu0
        %v10876 = vadd.f32 %v10835, %v10875
        %v10877 = vpop.f32.mrb[0].mxu0
        %v10878 = vpop.f32.mrb[0].mxu0
        %10879 = vdwg.mxu0
        %10880 = vmatprep.subr.bf16.mxu0 %v6589
        %10881 = vmatpush1.bf16.msra.mxu0 %v6588
        %10882 = vmatprep.subr.bf16.mxu0 %v6605
        %10883 = vmatpush1.bf16.msra.mxu0 %v6604
        %10884 = vmatprep.subr.bf16.mxu0 %v6621
        %10885 = vmatpush1.bf16.msra.mxu0 %v6620
        %10886 = vmatprep.subr.bf16.mxu0 %v6637
        %10887 = vmatpush1.bf16.msra.mxu0 %v6636
        %10888 = vmatprep.subr.bf16.mxu0 %v6653
        %10889 = vmatpush1.bf16.msra.mxu0 %v6652
        %10890 = vmatprep.subr.bf16.mxu0 %v6669
        %10891 = vmatpush1.bf16.msra.mxu0 %v6668
        %10892 = vmatprep.subr.bf16.mxu0 %v6685
        %10893 = vmatpush1.bf16.msra.mxu0 %v6684
        %10894 = vmatprep.subr.bf16.mxu0 %v6701
        %10895 = vmatpush1.bf16.msra.mxu0 %v6700
        %10896 = vmatprep.subr.bf16.mxu0 %v6717
        %10897 = vmatpush1.bf16.msra.mxu0 %v6716
        %10898 = vmatprep.subr.bf16.mxu0 %v6733
        %10899 = vmatpush1.bf16.msra.mxu0 %v6732
        %10900 = vmatprep.subr.bf16.mxu0 %v6749
        %10901 = vmatpush1.bf16.msra.mxu0 %v6748
        %10902 = vmatprep.subr.bf16.mxu0 %v6765
        %10903 = vmatpush1.bf16.msra.mxu0 %v6764
        %10904 = vmatprep.subr.bf16.mxu0 %v6781
        %10905 = vmatpush1.bf16.msra.mxu0 %v6780
        %10906 = vmatprep.subr.bf16.mxu0 %v6797
        %10907 = vmatpush1.bf16.msra.mxu0 %v6796
        %10908 = vmatprep.subr.bf16.mxu0 %v6813
        %10909 = vmatpush1.bf16.msra.mxu0 %v6812
        %10910 = vmatprep.subr.bf16.mxu0 %v6829
        %10911 = vmatpush1.bf16.msra.mxu0 %v6828
        %10912 = vmatprep.mubr.bf16.mxu0 %v1947
        %10913 = vmatmul.mubr.bf16.gmra.mrb[0].mxu0 %v1946
        %v10914 = vpop.f32.mrb[0].mxu0
        %v10915 = vadd.f32 0.0, %v10914
        %v10916 = vpop.f32.mrb[0].mxu0
        %v10917 = vadd.f32 0.0, %v10916
        %v10918 = vpop.f32.mrb[0].mxu0
        %v10919 = vpop.f32.mrb[0].mxu0
        %10920 = vdwg.mxu0
        %10921 = vmatprep.subr.bf16.mxu0 %v6845
        %10922 = vmatpush1.bf16.msra.mxu0 %v6844
        %10923 = vmatprep.subr.bf16.mxu0 %v6861
        %10924 = vmatpush1.bf16.msra.mxu0 %v6860
        %10925 = vmatprep.subr.bf16.mxu0 %v6877
        %10926 = vmatpush1.bf16.msra.mxu0 %v6876
        %10927 = vmatprep.subr.bf16.mxu0 %v6893
        %10928 = vmatpush1.bf16.msra.mxu0 %v6892
        %10929 = vmatprep.subr.bf16.mxu0 %v6909
        %10930 = vmatpush1.bf16.msra.mxu0 %v6908
        %10931 = vmatprep.subr.bf16.mxu0 %v6925
        %10932 = vmatpush1.bf16.msra.mxu0 %v6924
        %10933 = vmatprep.subr.bf16.mxu0 %v6941
        %10934 = vmatpush1.bf16.msra.mxu0 %v6940
        %10935 = vmatprep.subr.bf16.mxu0 %v6957
        %10936 = vmatpush1.bf16.msra.mxu0 %v6956
        %10937 = vmatprep.subr.bf16.mxu0 %v6973
        %10938 = vmatpush1.bf16.msra.mxu0 %v6972
        %10939 = vmatprep.subr.bf16.mxu0 %v6989
        %10940 = vmatpush1.bf16.msra.mxu0 %v6988
        %10941 = vmatprep.subr.bf16.mxu0 %v7005
        %10942 = vmatpush1.bf16.msra.mxu0 %v7004
        %10943 = vmatprep.subr.bf16.mxu0 %v7021
        %10944 = vmatpush1.bf16.msra.mxu0 %v7020
        %10945 = vmatprep.subr.bf16.mxu0 %v7037
        %10946 = vmatpush1.bf16.msra.mxu0 %v7036
        %10947 = vmatprep.subr.bf16.mxu0 %v7053
        %10948 = vmatpush1.bf16.msra.mxu0 %v7052
        %10949 = vmatprep.subr.bf16.mxu0 %v7069
        %10950 = vmatpush1.bf16.msra.mxu0 %v7068
        %10951 = vmatprep.subr.bf16.mxu0 %v7085
        %10952 = vmatpush1.bf16.msra.mxu0 %v7084
        %10953 = vmatprep.mubr.bf16.mxu0 %v1949
        %10954 = vmatmul.mubr.bf16.gmra.mrb[0].mxu0 %v1948
        %v10955 = vpop.f32.mrb[0].mxu0
        %v10956 = vadd.f32 %v10915, %v10955
        %v10957 = vpop.f32.mrb[0].mxu0
        %v10958 = vadd.f32 %v10917, %v10957
        %v10959 = vpop.f32.mrb[0].mxu0
        %v10960 = vpop.f32.mrb[0].mxu0
        %10961 = vdwg.mxu0
        %10962 = vmatprep.subr.bf16.mxu0 %v7101
        %10963 = vmatpush1.bf16.msra.mxu0 %v7100
        %10964 = vmatprep.subr.bf16.mxu0 %v7117
        %10965 = vmatpush1.bf16.msra.mxu0 %v7116
        %10966 = vmatprep.subr.bf16.mxu0 %v7133
        %10967 = vmatpush1.bf16.msra.mxu0 %v7132
        %10968 = vmatprep.subr.bf16.mxu0 %v7149
        %10969 = vmatpush1.bf16.msra.mxu0 %v7148
        %10970 = vmatprep.subr.bf16.mxu0 %v7165
        %10971 = vmatpush1.bf16.msra.mxu0 %v7164
        %10972 = vmatprep.subr.bf16.mxu0 %v7181
        %10973 = vmatpush1.bf16.msra.mxu0 %v7180
        %10974 = vmatprep.subr.bf16.mxu0 %v7197
        %10975 = vmatpush1.bf16.msra.mxu0 %v7196
        %10976 = vmatprep.subr.bf16.mxu0 %v7213
        %10977 = vmatpush1.bf16.msra.mxu0 %v7212
        %10978 = vmatprep.subr.bf16.mxu0 %v7229
        %10979 = vmatpush1.bf16.msra.mxu0 %v7228
        %10980 = vmatprep.subr.bf16.mxu0 %v7245
        %10981 = vmatpush1.bf16.msra.mxu0 %v7244
        %10982 = vmatprep.subr.bf16.mxu0 %v7261
        %10983 = vmatpush1.bf16.msra.mxu0 %v7260
        %10984 = vmatprep.subr.bf16.mxu0 %v7277
        %10985 = vmatpush1.bf16.msra.mxu0 %v7276
        %10986 = vmatprep.subr.bf16.mxu0 %v7293
        %10987 = vmatpush1.bf16.msra.mxu0 %v7292
        %10988 = vmatprep.subr.bf16.mxu0 %v7309
        %10989 = vmatpush1.bf16.msra.mxu0 %v7308
        %10990 = vmatprep.subr.bf16.mxu0 %v7325
        %10991 = vmatpush1.bf16.msra.mxu0 %v7324
        %10992 = vmatprep.subr.bf16.mxu0 %v7341
        %10993 = vmatpush1.bf16.msra.mxu0 %v7340
        %10994 = vmatprep.mubr.bf16.mxu0 %v1951
        %10995 = vmatmul.mubr.bf16.gmra.mrb[0].mxu0 %v1950
        %v10996 = vpop.f32.mrb[0].mxu0
        %v10997 = vadd.f32 %v10956, %v10996
        %v10998 = vpop.f32.mrb[0].mxu0
        %v10999 = vadd.f32 %v10958, %v10998
        %v11000 = vpop.f32.mrb[0].mxu0
        %v11001 = vpop.f32.mrb[0].mxu0
        %11002 = vdwg.mxu0
        %11003 = vmatprep.subr.bf16.mxu0 %v7357
        %11004 = vmatpush1.bf16.msra.mxu0 %v7356
        %11005 = vmatprep.subr.bf16.mxu0 %v7373
        %11006 = vmatpush1.bf16.msra.mxu0 %v7372
        %11007 = vmatprep.subr.bf16.mxu0 %v7389
        %11008 = vmatpush1.bf16.msra.mxu0 %v7388
        %11009 = vmatprep.subr.bf16.mxu0 %v7405
        %11010 = vmatpush1.bf16.msra.mxu0 %v7404
        %11011 = vmatprep.subr.bf16.mxu0 %v7421
        %11012 = vmatpush1.bf16.msra.mxu0 %v7420
        %11013 = vmatprep.subr.bf16.mxu0 %v7437
        %11014 = vmatpush1.bf16.msra.mxu0 %v7436
        %11015 = vmatprep.subr.bf16.mxu0 %v7453
        %11016 = vmatpush1.bf16.msra.mxu0 %v7452
        %11017 = vmatprep.subr.bf16.mxu0 %v7469
        %11018 = vmatpush1.bf16.msra.mxu0 %v7468
        %11019 = vmatprep.subr.bf16.mxu0 %v7485
        %11020 = vmatpush1.bf16.msra.mxu0 %v7484
        %11021 = vmatprep.subr.bf16.mxu0 %v7501
        %11022 = vmatpush1.bf16.msra.mxu0 %v7500
        %11023 = vmatprep.subr.bf16.mxu0 %v7517
        %11024 = vmatpush1.bf16.msra.mxu0 %v7516
        %11025 = vmatprep.subr.bf16.mxu0 %v7533
        %11026 = vmatpush1.bf16.msra.mxu0 %v7532
        %11027 = vmatprep.subr.bf16.mxu0 %v7549
        %11028 = vmatpush1.bf16.msra.mxu0 %v7548
        %11029 = vmatprep.subr.bf16.mxu0 %v7565
        %11030 = vmatpush1.bf16.msra.mxu0 %v7564
        %11031 = vmatprep.subr.bf16.mxu0 %v7581
        %11032 = vmatpush1.bf16.msra.mxu0 %v7580
        %11033 = vmatprep.subr.bf16.mxu0 %v7597
        %11034 = vmatpush1.bf16.msra.mxu0 %v7596
        %11035 = vmatprep.mubr.bf16.mxu0 %v1953
        %11036 = vmatmul.mubr.bf16.gmra.mrb[0].mxu0 %v1952
        %v11037 = vpop.f32.mrb[0].mxu0
        %v11038 = vadd.f32 %v10997, %v11037
        %v11039 = vpop.f32.mrb[0].mxu0
        %v11040 = vadd.f32 %v10999, %v11039
        %v11041 = vpop.f32.mrb[0].mxu0
        %v11042 = vpop.f32.mrb[0].mxu0
        %11043 = vdwg.mxu0
        %11044 = vmatprep.subr.bf16.mxu0 %v7613
        %11045 = vmatpush1.bf16.msra.mxu0 %v7612
        %11046 = vmatprep.subr.bf16.mxu0 %v7629
        %11047 = vmatpush1.bf16.msra.mxu0 %v7628
        %11048 = vmatprep.subr.bf16.mxu0 %v7645
        %11049 = vmatpush1.bf16.msra.mxu0 %v7644
        %11050 = vmatprep.subr.bf16.mxu0 %v7661
        %11051 = vmatpush1.bf16.msra.mxu0 %v7660
        %11052 = vmatprep.subr.bf16.mxu0 %v7677
        %11053 = vmatpush1.bf16.msra.mxu0 %v7676
        %11054 = vmatprep.subr.bf16.mxu0 %v7693
        %11055 = vmatpush1.bf16.msra.mxu0 %v7692
        %11056 = vmatprep.subr.bf16.mxu0 %v7709
        %11057 = vmatpush1.bf16.msra.mxu0 %v7708
        %11058 = vmatprep.subr.bf16.mxu0 %v7725
        %11059 = vmatpush1.bf16.msra.mxu0 %v7724
        %11060 = vmatprep.subr.bf16.mxu0 %v7741
        %11061 = vmatpush1.bf16.msra.mxu0 %v7740
        %11062 = vmatprep.subr.bf16.mxu0 %v7757
        %11063 = vmatpush1.bf16.msra.mxu0 %v7756
        %11064 = vmatprep.subr.bf16.mxu0 %v7773
        %11065 = vmatpush1.bf16.msra.mxu0 %v7772
        %11066 = vmatprep.subr.bf16.mxu0 %v7789
        %11067 = vmatpush1.bf16.msra.mxu0 %v7788
        %11068 = vmatprep.subr.bf16.mxu0 %v7805
        %11069 = vmatpush1.bf16.msra.mxu0 %v7804
        %11070 = vmatprep.subr.bf16.mxu0 %v7821
        %11071 = vmatpush1.bf16.msra.mxu0 %v7820
        %11072 = vmatprep.subr.bf16.mxu0 %v7837
        %11073 = vmatpush1.bf16.msra.mxu0 %v7836
        %11074 = vmatprep.subr.bf16.mxu0 %v7853
        %11075 = vmatpush1.bf16.msra.mxu0 %v7852
        %11076 = vmatprep.mubr.bf16.mxu0 %v1955
        %11077 = vmatmul.mubr.bf16.gmra.mrb[0].mxu0 %v1954
        %v11078 = vpop.f32.mrb[0].mxu0
        %v11079 = vadd.f32 %v11038, %v11078
        %v11080 = vpop.f32.mrb[0].mxu0
        %v11081 = vadd.f32 %v11040, %v11080
        %v11082 = vpop.f32.mrb[0].mxu0
        %v11083 = vpop.f32.mrb[0].mxu0
        %11084 = vdwg.mxu0
        %11085 = vmatprep.subr.bf16.mxu0 %v7869
        %11086 = vmatpush1.bf16.msra.mxu0 %v7868
        %11087 = vmatprep.subr.bf16.mxu0 %v7885
        %11088 = vmatpush1.bf16.msra.mxu0 %v7884
        %11089 = vmatprep.subr.bf16.mxu0 %v7901
        %11090 = vmatpush1.bf16.msra.mxu0 %v7900
        %11091 = vmatprep.subr.bf16.mxu0 %v7917
        %11092 = vmatpush1.bf16.msra.mxu0 %v7916
        %11093 = vmatprep.subr.bf16.mxu0 %v7933
        %11094 = vmatpush1.bf16.msra.mxu0 %v7932
        %11095 = vmatprep.subr.bf16.mxu0 %v7949
        %11096 = vmatpush1.bf16.msra.mxu0 %v7948
        %11097 = vmatprep.subr.bf16.mxu0 %v7965
        %11098 = vmatpush1.bf16.msra.mxu0 %v7964
        %11099 = vmatprep.subr.bf16.mxu0 %v7981
        %11100 = vmatpush1.bf16.msra.mxu0 %v7980
        %11101 = vmatprep.subr.bf16.mxu0 %v7997
        %11102 = vmatpush1.bf16.msra.mxu0 %v7996
        %11103 = vmatprep.subr.bf16.mxu0 %v8013
        %11104 = vmatpush1.bf16.msra.mxu0 %v8012
        %11105 = vmatprep.subr.bf16.mxu0 %v8029
        %11106 = vmatpush1.bf16.msra.mxu0 %v8028
        %11107 = vmatprep.subr.bf16.mxu0 %v8045
        %11108 = vmatpush1.bf16.msra.mxu0 %v8044
        %11109 = vmatprep.subr.bf16.mxu0 %v8061
        %11110 = vmatpush1.bf16.msra.mxu0 %v8060
        %11111 = vmatprep.subr.bf16.mxu0 %v8077
        %11112 = vmatpush1.bf16.msra.mxu0 %v8076
        %11113 = vmatprep.subr.bf16.mxu0 %v8093
        %11114 = vmatpush1.bf16.msra.mxu0 %v8092
        %11115 = vmatprep.subr.bf16.mxu0 %v8109
        %11116 = vmatpush1.bf16.msra.mxu0 %v8108
        %11117 = vmatprep.mubr.bf16.mxu0 %v1957
        %11118 = vmatmul.mubr.bf16.gmra.mrb[0].mxu0 %v1956
        %v11119 = vpop.f32.mrb[0].mxu0
        %v11120 = vadd.f32 %v11079, %v11119
        %v11121 = vpop.f32.mrb[0].mxu0
        %v11122 = vadd.f32 %v11081, %v11121
        %v11123 = vpop.f32.mrb[0].mxu0
        %v11124 = vpop.f32.mrb[0].mxu0
        %11125 = vdwg.mxu0
        %11126 = vmatprep.subr.bf16.mxu0 %v6591
        %11127 = vmatpush1.bf16.msra.mxu0 %v6590
        %11128 = vmatprep.subr.bf16.mxu0 %v6607
        %11129 = vmatpush1.bf16.msra.mxu0 %v6606
        %11130 = vmatprep.subr.bf16.mxu0 %v6623
        %11131 = vmatpush1.bf16.msra.mxu0 %v6622
        %11132 = vmatprep.subr.bf16.mxu0 %v6639
        %11133 = vmatpush1.bf16.msra.mxu0 %v6638
        %11134 = vmatprep.subr.bf16.mxu0 %v6655
        %11135 = vmatpush1.bf16.msra.mxu0 %v6654
        %11136 = vmatprep.subr.bf16.mxu0 %v6671
        %11137 = vmatpush1.bf16.msra.mxu0 %v6670
        %11138 = vmatprep.subr.bf16.mxu0 %v6687
        %11139 = vmatpush1.bf16.msra.mxu0 %v6686
        %11140 = vmatprep.subr.bf16.mxu0 %v6703
        %11141 = vmatpush1.bf16.msra.mxu0 %v6702
        %11142 = vmatprep.subr.bf16.mxu0 %v6719
        %11143 = vmatpush1.bf16.msra.mxu0 %v6718
        %11144 = vmatprep.subr.bf16.mxu0 %v6735
        %11145 = vmatpush1.bf16.msra.mxu0 %v6734
        %11146 = vmatprep.subr.bf16.mxu0 %v6751
        %11147 = vmatpush1.bf16.msra.mxu0 %v6750
        %11148 = vmatprep.subr.bf16.mxu0 %v6767
        %11149 = vmatpush1.bf16.msra.mxu0 %v6766
        %11150 = vmatprep.subr.bf16.mxu0 %v6783
        %11151 = vmatpush1.bf16.msra.mxu0 %v6782
        %11152 = vmatprep.subr.bf16.mxu0 %v6799
        %11153 = vmatpush1.bf16.msra.mxu0 %v6798
        %11154 = vmatprep.subr.bf16.mxu0 %v6815
        %11155 = vmatpush1.bf16.msra.mxu0 %v6814
        %11156 = vmatprep.subr.bf16.mxu0 %v6831
        %11157 = vmatpush1.bf16.msra.mxu0 %v6830
        %11158 = vmatprep.mubr.bf16.mxu0 %v1947
        %11159 = vmatmul.mubr.bf16.gmra.mrb[0].mxu0 %v1946
        %v11160 = vpop.f32.mrb[0].mxu0
        %v11161 = vadd.f32 0.0, %v11160
        %v11162 = vpop.f32.mrb[0].mxu0
        %v11163 = vadd.f32 0.0, %v11162
        %v11164 = vpop.f32.mrb[0].mxu0
        %v11165 = vpop.f32.mrb[0].mxu0
        %11166 = vdwg.mxu0
        %11167 = vmatprep.subr.bf16.mxu0 %v6847
        %11168 = vmatpush1.bf16.msra.mxu0 %v6846
        %11169 = vmatprep.subr.bf16.mxu0 %v6863
        %11170 = vmatpush1.bf16.msra.mxu0 %v6862
        %11171 = vmatprep.subr.bf16.mxu0 %v6879
        %11172 = vmatpush1.bf16.msra.mxu0 %v6878
        %11173 = vmatprep.subr.bf16.mxu0 %v6895
        %11174 = vmatpush1.bf16.msra.mxu0 %v6894
        %11175 = vmatprep.subr.bf16.mxu0 %v6911
        %11176 = vmatpush1.bf16.msra.mxu0 %v6910
        %11177 = vmatprep.subr.bf16.mxu0 %v6927
        %11178 = vmatpush1.bf16.msra.mxu0 %v6926
        %11179 = vmatprep.subr.bf16.mxu0 %v6943
        %11180 = vmatpush1.bf16.msra.mxu0 %v6942
        %11181 = vmatprep.subr.bf16.mxu0 %v6959
        %11182 = vmatpush1.bf16.msra.mxu0 %v6958
        %11183 = vmatprep.subr.bf16.mxu0 %v6975
        %11184 = vmatpush1.bf16.msra.mxu0 %v6974
        %11185 = vmatprep.subr.bf16.mxu0 %v6991
        %11186 = vmatpush1.bf16.msra.mxu0 %v6990
        %11187 = vmatprep.subr.bf16.mxu0 %v7007
        %11188 = vmatpush1.bf16.msra.mxu0 %v7006
        %11189 = vmatprep.subr.bf16.mxu0 %v7023
        %11190 = vmatpush1.bf16.msra.mxu0 %v7022
        %11191 = vmatprep.subr.bf16.mxu0 %v7039
        %11192 = vmatpush1.bf16.msra.mxu0 %v7038
        %11193 = vmatprep.subr.bf16.mxu0 %v7055
        %11194 = vmatpush1.bf16.msra.mxu0 %v7054
        %11195 = vmatprep.subr.bf16.mxu0 %v7071
        %11196 = vmatpush1.bf16.msra.mxu0 %v7070
        %11197 = vmatprep.subr.bf16.mxu0 %v7087
        %11198 = vmatpush1.bf16.msra.mxu0 %v7086
        %11199 = vmatprep.mubr.bf16.mxu0 %v1949
        %11200 = vmatmul.mubr.bf16.gmra.mrb[0].mxu0 %v1948
        %v11201 = vpop.f32.mrb[0].mxu0
        %v11202 = vadd.f32 %v11161, %v11201
        %v11203 = vpop.f32.mrb[0].mxu0
        %v11204 = vadd.f32 %v11163, %v11203
        %v11205 = vpop.f32.mrb[0].mxu0
        %v11206 = vpop.f32.mrb[0].mxu0
        %11207 = vdwg.mxu0
        %11208 = vmatprep.subr.bf16.mxu0 %v7103
        %11209 = vmatpush1.bf16.msra.mxu0 %v7102
        %11210 = vmatprep.subr.bf16.mxu0 %v7119
        %11211 = vmatpush1.bf16.msra.mxu0 %v7118
        %11212 = vmatprep.subr.bf16.mxu0 %v7135
        %11213 = vmatpush1.bf16.msra.mxu0 %v7134
        %11214 = vmatprep.subr.bf16.mxu0 %v7151
        %11215 = vmatpush1.bf16.msra.mxu0 %v7150
        %11216 = vmatprep.subr.bf16.mxu0 %v7167
        %11217 = vmatpush1.bf16.msra.mxu0 %v7166
        %11218 = vmatprep.subr.bf16.mxu0 %v7183
        %11219 = vmatpush1.bf16.msra.mxu0 %v7182
        %11220 = vmatprep.subr.bf16.mxu0 %v7199
        %11221 = vmatpush1.bf16.msra.mxu0 %v7198
        %11222 = vmatprep.subr.bf16.mxu0 %v7215
        %11223 = vmatpush1.bf16.msra.mxu0 %v7214
        %11224 = vmatprep.subr.bf16.mxu0 %v7231
        %11225 = vmatpush1.bf16.msra.mxu0 %v7230
        %11226 = vmatprep.subr.bf16.mxu0 %v7247
        %11227 = vmatpush1.bf16.msra.mxu0 %v7246
        %11228 = vmatprep.subr.bf16.mxu0 %v7263
        %11229 = vmatpush1.bf16.msra.mxu0 %v7262
        %11230 = vmatprep.subr.bf16.mxu0 %v7279
        %11231 = vmatpush1.bf16.msra.mxu0 %v7278
        %11232 = vmatprep.subr.bf16.mxu0 %v7295
        %11233 = vmatpush1.bf16.msra.mxu0 %v7294
        %11234 = vmatprep.subr.bf16.mxu0 %v7311
        %11235 = vmatpush1.bf16.msra.mxu0 %v7310
        %11236 = vmatprep.subr.bf16.mxu0 %v7327
        %11237 = vmatpush1.bf16.msra.mxu0 %v7326
        %11238 = vmatprep.subr.bf16.mxu0 %v7343
        %11239 = vmatpush1.bf16.msra.mxu0 %v7342
        %11240 = vmatprep.mubr.bf16.mxu0 %v1951
        %11241 = vmatmul.mubr.bf16.gmra.mrb[0].mxu0 %v1950
        %v11242 = vpop.f32.mrb[0].mxu0
        %v11243 = vadd.f32 %v11202, %v11242
        %v11244 = vpop.f32.mrb[0].mxu0
        %v11245 = vadd.f32 %v11204, %v11244
        %v11246 = vpop.f32.mrb[0].mxu0
        %v11247 = vpop.f32.mrb[0].mxu0
        %11248 = vdwg.mxu0
        %11249 = vmatprep.subr.bf16.mxu0 %v7359
        %11250 = vmatpush1.bf16.msra.mxu0 %v7358
        %11251 = vmatprep.subr.bf16.mxu0 %v7375
        %11252 = vmatpush1.bf16.msra.mxu0 %v7374
        %11253 = vmatprep.subr.bf16.mxu0 %v7391
        %11254 = vmatpush1.bf16.msra.mxu0 %v7390
        %11255 = vmatprep.subr.bf16.mxu0 %v7407
        %11256 = vmatpush1.bf16.msra.mxu0 %v7406
        %11257 = vmatprep.subr.bf16.mxu0 %v7423
        %11258 = vmatpush1.bf16.msra.mxu0 %v7422
        %11259 = vmatprep.subr.bf16.mxu0 %v7439
        %11260 = vmatpush1.bf16.msra.mxu0 %v7438
        %11261 = vmatprep.subr.bf16.mxu0 %v7455
        %11262 = vmatpush1.bf16.msra.mxu0 %v7454
        %11263 = vmatprep.subr.bf16.mxu0 %v7471
        %11264 = vmatpush1.bf16.msra.mxu0 %v7470
        %11265 = vmatprep.subr.bf16.mxu0 %v7487
        %11266 = vmatpush1.bf16.msra.mxu0 %v7486
        %11267 = vmatprep.subr.bf16.mxu0 %v7503
        %11268 = vmatpush1.bf16.msra.mxu0 %v7502
        %11269 = vmatprep.subr.bf16.mxu0 %v7519
        %11270 = vmatpush1.bf16.msra.mxu0 %v7518
        %11271 = vmatprep.subr.bf16.mxu0 %v7535
        %11272 = vmatpush1.bf16.msra.mxu0 %v7534
        %11273 = vmatprep.subr.bf16.mxu0 %v7551
        %11274 = vmatpush1.bf16.msra.mxu0 %v7550
        %11275 = vmatprep.subr.bf16.mxu0 %v7567
        %11276 = vmatpush1.bf16.msra.mxu0 %v7566
        %11277 = vmatprep.subr.bf16.mxu0 %v7583
        %11278 = vmatpush1.bf16.msra.mxu0 %v7582
        %11279 = vmatprep.subr.bf16.mxu0 %v7599
        %11280 = vmatpush1.bf16.msra.mxu0 %v7598
        %11281 = vmatprep.mubr.bf16.mxu0 %v1953
        %11282 = vmatmul.mubr.bf16.gmra.mrb[0].mxu0 %v1952
        %v11283 = vpop.f32.mrb[0].mxu0
        %v11284 = vadd.f32 %v11243, %v11283
        %v11285 = vpop.f32.mrb[0].mxu0
        %v11286 = vadd.f32 %v11245, %v11285
        %v11287 = vpop.f32.mrb[0].mxu0
        %v11288 = vpop.f32.mrb[0].mxu0
        %11289 = vdwg.mxu0
        %11290 = vmatprep.subr.bf16.mxu0 %v7615
        %11291 = vmatpush1.bf16.msra.mxu0 %v7614
        %11292 = vmatprep.subr.bf16.mxu0 %v7631
        %11293 = vmatpush1.bf16.msra.mxu0 %v7630
        %11294 = vmatprep.subr.bf16.mxu0 %v7647
        %11295 = vmatpush1.bf16.msra.mxu0 %v7646
        %11296 = vmatprep.subr.bf16.mxu0 %v7663
        %11297 = vmatpush1.bf16.msra.mxu0 %v7662
        %11298 = vmatprep.subr.bf16.mxu0 %v7679
        %11299 = vmatpush1.bf16.msra.mxu0 %v7678
        %11300 = vmatprep.subr.bf16.mxu0 %v7695
        %11301 = vmatpush1.bf16.msra.mxu0 %v7694
        %11302 = vmatprep.subr.bf16.mxu0 %v7711
        %11303 = vmatpush1.bf16.msra.mxu0 %v7710
        %11304 = vmatprep.subr.bf16.mxu0 %v7727
        %11305 = vmatpush1.bf16.msra.mxu0 %v7726
        %11306 = vmatprep.subr.bf16.mxu0 %v7743
        %11307 = vmatpush1.bf16.msra.mxu0 %v7742
        %11308 = vmatprep.subr.bf16.mxu0 %v7759
        %11309 = vmatpush1.bf16.msra.mxu0 %v7758
        %11310 = vmatprep.subr.bf16.mxu0 %v7775
        %11311 = vmatpush1.bf16.msra.mxu0 %v7774
        %11312 = vmatprep.subr.bf16.mxu0 %v7791
        %11313 = vmatpush1.bf16.msra.mxu0 %v7790
        %11314 = vmatprep.subr.bf16.mxu0 %v7807
        %11315 = vmatpush1.bf16.msra.mxu0 %v7806
        %11316 = vmatprep.subr.bf16.mxu0 %v7823
        %11317 = vmatpush1.bf16.msra.mxu0 %v7822
        %11318 = vmatprep.subr.bf16.mxu0 %v7839
        %11319 = vmatpush1.bf16.msra.mxu0 %v7838
        %11320 = vmatprep.subr.bf16.mxu0 %v7855
        %11321 = vmatpush1.bf16.msra.mxu0 %v7854
        %11322 = vmatprep.mubr.bf16.mxu0 %v1955
        %11323 = vmatmul.mubr.bf16.gmra.mrb[0].mxu0 %v1954
        %v11324 = vpop.f32.mrb[0].mxu0
        %v11325 = vadd.f32 %v11284, %v11324
        %v11326 = vpop.f32.mrb[0].mxu0
        %v11327 = vadd.f32 %v11286, %v11326
        %v11328 = vpop.f32.mrb[0].mxu0
        %v11329 = vpop.f32.mrb[0].mxu0
        %11330 = vdwg.mxu0
        %11331 = vmatprep.subr.bf16.mxu0 %v7871
        %11332 = vmatpush1.bf16.msra.mxu0 %v7870
        %11333 = vmatprep.subr.bf16.mxu0 %v7887
        %11334 = vmatpush1.bf16.msra.mxu0 %v7886
        %11335 = vmatprep.subr.bf16.mxu0 %v7903
        %11336 = vmatpush1.bf16.msra.mxu0 %v7902
        %11337 = vmatprep.subr.bf16.mxu0 %v7919
        %11338 = vmatpush1.bf16.msra.mxu0 %v7918
        %11339 = vmatprep.subr.bf16.mxu0 %v7935
        %11340 = vmatpush1.bf16.msra.mxu0 %v7934
        %11341 = vmatprep.subr.bf16.mxu0 %v7951
        %11342 = vmatpush1.bf16.msra.mxu0 %v7950
        %11343 = vmatprep.subr.bf16.mxu0 %v7967
        %11344 = vmatpush1.bf16.msra.mxu0 %v7966
        %11345 = vmatprep.subr.bf16.mxu0 %v7983
        %11346 = vmatpush1.bf16.msra.mxu0 %v7982
        %11347 = vmatprep.subr.bf16.mxu0 %v7999
        %11348 = vmatpush1.bf16.msra.mxu0 %v7998
        %11349 = vmatprep.subr.bf16.mxu0 %v8015
        %11350 = vmatpush1.bf16.msra.mxu0 %v8014
        %11351 = vmatprep.subr.bf16.mxu0 %v8031
        %11352 = vmatpush1.bf16.msra.mxu0 %v8030
        %11353 = vmatprep.subr.bf16.mxu0 %v8047
        %11354 = vmatpush1.bf16.msra.mxu0 %v8046
        %11355 = vmatprep.subr.bf16.mxu0 %v8063
        %11356 = vmatpush1.bf16.msra.mxu0 %v8062
        %11357 = vmatprep.subr.bf16.mxu0 %v8079
        %11358 = vmatpush1.bf16.msra.mxu0 %v8078
        %11359 = vmatprep.subr.bf16.mxu0 %v8095
        %11360 = vmatpush1.bf16.msra.mxu0 %v8094
        %11361 = vmatprep.subr.bf16.mxu0 %v8111
        %11362 = vmatpush1.bf16.msra.mxu0 %v8110
        %11363 = vmatprep.mubr.bf16.mxu0 %v1957
        %11364 = vmatmul.mubr.bf16.gmra.mrb[0].mxu0 %v1956
        %v11365 = vpop.f32.mrb[0].mxu0
        %v11366 = vadd.f32 %v11325, %v11365
        %v11367 = vpop.f32.mrb[0].mxu0
        %v11368 = vadd.f32 %v11327, %v11367
        %v11369 = vpop.f32.mrb[0].mxu0
        %v11370 = vpop.f32.mrb[0].mxu0
        %11371 = vdwg.mxu0
        %11372 = vmatprep.subr.bf16.mxu0 %v6593
        %11373 = vmatpush1.bf16.msra.mxu0 %v6592
        %11374 = vmatprep.subr.bf16.mxu0 %v6609
        %11375 = vmatpush1.bf16.msra.mxu0 %v6608
        %11376 = vmatprep.subr.bf16.mxu0 %v6625
        %11377 = vmatpush1.bf16.msra.mxu0 %v6624
        %11378 = vmatprep.subr.bf16.mxu0 %v6641
        %11379 = vmatpush1.bf16.msra.mxu0 %v6640
        %11380 = vmatprep.subr.bf16.mxu0 %v6657
        %11381 = vmatpush1.bf16.msra.mxu0 %v6656
        %11382 = vmatprep.subr.bf16.mxu0 %v6673
        %11383 = vmatpush1.bf16.msra.mxu0 %v6672
        %11384 = vmatprep.subr.bf16.mxu0 %v6689
        %11385 = vmatpush1.bf16.msra.mxu0 %v6688
        %11386 = vmatprep.subr.bf16.mxu0 %v6705
        %11387 = vmatpush1.bf16.msra.mxu0 %v6704
        %11388 = vmatprep.subr.bf16.mxu0 %v6721
        %11389 = vmatpush1.bf16.msra.mxu0 %v6720
        %11390 = vmatprep.subr.bf16.mxu0 %v6737
        %11391 = vmatpush1.bf16.msra.mxu0 %v6736
        %11392 = vmatprep.subr.bf16.mxu0 %v6753
        %11393 = vmatpush1.bf16.msra.mxu0 %v6752
        %11394 = vmatprep.subr.bf16.mxu0 %v6769
        %11395 = vmatpush1.bf16.msra.mxu0 %v6768
        %11396 = vmatprep.subr.bf16.mxu0 %v6785
        %11397 = vmatpush1.bf16.msra.mxu0 %v6784
        %11398 = vmatprep.subr.bf16.mxu0 %v6801
        %11399 = vmatpush1.bf16.msra.mxu0 %v6800
        %11400 = vmatprep.subr.bf16.mxu0 %v6817
        %11401 = vmatpush1.bf16.msra.mxu0 %v6816
        %11402 = vmatprep.subr.bf16.mxu0 %v6833
        %11403 = vmatpush1.bf16.msra.mxu0 %v6832
        %11404 = vmatprep.mubr.bf16.mxu0 %v1947
        %11405 = vmatmul.mubr.bf16.gmra.mrb[0].mxu0 %v1946
        %v11406 = vpop.f32.mrb[0].mxu0
        %v11407 = vadd.f32 0.0, %v11406
        %v11408 = vpop.f32.mrb[0].mxu0
        %v11409 = vadd.f32 0.0, %v11408
        %v11410 = vpop.f32.mrb[0].mxu0
        %v11411 = vpop.f32.mrb[0].mxu0
        %11412 = vdwg.mxu0
        %11413 = vmatprep.subr.bf16.mxu0 %v6849
        %11414 = vmatpush1.bf16.msra.mxu0 %v6848
        %11415 = vmatprep.subr.bf16.mxu0 %v6865
        %11416 = vmatpush1.bf16.msra.mxu0 %v6864
        %11417 = vmatprep.subr.bf16.mxu0 %v6881
        %11418 = vmatpush1.bf16.msra.mxu0 %v6880
        %11419 = vmatprep.subr.bf16.mxu0 %v6897
        %11420 = vmatpush1.bf16.msra.mxu0 %v6896
        %11421 = vmatprep.subr.bf16.mxu0 %v6913
        %11422 = vmatpush1.bf16.msra.mxu0 %v6912
        %11423 = vmatprep.subr.bf16.mxu0 %v6929
        %11424 = vmatpush1.bf16.msra.mxu0 %v6928
        %11425 = vmatprep.subr.bf16.mxu0 %v6945
        %11426 = vmatpush1.bf16.msra.mxu0 %v6944
        %11427 = vmatprep.subr.bf16.mxu0 %v6961
        %11428 = vmatpush1.bf16.msra.mxu0 %v6960
        %11429 = vmatprep.subr.bf16.mxu0 %v6977
        %11430 = vmatpush1.bf16.msra.mxu0 %v6976
        %11431 = vmatprep.subr.bf16.mxu0 %v6993
        %11432 = vmatpush1.bf16.msra.mxu0 %v6992
        %11433 = vmatprep.subr.bf16.mxu0 %v7009
        %11434 = vmatpush1.bf16.msra.mxu0 %v7008
        %11435 = vmatprep.subr.bf16.mxu0 %v7025
        %11436 = vmatpush1.bf16.msra.mxu0 %v7024
        %11437 = vmatprep.subr.bf16.mxu0 %v7041
        %11438 = vmatpush1.bf16.msra.mxu0 %v7040
        %11439 = vmatprep.subr.bf16.mxu0 %v7057
        %11440 = vmatpush1.bf16.msra.mxu0 %v7056
        %11441 = vmatprep.subr.bf16.mxu0 %v7073
        %11442 = vmatpush1.bf16.msra.mxu0 %v7072
        %11443 = vmatprep.subr.bf16.mxu0 %v7089
        %11444 = vmatpush1.bf16.msra.mxu0 %v7088
        %11445 = vmatprep.mubr.bf16.mxu0 %v1949
        %11446 = vmatmul.mubr.bf16.gmra.mrb[0].mxu0 %v1948
        %v11447 = vpop.f32.mrb[0].mxu0
        %v11448 = vadd.f32 %v11407, %v11447
        %v11449 = vpop.f32.mrb[0].mxu0
        %v11450 = vadd.f32 %v11409, %v11449
        %v11451 = vpop.f32.mrb[0].mxu0
        %v11452 = vpop.f32.mrb[0].mxu0
        %11453 = vdwg.mxu0
        %11454 = vmatprep.subr.bf16.mxu0 %v7105
        %11455 = vmatpush1.bf16.msra.mxu0 %v7104
        %11456 = vmatprep.subr.bf16.mxu0 %v7121
        %11457 = vmatpush1.bf16.msra.mxu0 %v7120
        %11458 = vmatprep.subr.bf16.mxu0 %v7137
        %11459 = vmatpush1.bf16.msra.mxu0 %v7136
        %11460 = vmatprep.subr.bf16.mxu0 %v7153
        %11461 = vmatpush1.bf16.msra.mxu0 %v7152
        %11462 = vmatprep.subr.bf16.mxu0 %v7169
        %11463 = vmatpush1.bf16.msra.mxu0 %v7168
        %11464 = vmatprep.subr.bf16.mxu0 %v7185
        %11465 = vmatpush1.bf16.msra.mxu0 %v7184
        %11466 = vmatprep.subr.bf16.mxu0 %v7201
        %11467 = vmatpush1.bf16.msra.mxu0 %v7200
        %11468 = vmatprep.subr.bf16.mxu0 %v7217
        %11469 = vmatpush1.bf16.msra.mxu0 %v7216
        %11470 = vmatprep.subr.bf16.mxu0 %v7233
        %11471 = vmatpush1.bf16.msra.mxu0 %v7232
        %11472 = vmatprep.subr.bf16.mxu0 %v7249
        %11473 = vmatpush1.bf16.msra.mxu0 %v7248
        %11474 = vmatprep.subr.bf16.mxu0 %v7265
        %11475 = vmatpush1.bf16.msra.mxu0 %v7264
        %11476 = vmatprep.subr.bf16.mxu0 %v7281
        %11477 = vmatpush1.bf16.msra.mxu0 %v7280
        %11478 = vmatprep.subr.bf16.mxu0 %v7297
        %11479 = vmatpush1.bf16.msra.mxu0 %v7296
        %11480 = vmatprep.subr.bf16.mxu0 %v7313
        %11481 = vmatpush1.bf16.msra.mxu0 %v7312
        %11482 = vmatprep.subr.bf16.mxu0 %v7329
        %11483 = vmatpush1.bf16.msra.mxu0 %v7328
        %11484 = vmatprep.subr.bf16.mxu0 %v7345
        %11485 = vmatpush1.bf16.msra.mxu0 %v7344
        %11486 = vmatprep.mubr.bf16.mxu0 %v1951
        %11487 = vmatmul.mubr.bf16.gmra.mrb[0].mxu0 %v1950
        %v11488 = vpop.f32.mrb[0].mxu0
        %v11489 = vadd.f32 %v11448, %v11488
        %v11490 = vpop.f32.mrb[0].mxu0
        %v11491 = vadd.f32 %v11450, %v11490
        %v11492 = vpop.f32.mrb[0].mxu0
        %v11493 = vpop.f32.mrb[0].mxu0
        %11494 = vdwg.mxu0
        %11495 = vmatprep.subr.bf16.mxu0 %v7361
        %11496 = vmatpush1.bf16.msra.mxu0 %v7360
        %11497 = vmatprep.subr.bf16.mxu0 %v7377
        %11498 = vmatpush1.bf16.msra.mxu0 %v7376
        %11499 = vmatprep.subr.bf16.mxu0 %v7393
        %11500 = vmatpush1.bf16.msra.mxu0 %v7392
        %11501 = vmatprep.subr.bf16.mxu0 %v7409
        %11502 = vmatpush1.bf16.msra.mxu0 %v7408
        %11503 = vmatprep.subr.bf16.mxu0 %v7425
        %11504 = vmatpush1.bf16.msra.mxu0 %v7424
        %11505 = vmatprep.subr.bf16.mxu0 %v7441
        %11506 = vmatpush1.bf16.msra.mxu0 %v7440
        %11507 = vmatprep.subr.bf16.mxu0 %v7457
        %11508 = vmatpush1.bf16.msra.mxu0 %v7456
        %11509 = vmatprep.subr.bf16.mxu0 %v7473
        %11510 = vmatpush1.bf16.msra.mxu0 %v7472
        %11511 = vmatprep.subr.bf16.mxu0 %v7489
        %11512 = vmatpush1.bf16.msra.mxu0 %v7488
        %11513 = vmatprep.subr.bf16.mxu0 %v7505
        %11514 = vmatpush1.bf16.msra.mxu0 %v7504
        %11515 = vmatprep.subr.bf16.mxu0 %v7521
        %11516 = vmatpush1.bf16.msra.mxu0 %v7520
        %11517 = vmatprep.subr.bf16.mxu0 %v7537
        %11518 = vmatpush1.bf16.msra.mxu0 %v7536
        %11519 = vmatprep.subr.bf16.mxu0 %v7553
        %11520 = vmatpush1.bf16.msra.mxu0 %v7552
        %11521 = vmatprep.subr.bf16.mxu0 %v7569
        %11522 = vmatpush1.bf16.msra.mxu0 %v7568
        %11523 = vmatprep.subr.bf16.mxu0 %v7585
        %11524 = vmatpush1.bf16.msra.mxu0 %v7584
        %11525 = vmatprep.subr.bf16.mxu0 %v7601
        %11526 = vmatpush1.bf16.msra.mxu0 %v7600
        %11527 = vmatprep.mubr.bf16.mxu0 %v1953
        %11528 = vmatmul.mubr.bf16.gmra.mrb[0].mxu0 %v1952
        %v11529 = vpop.f32.mrb[0].mxu0
        %v11530 = vadd.f32 %v11489, %v11529
        %v11531 = vpop.f32.mrb[0].mxu0
        %v11532 = vadd.f32 %v11491, %v11531
        %v11533 = vpop.f32.mrb[0].mxu0
        %v11534 = vpop.f32.mrb[0].mxu0
        %11535 = vdwg.mxu0
        %11536 = vmatprep.subr.bf16.mxu0 %v7617
        %11537 = vmatpush1.bf16.msra.mxu0 %v7616
        %11538 = vmatprep.subr.bf16.mxu0 %v7633
        %11539 = vmatpush1.bf16.msra.mxu0 %v7632
        %11540 = vmatprep.subr.bf16.mxu0 %v7649
        %11541 = vmatpush1.bf16.msra.mxu0 %v7648
        %11542 = vmatprep.subr.bf16.mxu0 %v7665
        %11543 = vmatpush1.bf16.msra.mxu0 %v7664
        %11544 = vmatprep.subr.bf16.mxu0 %v7681
        %11545 = vmatpush1.bf16.msra.mxu0 %v7680
        %11546 = vmatprep.subr.bf16.mxu0 %v7697
        %11547 = vmatpush1.bf16.msra.mxu0 %v7696
        %11548 = vmatprep.subr.bf16.mxu0 %v7713
        %11549 = vmatpush1.bf16.msra.mxu0 %v7712
        %11550 = vmatprep.subr.bf16.mxu0 %v7729
        %11551 = vmatpush1.bf16.msra.mxu0 %v7728
        %11552 = vmatprep.subr.bf16.mxu0 %v7745
        %11553 = vmatpush1.bf16.msra.mxu0 %v7744
        %11554 = vmatprep.subr.bf16.mxu0 %v7761
        %11555 = vmatpush1.bf16.msra.mxu0 %v7760
        %11556 = vmatprep.subr.bf16.mxu0 %v7777
        %11557 = vmatpush1.bf16.msra.mxu0 %v7776
        %11558 = vmatprep.subr.bf16.mxu0 %v7793
        %11559 = vmatpush1.bf16.msra.mxu0 %v7792
        %11560 = vmatprep.subr.bf16.mxu0 %v7809
        %11561 = vmatpush1.bf16.msra.mxu0 %v7808
        %11562 = vmatprep.subr.bf16.mxu0 %v7825
        %11563 = vmatpush1.bf16.msra.mxu0 %v7824
        %11564 = vmatprep.subr.bf16.mxu0 %v7841
        %11565 = vmatpush1.bf16.msra.mxu0 %v7840
        %11566 = vmatprep.subr.bf16.mxu0 %v7857
        %11567 = vmatpush1.bf16.msra.mxu0 %v7856
        %11568 = vmatprep.mubr.bf16.mxu0 %v1955
        %11569 = vmatmul.mubr.bf16.gmra.mrb[0].mxu0 %v1954
        %v11570 = vpop.f32.mrb[0].mxu0
        %v11571 = vadd.f32 %v11530, %v11570
        %v11572 = vpop.f32.mrb[0].mxu0
        %v11573 = vadd.f32 %v11532, %v11572
        %v11574 = vpop.f32.mrb[0].mxu0
        %v11575 = vpop.f32.mrb[0].mxu0
        %11576 = vdwg.mxu0
        %11577 = vmatprep.subr.bf16.mxu0 %v7873
        %11578 = vmatpush1.bf16.msra.mxu0 %v7872
        %11579 = vmatprep.subr.bf16.mxu0 %v7889
        %11580 = vmatpush1.bf16.msra.mxu0 %v7888
        %11581 = vmatprep.subr.bf16.mxu0 %v7905
        %11582 = vmatpush1.bf16.msra.mxu0 %v7904
        %11583 = vmatprep.subr.bf16.mxu0 %v7921
        %11584 = vmatpush1.bf16.msra.mxu0 %v7920
        %11585 = vmatprep.subr.bf16.mxu0 %v7937
        %11586 = vmatpush1.bf16.msra.mxu0 %v7936
        %11587 = vmatprep.subr.bf16.mxu0 %v7953
        %11588 = vmatpush1.bf16.msra.mxu0 %v7952
        %11589 = vmatprep.subr.bf16.mxu0 %v7969
        %11590 = vmatpush1.bf16.msra.mxu0 %v7968
        %11591 = vmatprep.subr.bf16.mxu0 %v7985
        %11592 = vmatpush1.bf16.msra.mxu0 %v7984
        %11593 = vmatprep.subr.bf16.mxu0 %v8001
        %11594 = vmatpush1.bf16.msra.mxu0 %v8000
        %11595 = vmatprep.subr.bf16.mxu0 %v8017
        %11596 = vmatpush1.bf16.msra.mxu0 %v8016
        %11597 = vmatprep.subr.bf16.mxu0 %v8033
        %11598 = vmatpush1.bf16.msra.mxu0 %v8032
        %11599 = vmatprep.subr.bf16.mxu0 %v8049
        %11600 = vmatpush1.bf16.msra.mxu0 %v8048
        %11601 = vmatprep.subr.bf16.mxu0 %v8065
        %11602 = vmatpush1.bf16.msra.mxu0 %v8064
        %11603 = vmatprep.subr.bf16.mxu0 %v8081
        %11604 = vmatpush1.bf16.msra.mxu0 %v8080
        %11605 = vmatprep.subr.bf16.mxu0 %v8097
        %11606 = vmatpush1.bf16.msra.mxu0 %v8096
        %11607 = vmatprep.subr.bf16.mxu0 %v8113
        %11608 = vmatpush1.bf16.msra.mxu0 %v8112
        %11609 = vmatprep.mubr.bf16.mxu0 %v1957
        %11610 = vmatmul.mubr.bf16.gmra.mrb[0].mxu0 %v1956
        %v11611 = vpop.f32.mrb[0].mxu0
        %v11612 = vadd.f32 %v11571, %v11611
        %v11613 = vpop.f32.mrb[0].mxu0
        %v11614 = vadd.f32 %v11573, %v11613
        %v11615 = vpop.f32.mrb[0].mxu0
        %v11616 = vpop.f32.mrb[0].mxu0
        %11617 = vdwg.mxu0
        %v11618 = vadd.f32 %v370, %v9890
        %v11619 = vadd.f32 %v371, %v9892
        %v11620 = vadd.f32 %v372, %v10136
        %v11621 = vadd.f32 %v373, %v10138
        %v11622 = vadd.f32 %v374, %v10382
        %v11623 = vadd.f32 %v375, %v10384
        %v11624 = vadd.f32 %v376, %v10628
        %v11625 = vadd.f32 %v377, %v10630
        %v11626 = vadd.f32 %v378, %v10874
        %v11627 = vadd.f32 %v379, %v10876
        %v11628 = vadd.f32 %v380, %v11120
        %v11629 = vadd.f32 %v381, %v11122
        %v11630 = vadd.f32 %v382, %v11366
        %v11631 = vadd.f32 %v383, %v11368
        %v11632 = vadd.f32 %v384, %v11612
        %v11633 = vadd.f32 %v385, %v11614
        %11634 = vst [vmem:[#allocation2] sm:$0xff] %v11618
        %11635 = vst [vmem:[#allocation2 + $0x8] sm:$0xff] %v11619
        %11636 = vst [vmem:[#allocation2 + $0x10] sm:$0xff] %v11620
        %11637 = vst [vmem:[#allocation2 + $0x18] sm:$0xff] %v11621
        %11638 = vst [vmem:[#allocation2 + $0x20] sm:$0xff] %v11622
        %11639 = vst [vmem:[#allocation2 + $0x28] sm:$0xff] %v11623
        %11640 = vst [vmem:[#allocation2 + $0x30] sm:$0xff] %v11624
        %11641 = vst [vmem:[#allocation2 + $0x38] sm:$0xff] %v11625
        %11642 = vst [vmem:[#allocation2 + $0x40] sm:$0xff] %v11626
        %11643 = vst [vmem:[#allocation2 + $0x48] sm:$0xff] %v11627
        %11644 = vst [vmem:[#allocation2 + $0x50] sm:$0xff] %v11628
        %11645 = vst [vmem:[#allocation2 + $0x58] sm:$0xff] %v11629
        %11646 = vst [vmem:[#allocation2 + $0x60] sm:$0xff] %v11630
        %11647 = vst [vmem:[#allocation2 + $0x68] sm:$0xff] %v11631
        %11648 = vst [vmem:[#allocation2 + $0x70] sm:$0xff] %v11632
        %11649 = vst [vmem:[#allocation2 + $0x78] sm:$0xff] %v11633
        %p11650 = scmp.eq.s32.totalorder %s26, 1
        // Predicated region
        $region61: #{mlp_forward.1} parent=39 // pred_check
          %p11651 = pneg %p11650
        $region62: #{mlp_forward.1} parent=39 // pred_check_branch
          %11653 = sbr.rel (%p11651) target = $region64
        $region63: #{mlp_forward.1} parent=39 // pred_region
          %v11654 = vld [vmem:[#allocation2] sm:$0xff]
          %v11655 = vld [vmem:[#allocation2 + $0x8] sm:$0xff]
          %v11656 = vld [vmem:[#allocation2 + $0x10] sm:$0xff]
          %v11657 = vld [vmem:[#allocation2 + $0x18] sm:$0xff]
          %v11658 = vld [vmem:[#allocation2 + $0x20] sm:$0xff]
          %v11659 = vld [vmem:[#allocation2 + $0x28] sm:$0xff]
          %v11660 = vld [vmem:[#allocation2 + $0x30] sm:$0xff]
          %v11661 = vld [vmem:[#allocation2 + $0x38] sm:$0xff]
          %v11662 = vld [vmem:[#allocation2 + $0x40] sm:$0xff]
          %v11663 = vld [vmem:[#allocation2 + $0x48] sm:$0xff]
          %v11664 = vld [vmem:[#allocation2 + $0x50] sm:$0xff]
          %v11665 = vld [vmem:[#allocation2 + $0x58] sm:$0xff]
          %v11666 = vld [vmem:[#allocation2 + $0x60] sm:$0xff]
          %v11667 = vld [vmem:[#allocation2 + $0x68] sm:$0xff]
          %v11668 = vld [vmem:[#allocation2 + $0x70] sm:$0xff]
          %v11669 = vld [vmem:[#allocation2 + $0x78] sm:$0xff]
          %v11670 = vld [vmem:[#allocation5] sm:$0xff]
          %v11671 = vld [vmem:[#allocation5 + $0x8] sm:$0xff]
          %v11674 = vlaneseq
          %v11675 = vshrl.u32 %v11674, 7
          %v11676 = vsub.s32 0, %v11675
          %v11677 = vrot.slane %v11670, %v11676
          %v11678 = vlaneseq
          %v11679 = vshrl.u32 %v11678, 7
          %v11680 = vsub.s32 1, %v11679
          %v11681 = vrot.slane %v11670, %v11680
          %v11682 = vlaneseq
          %v11683 = vshrl.u32 %v11682, 7
          %v11684 = vsub.s32 2, %v11683
          %v11685 = vrot.slane %v11670, %v11684
          %v11686 = vlaneseq
          %v11687 = vshrl.u32 %v11686, 7
          %v11688 = vsub.s32 3, %v11687
          %v11689 = vrot.slane %v11670, %v11688
          %v11690 = vlaneseq
          %v11691 = vshrl.u32 %v11690, 7
          %v11692 = vsub.s32 4, %v11691
          %v11693 = vrot.slane %v11670, %v11692
          %v11694 = vlaneseq
          %v11695 = vshrl.u32 %v11694, 7
          %v11696 = vsub.s32 5, %v11695
          %v11697 = vrot.slane %v11670, %v11696
          %v11698 = vlaneseq
          %v11699 = vshrl.u32 %v11698, 7
          %v11700 = vsub.s32 6, %v11699
          %v11701 = vrot.slane %v11670, %v11700
          %v11702 = vlaneseq
          %v11703 = vshrl.u32 %v11702, 7
          %v11704 = vsub.s32 7, %v11703
          %v11705 = vrot.slane %v11670, %v11704
          %v11706 = vlaneseq
          %v11707 = vshrl.u32 %v11706, 7
          %v11708 = vsub.s32 0, %v11707
          %v11709 = vrot.slane %v11671, %v11708
          %v11710 = vlaneseq
          %v11711 = vshrl.u32 %v11710, 7
          %v11712 = vsub.s32 1, %v11711
          %v11713 = vrot.slane %v11671, %v11712
          %v11714 = vlaneseq
          %v11715 = vshrl.u32 %v11714, 7
          %v11716 = vsub.s32 2, %v11715
          %v11717 = vrot.slane %v11671, %v11716
          %v11718 = vlaneseq
          %v11719 = vshrl.u32 %v11718, 7
          %v11720 = vsub.s32 3, %v11719
          %v11721 = vrot.slane %v11671, %v11720
          %v11722 = vlaneseq
          %v11723 = vshrl.u32 %v11722, 7
          %v11724 = vsub.s32 4, %v11723
          %v11725 = vrot.slane %v11671, %v11724
          %v11726 = vlaneseq
          %v11727 = vshrl.u32 %v11726, 7
          %v11728 = vsub.s32 5, %v11727
          %v11729 = vrot.slane %v11671, %v11728
          %v11730 = vlaneseq
          %v11731 = vshrl.u32 %v11730, 7
          %v11732 = vsub.s32 6, %v11731
          %v11733 = vrot.slane %v11671, %v11732
          %v11734 = vlaneseq
          %v11735 = vshrl.u32 %v11734, 7
          %v11736 = vsub.s32 7, %v11735
          %v11737 = vrot.slane %v11671, %v11736
          %v11754 = vmul.f32 %v11654, %v11677
          %v11755 = vmul.f32 %v11655, %v11681
          %v11756 = vmul.f32 %v11656, %v11685
          %v11757 = vmul.f32 %v11657, %v11689
          %v11758 = vmul.f32 %v11658, %v11693
          %v11759 = vmul.f32 %v11659, %v11697
          %v11760 = vmul.f32 %v11660, %v11701
          %v11761 = vmul.f32 %v11661, %v11705
          %v11762 = vmul.f32 %v11662, %v11709
          %v11763 = vmul.f32 %v11663, %v11713
          %v11764 = vmul.f32 %v11664, %v11717
          %v11765 = vmul.f32 %v11665, %v11721
          %v11766 = vmul.f32 %v11666, %v11725
          %v11767 = vmul.f32 %v11667, %v11729
          %v11768 = vmul.f32 %v11668, %v11733
          %v11769 = vmul.f32 %v11669, %v11737
          %v11770 = vld [vmem:[#allocation7] sm:$0xff]
          %v11771 = vld [vmem:[#allocation7 + $0x8] sm:$0xff]
          %v11774 = vlaneseq
          %v11775 = vshrl.u32 %v11774, 7
          %v11776 = vsub.s32 0, %v11775
          %v11777 = vrot.slane %v11770, %v11776
          %v11778 = vlaneseq
          %v11779 = vshrl.u32 %v11778, 7
          %v11780 = vsub.s32 1, %v11779
          %v11781 = vrot.slane %v11770, %v11780
          %v11782 = vlaneseq
          %v11783 = vshrl.u32 %v11782, 7
          %v11784 = vsub.s32 2, %v11783
          %v11785 = vrot.slane %v11770, %v11784
          %v11786 = vlaneseq
          %v11787 = vshrl.u32 %v11786, 7
          %v11788 = vsub.s32 3, %v11787
          %v11789 = vrot.slane %v11770, %v11788
          %v11790 = vlaneseq
          %v11791 = vshrl.u32 %v11790, 7
          %v11792 = vsub.s32 4, %v11791
          %v11793 = vrot.slane %v11770, %v11792
          %v11794 = vlaneseq
          %v11795 = vshrl.u32 %v11794, 7
          %v11796 = vsub.s32 5, %v11795
          %v11797 = vrot.slane %v11770, %v11796
          %v11798 = vlaneseq
          %v11799 = vshrl.u32 %v11798, 7
          %v11800 = vsub.s32 6, %v11799
          %v11801 = vrot.slane %v11770, %v11800
          %v11802 = vlaneseq
          %v11803 = vshrl.u32 %v11802, 7
          %v11804 = vsub.s32 7, %v11803
          %v11805 = vrot.slane %v11770, %v11804
          %v11806 = vlaneseq
          %v11807 = vshrl.u32 %v11806, 7
          %v11808 = vsub.s32 0, %v11807
          %v11809 = vrot.slane %v11771, %v11808
          %v11810 = vlaneseq
          %v11811 = vshrl.u32 %v11810, 7
          %v11812 = vsub.s32 1, %v11811
          %v11813 = vrot.slane %v11771, %v11812
          %v11814 = vlaneseq
          %v11815 = vshrl.u32 %v11814, 7
          %v11816 = vsub.s32 2, %v11815
          %v11817 = vrot.slane %v11771, %v11816
          %v11818 = vlaneseq
          %v11819 = vshrl.u32 %v11818, 7
          %v11820 = vsub.s32 3, %v11819
          %v11821 = vrot.slane %v11771, %v11820
          %v11822 = vlaneseq
          %v11823 = vshrl.u32 %v11822, 7
          %v11824 = vsub.s32 4, %v11823
          %v11825 = vrot.slane %v11771, %v11824
          %v11826 = vlaneseq
          %v11827 = vshrl.u32 %v11826, 7
          %v11828 = vsub.s32 5, %v11827
          %v11829 = vrot.slane %v11771, %v11828
          %v11830 = vlaneseq
          %v11831 = vshrl.u32 %v11830, 7
          %v11832 = vsub.s32 6, %v11831
          %v11833 = vrot.slane %v11771, %v11832
          %v11834 = vlaneseq
          %v11835 = vshrl.u32 %v11834, 7
          %v11836 = vsub.s32 7, %v11835
          %v11837 = vrot.slane %v11771, %v11836
          %v11854 = vadd.f32 %v11754, %v11777
          %v11855 = vadd.f32 %v11755, %v11781
          %v11856 = vadd.f32 %v11756, %v11785
          %v11857 = vadd.f32 %v11757, %v11789
          %v11858 = vadd.f32 %v11758, %v11793
          %v11859 = vadd.f32 %v11759, %v11797
          %v11860 = vadd.f32 %v11760, %v11801
          %v11861 = vadd.f32 %v11761, %v11805
          %v11862 = vadd.f32 %v11762, %v11809
          %v11863 = vadd.f32 %v11763, %v11813
          %v11864 = vadd.f32 %v11764, %v11817
          %v11865 = vadd.f32 %v11765, %v11821
          %v11866 = vadd.f32 %v11766, %v11825
          %v11867 = vadd.f32 %v11767, %v11829
          %v11868 = vadd.f32 %v11768, %v11833
          %v11869 = vadd.f32 %v11769, %v11837
          %v11870 = vmax.f32 %v11854, 0.0
          %v11871 = vmax.f32 %v11855, 0.0
          %v11872 = vmax.f32 %v11856, 0.0
          %v11873 = vmax.f32 %v11857, 0.0
          %v11874 = vmax.f32 %v11858, 0.0
          %v11875 = vmax.f32 %v11859, 0.0
          %v11876 = vmax.f32 %v11860, 0.0
          %v11877 = vmax.f32 %v11861, 0.0
          %v11878 = vmax.f32 %v11862, 0.0
          %v11879 = vmax.f32 %v11863, 0.0
          %v11880 = vmax.f32 %v11864, 0.0
          %v11881 = vmax.f32 %v11865, 0.0
          %v11882 = vmax.f32 %v11866, 0.0
          %v11883 = vmax.f32 %v11867, 0.0
          %v11884 = vmax.f32 %v11868, 0.0
          %v11885 = vmax.f32 %v11869, 0.0
          %v11886 = vpack.c.bf16 %v11870, %v11870
          %v11887 = vpack.c.bf16 %v11871, %v11871
          %v11888 = vpack.c.bf16 %v11872, %v11872
          %v11889 = vpack.c.bf16 %v11873, %v11873
          %v11890 = vpack.c.bf16 %v11874, %v11874
          %v11891 = vpack.c.bf16 %v11875, %v11875
          %v11892 = vpack.c.bf16 %v11876, %v11876
          %v11893 = vpack.c.bf16 %v11877, %v11877
          %v11894 = vpack.c.bf16 %v11878, %v11878
          %v11895 = vpack.c.bf16 %v11879, %v11879
          %v11896 = vpack.c.bf16 %v11880, %v11880
          %v11897 = vpack.c.bf16 %v11881, %v11881
          %v11898 = vpack.c.bf16 %v11882, %v11882
          %v11899 = vpack.c.bf16 %v11883, %v11883
          %v11900 = vpack.c.bf16 %v11884, %v11884
          %v11901 = vpack.c.bf16 %v11885, %v11885
          %v11902 = vld [vmem:[#allocation8] sm:$0xf]
          %v11903 = vld [vmem:[#allocation8 + $0x4] sm:$0xf]
          %v11904 = vld [vmem:[#allocation8 + $0x8] sm:$0xf]
          %v11905 = vld [vmem:[#allocation8 + $0xc] sm:$0xf]
          %v11906 = vld [vmem:[#allocation8 + $0x10] sm:$0xf]
          %v11907 = vld [vmem:[#allocation8 + $0x14] sm:$0xf]
          %v11908 = vld [vmem:[#allocation8 + $0x18] sm:$0xf]
          %v11909 = vld [vmem:[#allocation8 + $0x1c] sm:$0xf]
          %v11910 = vld [vmem:[#allocation8 + $0x20] sm:$0xf]
          %v11911 = vld [vmem:[#allocation8 + $0x24] sm:$0xf]
          %v11912 = vld [vmem:[#allocation8 + $0x28] sm:$0xf]
          %v11913 = vld [vmem:[#allocation8 + $0x2c] sm:$0xf]
          %v11914 = vld [vmem:[#allocation8 + $0x30] sm:$0xf]
          %v11915 = vld [vmem:[#allocation8 + $0x34] sm:$0xf]
          %v11916 = vld [vmem:[#allocation8 + $0x38] sm:$0xf]
          %v11917 = vld [vmem:[#allocation8 + $0x3c] sm:$0xf]
          %v11918 = vld [vmem:[#allocation8 + $0x40] sm:$0xf]
          %v11919 = vld [vmem:[#allocation8 + $0x44] sm:$0xf]
          %v11920 = vld [vmem:[#allocation8 + $0x48] sm:$0xf]
          %v11921 = vld [vmem:[#allocation8 + $0x4c] sm:$0xf]
          %v11922 = vld [vmem:[#allocation8 + $0x50] sm:$0xf]
          %v11923 = vld [vmem:[#allocation8 + $0x54] sm:$0xf]
          %v11924 = vld [vmem:[#allocation8 + $0x58] sm:$0xf]
          %v11925 = vld [vmem:[#allocation8 + $0x5c] sm:$0xf]
          %v11926 = vld [vmem:[#allocation8 + $0x60] sm:$0xf]
          %v11927 = vld [vmem:[#allocation8 + $0x64] sm:$0xf]
          %v11928 = vld [vmem:[#allocation8 + $0x68] sm:$0xf]
          %v11929 = vld [vmem:[#allocation8 + $0x6c] sm:$0xf]
          %v11930 = vld [vmem:[#allocation8 + $0x70] sm:$0xf]
          %v11931 = vld [vmem:[#allocation8 + $0x74] sm:$0xf]
          %v11932 = vld [vmem:[#allocation8 + $0x78] sm:$0xf]
          %v11933 = vld [vmem:[#allocation8 + $0x7c] sm:$0xf]
          %v11934 = vld [vmem:[#allocation8 + $0x80] sm:$0xf]
          %v11935 = vld [vmem:[#allocation8 + $0x84] sm:$0xf]
          %v11936 = vld [vmem:[#allocation8 + $0x88] sm:$0xf]
          %v11937 = vld [vmem:[#allocation8 + $0x8c] sm:$0xf]
          %v11938 = vld [vmem:[#allocation8 + $0x90] sm:$0xf]
          %v11939 = vld [vmem:[#allocation8 + $0x94] sm:$0xf]
          %v11940 = vld [vmem:[#allocation8 + $0x98] sm:$0xf]
          %v11941 = vld [vmem:[#allocation8 + $0x9c] sm:$0xf]
          %v11942 = vld [vmem:[#allocation8 + $0xa0] sm:$0xf]
          %v11943 = vld [vmem:[#allocation8 + $0xa4] sm:$0xf]
          %v11944 = vld [vmem:[#allocation8 + $0xa8] sm:$0xf]
          %v11945 = vld [vmem:[#allocation8 + $0xac] sm:$0xf]
          %v11946 = vld [vmem:[#allocation8 + $0xb0] sm:$0xf]
          %v11947 = vld [vmem:[#allocation8 + $0xb4] sm:$0xf]
          %v11948 = vld [vmem:[#allocation8 + $0xb8] sm:$0xf]
          %v11949 = vld [vmem:[#allocation8 + $0xbc] sm:$0xf]
          %v11950 = vld [vmem:[#allocation8 + $0xc0] sm:$0xf]
          %v11951 = vld [vmem:[#allocation8 + $0xc4] sm:$0xf]
          %v11952 = vld [vmem:[#allocation8 + $0xc8] sm:$0xf]
          %v11953 = vld [vmem:[#allocation8 + $0xcc] sm:$0xf]
          %v11954 = vld [vmem:[#allocation8 + $0xd0] sm:$0xf]
          %v11955 = vld [vmem:[#allocation8 + $0xd4] sm:$0xf]
          %v11956 = vld [vmem:[#allocation8 + $0xd8] sm:$0xf]
          %v11957 = vld [vmem:[#allocation8 + $0xdc] sm:$0xf]
          %v11958 = vld [vmem:[#allocation8 + $0xe0] sm:$0xf]
          %v11959 = vld [vmem:[#allocation8 + $0xe4] sm:$0xf]
          %v11960 = vld [vmem:[#allocation8 + $0xe8] sm:$0xf]
          %v11961 = vld [vmem:[#allocation8 + $0xec] sm:$0xf]
          %v11962 = vld [vmem:[#allocation8 + $0xf0] sm:$0xf]
          %v11963 = vld [vmem:[#allocation8 + $0xf4] sm:$0xf]
          %v11964 = vld [vmem:[#allocation8 + $0xf8] sm:$0xf]
          %v11965 = vld [vmem:[#allocation8 + $0xfc] sm:$0xf]
          %v11966 = vld [vmem:[#allocation8 + $0x100] sm:$0xf]
          %v11967 = vld [vmem:[#allocation8 + $0x104] sm:$0xf]
          %v11968 = vld [vmem:[#allocation8 + $0x108] sm:$0xf]
          %v11969 = vld [vmem:[#allocation8 + $0x10c] sm:$0xf]
          %v11970 = vld [vmem:[#allocation8 + $0x110] sm:$0xf]
          %v11971 = vld [vmem:[#allocation8 + $0x114] sm:$0xf]
          %v11972 = vld [vmem:[#allocation8 + $0x118] sm:$0xf]
          %v11973 = vld [vmem:[#allocation8 + $0x11c] sm:$0xf]
          %v11974 = vld [vmem:[#allocation8 + $0x120] sm:$0xf]
          %v11975 = vld [vmem:[#allocation8 + $0x124] sm:$0xf]
          %v11976 = vld [vmem:[#allocation8 + $0x128] sm:$0xf]
          %v11977 = vld [vmem:[#allocation8 + $0x12c] sm:$0xf]
          %v11978 = vld [vmem:[#allocation8 + $0x130] sm:$0xf]
          %v11979 = vld [vmem:[#allocation8 + $0x134] sm:$0xf]
          %v11980 = vld [vmem:[#allocation8 + $0x138] sm:$0xf]
          %v11981 = vld [vmem:[#allocation8 + $0x13c] sm:$0xf]
          %v11982 = vld [vmem:[#allocation8 + $0x140] sm:$0xf]
          %v11983 = vld [vmem:[#allocation8 + $0x144] sm:$0xf]
          %v11984 = vld [vmem:[#allocation8 + $0x148] sm:$0xf]
          %v11985 = vld [vmem:[#allocation8 + $0x14c] sm:$0xf]
          %v11986 = vld [vmem:[#allocation8 + $0x150] sm:$0xf]
          %v11987 = vld [vmem:[#allocation8 + $0x154] sm:$0xf]
          %v11988 = vld [vmem:[#allocation8 + $0x158] sm:$0xf]
          %v11989 = vld [vmem:[#allocation8 + $0x15c] sm:$0xf]
          %v11990 = vld [vmem:[#allocation8 + $0x160] sm:$0xf]
          %v11991 = vld [vmem:[#allocation8 + $0x164] sm:$0xf]
          %v11992 = vld [vmem:[#allocation8 + $0x168] sm:$0xf]
          %v11993 = vld [vmem:[#allocation8 + $0x16c] sm:$0xf]
          %v11994 = vld [vmem:[#allocation8 + $0x170] sm:$0xf]
          %v11995 = vld [vmem:[#allocation8 + $0x174] sm:$0xf]
          %v11996 = vld [vmem:[#allocation8 + $0x178] sm:$0xf]
          %v11997 = vld [vmem:[#allocation8 + $0x17c] sm:$0xf]
          %v11998 = vld [vmem:[#allocation8 + $0x180] sm:$0xf]
          %v11999 = vld [vmem:[#allocation8 + $0x184] sm:$0xf]
          %v12000 = vld [vmem:[#allocation8 + $0x188] sm:$0xf]
          %v12001 = vld [vmem:[#allocation8 + $0x18c] sm:$0xf]
          %v12002 = vld [vmem:[#allocation8 + $0x190] sm:$0xf]
          %v12003 = vld [vmem:[#allocation8 + $0x194] sm:$0xf]
          %v12004 = vld [vmem:[#allocation8 + $0x198] sm:$0xf]
          %v12005 = vld [vmem:[#allocation8 + $0x19c] sm:$0xf]
          %v12006 = vld [vmem:[#allocation8 + $0x1a0] sm:$0xf]
          %v12007 = vld [vmem:[#allocation8 + $0x1a4] sm:$0xf]
          %v12008 = vld [vmem:[#allocation8 + $0x1a8] sm:$0xf]
          %v12009 = vld [vmem:[#allocation8 + $0x1ac] sm:$0xf]
          %v12010 = vld [vmem:[#allocation8 + $0x1b0] sm:$0xf]
          %v12011 = vld [vmem:[#allocation8 + $0x1b4] sm:$0xf]
          %v12012 = vld [vmem:[#allocation8 + $0x1b8] sm:$0xf]
          %v12013 = vld [vmem:[#allocation8 + $0x1bc] sm:$0xf]
          %v12014 = vld [vmem:[#allocation8 + $0x1c0] sm:$0xf]
          %v12015 = vld [vmem:[#allocation8 + $0x1c4] sm:$0xf]
          %v12016 = vld [vmem:[#allocation8 + $0x1c8] sm:$0xf]
          %v12017 = vld [vmem:[#allocation8 + $0x1cc] sm:$0xf]
          %v12018 = vld [vmem:[#allocation8 + $0x1d0] sm:$0xf]
          %v12019 = vld [vmem:[#allocation8 + $0x1d4] sm:$0xf]
          %v12020 = vld [vmem:[#allocation8 + $0x1d8] sm:$0xf]
          %v12021 = vld [vmem:[#allocation8 + $0x1dc] sm:$0xf]
          %v12022 = vld [vmem:[#allocation8 + $0x1e0] sm:$0xf]
          %v12023 = vld [vmem:[#allocation8 + $0x1e4] sm:$0xf]
          %v12024 = vld [vmem:[#allocation8 + $0x1e8] sm:$0xf]
          %v12025 = vld [vmem:[#allocation8 + $0x1ec] sm:$0xf]
          %v12026 = vld [vmem:[#allocation8 + $0x1f0] sm:$0xf]
          %v12027 = vld [vmem:[#allocation8 + $0x1f4] sm:$0xf]
          %v12028 = vld [vmem:[#allocation8 + $0x1f8] sm:$0xf]
          %v12029 = vld [vmem:[#allocation8 + $0x1fc] sm:$0xf]
          %v12030 = vld [vmem:[#allocation8 + $0x200] sm:$0xf]
          %v12031 = vld [vmem:[#allocation8 + $0x204] sm:$0xf]
          %v12032 = vld [vmem:[#allocation8 + $0x208] sm:$0xf]
          %v12033 = vld [vmem:[#allocation8 + $0x20c] sm:$0xf]
          %v12034 = vld [vmem:[#allocation8 + $0x210] sm:$0xf]
          %v12035 = vld [vmem:[#allocation8 + $0x214] sm:$0xf]
          %v12036 = vld [vmem:[#allocation8 + $0x218] sm:$0xf]
          %v12037 = vld [vmem:[#allocation8 + $0x21c] sm:$0xf]
          %v12038 = vld [vmem:[#allocation8 + $0x220] sm:$0xf]
          %v12039 = vld [vmem:[#allocation8 + $0x224] sm:$0xf]
          %v12040 = vld [vmem:[#allocation8 + $0x228] sm:$0xf]
          %v12041 = vld [vmem:[#allocation8 + $0x22c] sm:$0xf]
          %v12042 = vld [vmem:[#allocation8 + $0x230] sm:$0xf]
          %v12043 = vld [vmem:[#allocation8 + $0x234] sm:$0xf]
          %v12044 = vld [vmem:[#allocation8 + $0x238] sm:$0xf]
          %v12045 = vld [vmem:[#allocation8 + $0x23c] sm:$0xf]
          %v12046 = vld [vmem:[#allocation8 + $0x240] sm:$0xf]
          %v12047 = vld [vmem:[#allocation8 + $0x244] sm:$0xf]
          %v12048 = vld [vmem:[#allocation8 + $0x248] sm:$0xf]
          %v12049 = vld [vmem:[#allocation8 + $0x24c] sm:$0xf]
          %v12050 = vld [vmem:[#allocation8 + $0x250] sm:$0xf]
          %v12051 = vld [vmem:[#allocation8 + $0x254] sm:$0xf]
          %v12052 = vld [vmem:[#allocation8 + $0x258] sm:$0xf]
          %v12053 = vld [vmem:[#allocation8 + $0x25c] sm:$0xf]
          %v12054 = vld [vmem:[#allocation8 + $0x260] sm:$0xf]
          %v12055 = vld [vmem:[#allocation8 + $0x264] sm:$0xf]
          %v12056 = vld [vmem:[#allocation8 + $0x268] sm:$0xf]
          %v12057 = vld [vmem:[#allocation8 + $0x26c] sm:$0xf]
          %v12058 = vld [vmem:[#allocation8 + $0x270] sm:$0xf]
          %v12059 = vld [vmem:[#allocation8 + $0x274] sm:$0xf]
          %v12060 = vld [vmem:[#allocation8 + $0x278] sm:$0xf]
          %v12061 = vld [vmem:[#allocation8 + $0x27c] sm:$0xf]
          %v12062 = vld [vmem:[#allocation8 + $0x280] sm:$0xf]
          %v12063 = vld [vmem:[#allocation8 + $0x284] sm:$0xf]
          %v12064 = vld [vmem:[#allocation8 + $0x288] sm:$0xf]
          %v12065 = vld [vmem:[#allocation8 + $0x28c] sm:$0xf]
          %v12066 = vld [vmem:[#allocation8 + $0x290] sm:$0xf]
          %v12067 = vld [vmem:[#allocation8 + $0x294] sm:$0xf]
          %v12068 = vld [vmem:[#allocation8 + $0x298] sm:$0xf]
          %v12069 = vld [vmem:[#allocation8 + $0x29c] sm:$0xf]
          %v12070 = vld [vmem:[#allocation8 + $0x2a0] sm:$0xf]
          %v12071 = vld [vmem:[#allocation8 + $0x2a4] sm:$0xf]
          %v12072 = vld [vmem:[#allocation8 + $0x2a8] sm:$0xf]
          %v12073 = vld [vmem:[#allocation8 + $0x2ac] sm:$0xf]
          %v12074 = vld [vmem:[#allocation8 + $0x2b0] sm:$0xf]
          %v12075 = vld [vmem:[#allocation8 + $0x2b4] sm:$0xf]
          %v12076 = vld [vmem:[#allocation8 + $0x2b8] sm:$0xf]
          %v12077 = vld [vmem:[#allocation8 + $0x2bc] sm:$0xf]
          %v12078 = vld [vmem:[#allocation8 + $0x2c0] sm:$0xf]
          %v12079 = vld [vmem:[#allocation8 + $0x2c4] sm:$0xf]
          %v12080 = vld [vmem:[#allocation8 + $0x2c8] sm:$0xf]
          %v12081 = vld [vmem:[#allocation8 + $0x2cc] sm:$0xf]
          %v12082 = vld [vmem:[#allocation8 + $0x2d0] sm:$0xf]
          %v12083 = vld [vmem:[#allocation8 + $0x2d4] sm:$0xf]
          %v12084 = vld [vmem:[#allocation8 + $0x2d8] sm:$0xf]
          %v12085 = vld [vmem:[#allocation8 + $0x2dc] sm:$0xf]
          %v12086 = vld [vmem:[#allocation8 + $0x2e0] sm:$0xf]
          %v12087 = vld [vmem:[#allocation8 + $0x2e4] sm:$0xf]
          %v12088 = vld [vmem:[#allocation8 + $0x2e8] sm:$0xf]
          %v12089 = vld [vmem:[#allocation8 + $0x2ec] sm:$0xf]
          %v12090 = vld [vmem:[#allocation8 + $0x2f0] sm:$0xf]
          %v12091 = vld [vmem:[#allocation8 + $0x2f4] sm:$0xf]
          %v12092 = vld [vmem:[#allocation8 + $0x2f8] sm:$0xf]
          %v12093 = vld [vmem:[#allocation8 + $0x2fc] sm:$0xf]
          %v12094 = vld [vmem:[#allocation8 + $0x300] sm:$0xf]
          %v12095 = vld [vmem:[#allocation8 + $0x304] sm:$0xf]
          %v12096 = vld [vmem:[#allocation8 + $0x308] sm:$0xf]
          %v12097 = vld [vmem:[#allocation8 + $0x30c] sm:$0xf]
          %v12098 = vld [vmem:[#allocation8 + $0x310] sm:$0xf]
          %v12099 = vld [vmem:[#allocation8 + $0x314] sm:$0xf]
          %v12100 = vld [vmem:[#allocation8 + $0x318] sm:$0xf]
          %v12101 = vld [vmem:[#allocation8 + $0x31c] sm:$0xf]
          %v12102 = vld [vmem:[#allocation8 + $0x320] sm:$0xf]
          %v12103 = vld [vmem:[#allocation8 + $0x324] sm:$0xf]
          %v12104 = vld [vmem:[#allocation8 + $0x328] sm:$0xf]
          %v12105 = vld [vmem:[#allocation8 + $0x32c] sm:$0xf]
          %v12106 = vld [vmem:[#allocation8 + $0x330] sm:$0xf]
          %v12107 = vld [vmem:[#allocation8 + $0x334] sm:$0xf]
          %v12108 = vld [vmem:[#allocation8 + $0x338] sm:$0xf]
          %v12109 = vld [vmem:[#allocation8 + $0x33c] sm:$0xf]
          %v12110 = vld [vmem:[#allocation8 + $0x340] sm:$0xf]
          %v12111 = vld [vmem:[#allocation8 + $0x344] sm:$0xf]
          %v12112 = vld [vmem:[#allocation8 + $0x348] sm:$0xf]
          %v12113 = vld [vmem:[#allocation8 + $0x34c] sm:$0xf]
          %v12114 = vld [vmem:[#allocation8 + $0x350] sm:$0xf]
          %v12115 = vld [vmem:[#allocation8 + $0x354] sm:$0xf]
          %v12116 = vld [vmem:[#allocation8 + $0x358] sm:$0xf]
          %v12117 = vld [vmem:[#allocation8 + $0x35c] sm:$0xf]
          %v12118 = vld [vmem:[#allocation8 + $0x360] sm:$0xf]
          %v12119 = vld [vmem:[#allocation8 + $0x364] sm:$0xf]
          %v12120 = vld [vmem:[#allocation8 + $0x368] sm:$0xf]
          %v12121 = vld [vmem:[#allocation8 + $0x36c] sm:$0xf]
          %v12122 = vld [vmem:[#allocation8 + $0x370] sm:$0xf]
          %v12123 = vld [vmem:[#allocation8 + $0x374] sm:$0xf]
          %v12124 = vld [vmem:[#allocation8 + $0x378] sm:$0xf]
          %v12125 = vld [vmem:[#allocation8 + $0x37c] sm:$0xf]
          %v12126 = vld [vmem:[#allocation8 + $0x380] sm:$0xf]
          %v12127 = vld [vmem:[#allocation8 + $0x384] sm:$0xf]
          %v12128 = vld [vmem:[#allocation8 + $0x388] sm:$0xf]
          %v12129 = vld [vmem:[#allocation8 + $0x38c] sm:$0xf]
          %v12130 = vld [vmem:[#allocation8 + $0x390] sm:$0xf]
          %v12131 = vld [vmem:[#allocation8 + $0x394] sm:$0xf]
          %v12132 = vld [vmem:[#allocation8 + $0x398] sm:$0xf]
          %v12133 = vld [vmem:[#allocation8 + $0x39c] sm:$0xf]
          %v12134 = vld [vmem:[#allocation8 + $0x3a0] sm:$0xf]
          %v12135 = vld [vmem:[#allocation8 + $0x3a4] sm:$0xf]
          %v12136 = vld [vmem:[#allocation8 + $0x3a8] sm:$0xf]
          %v12137 = vld [vmem:[#allocation8 + $0x3ac] sm:$0xf]
          %v12138 = vld [vmem:[#allocation8 + $0x3b0] sm:$0xf]
          %v12139 = vld [vmem:[#allocation8 + $0x3b4] sm:$0xf]
          %v12140 = vld [vmem:[#allocation8 + $0x3b8] sm:$0xf]
          %v12141 = vld [vmem:[#allocation8 + $0x3bc] sm:$0xf]
          %v12142 = vld [vmem:[#allocation8 + $0x3c0] sm:$0xf]
          %v12143 = vld [vmem:[#allocation8 + $0x3c4] sm:$0xf]
          %v12144 = vld [vmem:[#allocation8 + $0x3c8] sm:$0xf]
          %v12145 = vld [vmem:[#allocation8 + $0x3cc] sm:$0xf]
          %v12146 = vld [vmem:[#allocation8 + $0x3d0] sm:$0xf]
          %v12147 = vld [vmem:[#allocation8 + $0x3d4] sm:$0xf]
          %v12148 = vld [vmem:[#allocation8 + $0x3d8] sm:$0xf]
          %v12149 = vld [vmem:[#allocation8 + $0x3dc] sm:$0xf]
          %v12150 = vld [vmem:[#allocation8 + $0x3e0] sm:$0xf]
          %v12151 = vld [vmem:[#allocation8 + $0x3e4] sm:$0xf]
          %v12152 = vld [vmem:[#allocation8 + $0x3e8] sm:$0xf]
          %v12153 = vld [vmem:[#allocation8 + $0x3ec] sm:$0xf]
          %v12154 = vld [vmem:[#allocation8 + $0x3f0] sm:$0xf]
          %v12155 = vld [vmem:[#allocation8 + $0x3f4] sm:$0xf]
          %v12156 = vld [vmem:[#allocation8 + $0x3f8] sm:$0xf]
          %v12157 = vld [vmem:[#allocation8 + $0x3fc] sm:$0xf]
          %v12414 = vunpack.c.l.b16 %v11902
          %v12415 = vunpack.c.l.b16 %v11903
          %v12416 = vunpack.c.l.b16 %v11904
          %v12417 = vunpack.c.l.b16 %v11905
          %v12418 = vunpack.c.l.b16 %v11906
          %v12419 = vunpack.c.l.b16 %v11907
          %v12420 = vunpack.c.l.b16 %v11908
          %v12421 = vunpack.c.l.b16 %v11909
          %v12422 = vunpack.c.l.b16 %v11910
          %v12423 = vunpack.c.l.b16 %v11911
          %v12424 = vunpack.c.l.b16 %v11912
          %v12425 = vunpack.c.l.b16 %v11913
          %v12426 = vunpack.c.l.b16 %v11914
          %v12427 = vunpack.c.l.b16 %v11915
          %v12428 = vunpack.c.l.b16 %v11916
          %v12429 = vunpack.c.l.b16 %v11917
          %v12430 = vunpack.c.l.b16 %v11918
          %v12431 = vunpack.c.l.b16 %v11919
          %v12432 = vunpack.c.l.b16 %v11920
          %v12433 = vunpack.c.l.b16 %v11921
          %v12434 = vunpack.c.l.b16 %v11922
          %v12435 = vunpack.c.l.b16 %v11923
          %v12436 = vunpack.c.l.b16 %v11924
          %v12437 = vunpack.c.l.b16 %v11925
          %v12438 = vunpack.c.l.b16 %v11926
          %v12439 = vunpack.c.l.b16 %v11927
          %v12440 = vunpack.c.l.b16 %v11928
          %v12441 = vunpack.c.l.b16 %v11929
          %v12442 = vunpack.c.l.b16 %v11930
          %v12443 = vunpack.c.l.b16 %v11931
          %v12444 = vunpack.c.l.b16 %v11932
          %v12445 = vunpack.c.l.b16 %v11933
          %v12446 = vunpack.c.l.b16 %v11934
          %v12447 = vunpack.c.l.b16 %v11935
          %v12448 = vunpack.c.l.b16 %v11936
          %v12449 = vunpack.c.l.b16 %v11937
          %v12450 = vunpack.c.l.b16 %v11938
          %v12451 = vunpack.c.l.b16 %v11939
          %v12452 = vunpack.c.l.b16 %v11940
          %v12453 = vunpack.c.l.b16 %v11941
          %v12454 = vunpack.c.l.b16 %v11942
          %v12455 = vunpack.c.l.b16 %v11943
          %v12456 = vunpack.c.l.b16 %v11944
          %v12457 = vunpack.c.l.b16 %v11945
          %v12458 = vunpack.c.l.b16 %v11946
          %v12459 = vunpack.c.l.b16 %v11947
          %v12460 = vunpack.c.l.b16 %v11948
          %v12461 = vunpack.c.l.b16 %v11949
          %v12462 = vunpack.c.l.b16 %v11950
          %v12463 = vunpack.c.l.b16 %v11951
          %v12464 = vunpack.c.l.b16 %v11952
          %v12465 = vunpack.c.l.b16 %v11953
          %v12466 = vunpack.c.l.b16 %v11954
          %v12467 = vunpack.c.l.b16 %v11955
          %v12468 = vunpack.c.l.b16 %v11956
          %v12469 = vunpack.c.l.b16 %v11957
          %v12470 = vunpack.c.l.b16 %v11958
          %v12471 = vunpack.c.l.b16 %v11959
          %v12472 = vunpack.c.l.b16 %v11960
          %v12473 = vunpack.c.l.b16 %v11961
          %v12474 = vunpack.c.l.b16 %v11962
          %v12475 = vunpack.c.l.b16 %v11963
          %v12476 = vunpack.c.l.b16 %v11964
          %v12477 = vunpack.c.l.b16 %v11965
          %v12478 = vunpack.c.l.b16 %v11966
          %v12479 = vunpack.c.l.b16 %v11967
          %v12480 = vunpack.c.l.b16 %v11968
          %v12481 = vunpack.c.l.b16 %v11969
          %v12482 = vunpack.c.l.b16 %v11970
          %v12483 = vunpack.c.l.b16 %v11971
          %v12484 = vunpack.c.l.b16 %v11972
          %v12485 = vunpack.c.l.b16 %v11973
          %v12486 = vunpack.c.l.b16 %v11974
          %v12487 = vunpack.c.l.b16 %v11975
          %v12488 = vunpack.c.l.b16 %v11976
          %v12489 = vunpack.c.l.b16 %v11977
          %v12490 = vunpack.c.l.b16 %v11978
          %v12491 = vunpack.c.l.b16 %v11979
          %v12492 = vunpack.c.l.b16 %v11980
          %v12493 = vunpack.c.l.b16 %v11981
          %v12494 = vunpack.c.l.b16 %v11982
          %v12495 = vunpack.c.l.b16 %v11983
          %v12496 = vunpack.c.l.b16 %v11984
          %v12497 = vunpack.c.l.b16 %v11985
          %v12498 = vunpack.c.l.b16 %v11986
          %v12499 = vunpack.c.l.b16 %v11987
          %v12500 = vunpack.c.l.b16 %v11988
          %v12501 = vunpack.c.l.b16 %v11989
          %v12502 = vunpack.c.l.b16 %v11990
          %v12503 = vunpack.c.l.b16 %v11991
          %v12504 = vunpack.c.l.b16 %v11992
          %v12505 = vunpack.c.l.b16 %v11993
          %v12506 = vunpack.c.l.b16 %v11994
          %v12507 = vunpack.c.l.b16 %v11995
          %v12508 = vunpack.c.l.b16 %v11996
          %v12509 = vunpack.c.l.b16 %v11997
          %v12510 = vunpack.c.l.b16 %v11998
          %v12511 = vunpack.c.l.b16 %v11999
          %v12512 = vunpack.c.l.b16 %v12000
          %v12513 = vunpack.c.l.b16 %v12001
          %v12514 = vunpack.c.l.b16 %v12002
          %v12515 = vunpack.c.l.b16 %v12003
          %v12516 = vunpack.c.l.b16 %v12004
          %v12517 = vunpack.c.l.b16 %v12005
          %v12518 = vunpack.c.l.b16 %v12006
          %v12519 = vunpack.c.l.b16 %v12007
          %v12520 = vunpack.c.l.b16 %v12008
          %v12521 = vunpack.c.l.b16 %v12009
          %v12522 = vunpack.c.l.b16 %v12010
          %v12523 = vunpack.c.l.b16 %v12011
          %v12524 = vunpack.c.l.b16 %v12012
          %v12525 = vunpack.c.l.b16 %v12013
          %v12526 = vunpack.c.l.b16 %v12014
          %v12527 = vunpack.c.l.b16 %v12015
          %v12528 = vunpack.c.l.b16 %v12016
          %v12529 = vunpack.c.l.b16 %v12017
          %v12530 = vunpack.c.l.b16 %v12018
          %v12531 = vunpack.c.l.b16 %v12019
          %v12532 = vunpack.c.l.b16 %v12020
          %v12533 = vunpack.c.l.b16 %v12021
          %v12534 = vunpack.c.l.b16 %v12022
          %v12535 = vunpack.c.l.b16 %v12023
          %v12536 = vunpack.c.l.b16 %v12024
          %v12537 = vunpack.c.l.b16 %v12025
          %v12538 = vunpack.c.l.b16 %v12026
          %v12539 = vunpack.c.l.b16 %v12027
          %v12540 = vunpack.c.l.b16 %v12028
          %v12541 = vunpack.c.l.b16 %v12029
          %v12542 = vunpack.c.l.b16 %v12030
          %v12543 = vunpack.c.l.b16 %v12031
          %v12544 = vunpack.c.l.b16 %v12032
          %v12545 = vunpack.c.l.b16 %v12033
          %v12546 = vunpack.c.l.b16 %v12034
          %v12547 = vunpack.c.l.b16 %v12035
          %v12548 = vunpack.c.l.b16 %v12036
          %v12549 = vunpack.c.l.b16 %v12037
          %v12550 = vunpack.c.l.b16 %v12038
          %v12551 = vunpack.c.l.b16 %v12039
          %v12552 = vunpack.c.l.b16 %v12040
          %v12553 = vunpack.c.l.b16 %v12041
          %v12554 = vunpack.c.l.b16 %v12042
          %v12555 = vunpack.c.l.b16 %v12043
          %v12556 = vunpack.c.l.b16 %v12044
          %v12557 = vunpack.c.l.b16 %v12045
          %v12558 = vunpack.c.l.b16 %v12046
          %v12559 = vunpack.c.l.b16 %v12047
          %v12560 = vunpack.c.l.b16 %v12048
          %v12561 = vunpack.c.l.b16 %v12049
          %v12562 = vunpack.c.l.b16 %v12050
          %v12563 = vunpack.c.l.b16 %v12051
          %v12564 = vunpack.c.l.b16 %v12052
          %v12565 = vunpack.c.l.b16 %v12053
          %v12566 = vunpack.c.l.b16 %v12054
          %v12567 = vunpack.c.l.b16 %v12055
          %v12568 = vunpack.c.l.b16 %v12056
          %v12569 = vunpack.c.l.b16 %v12057
          %v12570 = vunpack.c.l.b16 %v12058
          %v12571 = vunpack.c.l.b16 %v12059
          %v12572 = vunpack.c.l.b16 %v12060
          %v12573 = vunpack.c.l.b16 %v12061
          %v12574 = vunpack.c.l.b16 %v12062
          %v12575 = vunpack.c.l.b16 %v12063
          %v12576 = vunpack.c.l.b16 %v12064
          %v12577 = vunpack.c.l.b16 %v12065
          %v12578 = vunpack.c.l.b16 %v12066
          %v12579 = vunpack.c.l.b16 %v12067
          %v12580 = vunpack.c.l.b16 %v12068
          %v12581 = vunpack.c.l.b16 %v12069
          %v12582 = vunpack.c.l.b16 %v12070
          %v12583 = vunpack.c.l.b16 %v12071
          %v12584 = vunpack.c.l.b16 %v12072
          %v12585 = vunpack.c.l.b16 %v12073
          %v12586 = vunpack.c.l.b16 %v12074
          %v12587 = vunpack.c.l.b16 %v12075
          %v12588 = vunpack.c.l.b16 %v12076
          %v12589 = vunpack.c.l.b16 %v12077
          %v12590 = vunpack.c.l.b16 %v12078
          %v12591 = vunpack.c.l.b16 %v12079
          %v12592 = vunpack.c.l.b16 %v12080
          %v12593 = vunpack.c.l.b16 %v12081
          %v12594 = vunpack.c.l.b16 %v12082
          %v12595 = vunpack.c.l.b16 %v12083
          %v12596 = vunpack.c.l.b16 %v12084
          %v12597 = vunpack.c.l.b16 %v12085
          %v12598 = vunpack.c.l.b16 %v12086
          %v12599 = vunpack.c.l.b16 %v12087
          %v12600 = vunpack.c.l.b16 %v12088
          %v12601 = vunpack.c.l.b16 %v12089
          %v12602 = vunpack.c.l.b16 %v12090
          %v12603 = vunpack.c.l.b16 %v12091
          %v12604 = vunpack.c.l.b16 %v12092
          %v12605 = vunpack.c.l.b16 %v12093
          %v12606 = vunpack.c.l.b16 %v12094
          %v12607 = vunpack.c.l.b16 %v12095
          %v12608 = vunpack.c.l.b16 %v12096
          %v12609 = vunpack.c.l.b16 %v12097
          %v12610 = vunpack.c.l.b16 %v12098
          %v12611 = vunpack.c.l.b16 %v12099
          %v12612 = vunpack.c.l.b16 %v12100
          %v12613 = vunpack.c.l.b16 %v12101
          %v12614 = vunpack.c.l.b16 %v12102
          %v12615 = vunpack.c.l.b16 %v12103
          %v12616 = vunpack.c.l.b16 %v12104
          %v12617 = vunpack.c.l.b16 %v12105
          %v12618 = vunpack.c.l.b16 %v12106
          %v12619 = vunpack.c.l.b16 %v12107
          %v12620 = vunpack.c.l.b16 %v12108
          %v12621 = vunpack.c.l.b16 %v12109
          %v12622 = vunpack.c.l.b16 %v12110
          %v12623 = vunpack.c.l.b16 %v12111
          %v12624 = vunpack.c.l.b16 %v12112
          %v12625 = vunpack.c.l.b16 %v12113
          %v12626 = vunpack.c.l.b16 %v12114
          %v12627 = vunpack.c.l.b16 %v12115
          %v12628 = vunpack.c.l.b16 %v12116
          %v12629 = vunpack.c.l.b16 %v12117
          %v12630 = vunpack.c.l.b16 %v12118
          %v12631 = vunpack.c.l.b16 %v12119
          %v12632 = vunpack.c.l.b16 %v12120
          %v12633 = vunpack.c.l.b16 %v12121
          %v12634 = vunpack.c.l.b16 %v12122
          %v12635 = vunpack.c.l.b16 %v12123
          %v12636 = vunpack.c.l.b16 %v12124
          %v12637 = vunpack.c.l.b16 %v12125
          %v12638 = vunpack.c.l.b16 %v12126
          %v12639 = vunpack.c.l.b16 %v12127
          %v12640 = vunpack.c.l.b16 %v12128
          %v12641 = vunpack.c.l.b16 %v12129
          %v12642 = vunpack.c.l.b16 %v12130
          %v12643 = vunpack.c.l.b16 %v12131
          %v12644 = vunpack.c.l.b16 %v12132
          %v12645 = vunpack.c.l.b16 %v12133
          %v12646 = vunpack.c.l.b16 %v12134
          %v12647 = vunpack.c.l.b16 %v12135
          %v12648 = vunpack.c.l.b16 %v12136
          %v12649 = vunpack.c.l.b16 %v12137
          %v12650 = vunpack.c.l.b16 %v12138
          %v12651 = vunpack.c.l.b16 %v12139
          %v12652 = vunpack.c.l.b16 %v12140
          %v12653 = vunpack.c.l.b16 %v12141
          %v12654 = vunpack.c.l.b16 %v12142
          %v12655 = vunpack.c.l.b16 %v12143
          %v12656 = vunpack.c.l.b16 %v12144
          %v12657 = vunpack.c.l.b16 %v12145
          %v12658 = vunpack.c.l.b16 %v12146
          %v12659 = vunpack.c.l.b16 %v12147
          %v12660 = vunpack.c.l.b16 %v12148
          %v12661 = vunpack.c.l.b16 %v12149
          %v12662 = vunpack.c.l.b16 %v12150
          %v12663 = vunpack.c.l.b16 %v12151
          %v12664 = vunpack.c.l.b16 %v12152
          %v12665 = vunpack.c.l.b16 %v12153
          %v12666 = vunpack.c.l.b16 %v12154
          %v12667 = vunpack.c.l.b16 %v12155
          %v12668 = vunpack.c.l.b16 %v12156
          %v12669 = vunpack.c.l.b16 %v12157
          %v12670 = vpack.c.b16 %v12415, %v12414
          %v12671 = vpack.c.b16 %v12417, %v12416
          %v12672 = vpack.c.b16 %v12419, %v12418
          %v12673 = vpack.c.b16 %v12421, %v12420
          %v12674 = vpack.c.b16 %v12423, %v12422
          %v12675 = vpack.c.b16 %v12425, %v12424
          %v12676 = vpack.c.b16 %v12427, %v12426
          %v12677 = vpack.c.b16 %v12429, %v12428
          %v12678 = vpack.c.b16 %v12431, %v12430
          %v12679 = vpack.c.b16 %v12433, %v12432
          %v12680 = vpack.c.b16 %v12435, %v12434
          %v12681 = vpack.c.b16 %v12437, %v12436
          %v12682 = vpack.c.b16 %v12439, %v12438
          %v12683 = vpack.c.b16 %v12441, %v12440
          %v12684 = vpack.c.b16 %v12443, %v12442
          %v12685 = vpack.c.b16 %v12445, %v12444
          %v12686 = vpack.c.b16 %v12447, %v12446
          %v12687 = vpack.c.b16 %v12449, %v12448
          %v12688 = vpack.c.b16 %v12451, %v12450
          %v12689 = vpack.c.b16 %v12453, %v12452
          %v12690 = vpack.c.b16 %v12455, %v12454
          %v12691 = vpack.c.b16 %v12457, %v12456
          %v12692 = vpack.c.b16 %v12459, %v12458
          %v12693 = vpack.c.b16 %v12461, %v12460
          %v12694 = vpack.c.b16 %v12463, %v12462
          %v12695 = vpack.c.b16 %v12465, %v12464
          %v12696 = vpack.c.b16 %v12467, %v12466
          %v12697 = vpack.c.b16 %v12469, %v12468
          %v12698 = vpack.c.b16 %v12471, %v12470
          %v12699 = vpack.c.b16 %v12473, %v12472
          %v12700 = vpack.c.b16 %v12475, %v12474
          %v12701 = vpack.c.b16 %v12477, %v12476
          %v12702 = vpack.c.b16 %v12479, %v12478
          %v12703 = vpack.c.b16 %v12481, %v12480
          %v12704 = vpack.c.b16 %v12483, %v12482
          %v12705 = vpack.c.b16 %v12485, %v12484
          %v12706 = vpack.c.b16 %v12487, %v12486
          %v12707 = vpack.c.b16 %v12489, %v12488
          %v12708 = vpack.c.b16 %v12491, %v12490
          %v12709 = vpack.c.b16 %v12493, %v12492
          %v12710 = vpack.c.b16 %v12495, %v12494
          %v12711 = vpack.c.b16 %v12497, %v12496
          %v12712 = vpack.c.b16 %v12499, %v12498
          %v12713 = vpack.c.b16 %v12501, %v12500
          %v12714 = vpack.c.b16 %v12503, %v12502
          %v12715 = vpack.c.b16 %v12505, %v12504
          %v12716 = vpack.c.b16 %v12507, %v12506
          %v12717 = vpack.c.b16 %v12509, %v12508
          %v12718 = vpack.c.b16 %v12511, %v12510
          %v12719 = vpack.c.b16 %v12513, %v12512
          %v12720 = vpack.c.b16 %v12515, %v12514
          %v12721 = vpack.c.b16 %v12517, %v12516
          %v12722 = vpack.c.b16 %v12519, %v12518
          %v12723 = vpack.c.b16 %v12521, %v12520
          %v12724 = vpack.c.b16 %v12523, %v12522
          %v12725 = vpack.c.b16 %v12525, %v12524
          %v12726 = vpack.c.b16 %v12527, %v12526
          %v12727 = vpack.c.b16 %v12529, %v12528
          %v12728 = vpack.c.b16 %v12531, %v12530
          %v12729 = vpack.c.b16 %v12533, %v12532
          %v12730 = vpack.c.b16 %v12535, %v12534
          %v12731 = vpack.c.b16 %v12537, %v12536
          %v12732 = vpack.c.b16 %v12539, %v12538
          %v12733 = vpack.c.b16 %v12541, %v12540
          %v12734 = vpack.c.b16 %v12543, %v12542
          %v12735 = vpack.c.b16 %v12545, %v12544
          %v12736 = vpack.c.b16 %v12547, %v12546
          %v12737 = vpack.c.b16 %v12549, %v12548
          %v12738 = vpack.c.b16 %v12551, %v12550
          %v12739 = vpack.c.b16 %v12553, %v12552
          %v12740 = vpack.c.b16 %v12555, %v12554
          %v12741 = vpack.c.b16 %v12557, %v12556
          %v12742 = vpack.c.b16 %v12559, %v12558
          %v12743 = vpack.c.b16 %v12561, %v12560
          %v12744 = vpack.c.b16 %v12563, %v12562
          %v12745 = vpack.c.b16 %v12565, %v12564
          %v12746 = vpack.c.b16 %v12567, %v12566
          %v12747 = vpack.c.b16 %v12569, %v12568
          %v12748 = vpack.c.b16 %v12571, %v12570
          %v12749 = vpack.c.b16 %v12573, %v12572
          %v12750 = vpack.c.b16 %v12575, %v12574
          %v12751 = vpack.c.b16 %v12577, %v12576
          %v12752 = vpack.c.b16 %v12579, %v12578
          %v12753 = vpack.c.b16 %v12581, %v12580
          %v12754 = vpack.c.b16 %v12583, %v12582
          %v12755 = vpack.c.b16 %v12585, %v12584
          %v12756 = vpack.c.b16 %v12587, %v12586
          %v12757 = vpack.c.b16 %v12589, %v12588
          %v12758 = vpack.c.b16 %v12591, %v12590
          %v12759 = vpack.c.b16 %v12593, %v12592
          %v12760 = vpack.c.b16 %v12595, %v12594
          %v12761 = vpack.c.b16 %v12597, %v12596
          %v12762 = vpack.c.b16 %v12599, %v12598
          %v12763 = vpack.c.b16 %v12601, %v12600
          %v12764 = vpack.c.b16 %v12603, %v12602
          %v12765 = vpack.c.b16 %v12605, %v12604
          %v12766 = vpack.c.b16 %v12607, %v12606
          %v12767 = vpack.c.b16 %v12609, %v12608
          %v12768 = vpack.c.b16 %v12611, %v12610
          %v12769 = vpack.c.b16 %v12613, %v12612
          %v12770 = vpack.c.b16 %v12615, %v12614
          %v12771 = vpack.c.b16 %v12617, %v12616
          %v12772 = vpack.c.b16 %v12619, %v12618
          %v12773 = vpack.c.b16 %v12621, %v12620
          %v12774 = vpack.c.b16 %v12623, %v12622
          %v12775 = vpack.c.b16 %v12625, %v12624
          %v12776 = vpack.c.b16 %v12627, %v12626
          %v12777 = vpack.c.b16 %v12629, %v12628
          %v12778 = vpack.c.b16 %v12631, %v12630
          %v12779 = vpack.c.b16 %v12633, %v12632
          %v12780 = vpack.c.b16 %v12635, %v12634
          %v12781 = vpack.c.b16 %v12637, %v12636
          %v12782 = vpack.c.b16 %v12639, %v12638
          %v12783 = vpack.c.b16 %v12641, %v12640
          %v12784 = vpack.c.b16 %v12643, %v12642
          %v12785 = vpack.c.b16 %v12645, %v12644
          %v12786 = vpack.c.b16 %v12647, %v12646
          %v12787 = vpack.c.b16 %v12649, %v12648
          %v12788 = vpack.c.b16 %v12651, %v12650
          %v12789 = vpack.c.b16 %v12653, %v12652
          %v12790 = vpack.c.b16 %v12655, %v12654
          %v12791 = vpack.c.b16 %v12657, %v12656
          %v12792 = vpack.c.b16 %v12659, %v12658
          %v12793 = vpack.c.b16 %v12661, %v12660
          %v12794 = vpack.c.b16 %v12663, %v12662
          %v12795 = vpack.c.b16 %v12665, %v12664
          %v12796 = vpack.c.b16 %v12667, %v12666
          %v12797 = vpack.c.b16 %v12669, %v12668
          %12926 = vmatprep.subr.bf16.mxu0 0
          %12927 = vmatpush1.bf16.msra.mxu0 %v12670
          %12928 = vmatprep.subr.bf16.mxu0 0
          %12929 = vmatpush1.bf16.msra.mxu0 %v12671
          %12930 = vmatprep.subr.bf16.mxu0 0
          %12931 = vmatpush1.bf16.msra.mxu0 %v12672
          %12932 = vmatprep.subr.bf16.mxu0 0
          %12933 = vmatpush1.bf16.msra.mxu0 %v12673
          %12934 = vmatprep.subr.bf16.mxu0 0
          %12935 = vmatpush1.bf16.msra.mxu0 %v12674
          %12936 = vmatprep.subr.bf16.mxu0 0
          %12937 = vmatpush1.bf16.msra.mxu0 %v12675
          %12938 = vmatprep.subr.bf16.mxu0 0
          %12939 = vmatpush1.bf16.msra.mxu0 %v12676
          %12940 = vmatprep.subr.bf16.mxu0 0
          %12941 = vmatpush1.bf16.msra.mxu0 %v12677
          %12942 = vmatprep.subr.bf16.mxu0 0
          %12943 = vmatpush1.bf16.msra.mxu0 %v12678
          %12944 = vmatprep.subr.bf16.mxu0 0
          %12945 = vmatpush1.bf16.msra.mxu0 %v12679
          %12946 = vmatprep.subr.bf16.mxu0 0
          %12947 = vmatpush1.bf16.msra.mxu0 %v12680
          %12948 = vmatprep.subr.bf16.mxu0 0
          %12949 = vmatpush1.bf16.msra.mxu0 %v12681
          %12950 = vmatprep.subr.bf16.mxu0 0
          %12951 = vmatpush1.bf16.msra.mxu0 %v12682
          %12952 = vmatprep.subr.bf16.mxu0 0
          %12953 = vmatpush1.bf16.msra.mxu0 %v12683
          %12954 = vmatprep.subr.bf16.mxu0 0
          %12955 = vmatpush1.bf16.msra.mxu0 %v12684
          %12956 = vmatprep.subr.bf16.mxu0 0
          %12957 = vmatpush1.bf16.msra.mxu0 %v12685
          %12958 = vmatprep.mubr.bf16.mxu0 %v11887
          %12959 = vmatmul.mubr.bf16.gmra.mrb[0].mxu0 %v11886
          %v12960 = vpop.f32.mrb[0].mxu0
          %v12961 = vadd.f32 0.0, %v12960
          %v12962 = vpop.f32.mrb[0].mxu0
          %v12963 = vpop.f32.mrb[0].mxu0
          %v12964 = vpop.f32.mrb[0].mxu0
          %12965 = vdwg.mxu0
          %12966 = vmatprep.subr.bf16.mxu0 0
          %12967 = vmatpush1.bf16.msra.mxu0 %v12686
          %12968 = vmatprep.subr.bf16.mxu0 0
          %12969 = vmatpush1.bf16.msra.mxu0 %v12687
          %12970 = vmatprep.subr.bf16.mxu0 0
          %12971 = vmatpush1.bf16.msra.mxu0 %v12688
          %12972 = vmatprep.subr.bf16.mxu0 0
          %12973 = vmatpush1.bf16.msra.mxu0 %v12689
          %12974 = vmatprep.subr.bf16.mxu0 0
          %12975 = vmatpush1.bf16.msra.mxu0 %v12690
          %12976 = vmatprep.subr.bf16.mxu0 0
          %12977 = vmatpush1.bf16.msra.mxu0 %v12691
          %12978 = vmatprep.subr.bf16.mxu0 0
          %12979 = vmatpush1.bf16.msra.mxu0 %v12692
          %12980 = vmatprep.subr.bf16.mxu0 0
          %12981 = vmatpush1.bf16.msra.mxu0 %v12693
          %12982 = vmatprep.subr.bf16.mxu0 0
          %12983 = vmatpush1.bf16.msra.mxu0 %v12694
          %12984 = vmatprep.subr.bf16.mxu0 0
          %12985 = vmatpush1.bf16.msra.mxu0 %v12695
          %12986 = vmatprep.subr.bf16.mxu0 0
          %12987 = vmatpush1.bf16.msra.mxu0 %v12696
          %12988 = vmatprep.subr.bf16.mxu0 0
          %12989 = vmatpush1.bf16.msra.mxu0 %v12697
          %12990 = vmatprep.subr.bf16.mxu0 0
          %12991 = vmatpush1.bf16.msra.mxu0 %v12698
          %12992 = vmatprep.subr.bf16.mxu0 0
          %12993 = vmatpush1.bf16.msra.mxu0 %v12699
          %12994 = vmatprep.subr.bf16.mxu0 0
          %12995 = vmatpush1.bf16.msra.mxu0 %v12700
          %12996 = vmatprep.subr.bf16.mxu0 0
          %12997 = vmatpush1.bf16.msra.mxu0 %v12701
          %12998 = vmatprep.mubr.bf16.mxu0 %v11889
          %12999 = vmatmul.mubr.bf16.gmra.mrb[0].mxu0 %v11888
          %v13000 = vpop.f32.mrb[0].mxu0
          %v13001 = vadd.f32 %v12961, %v13000
          %v13002 = vpop.f32.mrb[0].mxu0
          %v13003 = vpop.f32.mrb[0].mxu0
          %v13004 = vpop.f32.mrb[0].mxu0
          %13005 = vdwg.mxu0
          %13006 = vmatprep.subr.bf16.mxu0 0
          %13007 = vmatpush1.bf16.msra.mxu0 %v12702
          %13008 = vmatprep.subr.bf16.mxu0 0
          %13009 = vmatpush1.bf16.msra.mxu0 %v12703
          %13010 = vmatprep.subr.bf16.mxu0 0
          %13011 = vmatpush1.bf16.msra.mxu0 %v12704
          %13012 = vmatprep.subr.bf16.mxu0 0
          %13013 = vmatpush1.bf16.msra.mxu0 %v12705
          %13014 = vmatprep.subr.bf16.mxu0 0
          %13015 = vmatpush1.bf16.msra.mxu0 %v12706
          %13016 = vmatprep.subr.bf16.mxu0 0
          %13017 = vmatpush1.bf16.msra.mxu0 %v12707
          %13018 = vmatprep.subr.bf16.mxu0 0
          %13019 = vmatpush1.bf16.msra.mxu0 %v12708
          %13020 = vmatprep.subr.bf16.mxu0 0
          %13021 = vmatpush1.bf16.msra.mxu0 %v12709
          %13022 = vmatprep.subr.bf16.mxu0 0
          %13023 = vmatpush1.bf16.msra.mxu0 %v12710
          %13024 = vmatprep.subr.bf16.mxu0 0
          %13025 = vmatpush1.bf16.msra.mxu0 %v12711
          %13026 = vmatprep.subr.bf16.mxu0 0
          %13027 = vmatpush1.bf16.msra.mxu0 %v12712
          %13028 = vmatprep.subr.bf16.mxu0 0
          %13029 = vmatpush1.bf16.msra.mxu0 %v12713
          %13030 = vmatprep.subr.bf16.mxu0 0
          %13031 = vmatpush1.bf16.msra.mxu0 %v12714
          %13032 = vmatprep.subr.bf16.mxu0 0
          %13033 = vmatpush1.bf16.msra.mxu0 %v12715
          %13034 = vmatprep.subr.bf16.mxu0 0
          %13035 = vmatpush1.bf16.msra.mxu0 %v12716
          %13036 = vmatprep.subr.bf16.mxu0 0
          %13037 = vmatpush1.bf16.msra.mxu0 %v12717
          %13038 = vmatprep.mubr.bf16.mxu0 %v11891
          %13039 = vmatmul.mubr.bf16.gmra.mrb[0].mxu0 %v11890
          %v13040 = vpop.f32.mrb[0].mxu0
          %v13041 = vadd.f32 %v13001, %v13040
          %v13042 = vpop.f32.mrb[0].mxu0
          %v13043 = vpop.f32.mrb[0].mxu0
          %v13044 = vpop.f32.mrb[0].mxu0
          %13045 = vdwg.mxu0
          %13046 = vmatprep.subr.bf16.mxu0 0
          %13047 = vmatpush1.bf16.msra.mxu0 %v12718
          %13048 = vmatprep.subr.bf16.mxu0 0
          %13049 = vmatpush1.bf16.msra.mxu0 %v12719
          %13050 = vmatprep.subr.bf16.mxu0 0
          %13051 = vmatpush1.bf16.msra.mxu0 %v12720
          %13052 = vmatprep.subr.bf16.mxu0 0
          %13053 = vmatpush1.bf16.msra.mxu0 %v12721
          %13054 = vmatprep.subr.bf16.mxu0 0
          %13055 = vmatpush1.bf16.msra.mxu0 %v12722
          %13056 = vmatprep.subr.bf16.mxu0 0
          %13057 = vmatpush1.bf16.msra.mxu0 %v12723
          %13058 = vmatprep.subr.bf16.mxu0 0
          %13059 = vmatpush1.bf16.msra.mxu0 %v12724
          %13060 = vmatprep.subr.bf16.mxu0 0
          %13061 = vmatpush1.bf16.msra.mxu0 %v12725
          %13062 = vmatprep.subr.bf16.mxu0 0
          %13063 = vmatpush1.bf16.msra.mxu0 %v12726
          %13064 = vmatprep.subr.bf16.mxu0 0
          %13065 = vmatpush1.bf16.msra.mxu0 %v12727
          %13066 = vmatprep.subr.bf16.mxu0 0
          %13067 = vmatpush1.bf16.msra.mxu0 %v12728
          %13068 = vmatprep.subr.bf16.mxu0 0
          %13069 = vmatpush1.bf16.msra.mxu0 %v12729
          %13070 = vmatprep.subr.bf16.mxu0 0
          %13071 = vmatpush1.bf16.msra.mxu0 %v12730
          %13072 = vmatprep.subr.bf16.mxu0 0
          %13073 = vmatpush1.bf16.msra.mxu0 %v12731
          %13074 = vmatprep.subr.bf16.mxu0 0
          %13075 = vmatpush1.bf16.msra.mxu0 %v12732
          %13076 = vmatprep.subr.bf16.mxu0 0
          %13077 = vmatpush1.bf16.msra.mxu0 %v12733
          %13078 = vmatprep.mubr.bf16.mxu0 %v11893
          %13079 = vmatmul.mubr.bf16.gmra.mrb[0].mxu0 %v11892
          %v13080 = vpop.f32.mrb[0].mxu0
          %v13081 = vadd.f32 %v13041, %v13080
          %v13082 = vpop.f32.mrb[0].mxu0
          %v13083 = vpop.f32.mrb[0].mxu0
          %v13084 = vpop.f32.mrb[0].mxu0
          %13085 = vdwg.mxu0
          %13086 = vmatprep.subr.bf16.mxu0 0
          %13087 = vmatpush1.bf16.msra.mxu0 %v12734
          %13088 = vmatprep.subr.bf16.mxu0 0
          %13089 = vmatpush1.bf16.msra.mxu0 %v12735
          %13090 = vmatprep.subr.bf16.mxu0 0
          %13091 = vmatpush1.bf16.msra.mxu0 %v12736
          %13092 = vmatprep.subr.bf16.mxu0 0
          %13093 = vmatpush1.bf16.msra.mxu0 %v12737
          %13094 = vmatprep.subr.bf16.mxu0 0
          %13095 = vmatpush1.bf16.msra.mxu0 %v12738
          %13096 = vmatprep.subr.bf16.mxu0 0
          %13097 = vmatpush1.bf16.msra.mxu0 %v12739
          %13098 = vmatprep.subr.bf16.mxu0 0
          %13099 = vmatpush1.bf16.msra.mxu0 %v12740
          %13100 = vmatprep.subr.bf16.mxu0 0
          %13101 = vmatpush1.bf16.msra.mxu0 %v12741
          %13102 = vmatprep.subr.bf16.mxu0 0
          %13103 = vmatpush1.bf16.msra.mxu0 %v12742
          %13104 = vmatprep.subr.bf16.mxu0 0
          %13105 = vmatpush1.bf16.msra.mxu0 %v12743
          %13106 = vmatprep.subr.bf16.mxu0 0
          %13107 = vmatpush1.bf16.msra.mxu0 %v12744
          %13108 = vmatprep.subr.bf16.mxu0 0
          %13109 = vmatpush1.bf16.msra.mxu0 %v12745
          %13110 = vmatprep.subr.bf16.mxu0 0
          %13111 = vmatpush1.bf16.msra.mxu0 %v12746
          %13112 = vmatprep.subr.bf16.mxu0 0
          %13113 = vmatpush1.bf16.msra.mxu0 %v12747
          %13114 = vmatprep.subr.bf16.mxu0 0
          %13115 = vmatpush1.bf16.msra.mxu0 %v12748
          %13116 = vmatprep.subr.bf16.mxu0 0
          %13117 = vmatpush1.bf16.msra.mxu0 %v12749
          %13118 = vmatprep.mubr.bf16.mxu0 %v11895
          %13119 = vmatmul.mubr.bf16.gmra.mrb[0].mxu0 %v11894
          %v13120 = vpop.f32.mrb[0].mxu0
          %v13121 = vadd.f32 %v13081, %v13120
          %v13122 = vpop.f32.mrb[0].mxu0
          %v13123 = vpop.f32.mrb[0].mxu0
          %v13124 = vpop.f32.mrb[0].mxu0
          %13125 = vdwg.mxu0
          %13126 = vmatprep.subr.bf16.mxu0 0
          %13127 = vmatpush1.bf16.msra.mxu0 %v12750
          %13128 = vmatprep.subr.bf16.mxu0 0
          %13129 = vmatpush1.bf16.msra.mxu0 %v12751
          %13130 = vmatprep.subr.bf16.mxu0 0
          %13131 = vmatpush1.bf16.msra.mxu0 %v12752
          %13132 = vmatprep.subr.bf16.mxu0 0
          %13133 = vmatpush1.bf16.msra.mxu0 %v12753
          %13134 = vmatprep.subr.bf16.mxu0 0
          %13135 = vmatpush1.bf16.msra.mxu0 %v12754
          %13136 = vmatprep.subr.bf16.mxu0 0
          %13137 = vmatpush1.bf16.msra.mxu0 %v12755
          %13138 = vmatprep.subr.bf16.mxu0 0
          %13139 = vmatpush1.bf16.msra.mxu0 %v12756
          %13140 = vmatprep.subr.bf16.mxu0 0
          %13141 = vmatpush1.bf16.msra.mxu0 %v12757
          %13142 = vmatprep.subr.bf16.mxu0 0
          %13143 = vmatpush1.bf16.msra.mxu0 %v12758
          %13144 = vmatprep.subr.bf16.mxu0 0
          %13145 = vmatpush1.bf16.msra.mxu0 %v12759
          %13146 = vmatprep.subr.bf16.mxu0 0
          %13147 = vmatpush1.bf16.msra.mxu0 %v12760
          %13148 = vmatprep.subr.bf16.mxu0 0
          %13149 = vmatpush1.bf16.msra.mxu0 %v12761
          %13150 = vmatprep.subr.bf16.mxu0 0
          %13151 = vmatpush1.bf16.msra.mxu0 %v12762
          %13152 = vmatprep.subr.bf16.mxu0 0
          %13153 = vmatpush1.bf16.msra.mxu0 %v12763
          %13154 = vmatprep.subr.bf16.mxu0 0
          %13155 = vmatpush1.bf16.msra.mxu0 %v12764
          %13156 = vmatprep.subr.bf16.mxu0 0
          %13157 = vmatpush1.bf16.msra.mxu0 %v12765
          %13158 = vmatprep.mubr.bf16.mxu0 %v11897
          %13159 = vmatmul.mubr.bf16.gmra.mrb[0].mxu0 %v11896
          %v13160 = vpop.f32.mrb[0].mxu0
          %v13161 = vadd.f32 %v13121, %v13160
          %v13162 = vpop.f32.mrb[0].mxu0
          %v13163 = vpop.f32.mrb[0].mxu0
          %v13164 = vpop.f32.mrb[0].mxu0
          %13165 = vdwg.mxu0
          %13166 = vmatprep.subr.bf16.mxu0 0
          %13167 = vmatpush1.bf16.msra.mxu0 %v12766
          %13168 = vmatprep.subr.bf16.mxu0 0
          %13169 = vmatpush1.bf16.msra.mxu0 %v12767
          %13170 = vmatprep.subr.bf16.mxu0 0
          %13171 = vmatpush1.bf16.msra.mxu0 %v12768
          %13172 = vmatprep.subr.bf16.mxu0 0
          %13173 = vmatpush1.bf16.msra.mxu0 %v12769
          %13174 = vmatprep.subr.bf16.mxu0 0
          %13175 = vmatpush1.bf16.msra.mxu0 %v12770
          %13176 = vmatprep.subr.bf16.mxu0 0
          %13177 = vmatpush1.bf16.msra.mxu0 %v12771
          %13178 = vmatprep.subr.bf16.mxu0 0
          %13179 = vmatpush1.bf16.msra.mxu0 %v12772
          %13180 = vmatprep.subr.bf16.mxu0 0
          %13181 = vmatpush1.bf16.msra.mxu0 %v12773
          %13182 = vmatprep.subr.bf16.mxu0 0
          %13183 = vmatpush1.bf16.msra.mxu0 %v12774
          %13184 = vmatprep.subr.bf16.mxu0 0
          %13185 = vmatpush1.bf16.msra.mxu0 %v12775
          %13186 = vmatprep.subr.bf16.mxu0 0
          %13187 = vmatpush1.bf16.msra.mxu0 %v12776
          %13188 = vmatprep.subr.bf16.mxu0 0
          %13189 = vmatpush1.bf16.msra.mxu0 %v12777
          %13190 = vmatprep.subr.bf16.mxu0 0
          %13191 = vmatpush1.bf16.msra.mxu0 %v12778
          %13192 = vmatprep.subr.bf16.mxu0 0
          %13193 = vmatpush1.bf16.msra.mxu0 %v12779
          %13194 = vmatprep.subr.bf16.mxu0 0
          %13195 = vmatpush1.bf16.msra.mxu0 %v12780
          %13196 = vmatprep.subr.bf16.mxu0 0
          %13197 = vmatpush1.bf16.msra.mxu0 %v12781
          %13198 = vmatprep.mubr.bf16.mxu0 %v11899
          %13199 = vmatmul.mubr.bf16.gmra.mrb[0].mxu0 %v11898
          %v13200 = vpop.f32.mrb[0].mxu0
          %v13201 = vadd.f32 %v13161, %v13200
          %v13202 = vpop.f32.mrb[0].mxu0
          %v13203 = vpop.f32.mrb[0].mxu0
          %v13204 = vpop.f32.mrb[0].mxu0
          %13205 = vdwg.mxu0
          %13206 = vmatprep.subr.bf16.mxu0 0
          %13207 = vmatpush1.bf16.msra.mxu0 %v12782
          %13208 = vmatprep.subr.bf16.mxu0 0
          %13209 = vmatpush1.bf16.msra.mxu0 %v12783
          %13210 = vmatprep.subr.bf16.mxu0 0
          %13211 = vmatpush1.bf16.msra.mxu0 %v12784
          %13212 = vmatprep.subr.bf16.mxu0 0
          %13213 = vmatpush1.bf16.msra.mxu0 %v12785
          %13214 = vmatprep.subr.bf16.mxu0 0
          %13215 = vmatpush1.bf16.msra.mxu0 %v12786
          %13216 = vmatprep.subr.bf16.mxu0 0
          %13217 = vmatpush1.bf16.msra.mxu0 %v12787
          %13218 = vmatprep.subr.bf16.mxu0 0
          %13219 = vmatpush1.bf16.msra.mxu0 %v12788
          %13220 = vmatprep.subr.bf16.mxu0 0
          %13221 = vmatpush1.bf16.msra.mxu0 %v12789
          %13222 = vmatprep.subr.bf16.mxu0 0
          %13223 = vmatpush1.bf16.msra.mxu0 %v12790
          %13224 = vmatprep.subr.bf16.mxu0 0
          %13225 = vmatpush1.bf16.msra.mxu0 %v12791
          %13226 = vmatprep.subr.bf16.mxu0 0
          %13227 = vmatpush1.bf16.msra.mxu0 %v12792
          %13228 = vmatprep.subr.bf16.mxu0 0
          %13229 = vmatpush1.bf16.msra.mxu0 %v12793
          %13230 = vmatprep.subr.bf16.mxu0 0
          %13231 = vmatpush1.bf16.msra.mxu0 %v12794
          %13232 = vmatprep.subr.bf16.mxu0 0
          %13233 = vmatpush1.bf16.msra.mxu0 %v12795
          %13234 = vmatprep.subr.bf16.mxu0 0
          %13235 = vmatpush1.bf16.msra.mxu0 %v12796
          %13236 = vmatprep.subr.bf16.mxu0 0
          %13237 = vmatpush1.bf16.msra.mxu0 %v12797
          %13238 = vmatprep.mubr.bf16.mxu0 %v11901
          %13239 = vmatmul.mubr.bf16.gmra.mrb[0].mxu0 %v11900
          %v13240 = vpop.f32.mrb[0].mxu0
          %v13241 = vadd.f32 %v13201, %v13240
          %v13242 = vpop.f32.mrb[0].mxu0
          %v13243 = vpop.f32.mrb[0].mxu0
          %v13244 = vpop.f32.mrb[0].mxu0
          %13245 = vdwg.mxu0
          %13246 = vst [vmem:[%s348] sm:$0xff] %v13241
        $region64: #{mlp_forward.1} parent=39 // pred_fallthru
          _
        %p13247 = scmp.lt.s32.totalorder %s25, 0
        %s13248 = scalar_select %p13247, %s25, 0
        %s13249 = smul.addr %s13248, 8
        %s13250 = scalar_lea.vmem %s5, %s13249
        // Predicated region
        $region65: #{mlp_forward.1} parent=39 // pred_check
          %p13251 = pneg %p183
        $region66: #{mlp_forward.1} parent=39 // pred_check_branch
          %13253 = sbr.rel (%p13251) target = $region68
        $region67: #{mlp_forward.1} parent=39 // pred_region
          _
        $region68: #{mlp_forward.1} parent=39 // pred_fallthru
          _
        // Predicated region
        $region69: #{mlp_forward.1} parent=39 // pred_check
          %p13254 = pneg %p183
        $region70: #{mlp_forward.1} parent=39 // pred_check_branch
          %13256 = sbr.rel (%p13254) target = $region72
        $region71: #{mlp_forward.1} parent=39 // pred_region
          %p13257 = scmp.lt.s32.totalorder %s25, 0
          %s13258 = scalar_select %p13257, %s25, 0
          %s13259 = smul.addr %s13258, 8
          %s13260 = scalar_lea.vmem %s5, %s13259
        $region72: #{mlp_forward.1} parent=39 // pred_fallthru
          _
      $region40: #{mlp_forward.1} parent=5 // pred_fallthru
        _
      %p13261 = scmp.le.s32.totalorder 2, %s16
      // Predicated region
      $region73: #{mlp_forward.1} parent=5 // pred_check
        %p13262 = pneg %p13261
      $region74: #{mlp_forward.1} parent=5 // pred_check_branch
        %13264 = sbr.rel (%p13262) target = $region76
      $region75: #{mlp_forward.1} parent=5 // pred_region
        %s13265 = ssub.s32 %s16, 2
      $region76: #{mlp_forward.1} parent=5 // pred_fallthru
        _
    $region6: #{mlp_forward.1} parent=1 // loop_footer
      %s20 = sadd.s32 1, %s16
    $region7: #{mlp_forward.1} parent=1 // loop_footer_branch
      %15 = sbr.rel target = $region3
    $region8: #{mlp_forward.1} parent=1 // loop_exit
      _
    %13266 = vsyncpa [#allocation4], 1
    %s13267 = scalar_lea.sflag [#allocation4], 1
    %13268 = vsyncpa %s13267, 1
    %13269 = vsyncpa [#allocation6], 1
    %13270 = vsyncpa [#allocation9], 1

</llo_original>
